<compile_context>
chip_gen: v6e
topology: v6e:2x2x1
jax: 0.10.0
libtpu: 0.0.40
codegen_flags: <defaults>
</compile_context>

<pallas_src>
import functools

import jax
import jax.numpy as jnp
from jax.experimental import pallas as pl
from jax.experimental.pallas import tpu as pltpu

LANE = 128  # lane width: channel axis is zero-padded to a multiple of this.


# ---------------------------------------------------------------------------
# helpers
# ---------------------------------------------------------------------------

def _round_up(x, m):
    return (x + m - 1) // m * m


def _pad_last(a, target):
    pad = target - a.shape[-1]
    if pad == 0:
        return a
    cfg = [(0, 0)] * (a.ndim - 1) + [(0, pad)]
    return jnp.pad(a, cfg)


@functools.lru_cache(maxsize=None)
def _vmem_limit_bytes():
    """Scoped-VMEM limit: 3/4 of physical (capped at 100 MiB), conservative fallback."""
    cap = 64 * 1024 * 1024
    try:
        cap = int(pltpu.get_tpu_info().vmem_capacity_bytes)
    except Exception:
        pass
    return int(min(cap * 3 // 4, 100 * 1024 * 1024))


def _pick_row_tile(m, row_bytes):
    """Row tile for the elementwise kernels: large (lane-dense, streams well) but sized so
    double-buffered operand tiles stay within a modest slice of scoped VMEM."""
    budget = 8 * 1024 * 1024
    tm = budget // max(2 * row_bytes, 1)
    tm = max(64, min(1024, tm))
    tm = min(tm, _round_up(m, 8))
    tm = _round_up(tm, 8)
    mp = _round_up(m, tm)
    return tm, mp


# ---------------------------------------------------------------------------
# Pallas kernels
# ---------------------------------------------------------------------------

def _conv3x3_bnstats_kernel(*refs, apply_pre):
    """3x3 conv with in-kernel zero padding + fused per-image BN partial statistics.

    If apply_pre: the input is y_prev and relu(y_prev*scale+shift) (previous layer's
    BN+ReLU) is applied while filling the halo scratch (border stays exactly zero).

    refs (apply_pre=True):  x, w, scale, shift, y, sum, sq, xp_scratch
    refs (apply_pre=False): x, w,                y, sum, sq, xp_scratch
      x  : [H, W, Cin_p]        (mxu dtype; or f32 y_prev when fused)
      w  : [3, 3*Cin_p, Cout_p] K ordered (dx, cin)
      y  : [H, W, Cout_p]       stored in mxu dtype
      sum, sq : [1, Cout_p]     f32 per-channel sum / sum-of-squares over H*W
      xp_scratch : [H+2, W+2, Cin_p] VMEM halo buffer (mxu dtype)
    """
    if apply_pre:
        x_ref, w_ref, scale_ref, shift_ref, y_ref, sum_ref, sq_ref, xp_sc = refs
    else:
        x_ref, w_ref, y_ref, sum_ref, sq_ref, xp_sc = refs
        scale_ref = shift_ref = None

    H, W, cin = x_ref.shape
    cout = y_ref.shape[-1]
    k = 3 * cin

    # --- fill zero-padded halo scratch (leading-dim-only ref stores) ---
    x = x_ref[...]
    if apply_pre:
        x = jnp.maximum(x.astype(jnp.float32) * scale_ref[...] + shift_ref[...], 0.0)
    x = x.astype(xp_sc.dtype)
    zc = jnp.zeros((H, 1, cin), xp_sc.dtype)
    xp_sc[1:H + 1, :, :] = jnp.concatenate([zc, x, zc], axis=1)
    zr = jnp.zeros((1, W + 2, cin), xp_sc.dtype)
    xp_sc[0:1, :, :] = zr
    xp_sc[H + 1:H + 2, :, :] = zr

    # --- 3 dx-shifted column slabs built once (3 relayout copies instead of 9) ---
    slab = jnp.concatenate([xp_sc[:, dx:dx + W, :] for dx in range(3)], axis=-1)  # [H+2, W, 3*Cin_p]

    # --- 3 deep MXU matmuls (K = 3*Cin_p), f32 accumulation ---
    acc = jnp.dot(slab[0:H].reshape(H * W, k), w_ref[0], preferred_element_type=jnp.float32)
    acc = acc + jnp.dot(slab[1:H + 1].reshape(H * W, k), w_ref[1],
                        preferred_element_type=jnp.float32)
    acc = acc + jnp.dot(slab[2:H + 2].reshape(H * W, k), w_ref[2],
                        preferred_element_type=jnp.float32)

    y_ref[...] = acc.reshape(H, W, cout).astype(y_ref.dtype)
    sum_ref[...] = jnp.sum(acc, axis=0, keepdims=True)
    sq_ref[...] = jnp.sum(acc * acc, axis=0, keepdims=True)


def _bn_resproj_relu_kernel(y_ref, scale_ref, shift_ref, x_ref, wr_ref, br_ref, o_ref):
    # o = relu(y*scale + shift + x @ wr + br)   -- residual 1x1 conv fused in-kernel
    res = jnp.dot(x_ref[...], wr_ref[...], preferred_element_type=jnp.float32) + br_ref[...]
    y = y_ref[...].astype(jnp.float32)
    o_ref[...] = jnp.maximum(y * scale_ref[...] + shift_ref[...] + res, 0.0).astype(o_ref.dtype)


def _bn_resid_relu_kernel(y_ref, scale_ref, shift_ref, x_ref, o_ref):
    # o = relu(y*scale + shift + x)   -- identity residual fused in-kernel
    y = y_ref[...].astype(jnp.float32)
    r = x_ref[...].astype(jnp.float32)
    o_ref[...] = jnp.maximum(y * scale_ref[...] + shift_ref[...] + r, 0.0).astype(o_ref.dtype)


# ---------------------------------------------------------------------------
# Pallas wrappers
# ---------------------------------------------------------------------------

def conv3x3_bnstats(x, w, pre_scale=None, pre_shift=None):
    """x: [N,H,W,Cin_p] (MXU dtype, unpadded spatially); w: [3, 3*Cin_p, Cout_p].

    Spatial zero-padding happens inside the kernel.  If pre_scale/pre_shift are given,
    relu(x*scale+shift) (previous BN+ReLU) is fused into the input path.  Returns
    y [N,H,W,Cout_p] (x.dtype) plus per-image channel sum / sum-of-squares [N,1,Cout_p]."""
    N, H, W, cin_p = x.shape
    cout_p = w.shape[-1]
    apply_pre = pre_scale is not None
    kernel = functools.partial(_conv3x3_bnstats_kernel, apply_pre=apply_pre)

    in_specs = [
        pl.BlockSpec((None, H, W, cin_p), lambda n: (n, 0, 0, 0)),
        pl.BlockSpec((3, 3 * cin_p, cout_p), lambda n: (0, 0, 0)),
    ]
    args = [x, w]
    if apply_pre:
        in_specs += [pl.BlockSpec((1, cin_p), lambda n: (0, 0)),
                     pl.BlockSpec((1, cin_p), lambda n: (0, 0))]
        args += [pre_scale.reshape(1, cin_p).astype(jnp.float32),
                 pre_shift.reshape(1, cin_p).astype(jnp.float32)]

    return pl.pallas_call(
        kernel,
        out_shape=(
            jax.ShapeDtypeStruct((N, H, W, cout_p), x.dtype),
            jax.ShapeDtypeStruct((N, 1, cout_p), jnp.float32),
            jax.ShapeDtypeStruct((N, 1, cout_p), jnp.float32),
        ),
        grid=(N,),
        in_specs=in_specs,
        out_specs=(
            pl.BlockSpec((None, H, W, cout_p), lambda n: (n, 0, 0, 0)),
            pl.BlockSpec((None, 1, cout_p), lambda n: (n, 0, 0)),
            pl.BlockSpec((None, 1, cout_p), lambda n: (n, 0, 0)),
        ),
        scratch_shapes=[pltpu.VMEM((H + 2, W + 2, cin_p), x.dtype)],
        compiler_params=pltpu.CompilerParams(
            dimension_semantics=("parallel",),
            vmem_limit_bytes=_vmem_limit_bytes()),
    )(*args)


def bn_residual_proj_relu(y, scale, shift, x, wr, br):
    """relu(y*scale + shift + x @ wr + br). y: [M,Co], x: [M,Ci], wr: [Ci,Co]."""
    M, Co = y.shape
    Ci = x.shape[1]
    row_bytes = Co * y.dtype.itemsize + Ci * x.dtype.itemsize + Co * 4
    tm, Mp = _pick_row_tile(M, row_bytes)
    if Mp != M:
        y = jnp.pad(y, ((0, Mp - M), (0, 0)))
        x = jnp.pad(x, ((0, Mp - M), (0, 0)))
    out = pl.pallas_call(
        _bn_resproj_relu_kernel,
        out_shape=jax.ShapeDtypeStruct((Mp, Co), jnp.float32),
        grid=(Mp // tm,),
        in_specs=[
            pl.BlockSpec((tm, Co), lambda i: (i, 0)),
            pl.BlockSpec((1, Co), lambda i: (0, 0)),
            pl.BlockSpec((1, Co), lambda i: (0, 0)),
            pl.BlockSpec((tm, Ci), lambda i: (i, 0)),
            pl.BlockSpec((Ci, Co), lambda i: (0, 0)),
            pl.BlockSpec((1, Co), lambda i: (0, 0)),
        ],
        out_specs=pl.BlockSpec((tm, Co), lambda i: (i, 0)),
        compiler_params=pltpu.CompilerParams(
            dimension_semantics=("parallel",),
            vmem_limit_bytes=_vmem_limit_bytes()),
    )(y, scale.reshape(1, Co), shift.reshape(1, Co), x, wr, br.reshape(1, Co))
    # NOTE: padded rows M..Mp hold relu(shift)+... garbage; this slice must stay.
    return out[:M]


def bn_residual_id_relu(y, scale, shift, x):
    """relu(y*scale + shift + x). y, x: [M, C]."""
    M, C = y.shape
    row_bytes = C * (y.dtype.itemsize + x.dtype.itemsize + 4)
    tm, Mp = _pick_row_tile(M, row_bytes)
    if Mp != M:
        y = jnp.pad(y, ((0, Mp - M), (0, 0)))
        x = jnp.pad(x, ((0, Mp - M), (0, 0)))
    out = pl.pallas_call(
        _bn_resid_relu_kernel,
        out_shape=jax.ShapeDtypeStruct((Mp, C), jnp.float32),
        grid=(Mp // tm,),
        in_specs=[
            pl.BlockSpec((tm, C), lambda i: (i, 0)),
            pl.BlockSpec((1, C), lambda i: (0, 0)),
            pl.BlockSpec((1, C), lambda i: (0, 0)),
            pl.BlockSpec((tm, C), lambda i: (i, 0)),
        ],
        out_specs=pl.BlockSpec((tm, C), lambda i: (i, 0)),
        compiler_params=pltpu.CompilerParams(
            dimension_semantics=("parallel",),
            vmem_limit_bytes=_vmem_limit_bytes()),
    )(y, scale.reshape(1, C), shift.reshape(1, C), x)
    return out[:M]


# ---------------------------------------------------------------------------
# tiny plain-JAX glue: combine per-image BN partial sums into scale/shift
# ---------------------------------------------------------------------------

def _bn_scale_shift_from_sums(s, sq, count, gamma, beta, eps):
    """Training-mode BN (biased variance) from fused in-kernel partial sums."""
    # TODO(synk): for very large N*H*W, switch to a shifted/compensated variance to avoid
    #             E[x^2]-E[x]^2 cancellation.
    s = jnp.sum(s, axis=0).reshape(-1)       # [C]
    sq = jnp.sum(sq, axis=0).reshape(-1)     # [C]
    mean = s / count
    var = jnp.maximum(sq / count - mean * mean, 0.0)
    scale = gamma * jax.lax.rsqrt(var + eps)
    shift = beta - mean * scale
    return scale, shift


# ---------------------------------------------------------------------------
# ResidualDoubleConv forward
# ---------------------------------------------------------------------------

@functools.partial(jax.jit, static_argnames=("mxu_dtype",))
def residual_double_conv(x_nchw, params, mxu_dtype=jnp.bfloat16):
    eps = 1e-5
    N, Cin, H, W = x_nchw.shape
    w1 = params["w1_hwio"]
    w2 = params["w2_hwio"]
    Cmid = w1.shape[-1]
    Cout = w2.shape[-1]
    Cin_p = _round_up(Cin, LANE)
    Cmid_p = _round_up(Cmid, LANE)
    Cout_p = _round_up(Cout, LANE)
    M = N * H * W

    # NCHW -> NHWC, channel-pad to lane width, cast to MXU dtype ONCE (reused by conv1
    # and by the residual path).
    x_mxu = _pad_last(jnp.transpose(x_nchw, (0, 2, 3, 1)), Cin_p).astype(mxu_dtype)

    # Weights -> [3, 3*Cin_p, Cout_p] with the K axis ordered (dx, cin) to match the
    # in-kernel dx-concatenated slab.
    w1_p = jnp.pad(w1, ((0, 0), (0, 0), (0, Cin_p - Cin), (0, Cmid_p - Cmid)))
    w1_p = w1_p.reshape(3, 3 * Cin_p, Cmid_p).astype(mxu_dtype)
    w2_p = jnp.pad(w2, ((0, 0), (0, 0), (0, Cmid_p - Cmid), (0, Cout_p - Cout)))
    w2_p = w2_p.reshape(3, 3 * Cmid_p, Cout_p).astype(mxu_dtype)

    gamma1 = _pad_last(params["gamma1"], Cmid_p)
    beta1 = _pad_last(params["beta1"], Cmid_p)
    gamma2 = _pad_last(params["gamma2"], Cout_p)
    beta2 = _pad_last(params["beta2"], Cout_p)

    # NOTE: conv biases b1/b2 are intentionally NOT applied: training-mode BN subtracts
    # the batch mean, which cancels any per-channel constant exactly.  Reinstate them if
    # eval-mode (running-stats) BN is ever required.

    # --- conv1 (3x3, in-kernel padding) + fused BN1 statistics ---
    y1, s1, sq1 = conv3x3_bnstats(x_mxu, w1_p)
    scale1, shift1 = _bn_scale_shift_from_sums(s1, sq1, M, gamma1, beta1, eps)

    # --- conv2 with BN1+ReLU fused into its input path + fused BN2 statistics ---
    y2, s2, sq2 = conv3x3_bnstats(y1, w2_p, scale1, shift1)
    scale2, shift2 = _bn_scale_shift_from_sums(s2, sq2, M, gamma2, beta2, eps)

    # --- fused BN2 + residual + add + ReLU ---
    y2_slab = y2.reshape(M, Cout_p)
    x_slab = x_mxu.reshape(M, Cin_p)
    if "wr" in params:                          # 1x1 conv residual (Cin != Cout)
        wr = jnp.pad(params["wr"], ((0, Cin_p - Cin), (0, Cout_p - Cout))).astype(mxu_dtype)
        br = _pad_last(params["br"], Cout_p)
        out = bn_residual_proj_relu(y2_slab, scale2, shift2, x_slab, wr, br)
    else:                                       # identity residual (Cin == Cout)
        out = bn_residual_id_relu(y2_slab, scale2, shift2, x_slab)

    out = out.reshape(N, H, W, Cout_p)[..., :Cout]
    return jnp.transpose(out, (0, 3, 1, 2))     # back to NCHW


# ---------------------------------------------------------------------------
# Pure-JAX reference (matches the PyTorch module with training-mode BN)
# ---------------------------------------------------------------------------

def reference(x_nchw, params):
    eps = 1e-5
    dn = ("NHWC", "HWIO", "NHWC")
    x = jnp.transpose(x_nchw, (0, 2, 3, 1)).astype(jnp.float32)

    def bn(y, g, b):
        m = y.mean((0, 1, 2))
        v = ((y - m) ** 2).mean((0, 1, 2))
        return (y - m) * jax.lax.rsqrt(v + eps) * g + b

    y1 = jax.lax.conv_general_dilated(x, params["w1_hwio"], (1, 1), "SAME",
                                      dimension_numbers=dn) + params["b1"]
    h1 = jnp.maximum(bn(y1, params["gamma1"], params["beta1"]), 0.0)
    y2 = jax.lax.conv_general_dilated(h1, params["w2_hwio"], (1, 1), "SAME",
                                      dimension_numbers=dn) + params["b2"]
    bn2 = bn(y2, params["gamma2"], params["beta2"])
    if "wr" in params:
        ident = jnp.einsum("nhwc,cd->nhwd", x, params["wr"]) + params["br"]
    else:
        ident = x
    out = jnp.maximum(bn2 + ident, 0.0)
    return jnp.transpose(out, (0, 3, 1, 2))


# ---------------------------------------------------------------------------
# main
# ---------------------------------------------------------------------------

if __name__ == "__main__":
    key = jax.random.PRNGKey(0)

    def make_params(k, cin, cmid, cout):
        ks = jax.random.split(k, 8)
        p = {
            "w1_hwio": jax.random.normal(ks[0], (3, 3, cin, cmid), jnp.float32) * 0.1,
            "b1": jax.random.normal(ks[1], (cmid,), jnp.float32) * 0.1,
            "gamma1": 1.0 + 0.1 * jax.random.normal(ks[2], (cmid,), jnp.float32),
            "beta1": 0.1 * jax.random.normal(ks[3], (cmid,), jnp.float32),
            "w2_hwio": jax.random.normal(ks[4], (3, 3, cmid, cout), jnp.float32) * 0.1,
            "b2": jax.random.normal(ks[5], (cout,), jnp.float32) * 0.1,
            "gamma2": 1.0 + 0.1 * jax.random.normal(ks[6], (cout,), jnp.float32),
            "beta2": 0.1 * jax.random.normal(ks[7], (cout,), jnp.float32),
        }
        if cin != cout:
            kr, kbr = jax.random.split(ks[0], 2)
            p["wr"] = jax.random.normal(kr, (cin, cout), jnp.float32) * 0.1
            p["br"] = jax.random.normal(kbr, (cout,), jnp.float32) * 0.1
        return p

    N, Cin, H, W = 2, 4, 16, 16
    Cout = 8  # mid_channels defaults to out_channels

    kx, kp1, kp2 = jax.random.split(key, 3)
    x = jax.random.normal(kx, (N, Cin, H, W), jnp.float32)

    # Case 1: projection residual (Cin != Cout), f32 MXU inputs (tight tolerance).
    params = make_params(kp1, Cin, Cout, Cout)
    out = jax.block_until_ready(residual_double_conv(x, params, mxu_dtype=jnp.float32))
    ref = jax.block_until_ready(reference(x, params))
    assert out.shape == (N, Cout, H, W), out.shape
    assert jnp.allclose(out, ref, atol=1e-3, rtol=1e-3), \
        f"proj/f32 max err {float(jnp.max(jnp.abs(out - ref)))}"

    # Case 2: identity residual (Cin == Cout), f32 MXU inputs.
    x_id = jax.random.normal(kx, (N, Cout, H, W), jnp.float32)
    params_id = make_params(kp2, Cout, Cout, Cout)
    out_id = jax.block_until_ready(residual_double_conv(x_id, params_id, mxu_dtype=jnp.float32))
    ref_id = jax.block_until_ready(reference(x_id, params_id))
    assert jnp.allclose(out_id, ref_id, atol=1e-3, rtol=1e-3), \
        f"identity/f32 max err {float(jnp.max(jnp.abs(out_id - ref_id)))}"

    # Case 3: default bf16 MXU inputs (f32 accumulation / BN math) — looser tolerance.
    out_bf16 = jax.block_until_ready(residual_double_conv(x, params))
    assert jnp.allclose(out_bf16, ref, atol=1e-1, rtol=1e-1), \
        f"proj/bf16 max err {float(jnp.max(jnp.abs(out_bf16 - ref)))}"

    print("KERNEL_OK")
</pallas_src>

<mosaic_0001>
module attributes {stable_mosaic.version = 11 : i64} {
  func.func @_conv3x3_bnstats_kernel(%arg0: i32, %arg1: memref<1x16x16x128xf32, #tpu.memory_space<vmem>>, %arg2: memref<3x384x128xf32, #tpu.memory_space<vmem>>, %arg3: memref<1x16x16x128xf32, #tpu.memory_space<vmem>>, %arg4: memref<1x1x128xf32, #tpu.memory_space<vmem>>, %arg5: memref<1x1x128xf32, #tpu.memory_space<vmem>>, %arg6: memref<18x18x128xf32, #tpu.memory_space<vmem>>) attributes {dimension_semantics = [#tpu.dimension_semantics<parallel>], iteration_bounds = array<i64: 2>, scalar_prefetch = 0 : i64, scratch_operands = 1 : i64, tpu.core_type = #tpu.core_type<tc>, window_params = [{transform_indices = @transform_0, window_bounds = array<i64: 1, 16, 16, 128>}, {pipeline_mode = #tpu.pipeline_mode<synchronous>, transform_indices = @transform_1, window_bounds = array<i64: 3, 384, 128>}, {transform_indices = @transform_2, window_bounds = array<i64: 1, 16, 16, 128>}, {transform_indices = @transform_3, window_bounds = array<i64: 1, 1, 128>}, {transform_indices = @transform_4, window_bounds = array<i64: 1, 1, 128>}]} {
    %c0 = arith.constant 0 : index
    %c0_0 = arith.constant 0 : index
    %c0_1 = arith.constant 0 : index
    %c0_2 = arith.constant 0 : index
    %0 = vector.load %arg1[%c0, %c0_0, %c0_1, %c0_2] : memref<1x16x16x128xf32, #tpu.memory_space<vmem>>, vector<1x16x16x128xf32>
    %1 = vector.shape_cast %0 : vector<1x16x16x128xf32> to vector<16x16x128xf32>
    %cst = arith.constant 0.000000e+00 : f32
    %2 = vector.broadcast %cst : f32 to vector<16x1x128xf32>
    %3 = tpu.concatenate %2, %1, %2 in 1 : vector<16x1x128xf32>, vector<16x16x128xf32>, vector<16x1x128xf32> -> vector<16x18x128xf32>
    %c1 = arith.constant 1 : index
    %c0_3 = arith.constant 0 : index
    %c0_4 = arith.constant 0 : index
    %4 = vector.load %arg6[%c1, %c0_3, %c0_4] : memref<18x18x128xf32, #tpu.memory_space<vmem>>, vector<16x18x128xf32>
    tpu.vector_store %arg6[%c1, %c0_3, %c0_4], %3 {strides = array<i32>} : memref<18x18x128xf32, #tpu.memory_space<vmem>>, vector<16x18x128xf32>,
    %cst_5 = arith.constant 0.000000e+00 : f32
    %5 = vector.broadcast %cst_5 : f32 to vector<1x18x128xf32>
    %c0_6 = arith.constant 0 : index
    %c0_7 = arith.constant 0 : index
    %c0_8 = arith.constant 0 : index
    %6 = vector.load %arg6[%c0_6, %c0_7, %c0_8] : memref<18x18x128xf32, #tpu.memory_space<vmem>>, vector<1x18x128xf32>
    tpu.vector_store %arg6[%c0_6, %c0_7, %c0_8], %5 {strides = array<i32>} : memref<18x18x128xf32, #tpu.memory_space<vmem>>, vector<1x18x128xf32>,
    %c17 = arith.constant 17 : index
    %c0_9 = arith.constant 0 : index
    %c0_10 = arith.constant 0 : index
    %7 = vector.load %arg6[%c17, %c0_9, %c0_10] : memref<18x18x128xf32, #tpu.memory_space<vmem>>, vector<1x18x128xf32>
    tpu.vector_store %arg6[%c17, %c0_9, %c0_10], %5 {strides = array<i32>} : memref<18x18x128xf32, #tpu.memory_space<vmem>>, vector<1x18x128xf32>,
    %c0_11 = arith.constant 0 : index
    %c0_12 = arith.constant 0 : index
    %c0_13 = arith.constant 0 : index
    %8 = vector.load %arg6[%c0_11, %c0_12, %c0_13] : memref<18x18x128xf32, #tpu.memory_space<vmem>>, vector<18x16x128xf32>
    %c0_14 = arith.constant 0 : index
    %c1_15 = arith.constant 1 : index
    %c0_16 = arith.constant 0 : index
    %9 = vector.load %arg6[%c0_14, %c1_15, %c0_16] : memref<18x18x128xf32, #tpu.memory_space<vmem>>, vector<18x16x128xf32>
    %c0_17 = arith.constant 0 : index
    %c2 = arith.constant 2 : index
    %c0_18 = arith.constant 0 : index
    %10 = vector.load %arg6[%c0_17, %c2, %c0_18] : memref<18x18x128xf32, #tpu.memory_space<vmem>>, vector<18x16x128xf32>
    %11 = tpu.concatenate %8, %9, %10 in 2 : vector<18x16x128xf32>, vector<18x16x128xf32>, vector<18x16x128xf32> -> vector<18x16x384xf32>
    %12 = vector.extract_strided_slice %11 {offsets = [0, 0, 0], sizes = [16, 16, 384], strides = [1, 1, 1]} : vector<18x16x384xf32> to vector<16x16x384xf32>
    %13 = vector.shape_cast %12 : vector<16x16x384xf32> to vector<256x384xf32>
    %c0_19 = arith.constant 0 : index
    %c0_20 = arith.constant 0 : index
    %c0_21 = arith.constant 0 : index
    %14 = vector.load %arg2[%c0_19, %c0_20, %c0_21] : memref<3x384x128xf32, #tpu.memory_space<vmem>>, vector<1x384x128xf32>
    %15 = vector.shape_cast %14 : vector<1x384x128xf32> to vector<384x128xf32>
    %cst_22 = arith.constant dense<0.000000e+00> : vector<256x128xf32>
    %16 = tpu.matmul %13, %15, %cst_22 {dimension_numbers = #tpu.dot_dimension_numbers<[1], [0], [0], [1], [0, 0, 1, 1], [], []>} : vector<256x384xf32>, vector<384x128xf32>, vector<256x128xf32> -> vector<256x128xf32>
    %17 = vector.extract_strided_slice %11 {offsets = [1, 0, 0], sizes = [16, 16, 384], strides = [1, 1, 1]} : vector<18x16x384xf32> to vector<16x16x384xf32>
    %18 = vector.shape_cast %17 : vector<16x16x384xf32> to vector<256x384xf32>
    %c1_23 = arith.constant 1 : index
    %c0_24 = arith.constant 0 : index
    %c0_25 = arith.constant 0 : index
    %19 = vector.load %arg2[%c1_23, %c0_24, %c0_25] : memref<3x384x128xf32, #tpu.memory_space<vmem>>, vector<1x384x128xf32>
    %20 = vector.shape_cast %19 : vector<1x384x128xf32> to vector<384x128xf32>
    %cst_26 = arith.constant dense<0.000000e+00> : vector<256x128xf32>
    %21 = tpu.matmul %18, %20, %cst_26 {dimension_numbers = #tpu.dot_dimension_numbers<[1], [0], [0], [1], [0, 0, 1, 1], [], []>} : vector<256x384xf32>, vector<384x128xf32>, vector<256x128xf32> -> vector<256x128xf32>
    %22 = arith.addf %16, %21 : vector<256x128xf32>
    %23 = vector.extract_strided_slice %11 {offsets = [2, 0, 0], sizes = [16, 16, 384], strides = [1, 1, 1]} : vector<18x16x384xf32> to vector<16x16x384xf32>
    %24 = vector.shape_cast %23 : vector<16x16x384xf32> to vector<256x384xf32>
    %c2_27 = arith.constant 2 : index
    %c0_28 = arith.constant 0 : index
    %c0_29 = arith.constant 0 : index
    %25 = vector.load %arg2[%c2_27, %c0_28, %c0_29] : memref<3x384x128xf32, #tpu.memory_space<vmem>>, vector<1x384x128xf32>
    %26 = vector.shape_cast %25 : vector<1x384x128xf32> to vector<384x128xf32>
    %cst_30 = arith.constant dense<0.000000e+00> : vector<256x128xf32>
    %27 = tpu.matmul %24, %26, %cst_30 {dimension_numbers = #tpu.dot_dimension_numbers<[1], [0], [0], [1], [0, 0, 1, 1], [], []>} : vector<256x384xf32>, vector<384x128xf32>, vector<256x128xf32> -> vector<256x128xf32>
    %28 = arith.addf %22, %27 : vector<256x128xf32>
    %29 = vector.shape_cast %28 : vector<256x128xf32> to vector<16x16x128xf32>
    %c0_31 = arith.constant 0 : index
    %c0_32 = arith.constant 0 : index
    %c0_33 = arith.constant 0 : index
    %c0_34 = arith.constant 0 : index
    %30 = vector.load %arg3[%c0_31, %c0_32, %c0_33, %c0_34] : memref<1x16x16x128xf32, #tpu.memory_space<vmem>>, vector<1x16x16x128xf32>
    %31 = vector.shape_cast %30 : vector<1x16x16x128xf32> to vector<16x16x128xf32>
    %32 = vector.shape_cast %29 : vector<16x16x128xf32> to vector<1x16x16x128xf32>
    tpu.vector_store %arg3[%c0_31, %c0_32, %c0_33, %c0_34], %32 {strides = array<i32>} : memref<1x16x16x128xf32, #tpu.memory_space<vmem>>, vector<1x16x16x128xf32>,
    %cst_35 = arith.constant dense<0.000000e+00> : vector<128xf32>
    %33 = vector.multi_reduction <add>, %28, %cst_35 [0] : vector<256x128xf32> to vector<128xf32>
    %34 = vector.shape_cast %33 : vector<128xf32> to vector<1x128xf32>
    %c0_36 = arith.constant 0 : index
    %c0_37 = arith.constant 0 : index
    %c0_38 = arith.constant 0 : index
    %35 = vector.load %arg4[%c0_36, %c0_37, %c0_38] : memref<1x1x128xf32, #tpu.memory_space<vmem>>, vector<1x1x128xf32>
    %36 = vector.shape_cast %35 : vector<1x1x128xf32> to vector<1x128xf32>
    %37 = vector.shape_cast %34 : vector<1x128xf32> to vector<1x1x128xf32>
    tpu.vector_store %arg4[%c0_36, %c0_37, %c0_38], %37 {strides = array<i32>} : memref<1x1x128xf32, #tpu.memory_space<vmem>>, vector<1x1x128xf32>,
    %38 = arith.mulf %28, %28 : vector<256x128xf32>
    %cst_39 = arith.constant dense<0.000000e+00> : vector<128xf32>
    %39 = vector.multi_reduction <add>, %38, %cst_39 [0] : vector<256x128xf32> to vector<128xf32>
    %40 = vector.shape_cast %39 : vector<128xf32> to vector<1x128xf32>
    %c0_40 = arith.constant 0 : index
    %c0_41 = arith.constant 0 : index
    %c0_42 = arith.constant 0 : index
    %41 = vector.load %arg5[%c0_40, %c0_41, %c0_42] : memref<1x1x128xf32, #tpu.memory_space<vmem>>, vector<1x1x128xf32>
    %42 = vector.shape_cast %41 : vector<1x1x128xf32> to vector<1x128xf32>
    %43 = vector.shape_cast %40 : vector<1x128xf32> to vector<1x1x128xf32>
    tpu.vector_store %arg5[%c0_40, %c0_41, %c0_42], %43 {strides = array<i32>} : memref<1x1x128xf32, #tpu.memory_space<vmem>>, vector<1x1x128xf32>,
    return
  }
  func.func @transform_0(%arg0: i32) -> (i32, i32, i32, i32) {
    %c0_i32 = arith.constant 0 : i32
    %c0_i32_0 = arith.constant 0 : i32
    %c0_i32_1 = arith.constant 0 : i32
    %c0_i32_2 = arith.constant 0 : i32
    return %arg0, %c0_i32, %c0_i32_0, %c0_i32_1 : i32, i32, i32, i32
  }
  func.func @transform_1(%arg0: i32) -> (i32, i32, i32) {
    %c0_i32 = arith.constant 0 : i32
    %c0_i32_0 = arith.constant 0 : i32
    %c0_i32_1 = arith.constant 0 : i32
    %c0_i32_2 = arith.constant 0 : i32
    return %c0_i32, %c0_i32_0, %c0_i32_1 : i32, i32, i32
  }
  func.func @transform_2(%arg0: i32) -> (i32, i32, i32, i32) {
    %c0_i32 = arith.constant 0 : i32
    %c0_i32_0 = arith.constant 0 : i32
    %c0_i32_1 = arith.constant 0 : i32
    %c0_i32_2 = arith.constant 0 : i32
    return %arg0, %c0_i32, %c0_i32_0, %c0_i32_1 : i32, i32, i32, i32
  }
  func.func @transform_3(%arg0: i32) -> (i32, i32, i32) {
    %c0_i32 = arith.constant 0 : i32
    %c0_i32_0 = arith.constant 0 : i32
    %c0_i32_1 = arith.constant 0 : i32
    return %arg0, %c0_i32, %c0_i32_0 : i32, i32, i32
  }
  func.func @transform_4(%arg0: i32) -> (i32, i32, i32) {
    %c0_i32 = arith.constant 0 : i32
    %c0_i32_0 = arith.constant 0 : i32
    %c0_i32_1 = arith.constant 0 : i32
    return %arg0, %c0_i32, %c0_i32_0 : i32, i32, i32
  }
}

module attributes {stable_mosaic.version = 11 : i64} {
  func.func @_conv3x3_bnstats_kernel(%arg0: i32, %arg1: memref<1x16x16x128xf32, #tpu.memory_space<vmem>>, %arg2: memref<3x384x128xf32, #tpu.memory_space<vmem>>, %arg3: memref<1x128xf32, #tpu.memory_space<vmem>>, %arg4: memref<1x128xf32, #tpu.memory_space<vmem>>, %arg5: memref<1x16x16x128xf32, #tpu.memory_space<vmem>>, %arg6: memref<1x1x128xf32, #tpu.memory_space<vmem>>, %arg7: memref<1x1x128xf32, #tpu.memory_space<vmem>>, %arg8: memref<18x18x128xf32, #tpu.memory_space<vmem>>) attributes {dimension_semantics = [#tpu.dimension_semantics<parallel>], iteration_bounds = array<i64: 2>, scalar_prefetch = 0 : i64, scratch_operands = 1 : i64, tpu.core_type = #tpu.core_type<tc>, window_params = [{transform_indices = @transform_0, window_bounds = array<i64: 1, 16, 16, 128>}, {pipeline_mode = #tpu.pipeline_mode<synchronous>, transform_indices = @transform_1, window_bounds = array<i64: 3, 384, 128>}, {pipeline_mode = #tpu.pipeline_mode<synchronous>, transform_indices = @transform_2, window_bounds = array<i64: 1, 128>}, {pipeline_mode = #tpu.pipeline_mode<synchronous>, transform_indices = @transform_3, window_bounds = array<i64: 1, 128>}, {transform_indices = @transform_4, window_bounds = array<i64: 1, 16, 16, 128>}, {transform_indices = @transform_5, window_bounds = array<i64: 1, 1, 128>}, {transform_indices = @transform_6, window_bounds = array<i64: 1, 1, 128>}]} {
    %c0 = arith.constant 0 : index
    %c0_0 = arith.constant 0 : index
    %c0_1 = arith.constant 0 : index
    %c0_2 = arith.constant 0 : index
    %0 = vector.load %arg1[%c0, %c0_0, %c0_1, %c0_2] : memref<1x16x16x128xf32, #tpu.memory_space<vmem>>, vector<1x16x16x128xf32>
    %1 = vector.shape_cast %0 : vector<1x16x16x128xf32> to vector<16x16x128xf32>
    %c0_3 = arith.constant 0 : index
    %c0_4 = arith.constant 0 : index
    %2 = vector.load %arg3[%c0_3, %c0_4] : memref<1x128xf32, #tpu.memory_space<vmem>>, vector<1x128xf32>
    %3 = vector.shape_cast %2 : vector<1x128xf32> to vector<1x1x128xf32>
    %4 = vector.broadcast %3 : vector<1x1x128xf32> to vector<16x16x128xf32>
    %5 = arith.mulf %1, %4 : vector<16x16x128xf32>
    %c0_5 = arith.constant 0 : index
    %c0_6 = arith.constant 0 : index
    %6 = vector.load %arg4[%c0_5, %c0_6] : memref<1x128xf32, #tpu.memory_space<vmem>>, vector<1x128xf32>
    %7 = vector.shape_cast %6 : vector<1x128xf32> to vector<1x1x128xf32>
    %8 = vector.broadcast %7 : vector<1x1x128xf32> to vector<16x16x128xf32>
    %9 = arith.addf %5, %8 : vector<16x16x128xf32>
    %cst = arith.constant 0.000000e+00 : f32
    %10 = vector.broadcast %cst : f32 to vector<16x16x128xf32>
    %11 = arith.maximumf %9, %10 : vector<16x16x128xf32>
    %cst_7 = arith.constant 0.000000e+00 : f32
    %12 = vector.broadcast %cst_7 : f32 to vector<16x1x128xf32>
    %13 = tpu.concatenate %12, %11, %12 in 1 : vector<16x1x128xf32>, vector<16x16x128xf32>, vector<16x1x128xf32> -> vector<16x18x128xf32>
    %c1 = arith.constant 1 : index
    %c0_8 = arith.constant 0 : index
    %c0_9 = arith.constant 0 : index
    %14 = vector.load %arg8[%c1, %c0_8, %c0_9] : memref<18x18x128xf32, #tpu.memory_space<vmem>>, vector<16x18x128xf32>
    tpu.vector_store %arg8[%c1, %c0_8, %c0_9], %13 {strides = array<i32>} : memref<18x18x128xf32, #tpu.memory_space<vmem>>, vector<16x18x128xf32>,
    %cst_10 = arith.constant 0.000000e+00 : f32
    %15 = vector.broadcast %cst_10 : f32 to vector<1x18x128xf32>
    %c0_11 = arith.constant 0 : index
    %c0_12 = arith.constant 0 : index
    %c0_13 = arith.constant 0 : index
    %16 = vector.load %arg8[%c0_11, %c0_12, %c0_13] : memref<18x18x128xf32, #tpu.memory_space<vmem>>, vector<1x18x128xf32>
    tpu.vector_store %arg8[%c0_11, %c0_12, %c0_13], %15 {strides = array<i32>} : memref<18x18x128xf32, #tpu.memory_space<vmem>>, vector<1x18x128xf32>,
    %c17 = arith.constant 17 : index
    %c0_14 = arith.constant 0 : index
    %c0_15 = arith.constant 0 : index
    %17 = vector.load %arg8[%c17, %c0_14, %c0_15] : memref<18x18x128xf32, #tpu.memory_space<vmem>>, vector<1x18x128xf32>
    tpu.vector_store %arg8[%c17, %c0_14, %c0_15], %15 {strides = array<i32>} : memref<18x18x128xf32, #tpu.memory_space<vmem>>, vector<1x18x128xf32>,
    %c0_16 = arith.constant 0 : index
    %c0_17 = arith.constant 0 : index
    %c0_18 = arith.constant 0 : index
    %18 = vector.load %arg8[%c0_16, %c0_17, %c0_18] : memref<18x18x128xf32, #tpu.memory_space<vmem>>, vector<18x16x128xf32>
    %c0_19 = arith.constant 0 : index
    %c1_20 = arith.constant 1 : index
    %c0_21 = arith.constant 0 : index
    %19 = vector.load %arg8[%c0_19, %c1_20, %c0_21] : memref<18x18x128xf32, #tpu.memory_space<vmem>>, vector<18x16x128xf32>
    %c0_22 = arith.constant 0 : index
    %c2 = arith.constant 2 : index
    %c0_23 = arith.constant 0 : index
    %20 = vector.load %arg8[%c0_22, %c2, %c0_23] : memref<18x18x128xf32, #tpu.memory_space<vmem>>, vector<18x16x128xf32>
    %21 = tpu.concatenate %18, %19, %20 in 2 : vector<18x16x128xf32>, vector<18x16x128xf32>, vector<18x16x128xf32> -> vector<18x16x384xf32>
    %22 = vector.extract_strided_slice %21 {offsets = [0, 0, 0], sizes = [16, 16, 384], strides = [1, 1, 1]} : vector<18x16x384xf32> to vector<16x16x384xf32>
    %23 = vector.shape_cast %22 : vector<16x16x384xf32> to vector<256x384xf32>
    %c0_24 = arith.constant 0 : index
    %c0_25 = arith.constant 0 : index
    %c0_26 = arith.constant 0 : index
    %24 = vector.load %arg2[%c0_24, %c0_25, %c0_26] : memref<3x384x128xf32, #tpu.memory_space<vmem>>, vector<1x384x128xf32>
    %25 = vector.shape_cast %24 : vector<1x384x128xf32> to vector<384x128xf32>
    %cst_27 = arith.constant dense<0.000000e+00> : vector<256x128xf32>
    %26 = tpu.matmul %23, %25, %cst_27 {dimension_numbers = #tpu.dot_dimension_numbers<[1], [0], [0], [1], [0, 0, 1, 1], [], []>} : vector<256x384xf32>, vector<384x128xf32>, vector<256x128xf32> -> vector<256x128xf32>
    %27 = vector.extract_strided_slice %21 {offsets = [1, 0, 0], sizes = [16, 16, 384], strides = [1, 1, 1]} : vector<18x16x384xf32> to vector<16x16x384xf32>
    %28 = vector.shape_cast %27 : vector<16x16x384xf32> to vector<256x384xf32>
    %c1_28 = arith.constant 1 : index
    %c0_29 = arith.constant 0 : index
    %c0_30 = arith.constant 0 : index
    %29 = vector.load %arg2[%c1_28, %c0_29, %c0_30] : memref<3x384x128xf32, #tpu.memory_space<vmem>>, vector<1x384x128xf32>
    %30 = vector.shape_cast %29 : vector<1x384x128xf32> to vector<384x128xf32>
    %cst_31 = arith.constant dense<0.000000e+00> : vector<256x128xf32>
    %31 = tpu.matmul %28, %30, %cst_31 {dimension_numbers = #tpu.dot_dimension_numbers<[1], [0], [0], [1], [0, 0, 1, 1], [], []>} : vector<256x384xf32>, vector<384x128xf32>, vector<256x128xf32> -> vector<256x128xf32>
    %32 = arith.addf %26, %31 : vector<256x128xf32>
    %33 = vector.extract_strided_slice %21 {offsets = [2, 0, 0], sizes = [16, 16, 384], strides = [1, 1, 1]} : vector<18x16x384xf32> to vector<16x16x384xf32>
    %34 = vector.shape_cast %33 : vector<16x16x384xf32> to vector<256x384xf32>
    %c2_32 = arith.constant 2 : index
    %c0_33 = arith.constant 0 : index
    %c0_34 = arith.constant 0 : index
    %35 = vector.load %arg2[%c2_32, %c0_33, %c0_34] : memref<3x384x128xf32, #tpu.memory_space<vmem>>, vector<1x384x128xf32>
    %36 = vector.shape_cast %35 : vector<1x384x128xf32> to vector<384x128xf32>
    %cst_35 = arith.constant dense<0.000000e+00> : vector<256x128xf32>
    %37 = tpu.matmul %34, %36, %cst_35 {dimension_numbers = #tpu.dot_dimension_numbers<[1], [0], [0], [1], [0, 0, 1, 1], [], []>} : vector<256x384xf32>, vector<384x128xf32>, vector<256x128xf32> -> vector<256x128xf32>
    %38 = arith.addf %32, %37 : vector<256x128xf32>
    %39 = vector.shape_cast %38 : vector<256x128xf32> to vector<16x16x128xf32>
    %c0_36 = arith.constant 0 : index
    %c0_37 = arith.constant 0 : index
    %c0_38 = arith.constant 0 : index
    %c0_39 = arith.constant 0 : index
    %40 = vector.load %arg5[%c0_36, %c0_37, %c0_38, %c0_39] : memref<1x16x16x128xf32, #tpu.memory_space<vmem>>, vector<1x16x16x128xf32>
    %41 = vector.shape_cast %40 : vector<1x16x16x128xf32> to vector<16x16x128xf32>
    %42 = vector.shape_cast %39 : vector<16x16x128xf32> to vector<1x16x16x128xf32>
    tpu.vector_store %arg5[%c0_36, %c0_37, %c0_38, %c0_39], %42 {strides = array<i32>} : memref<1x16x16x128xf32, #tpu.memory_space<vmem>>, vector<1x16x16x128xf32>,
    %cst_40 = arith.constant dense<0.000000e+00> : vector<128xf32>
    %43 = vector.multi_reduction <add>, %38, %cst_40 [0] : vector<256x128xf32> to vector<128xf32>
    %44 = vector.shape_cast %43 : vector<128xf32> to vector<1x128xf32>
    %c0_41 = arith.constant 0 : index
    %c0_42 = arith.constant 0 : index
    %c0_43 = arith.constant 0 : index
    %45 = vector.load %arg6[%c0_41, %c0_42, %c0_43] : memref<1x1x128xf32, #tpu.memory_space<vmem>>, vector<1x1x128xf32>
    %46 = vector.shape_cast %45 : vector<1x1x128xf32> to vector<1x128xf32>
    %47 = vector.shape_cast %44 : vector<1x128xf32> to vector<1x1x128xf32>
    tpu.vector_store %arg6[%c0_41, %c0_42, %c0_43], %47 {strides = array<i32>} : memref<1x1x128xf32, #tpu.memory_space<vmem>>, vector<1x1x128xf32>,
    %48 = arith.mulf %38, %38 : vector<256x128xf32>
    %cst_44 = arith.constant dense<0.000000e+00> : vector<128xf32>
    %49 = vector.multi_reduction <add>, %48, %cst_44 [0] : vector<256x128xf32> to vector<128xf32>
    %50 = vector.shape_cast %49 : vector<128xf32> to vector<1x128xf32>
    %c0_45 = arith.constant 0 : index
    %c0_46 = arith.constant 0 : index
    %c0_47 = arith.constant 0 : index
    %51 = vector.load %arg7[%c0_45, %c0_46, %c0_47] : memref<1x1x128xf32, #tpu.memory_space<vmem>>, vector<1x1x128xf32>
    %52 = vector.shape_cast %51 : vector<1x1x128xf32> to vector<1x128xf32>
    %53 = vector.shape_cast %50 : vector<1x128xf32> to vector<1x1x128xf32>
    tpu.vector_store %arg7[%c0_45, %c0_46, %c0_47], %53 {strides = array<i32>} : memref<1x1x128xf32, #tpu.memory_space<vmem>>, vector<1x1x128xf32>,
    return
  }
  func.func @transform_0(%arg0: i32) -> (i32, i32, i32, i32) {
    %c0_i32 = arith.constant 0 : i32
    %c0_i32_0 = arith.constant 0 : i32
    %c0_i32_1 = arith.constant 0 : i32
    %c0_i32_2 = arith.constant 0 : i32
    return %arg0, %c0_i32, %c0_i32_0, %c0_i32_1 : i32, i32, i32, i32
  }
  func.func @transform_1(%arg0: i32) -> (i32, i32, i32) {
    %c0_i32 = arith.constant 0 : i32
    %c0_i32_0 = arith.constant 0 : i32
    %c0_i32_1 = arith.constant 0 : i32
    %c0_i32_2 = arith.constant 0 : i32
    return %c0_i32, %c0_i32_0, %c0_i32_1 : i32, i32, i32
  }
  func.func @transform_2(%arg0: i32) -> (i32, i32) {
    %c0_i32 = arith.constant 0 : i32
    %c0_i32_0 = arith.constant 0 : i32
    %c0_i32_1 = arith.constant 0 : i32
    return %c0_i32, %c0_i32_0 : i32, i32
  }
  func.func @transform_3(%arg0: i32) -> (i32, i32) {
    %c0_i32 = arith.constant 0 : i32
    %c0_i32_0 = arith.constant 0 : i32
    %c0_i32_1 = arith.constant 0 : i32
    return %c0_i32, %c0_i32_0 : i32, i32
  }
  func.func @transform_4(%arg0: i32) -> (i32, i32, i32, i32) {
    %c0_i32 = arith.constant 0 : i32
    %c0_i32_0 = arith.constant 0 : i32
    %c0_i32_1 = arith.constant 0 : i32
    %c0_i32_2 = arith.constant 0 : i32
    return %arg0, %c0_i32, %c0_i32_0, %c0_i32_1 : i32, i32, i32, i32
  }
  func.func @transform_5(%arg0: i32) -> (i32, i32, i32) {
    %c0_i32 = arith.constant 0 : i32
    %c0_i32_0 = arith.constant 0 : i32
    %c0_i32_1 = arith.constant 0 : i32
    return %arg0, %c0_i32, %c0_i32_0 : i32, i32, i32
  }
  func.func @transform_6(%arg0: i32) -> (i32, i32, i32) {
    %c0_i32 = arith.constant 0 : i32
    %c0_i32_0 = arith.constant 0 : i32
    %c0_i32_1 = arith.constant 0 : i32
    return %arg0, %c0_i32, %c0_i32_0 : i32, i32, i32
  }
}

module attributes {stable_mosaic.version = 11 : i64} {
  func.func @_bn_resproj_relu_kernel(%arg0: i32, %arg1: memref<512x128xf32, #tpu.memory_space<vmem>>, %arg2: memref<1x128xf32, #tpu.memory_space<vmem>>, %arg3: memref<1x128xf32, #tpu.memory_space<vmem>>, %arg4: memref<512x128xf32, #tpu.memory_space<vmem>>, %arg5: memref<128x128xf32, #tpu.memory_space<vmem>>, %arg6: memref<1x128xf32, #tpu.memory_space<vmem>>, %arg7: memref<512x128xf32, #tpu.memory_space<vmem>>) attributes {dimension_semantics = [#tpu.dimension_semantics<parallel>], iteration_bounds = array<i64: 1>, scalar_prefetch = 0 : i64, scratch_operands = 0 : i64, tpu.core_type = #tpu.core_type<tc>, window_params = [{transform_indices = @transform_0, window_bounds = array<i64: 512, 128>}, {pipeline_mode = #tpu.pipeline_mode<synchronous>, transform_indices = @transform_1, window_bounds = array<i64: 1, 128>}, {pipeline_mode = #tpu.pipeline_mode<synchronous>, transform_indices = @transform_2, window_bounds = array<i64: 1, 128>}, {transform_indices = @transform_3, window_bounds = array<i64: 512, 128>}, {pipeline_mode = #tpu.pipeline_mode<synchronous>, transform_indices = @transform_4, window_bounds = array<i64: 128, 128>}, {pipeline_mode = #tpu.pipeline_mode<synchronous>, transform_indices = @transform_5, window_bounds = array<i64: 1, 128>}, {transform_indices = @transform_6, window_bounds = array<i64: 512, 128>}]} {
    %c0 = arith.constant 0 : index
    %c0_0 = arith.constant 0 : index
    %0 = vector.load %arg4[%c0, %c0_0] : memref<512x128xf32, #tpu.memory_space<vmem>>, vector<512x128xf32>
    %c0_1 = arith.constant 0 : index
    %c0_2 = arith.constant 0 : index
    %1 = vector.load %arg5[%c0_1, %c0_2] : memref<128x128xf32, #tpu.memory_space<vmem>>, vector<128x128xf32>
    %cst = arith.constant dense<0.000000e+00> : vector<512x128xf32>
    %2 = tpu.matmul %0, %1, %cst {dimension_numbers = #tpu.dot_dimension_numbers<[1], [0], [0], [1], [0, 0, 1, 1], [], []>} : vector<512x128xf32>, vector<128x128xf32>, vector<512x128xf32> -> vector<512x128xf32>
    %c0_3 = arith.constant 0 : index
    %c0_4 = arith.constant 0 : index
    %3 = vector.load %arg6[%c0_3, %c0_4] : memref<1x128xf32, #tpu.memory_space<vmem>>, vector<1x128xf32>
    %4 = vector.broadcast %3 : vector<1x128xf32> to vector<512x128xf32>
    %5 = arith.addf %2, %4 : vector<512x128xf32>
    %c0_5 = arith.constant 0 : index
    %c0_6 = arith.constant 0 : index
    %6 = vector.load %arg1[%c0_5, %c0_6] : memref<512x128xf32, #tpu.memory_space<vmem>>, vector<512x128xf32>
    %c0_7 = arith.constant 0 : index
    %c0_8 = arith.constant 0 : index
    %7 = vector.load %arg2[%c0_7, %c0_8] : memref<1x128xf32, #tpu.memory_space<vmem>>, vector<1x128xf32>
    %8 = vector.broadcast %7 : vector<1x128xf32> to vector<512x128xf32>
    %9 = arith.mulf %6, %8 : vector<512x128xf32>
    %c0_9 = arith.constant 0 : index
    %c0_10 = arith.constant 0 : index
    %10 = vector.load %arg3[%c0_9, %c0_10] : memref<1x128xf32, #tpu.memory_space<vmem>>, vector<1x128xf32>
    %11 = vector.broadcast %10 : vector<1x128xf32> to vector<512x128xf32>
    %12 = arith.addf %9, %11 : vector<512x128xf32>
    %13 = arith.addf %12, %5 : vector<512x128xf32>
    %cst_11 = arith.constant 0.000000e+00 : f32
    %14 = vector.broadcast %cst_11 : f32 to vector<512x128xf32>
    %15 = arith.maximumf %13, %14 : vector<512x128xf32>
    %c0_12 = arith.constant 0 : index
    %c0_13 = arith.constant 0 : index
    %16 = vector.load %arg7[%c0_12, %c0_13] : memref<512x128xf32, #tpu.memory_space<vmem>>, vector<512x128xf32>
    tpu.vector_store %arg7[%c0_12, %c0_13], %15 {strides = array<i32>} : memref<512x128xf32, #tpu.memory_space<vmem>>, vector<512x128xf32>,
    return
  }
  func.func @transform_0(%arg0: i32) -> (i32, i32) {
    %c0_i32 = arith.constant 0 : i32
    %c0_i32_0 = arith.constant 0 : i32
    return %arg0, %c0_i32 : i32, i32
  }
  func.func @transform_1(%arg0: i32) -> (i32, i32) {
    %c0_i32 = arith.constant 0 : i32
    %c0_i32_0 = arith.constant 0 : i32
    %c0_i32_1 = arith.constant 0 : i32
    return %c0_i32, %c0_i32_0 : i32, i32
  }
  func.func @transform_2(%arg0: i32) -> (i32, i32) {
    %c0_i32 = arith.constant 0 : i32
    %c0_i32_0 = arith.constant 0 : i32
    %c0_i32_1 = arith.constant 0 : i32
    return %c0_i32, %c0_i32_0 : i32, i32
  }
  func.func @transform_3(%arg0: i32) -> (i32, i32) {
    %c0_i32 = arith.constant 0 : i32
    %c0_i32_0 = arith.constant 0 : i32
    return %arg0, %c0_i32 : i32, i32
  }
  func.func @transform_4(%arg0: i32) -> (i32, i32) {
    %c0_i32 = arith.constant 0 : i32
    %c0_i32_0 = arith.constant 0 : i32
    %c0_i32_1 = arith.constant 0 : i32
    return %c0_i32, %c0_i32_0 : i32, i32
  }
  func.func @transform_5(%arg0: i32) -> (i32, i32) {
    %c0_i32 = arith.constant 0 : i32
    %c0_i32_0 = arith.constant 0 : i32
    %c0_i32_1 = arith.constant 0 : i32
    return %c0_i32, %c0_i32_0 : i32, i32
  }
  func.func @transform_6(%arg0: i32) -> (i32, i32) {
    %c0_i32 = arith.constant 0 : i32
    %c0_i32_0 = arith.constant 0 : i32
    return %arg0, %c0_i32 : i32, i32
  }
}

</mosaic_0001>

<llo_original>
// kernel: residual_double_conv.5
$region0: #{residual_double_conv.5}
  #allocation0 [shape = 'u32[]', space=smem, size = 0x4, offset = 0x4, fixed_abs, tag = 'smem constant byte address 0x4 - core index']
  #allocation1 [shape = 'u32[144,128]{1,0:T(1,128)}', space=vmem, size = 0x12000, scoped, tag = 'internal scratch']
  %s0 = inlined_call_operand.vmem [shape: f32[512,128], index: 0, kind: input, shape index: {}]
  %s1 = inlined_call_operand.vmem [shape: f32[1,128], index: 1, kind: input, shape index: {}]
  %s2 = inlined_call_operand.vmem [shape: f32[1,128], index: 2, kind: input, shape index: {}]
  %s3 = inlined_call_operand.vmem [shape: f32[512,128], index: 3, kind: input, shape index: {}]
  %s4 = inlined_call_operand.vmem [shape: f32[128,128], index: 4, kind: input, shape index: {}]
  %s5 = inlined_call_operand.vmem [shape: f32[1,128], index: 5, kind: input, shape index: {}]
  %s6 = inlined_call_operand.vmem [shape: f32[512,128], index: 6, kind: output, shape index: {}]
  %s7 = sld [smem:[#allocation0]]
  $region34: #{residual_double_conv.5} parent=0
    _
  %s9 = ssub.s32 1, %s7
  %s10 = scalar_select 0, %s9, %s7
  // Predicated region
  $region2: #{residual_double_conv.5} parent=0 // pred_check
    _
  $region3: #{residual_double_conv.5} parent=0 // pred_check_branch
    %12 = sbr.rel (0) target = $region5
  $region4: #{residual_double_conv.5} parent=0 // pred_region
    _
  $region5: #{residual_double_conv.5} parent=0 // pred_fallthru
    _
  // Predicated region
  $region6: #{residual_double_conv.5} parent=0 // pred_check
    _
  $region7: #{residual_double_conv.5} parent=0 // pred_check_branch
    %14 = sbr.rel (0) target = $region9
  $region8: #{residual_double_conv.5} parent=0 // pred_region
    _
  $region9: #{residual_double_conv.5} parent=0 // pred_fallthru
    _
  // Predicated region
  $region10: #{residual_double_conv.5} parent=0 // pred_check
    _
  $region11: #{residual_double_conv.5} parent=0 // pred_check_branch
    %16 = sbr.rel (0) target = $region13
  $region12: #{residual_double_conv.5} parent=0 // pred_region
    _
  $region13: #{residual_double_conv.5} parent=0 // pred_fallthru
    _
  // Predicated region
  $region14: #{residual_double_conv.5} parent=0 // pred_check
    _
  $region15: #{residual_double_conv.5} parent=0 // pred_check_branch
    %18 = sbr.rel (0) target = $region17
  $region16: #{residual_double_conv.5} parent=0 // pred_region
    _
  $region17: #{residual_double_conv.5} parent=0 // pred_fallthru
    _
  // Predicated region
  $region18: #{residual_double_conv.5} parent=0 // pred_check
    _
  $region19: #{residual_double_conv.5} parent=0 // pred_check_branch
    %20 = sbr.rel (0) target = $region21
  $region20: #{residual_double_conv.5} parent=0 // pred_region
    _
  $region21: #{residual_double_conv.5} parent=0 // pred_fallthru
    _
  // Predicated region
  $region22: #{residual_double_conv.5} parent=0 // pred_check
    _
  $region23: #{residual_double_conv.5} parent=0 // pred_check_branch
    %22 = sbr.rel (0) target = $region25
  $region24: #{residual_double_conv.5} parent=0 // pred_region
    _
  $region25: #{residual_double_conv.5} parent=0 // pred_fallthru
    _
  %v23 = vld [vmem:[%s3] sm:$0xff]
  %v24 = vld [vmem:[%s3 + $0x8] sm:$0xff]
  %v25 = vld [vmem:[%s3 + $0x10] sm:$0xff]
  %v26 = vld [vmem:[%s3 + $0x18] sm:$0xff]
  %v27 = vld [vmem:[%s3 + $0x20] sm:$0xff]
  %v28 = vld [vmem:[%s3 + $0x28] sm:$0xff]
  %v29 = vld [vmem:[%s3 + $0x30] sm:$0xff]
  %v30 = vld [vmem:[%s3 + $0x38] sm:$0xff]
  %v31 = vld [vmem:[%s3 + $0x40] sm:$0xff]
  %v32 = vld [vmem:[%s3 + $0x48] sm:$0xff]
  %v33 = vld [vmem:[%s3 + $0x50] sm:$0xff]
  %v34 = vld [vmem:[%s3 + $0x58] sm:$0xff]
  %v35 = vld [vmem:[%s3 + $0x60] sm:$0xff]
  %v36 = vld [vmem:[%s3 + $0x68] sm:$0xff]
  %v37 = vld [vmem:[%s3 + $0x70] sm:$0xff]
  %v38 = vld [vmem:[%s3 + $0x78] sm:$0xff]
  %v39 = vld [vmem:[%s3 + $0x80] sm:$0xff]
  %v40 = vld [vmem:[%s3 + $0x88] sm:$0xff]
  %v41 = vld [vmem:[%s3 + $0x90] sm:$0xff]
  %v42 = vld [vmem:[%s3 + $0x98] sm:$0xff]
  %v43 = vld [vmem:[%s3 + $0xa0] sm:$0xff]
  %v44 = vld [vmem:[%s3 + $0xa8] sm:$0xff]
  %v45 = vld [vmem:[%s3 + $0xb0] sm:$0xff]
  %v46 = vld [vmem:[%s3 + $0xb8] sm:$0xff]
  %v47 = vld [vmem:[%s3 + $0xc0] sm:$0xff]
  %v48 = vld [vmem:[%s3 + $0xc8] sm:$0xff]
  %v49 = vld [vmem:[%s3 + $0xd0] sm:$0xff]
  %v50 = vld [vmem:[%s3 + $0xd8] sm:$0xff]
  %v51 = vld [vmem:[%s3 + $0xe0] sm:$0xff]
  %v52 = vld [vmem:[%s3 + $0xe8] sm:$0xff]
  %v53 = vld [vmem:[%s3 + $0xf0] sm:$0xff]
  %v54 = vld [vmem:[%s3 + $0xf8] sm:$0xff]
  %v55 = vld [vmem:[%s3 + $0x100] sm:$0xff]
  %v56 = vld [vmem:[%s3 + $0x108] sm:$0xff]
  %v57 = vld [vmem:[%s3 + $0x110] sm:$0xff]
  %v58 = vld [vmem:[%s3 + $0x118] sm:$0xff]
  %v59 = vld [vmem:[%s3 + $0x120] sm:$0xff]
  %v60 = vld [vmem:[%s3 + $0x128] sm:$0xff]
  %v61 = vld [vmem:[%s3 + $0x130] sm:$0xff]
  %v62 = vld [vmem:[%s3 + $0x138] sm:$0xff]
  %v63 = vld [vmem:[%s3 + $0x140] sm:$0xff]
  %v64 = vld [vmem:[%s3 + $0x148] sm:$0xff]
  %v65 = vld [vmem:[%s3 + $0x150] sm:$0xff]
  %v66 = vld [vmem:[%s3 + $0x158] sm:$0xff]
  %v67 = vld [vmem:[%s3 + $0x160] sm:$0xff]
  %v68 = vld [vmem:[%s3 + $0x168] sm:$0xff]
  %v69 = vld [vmem:[%s3 + $0x170] sm:$0xff]
  %v70 = vld [vmem:[%s3 + $0x178] sm:$0xff]
  %v71 = vld [vmem:[%s3 + $0x180] sm:$0xff]
  %v72 = vld [vmem:[%s3 + $0x188] sm:$0xff]
  %v73 = vld [vmem:[%s3 + $0x190] sm:$0xff]
  %v74 = vld [vmem:[%s3 + $0x198] sm:$0xff]
  %v75 = vld [vmem:[%s3 + $0x1a0] sm:$0xff]
  %v76 = vld [vmem:[%s3 + $0x1a8] sm:$0xff]
  %v77 = vld [vmem:[%s3 + $0x1b0] sm:$0xff]
  %v78 = vld [vmem:[%s3 + $0x1b8] sm:$0xff]
  %v79 = vld [vmem:[%s3 + $0x1c0] sm:$0xff]
  %v80 = vld [vmem:[%s3 + $0x1c8] sm:$0xff]
  %v81 = vld [vmem:[%s3 + $0x1d0] sm:$0xff]
  %v82 = vld [vmem:[%s3 + $0x1d8] sm:$0xff]
  %v83 = vld [vmem:[%s3 + $0x1e0] sm:$0xff]
  %v84 = vld [vmem:[%s3 + $0x1e8] sm:$0xff]
  %v85 = vld [vmem:[%s3 + $0x1f0] sm:$0xff]
  %v86 = vld [vmem:[%s3 + $0x1f8] sm:$0xff]
  %v87 = vld [vmem:[%s4] sm:$0xff]
  %v88 = vld [vmem:[%s4 + $0x8] sm:$0xff]
  %v89 = vld [vmem:[%s4 + $0x10] sm:$0xff]
  %v90 = vld [vmem:[%s4 + $0x18] sm:$0xff]
  %v91 = vld [vmem:[%s4 + $0x20] sm:$0xff]
  %v92 = vld [vmem:[%s4 + $0x28] sm:$0xff]
  %v93 = vld [vmem:[%s4 + $0x30] sm:$0xff]
  %v94 = vld [vmem:[%s4 + $0x38] sm:$0xff]
  %v95 = vld [vmem:[%s4 + $0x40] sm:$0xff]
  %v96 = vld [vmem:[%s4 + $0x48] sm:$0xff]
  %v97 = vld [vmem:[%s4 + $0x50] sm:$0xff]
  %v98 = vld [vmem:[%s4 + $0x58] sm:$0xff]
  %v99 = vld [vmem:[%s4 + $0x60] sm:$0xff]
  %v100 = vld [vmem:[%s4 + $0x68] sm:$0xff]
  %v101 = vld [vmem:[%s4 + $0x70] sm:$0xff]
  %v102 = vld [vmem:[%s4 + $0x78] sm:$0xff]
  %v103 = vld [vmem:[%s5] sm:$0x1]
  %v105 = vlaneseq
  %v106 = vshrl.u32 %v105, 7
  %v107 = vsub.s32 0, %v106
  %v108 = vrot.slane %v103, %v107
  %110 = vmatprep.subr.mxu0 0.0
  %111 = vmatpush1.msra.mxu0 %v102
  %112 = vmatprep.subr.mxu0 0.0
  %113 = vmatpush1.msra.mxu0 %v101
  %114 = vmatprep.subr.mxu0 0.0
  %115 = vmatpush1.msra.mxu0 %v100
  %116 = vmatprep.subr.mxu0 0.0
  %117 = vmatpush1.msra.mxu0 %v99
  %118 = vmatprep.subr.mxu0 0.0
  %119 = vmatpush1.msra.mxu0 %v98
  %120 = vmatprep.subr.mxu0 0.0
  %121 = vmatpush1.msra.mxu0 %v97
  %122 = vmatprep.subr.mxu0 0.0
  %123 = vmatpush1.msra.mxu0 %v96
  %124 = vmatprep.subr.mxu0 0.0
  %125 = vmatpush1.msra.mxu0 %v95
  %126 = vmatprep.subr.mxu0 0.0
  %127 = vmatpush1.msra.mxu0 %v94
  %128 = vmatprep.subr.mxu0 0.0
  %129 = vmatpush1.msra.mxu0 %v93
  %130 = vmatprep.subr.mxu0 0.0
  %131 = vmatpush1.msra.mxu0 %v92
  %132 = vmatprep.subr.mxu0 0.0
  %133 = vmatpush1.msra.mxu0 %v91
  %134 = vmatprep.subr.mxu0 0.0
  %135 = vmatpush1.msra.mxu0 %v90
  %136 = vmatprep.subr.mxu0 0.0
  %137 = vmatpush1.msra.mxu0 %v89
  %138 = vmatprep.subr.mxu0 0.0
  %139 = vmatpush1.msra.mxu0 %v88
  %140 = vmatprep.subr.mxu0 0.0
  %141 = vmatpush1.msra.mxu0 %v87
  %142 = vmatprep.subr.mxu0 0.0
  %143 = vmatpush2.msra.mxu0 0.0
  %144 = vmatprep.subr.mxu0 0.0
  %145 = vmatpush2.msra.mxu0 0.0
  %146 = vmatprep.subr.mxu0 0.0
  %147 = vmatpush2.msra.mxu0 0.0
  %148 = vmatprep.subr.mxu0 0.0
  %149 = vmatpush2.msra.mxu0 0.0
  %150 = vmatprep.subr.mxu0 0.0
  %151 = vmatpush2.msra.mxu0 0.0
  %152 = vmatprep.subr.mxu0 0.0
  %153 = vmatpush2.msra.mxu0 0.0
  %154 = vmatprep.subr.mxu0 0.0
  %155 = vmatpush2.msra.mxu0 0.0
  %156 = vmatprep.subr.mxu0 0.0
  %157 = vmatpush2.msra.mxu0 0.0
  %158 = vmatprep.subr.mxu0 0.0
  %159 = vmatpush2.msra.mxu0 0.0
  %160 = vmatprep.subr.mxu0 0.0
  %161 = vmatpush2.msra.mxu0 0.0
  %162 = vmatprep.subr.mxu0 0.0
  %163 = vmatpush2.msra.mxu0 0.0
  %164 = vmatprep.subr.mxu0 0.0
  %165 = vmatpush2.msra.mxu0 0.0
  %166 = vmatprep.subr.mxu0 0.0
  %167 = vmatpush2.msra.mxu0 0.0
  %168 = vmatprep.subr.mxu0 0.0
  %169 = vmatpush2.msra.mxu0 0.0
  %170 = vmatprep.subr.mxu0 0.0
  %171 = vmatpush2.msra.mxu0 0.0
  %172 = vmatprep.subr.mxu0 0.0
  %173 = vmatpush2.msra.mxu0 0.0
  %174 = vmatprep.mubr.f32.mxu0 0.0
  %175 = vmatmul.mubr.f32.gmra.mxu0 %v23
  %v176 = vpop.f32.mrf.mxu0
  %v177 = vadd.f32 %v108, %v176
  %v178 = vpop.f32.mrf.mxu0
  %179 = vmatprep.mubr.f32.mxu0 0.0
  %180 = vmatmul.mubr.f32.gmra.mxu0 %v24
  %v181 = vpop.f32.mrf.mxu0
  %v182 = vadd.f32 %v108, %v181
  %v183 = vpop.f32.mrf.mxu0
  %184 = vmatprep.mubr.f32.mxu0 0.0
  %185 = vmatmul.mubr.f32.gmra.mxu0 %v25
  %v186 = vpop.f32.mrf.mxu0
  %v187 = vadd.f32 %v108, %v186
  %v188 = vpop.f32.mrf.mxu0
  %189 = vmatprep.mubr.f32.mxu0 0.0
  %190 = vmatmul.mubr.f32.gmra.mxu0 %v26
  %v191 = vpop.f32.mrf.mxu0
  %v192 = vadd.f32 %v108, %v191
  %v193 = vpop.f32.mrf.mxu0
  %194 = vmatprep.mubr.f32.mxu0 0.0
  %195 = vmatmul.mubr.f32.gmra.mxu0 %v27
  %v196 = vpop.f32.mrf.mxu0
  %v197 = vadd.f32 %v108, %v196
  %v198 = vpop.f32.mrf.mxu0
  %199 = vmatprep.mubr.f32.mxu0 0.0
  %200 = vmatmul.mubr.f32.gmra.mxu0 %v28
  %v201 = vpop.f32.mrf.mxu0
  %v202 = vadd.f32 %v108, %v201
  %v203 = vpop.f32.mrf.mxu0
  %204 = vmatprep.mubr.f32.mxu0 0.0
  %205 = vmatmul.mubr.f32.gmra.mxu0 %v29
  %v206 = vpop.f32.mrf.mxu0
  %v207 = vadd.f32 %v108, %v206
  %v208 = vpop.f32.mrf.mxu0
  %209 = vmatprep.mubr.f32.mxu0 0.0
  %210 = vmatmul.mubr.f32.gmra.mxu0 %v30
  %v211 = vpop.f32.mrf.mxu0
  %v212 = vadd.f32 %v108, %v211
  %v213 = vpop.f32.mrf.mxu0
  %214 = vmatprep.mubr.f32.mxu0 0.0
  %215 = vmatmul.mubr.f32.gmra.mxu0 %v31
  %v216 = vpop.f32.mrf.mxu0
  %v217 = vadd.f32 %v108, %v216
  %v218 = vpop.f32.mrf.mxu0
  %219 = vmatprep.mubr.f32.mxu0 0.0
  %220 = vmatmul.mubr.f32.gmra.mxu0 %v32
  %v221 = vpop.f32.mrf.mxu0
  %v222 = vadd.f32 %v108, %v221
  %v223 = vpop.f32.mrf.mxu0
  %224 = vmatprep.mubr.f32.mxu0 0.0
  %225 = vmatmul.mubr.f32.gmra.mxu0 %v33
  %v226 = vpop.f32.mrf.mxu0
  %v227 = vadd.f32 %v108, %v226
  %v228 = vpop.f32.mrf.mxu0
  %229 = vmatprep.mubr.f32.mxu0 0.0
  %230 = vmatmul.mubr.f32.gmra.mxu0 %v34
  %v231 = vpop.f32.mrf.mxu0
  %v232 = vadd.f32 %v108, %v231
  %v233 = vpop.f32.mrf.mxu0
  %234 = vmatprep.mubr.f32.mxu0 0.0
  %235 = vmatmul.mubr.f32.gmra.mxu0 %v35
  %v236 = vpop.f32.mrf.mxu0
  %v237 = vadd.f32 %v108, %v236
  %v238 = vpop.f32.mrf.mxu0
  %239 = vmatprep.mubr.f32.mxu0 0.0
  %240 = vmatmul.mubr.f32.gmra.mxu0 %v36
  %v241 = vpop.f32.mrf.mxu0
  %v242 = vadd.f32 %v108, %v241
  %v243 = vpop.f32.mrf.mxu0
  %244 = vmatprep.mubr.f32.mxu0 0.0
  %245 = vmatmul.mubr.f32.gmra.mxu0 %v37
  %v246 = vpop.f32.mrf.mxu0
  %v247 = vadd.f32 %v108, %v246
  %v248 = vpop.f32.mrf.mxu0
  %249 = vmatprep.mubr.f32.mxu0 0.0
  %250 = vmatmul.mubr.f32.gmra.mxu0 %v38
  %v251 = vpop.f32.mrf.mxu0
  %v252 = vadd.f32 %v108, %v251
  %v253 = vpop.f32.mrf.mxu0
  %254 = vmatprep.mubr.f32.mxu0 0.0
  %255 = vmatmul.mubr.f32.gmra.mxu0 %v39
  %v256 = vpop.f32.mrf.mxu0
  %v257 = vadd.f32 %v108, %v256
  %v258 = vpop.f32.mrf.mxu0
  %259 = vmatprep.mubr.f32.mxu0 0.0
  %260 = vmatmul.mubr.f32.gmra.mxu0 %v40
  %v261 = vpop.f32.mrf.mxu0
  %v262 = vadd.f32 %v108, %v261
  %v263 = vpop.f32.mrf.mxu0
  %264 = vmatprep.mubr.f32.mxu0 0.0
  %265 = vmatmul.mubr.f32.gmra.mxu0 %v41
  %v266 = vpop.f32.mrf.mxu0
  %v267 = vadd.f32 %v108, %v266
  %v268 = vpop.f32.mrf.mxu0
  %269 = vmatprep.mubr.f32.mxu0 0.0
  %270 = vmatmul.mubr.f32.gmra.mxu0 %v42
  %v271 = vpop.f32.mrf.mxu0
  %v272 = vadd.f32 %v108, %v271
  %v273 = vpop.f32.mrf.mxu0
  %274 = vmatprep.mubr.f32.mxu0 0.0
  %275 = vmatmul.mubr.f32.gmra.mxu0 %v43
  %v276 = vpop.f32.mrf.mxu0
  %v277 = vadd.f32 %v108, %v276
  %v278 = vpop.f32.mrf.mxu0
  %279 = vmatprep.mubr.f32.mxu0 0.0
  %280 = vmatmul.mubr.f32.gmra.mxu0 %v44
  %v281 = vpop.f32.mrf.mxu0
  %v282 = vadd.f32 %v108, %v281
  %v283 = vpop.f32.mrf.mxu0
  %284 = vmatprep.mubr.f32.mxu0 0.0
  %285 = vmatmul.mubr.f32.gmra.mxu0 %v45
  %v286 = vpop.f32.mrf.mxu0
  %v287 = vadd.f32 %v108, %v286
  %v288 = vpop.f32.mrf.mxu0
  %289 = vmatprep.mubr.f32.mxu0 0.0
  %290 = vmatmul.mubr.f32.gmra.mxu0 %v46
  %v291 = vpop.f32.mrf.mxu0
  %v292 = vadd.f32 %v108, %v291
  %v293 = vpop.f32.mrf.mxu0
  %294 = vmatprep.mubr.f32.mxu0 0.0
  %295 = vmatmul.mubr.f32.gmra.mxu0 %v47
  %v296 = vpop.f32.mrf.mxu0
  %v297 = vadd.f32 %v108, %v296
  %v298 = vpop.f32.mrf.mxu0
  %299 = vmatprep.mubr.f32.mxu0 0.0
  %300 = vmatmul.mubr.f32.gmra.mxu0 %v48
  %v301 = vpop.f32.mrf.mxu0
  %v302 = vadd.f32 %v108, %v301
  %v303 = vpop.f32.mrf.mxu0
  %304 = vmatprep.mubr.f32.mxu0 0.0
  %305 = vmatmul.mubr.f32.gmra.mxu0 %v49
  %v306 = vpop.f32.mrf.mxu0
  %v307 = vadd.f32 %v108, %v306
  %v308 = vpop.f32.mrf.mxu0
  %309 = vmatprep.mubr.f32.mxu0 0.0
  %310 = vmatmul.mubr.f32.gmra.mxu0 %v50
  %v311 = vpop.f32.mrf.mxu0
  %v312 = vadd.f32 %v108, %v311
  %v313 = vpop.f32.mrf.mxu0
  %314 = vmatprep.mubr.f32.mxu0 0.0
  %315 = vmatmul.mubr.f32.gmra.mxu0 %v51
  %v316 = vpop.f32.mrf.mxu0
  %v317 = vadd.f32 %v108, %v316
  %v318 = vpop.f32.mrf.mxu0
  %319 = vmatprep.mubr.f32.mxu0 0.0
  %320 = vmatmul.mubr.f32.gmra.mxu0 %v52
  %v321 = vpop.f32.mrf.mxu0
  %v322 = vadd.f32 %v108, %v321
  %v323 = vpop.f32.mrf.mxu0
  %324 = vmatprep.mubr.f32.mxu0 0.0
  %325 = vmatmul.mubr.f32.gmra.mxu0 %v53
  %v326 = vpop.f32.mrf.mxu0
  %v327 = vadd.f32 %v108, %v326
  %v328 = vpop.f32.mrf.mxu0
  %329 = vmatprep.mubr.f32.mxu0 0.0
  %330 = vmatmul.mubr.f32.gmra.mxu0 %v54
  %v331 = vpop.f32.mrf.mxu0
  %v332 = vadd.f32 %v108, %v331
  %v333 = vpop.f32.mrf.mxu0
  %334 = vmatprep.mubr.f32.mxu0 0.0
  %335 = vmatmul.mubr.f32.gmra.mxu0 %v55
  %v336 = vpop.f32.mrf.mxu0
  %v337 = vadd.f32 %v108, %v336
  %v338 = vpop.f32.mrf.mxu0
  %339 = vmatprep.mubr.f32.mxu0 0.0
  %340 = vmatmul.mubr.f32.gmra.mxu0 %v56
  %v341 = vpop.f32.mrf.mxu0
  %v342 = vadd.f32 %v108, %v341
  %v343 = vpop.f32.mrf.mxu0
  %344 = vmatprep.mubr.f32.mxu0 0.0
  %345 = vmatmul.mubr.f32.gmra.mxu0 %v57
  %v346 = vpop.f32.mrf.mxu0
  %v347 = vadd.f32 %v108, %v346
  %v348 = vpop.f32.mrf.mxu0
  %349 = vmatprep.mubr.f32.mxu0 0.0
  %350 = vmatmul.mubr.f32.gmra.mxu0 %v58
  %v351 = vpop.f32.mrf.mxu0
  %v352 = vadd.f32 %v108, %v351
  %v353 = vpop.f32.mrf.mxu0
  %354 = vmatprep.mubr.f32.mxu0 0.0
  %355 = vmatmul.mubr.f32.gmra.mxu0 %v59
  %v356 = vpop.f32.mrf.mxu0
  %v357 = vadd.f32 %v108, %v356
  %v358 = vpop.f32.mrf.mxu0
  %359 = vmatprep.mubr.f32.mxu0 0.0
  %360 = vmatmul.mubr.f32.gmra.mxu0 %v60
  %v361 = vpop.f32.mrf.mxu0
  %v362 = vadd.f32 %v108, %v361
  %v363 = vpop.f32.mrf.mxu0
  %364 = vmatprep.mubr.f32.mxu0 0.0
  %365 = vmatmul.mubr.f32.gmra.mxu0 %v61
  %v366 = vpop.f32.mrf.mxu0
  %v367 = vadd.f32 %v108, %v366
  %v368 = vpop.f32.mrf.mxu0
  %369 = vmatprep.mubr.f32.mxu0 0.0
  %370 = vmatmul.mubr.f32.gmra.mxu0 %v62
  %v371 = vpop.f32.mrf.mxu0
  %v372 = vadd.f32 %v108, %v371
  %v373 = vpop.f32.mrf.mxu0
  %374 = vmatprep.mubr.f32.mxu0 0.0
  %375 = vmatmul.mubr.f32.gmra.mxu0 %v63
  %v376 = vpop.f32.mrf.mxu0
  %v377 = vadd.f32 %v108, %v376
  %v378 = vpop.f32.mrf.mxu0
  %379 = vmatprep.mubr.f32.mxu0 0.0
  %380 = vmatmul.mubr.f32.gmra.mxu0 %v64
  %v381 = vpop.f32.mrf.mxu0
  %v382 = vadd.f32 %v108, %v381
  %v383 = vpop.f32.mrf.mxu0
  %384 = vmatprep.mubr.f32.mxu0 0.0
  %385 = vmatmul.mubr.f32.gmra.mxu0 %v65
  %v386 = vpop.f32.mrf.mxu0
  %v387 = vadd.f32 %v108, %v386
  %v388 = vpop.f32.mrf.mxu0
  %389 = vmatprep.mubr.f32.mxu0 0.0
  %390 = vmatmul.mubr.f32.gmra.mxu0 %v66
  %v391 = vpop.f32.mrf.mxu0
  %v392 = vadd.f32 %v108, %v391
  %v393 = vpop.f32.mrf.mxu0
  %394 = vmatprep.mubr.f32.mxu0 0.0
  %395 = vmatmul.mubr.f32.gmra.mxu0 %v67
  %v396 = vpop.f32.mrf.mxu0
  %v397 = vadd.f32 %v108, %v396
  %v398 = vpop.f32.mrf.mxu0
  %399 = vmatprep.mubr.f32.mxu0 0.0
  %400 = vmatmul.mubr.f32.gmra.mxu0 %v68
  %v401 = vpop.f32.mrf.mxu0
  %v402 = vadd.f32 %v108, %v401
  %v403 = vpop.f32.mrf.mxu0
  %404 = vmatprep.mubr.f32.mxu0 0.0
  %405 = vmatmul.mubr.f32.gmra.mxu0 %v69
  %v406 = vpop.f32.mrf.mxu0
  %v407 = vadd.f32 %v108, %v406
  %v408 = vpop.f32.mrf.mxu0
  %409 = vmatprep.mubr.f32.mxu0 0.0
  %410 = vmatmul.mubr.f32.gmra.mxu0 %v70
  %v411 = vpop.f32.mrf.mxu0
  %v412 = vadd.f32 %v108, %v411
  %v413 = vpop.f32.mrf.mxu0
  %414 = vmatprep.mubr.f32.mxu0 0.0
  %415 = vmatmul.mubr.f32.gmra.mxu0 %v71
  %v416 = vpop.f32.mrf.mxu0
  %v417 = vadd.f32 %v108, %v416
  %v418 = vpop.f32.mrf.mxu0
  %419 = vmatprep.mubr.f32.mxu0 0.0
  %420 = vmatmul.mubr.f32.gmra.mxu0 %v72
  %v421 = vpop.f32.mrf.mxu0
  %v422 = vadd.f32 %v108, %v421
  %v423 = vpop.f32.mrf.mxu0
  %424 = vmatprep.mubr.f32.mxu0 0.0
  %425 = vmatmul.mubr.f32.gmra.mxu0 %v73
  %v426 = vpop.f32.mrf.mxu0
  %v427 = vadd.f32 %v108, %v426
  %v428 = vpop.f32.mrf.mxu0
  %429 = vmatprep.mubr.f32.mxu0 0.0
  %430 = vmatmul.mubr.f32.gmra.mxu0 %v74
  %v431 = vpop.f32.mrf.mxu0
  %v432 = vadd.f32 %v108, %v431
  %v433 = vpop.f32.mrf.mxu0
  %434 = vmatprep.mubr.f32.mxu0 0.0
  %435 = vmatmul.mubr.f32.gmra.mxu0 %v75
  %v436 = vpop.f32.mrf.mxu0
  %v437 = vadd.f32 %v108, %v436
  %v438 = vpop.f32.mrf.mxu0
  %439 = vmatprep.mubr.f32.mxu0 0.0
  %440 = vmatmul.mubr.f32.gmra.mxu0 %v76
  %v441 = vpop.f32.mrf.mxu0
  %v442 = vadd.f32 %v108, %v441
  %v443 = vpop.f32.mrf.mxu0
  %444 = vmatprep.mubr.f32.mxu0 0.0
  %445 = vmatmul.mubr.f32.gmra.mxu0 %v77
  %v446 = vpop.f32.mrf.mxu0
  %v447 = vadd.f32 %v108, %v446
  %v448 = vpop.f32.mrf.mxu0
  %449 = vmatprep.mubr.f32.mxu0 0.0
  %450 = vmatmul.mubr.f32.gmra.mxu0 %v78
  %v451 = vpop.f32.mrf.mxu0
  %v452 = vadd.f32 %v108, %v451
  %v453 = vpop.f32.mrf.mxu0
  %454 = vmatprep.mubr.f32.mxu0 0.0
  %455 = vmatmul.mubr.f32.gmra.mxu0 %v79
  %v456 = vpop.f32.mrf.mxu0
  %v457 = vadd.f32 %v108, %v456
  %v458 = vpop.f32.mrf.mxu0
  %459 = vmatprep.mubr.f32.mxu0 0.0
  %460 = vmatmul.mubr.f32.gmra.mxu0 %v80
  %v461 = vpop.f32.mrf.mxu0
  %v462 = vadd.f32 %v108, %v461
  %v463 = vpop.f32.mrf.mxu0
  %464 = vmatprep.mubr.f32.mxu0 0.0
  %465 = vmatmul.mubr.f32.gmra.mxu0 %v81
  %v466 = vpop.f32.mrf.mxu0
  %v467 = vadd.f32 %v108, %v466
  %v468 = vpop.f32.mrf.mxu0
  %469 = vmatprep.mubr.f32.mxu0 0.0
  %470 = vmatmul.mubr.f32.gmra.mxu0 %v82
  %v471 = vpop.f32.mrf.mxu0
  %v472 = vadd.f32 %v108, %v471
  %v473 = vpop.f32.mrf.mxu0
  %474 = vmatprep.mubr.f32.mxu0 0.0
  %475 = vmatmul.mubr.f32.gmra.mxu0 %v83
  %v476 = vpop.f32.mrf.mxu0
  %v477 = vadd.f32 %v108, %v476
  %v478 = vpop.f32.mrf.mxu0
  %479 = vmatprep.mubr.f32.mxu0 0.0
  %480 = vmatmul.mubr.f32.gmra.mxu0 %v84
  %v481 = vpop.f32.mrf.mxu0
  %v482 = vadd.f32 %v108, %v481
  %v483 = vpop.f32.mrf.mxu0
  %484 = vmatprep.mubr.f32.mxu0 0.0
  %485 = vmatmul.mubr.f32.gmra.mxu0 %v85
  %v486 = vpop.f32.mrf.mxu0
  %v487 = vadd.f32 %v108, %v486
  %v488 = vpop.f32.mrf.mxu0
  %489 = vmatprep.mubr.f32.mxu0 0.0
  %490 = vmatmul.mubr.f32.gmra.mxu0 %v86
  %v491 = vpop.f32.mrf.mxu0
  %v492 = vadd.f32 %v108, %v491
  %v493 = vpop.f32.mrf.mxu0
  %494 = vdwg.mxu0
  %v495 = vld [vmem:[%s0] sm:$0xff]
  %v496 = vld [vmem:[%s0 + $0x8] sm:$0xff]
  %v497 = vld [vmem:[%s0 + $0x10] sm:$0xff]
  %v498 = vld [vmem:[%s0 + $0x18] sm:$0xff]
  %v499 = vld [vmem:[%s0 + $0x20] sm:$0xff]
  %v500 = vld [vmem:[%s0 + $0x28] sm:$0xff]
  %v501 = vld [vmem:[%s0 + $0x30] sm:$0xff]
  %v502 = vld [vmem:[%s0 + $0x38] sm:$0xff]
  %v503 = vld [vmem:[%s0 + $0x40] sm:$0xff]
  %v504 = vld [vmem:[%s0 + $0x48] sm:$0xff]
  %v505 = vld [vmem:[%s0 + $0x50] sm:$0xff]
  %v506 = vld [vmem:[%s0 + $0x58] sm:$0xff]
  %v507 = vld [vmem:[%s0 + $0x60] sm:$0xff]
  %v508 = vld [vmem:[%s0 + $0x68] sm:$0xff]
  %v509 = vld [vmem:[%s0 + $0x70] sm:$0xff]
  %v510 = vld [vmem:[%s0 + $0x78] sm:$0xff]
  %v511 = vld [vmem:[%s0 + $0x80] sm:$0xff]
  %v512 = vld [vmem:[%s0 + $0x88] sm:$0xff]
  %v513 = vld [vmem:[%s0 + $0x90] sm:$0xff]
  %v514 = vld [vmem:[%s0 + $0x98] sm:$0xff]
  %v515 = vld [vmem:[%s0 + $0xa0] sm:$0xff]
  %v516 = vld [vmem:[%s0 + $0xa8] sm:$0xff]
  %v517 = vld [vmem:[%s0 + $0xb0] sm:$0xff]
  %v518 = vld [vmem:[%s0 + $0xb8] sm:$0xff]
  %v519 = vld [vmem:[%s0 + $0xc0] sm:$0xff]
  %v520 = vld [vmem:[%s0 + $0xc8] sm:$0xff]
  %v521 = vld [vmem:[%s0 + $0xd0] sm:$0xff]
  %v522 = vld [vmem:[%s0 + $0xd8] sm:$0xff]
  %v523 = vld [vmem:[%s0 + $0xe0] sm:$0xff]
  %v524 = vld [vmem:[%s0 + $0xe8] sm:$0xff]
  %v525 = vld [vmem:[%s0 + $0xf0] sm:$0xff]
  %v526 = vld [vmem:[%s0 + $0xf8] sm:$0xff]
  %v527 = vld [vmem:[%s0 + $0x100] sm:$0xff]
  %v528 = vld [vmem:[%s0 + $0x108] sm:$0xff]
  %v529 = vld [vmem:[%s0 + $0x110] sm:$0xff]
  %v530 = vld [vmem:[%s0 + $0x118] sm:$0xff]
  %v531 = vld [vmem:[%s0 + $0x120] sm:$0xff]
  %v532 = vld [vmem:[%s0 + $0x128] sm:$0xff]
  %v533 = vld [vmem:[%s0 + $0x130] sm:$0xff]
  %v534 = vld [vmem:[%s0 + $0x138] sm:$0xff]
  %v535 = vld [vmem:[%s0 + $0x140] sm:$0xff]
  %v536 = vld [vmem:[%s0 + $0x148] sm:$0xff]
  %v537 = vld [vmem:[%s0 + $0x150] sm:$0xff]
  %v538 = vld [vmem:[%s0 + $0x158] sm:$0xff]
  %v539 = vld [vmem:[%s0 + $0x160] sm:$0xff]
  %v540 = vld [vmem:[%s0 + $0x168] sm:$0xff]
  %v541 = vld [vmem:[%s0 + $0x170] sm:$0xff]
  %v542 = vld [vmem:[%s0 + $0x178] sm:$0xff]
  %v543 = vld [vmem:[%s0 + $0x180] sm:$0xff]
  %v544 = vld [vmem:[%s0 + $0x188] sm:$0xff]
  %v545 = vld [vmem:[%s0 + $0x190] sm:$0xff]
  %v546 = vld [vmem:[%s0 + $0x198] sm:$0xff]
  %v547 = vld [vmem:[%s0 + $0x1a0] sm:$0xff]
  %v548 = vld [vmem:[%s0 + $0x1a8] sm:$0xff]
  %v549 = vld [vmem:[%s0 + $0x1b0] sm:$0xff]
  %v550 = vld [vmem:[%s0 + $0x1b8] sm:$0xff]
  %v551 = vld [vmem:[%s0 + $0x1c0] sm:$0xff]
  %v552 = vld [vmem:[%s0 + $0x1c8] sm:$0xff]
  %v553 = vld [vmem:[%s0 + $0x1d0] sm:$0xff]
  %v554 = vld [vmem:[%s0 + $0x1d8] sm:$0xff]
  %v555 = vld [vmem:[%s0 + $0x1e0] sm:$0xff]
  %v556 = vld [vmem:[%s0 + $0x1e8] sm:$0xff]
  %v557 = vld [vmem:[%s0 + $0x1f0] sm:$0xff]
  %v558 = vld [vmem:[%s0 + $0x1f8] sm:$0xff]
  %v559 = vld [vmem:[%s1] sm:$0x1]
  %v561 = vlaneseq
  %v562 = vshrl.u32 %v561, 7
  %v563 = vsub.s32 0, %v562
  %v564 = vrot.slane %v559, %v563
  %v566 = vmul.f32 %v495, %v564
  %v567 = vmul.f32 %v496, %v564
  %v568 = vmul.f32 %v497, %v564
  %v569 = vmul.f32 %v498, %v564
  %v570 = vmul.f32 %v499, %v564
  %v571 = vmul.f32 %v500, %v564
  %v572 = vmul.f32 %v501, %v564
  %v573 = vmul.f32 %v502, %v564
  %v574 = vmul.f32 %v503, %v564
  %v575 = vmul.f32 %v504, %v564
  %v576 = vmul.f32 %v505, %v564
  %v577 = vmul.f32 %v506, %v564
  %v578 = vmul.f32 %v507, %v564
  %v579 = vmul.f32 %v508, %v564
  %v580 = vmul.f32 %v509, %v564
  %v581 = vmul.f32 %v510, %v564
  %v582 = vmul.f32 %v511, %v564
  %v583 = vmul.f32 %v512, %v564
  %v584 = vmul.f32 %v513, %v564
  %v585 = vmul.f32 %v514, %v564
  %v586 = vmul.f32 %v515, %v564
  %v587 = vmul.f32 %v516, %v564
  %v588 = vmul.f32 %v517, %v564
  %v589 = vmul.f32 %v518, %v564
  %v590 = vmul.f32 %v519, %v564
  %v591 = vmul.f32 %v520, %v564
  %v592 = vmul.f32 %v521, %v564
  %v593 = vmul.f32 %v522, %v564
  %v594 = vmul.f32 %v523, %v564
  %v595 = vmul.f32 %v524, %v564
  %v596 = vmul.f32 %v525, %v564
  %v597 = vmul.f32 %v526, %v564
  %v598 = vmul.f32 %v527, %v564
  %v599 = vmul.f32 %v528, %v564
  %v600 = vmul.f32 %v529, %v564
  %v601 = vmul.f32 %v530, %v564
  %v602 = vmul.f32 %v531, %v564
  %v603 = vmul.f32 %v532, %v564
  %v604 = vmul.f32 %v533, %v564
  %v605 = vmul.f32 %v534, %v564
  %v606 = vmul.f32 %v535, %v564
  %v607 = vmul.f32 %v536, %v564
  %v608 = vmul.f32 %v537, %v564
  %v609 = vmul.f32 %v538, %v564
  %v610 = vmul.f32 %v539, %v564
  %v611 = vmul.f32 %v540, %v564
  %v612 = vmul.f32 %v541, %v564
  %v613 = vmul.f32 %v542, %v564
  %v614 = vmul.f32 %v543, %v564
  %v615 = vmul.f32 %v544, %v564
  %v616 = vmul.f32 %v545, %v564
  %v617 = vmul.f32 %v546, %v564
  %v618 = vmul.f32 %v547, %v564
  %v619 = vmul.f32 %v548, %v564
  %v620 = vmul.f32 %v549, %v564
  %v621 = vmul.f32 %v550, %v564
  %v622 = vmul.f32 %v551, %v564
  %v623 = vmul.f32 %v552, %v564
  %v624 = vmul.f32 %v553, %v564
  %v625 = vmul.f32 %v554, %v564
  %v626 = vmul.f32 %v555, %v564
  %v627 = vmul.f32 %v556, %v564
  %v628 = vmul.f32 %v557, %v564
  %v629 = vmul.f32 %v558, %v564
  %v630 = vld [vmem:[%s2] sm:$0x1]
  %v632 = vlaneseq
  %v633 = vshrl.u32 %v632, 7
  %v634 = vsub.s32 0, %v633
  %v635 = vrot.slane %v630, %v634
  %v637 = vadd.f32 %v566, %v635
  %v638 = vadd.f32 %v567, %v635
  %v639 = vadd.f32 %v568, %v635
  %v640 = vadd.f32 %v569, %v635
  %v641 = vadd.f32 %v570, %v635
  %v642 = vadd.f32 %v571, %v635
  %v643 = vadd.f32 %v572, %v635
  %v644 = vadd.f32 %v573, %v635
  %v645 = vadd.f32 %v574, %v635
  %v646 = vadd.f32 %v575, %v635
  %v647 = vadd.f32 %v576, %v635
  %v648 = vadd.f32 %v577, %v635
  %v649 = vadd.f32 %v578, %v635
  %v650 = vadd.f32 %v579, %v635
  %v651 = vadd.f32 %v580, %v635
  %v652 = vadd.f32 %v581, %v635
  %v653 = vadd.f32 %v582, %v635
  %v654 = vadd.f32 %v583, %v635
  %v655 = vadd.f32 %v584, %v635
  %v656 = vadd.f32 %v585, %v635
  %v657 = vadd.f32 %v586, %v635
  %v658 = vadd.f32 %v587, %v635
  %v659 = vadd.f32 %v588, %v635
  %v660 = vadd.f32 %v589, %v635
  %v661 = vadd.f32 %v590, %v635
  %v662 = vadd.f32 %v591, %v635
  %v663 = vadd.f32 %v592, %v635
  %v664 = vadd.f32 %v593, %v635
  %v665 = vadd.f32 %v594, %v635
  %v666 = vadd.f32 %v595, %v635
  %v667 = vadd.f32 %v596, %v635
  %v668 = vadd.f32 %v597, %v635
  %v669 = vadd.f32 %v598, %v635
  %v670 = vadd.f32 %v599, %v635
  %v671 = vadd.f32 %v600, %v635
  %v672 = vadd.f32 %v601, %v635
  %v673 = vadd.f32 %v602, %v635
  %v674 = vadd.f32 %v603, %v635
  %v675 = vadd.f32 %v604, %v635
  %v676 = vadd.f32 %v605, %v635
  %v677 = vadd.f32 %v606, %v635
  %v678 = vadd.f32 %v607, %v635
  %v679 = vadd.f32 %v608, %v635
  %v680 = vadd.f32 %v609, %v635
  %v681 = vadd.f32 %v610, %v635
  %v682 = vadd.f32 %v611, %v635
  %v683 = vadd.f32 %v612, %v635
  %v684 = vadd.f32 %v613, %v635
  %v685 = vadd.f32 %v614, %v635
  %v686 = vadd.f32 %v615, %v635
  %v687 = vadd.f32 %v616, %v635
  %v688 = vadd.f32 %v617, %v635
  %v689 = vadd.f32 %v618, %v635
  %v690 = vadd.f32 %v619, %v635
  %v691 = vadd.f32 %v620, %v635
  %v692 = vadd.f32 %v621, %v635
  %v693 = vadd.f32 %v622, %v635
  %v694 = vadd.f32 %v623, %v635
  %v695 = vadd.f32 %v624, %v635
  %v696 = vadd.f32 %v625, %v635
  %v697 = vadd.f32 %v626, %v635
  %v698 = vadd.f32 %v627, %v635
  %v699 = vadd.f32 %v628, %v635
  %v700 = vadd.f32 %v629, %v635
  %v701 = vadd.f32 %v637, %v177
  %v702 = vadd.f32 %v638, %v182
  %v703 = vadd.f32 %v639, %v187
  %v704 = vadd.f32 %v640, %v192
  %v705 = vadd.f32 %v641, %v197
  %v706 = vadd.f32 %v642, %v202
  %v707 = vadd.f32 %v643, %v207
  %v708 = vadd.f32 %v644, %v212
  %v709 = vadd.f32 %v645, %v217
  %v710 = vadd.f32 %v646, %v222
  %v711 = vadd.f32 %v647, %v227
  %v712 = vadd.f32 %v648, %v232
  %v713 = vadd.f32 %v649, %v237
  %v714 = vadd.f32 %v650, %v242
  %v715 = vadd.f32 %v651, %v247
  %v716 = vadd.f32 %v652, %v252
  %v717 = vadd.f32 %v653, %v257
  %v718 = vadd.f32 %v654, %v262
  %v719 = vadd.f32 %v655, %v267
  %v720 = vadd.f32 %v656, %v272
  %v721 = vadd.f32 %v657, %v277
  %v722 = vadd.f32 %v658, %v282
  %v723 = vadd.f32 %v659, %v287
  %v724 = vadd.f32 %v660, %v292
  %v725 = vadd.f32 %v661, %v297
  %v726 = vadd.f32 %v662, %v302
  %v727 = vadd.f32 %v663, %v307
  %v728 = vadd.f32 %v664, %v312
  %v729 = vadd.f32 %v665, %v317
  %v730 = vadd.f32 %v666, %v322
  %v731 = vadd.f32 %v667, %v327
  %v732 = vadd.f32 %v668, %v332
  %v733 = vadd.f32 %v669, %v337
  %v734 = vadd.f32 %v670, %v342
  %v735 = vadd.f32 %v671, %v347
  %v736 = vadd.f32 %v672, %v352
  %v737 = vadd.f32 %v673, %v357
  %v738 = vadd.f32 %v674, %v362
  %v739 = vadd.f32 %v675, %v367
  %v740 = vadd.f32 %v676, %v372
  %v741 = vadd.f32 %v677, %v377
  %v742 = vadd.f32 %v678, %v382
  %v743 = vadd.f32 %v679, %v387
  %v744 = vadd.f32 %v680, %v392
  %v745 = vadd.f32 %v681, %v397
  %v746 = vadd.f32 %v682, %v402
  %v747 = vadd.f32 %v683, %v407
  %v748 = vadd.f32 %v684, %v412
  %v749 = vadd.f32 %v685, %v417
  %v750 = vadd.f32 %v686, %v422
  %v751 = vadd.f32 %v687, %v427
  %v752 = vadd.f32 %v688, %v432
  %v753 = vadd.f32 %v689, %v437
  %v754 = vadd.f32 %v690, %v442
  %v755 = vadd.f32 %v691, %v447
  %v756 = vadd.f32 %v692, %v452
  %v757 = vadd.f32 %v693, %v457
  %v758 = vadd.f32 %v694, %v462
  %v759 = vadd.f32 %v695, %v467
  %v760 = vadd.f32 %v696, %v472
  %v761 = vadd.f32 %v697, %v477
  %v762 = vadd.f32 %v698, %v482
  %v763 = vadd.f32 %v699, %v487
  %v764 = vadd.f32 %v700, %v492
  %v765 = vmax.f32 %v701, 0.0
  %v766 = vmax.f32 %v702, 0.0
  %v767 = vmax.f32 %v703, 0.0
  %v768 = vmax.f32 %v704, 0.0
  %v769 = vmax.f32 %v705, 0.0
  %v770 = vmax.f32 %v706, 0.0
  %v771 = vmax.f32 %v707, 0.0
  %v772 = vmax.f32 %v708, 0.0
  %v773 = vmax.f32 %v709, 0.0
  %v774 = vmax.f32 %v710, 0.0
  %v775 = vmax.f32 %v711, 0.0
  %v776 = vmax.f32 %v712, 0.0
  %v777 = vmax.f32 %v713, 0.0
  %v778 = vmax.f32 %v714, 0.0
  %v779 = vmax.f32 %v715, 0.0
  %v780 = vmax.f32 %v716, 0.0
  %v781 = vmax.f32 %v717, 0.0
  %v782 = vmax.f32 %v718, 0.0
  %v783 = vmax.f32 %v719, 0.0
  %v784 = vmax.f32 %v720, 0.0
  %v785 = vmax.f32 %v721, 0.0
  %v786 = vmax.f32 %v722, 0.0
  %v787 = vmax.f32 %v723, 0.0
  %v788 = vmax.f32 %v724, 0.0
  %v789 = vmax.f32 %v725, 0.0
  %v790 = vmax.f32 %v726, 0.0
  %v791 = vmax.f32 %v727, 0.0
  %v792 = vmax.f32 %v728, 0.0
  %v793 = vmax.f32 %v729, 0.0
  %v794 = vmax.f32 %v730, 0.0
  %v795 = vmax.f32 %v731, 0.0
  %v796 = vmax.f32 %v732, 0.0
  %v797 = vmax.f32 %v733, 0.0
  %v798 = vmax.f32 %v734, 0.0
  %v799 = vmax.f32 %v735, 0.0
  %v800 = vmax.f32 %v736, 0.0
  %v801 = vmax.f32 %v737, 0.0
  %v802 = vmax.f32 %v738, 0.0
  %v803 = vmax.f32 %v739, 0.0
  %v804 = vmax.f32 %v740, 0.0
  %v805 = vmax.f32 %v741, 0.0
  %v806 = vmax.f32 %v742, 0.0
  %v807 = vmax.f32 %v743, 0.0
  %v808 = vmax.f32 %v744, 0.0
  %v809 = vmax.f32 %v745, 0.0
  %v810 = vmax.f32 %v746, 0.0
  %v811 = vmax.f32 %v747, 0.0
  %v812 = vmax.f32 %v748, 0.0
  %v813 = vmax.f32 %v749, 0.0
  %v814 = vmax.f32 %v750, 0.0
  %v815 = vmax.f32 %v751, 0.0
  %v816 = vmax.f32 %v752, 0.0
  %v817 = vmax.f32 %v753, 0.0
  %v818 = vmax.f32 %v754, 0.0
  %v819 = vmax.f32 %v755, 0.0
  %v820 = vmax.f32 %v756, 0.0
  %v821 = vmax.f32 %v757, 0.0
  %v822 = vmax.f32 %v758, 0.0
  %v823 = vmax.f32 %v759, 0.0
  %v824 = vmax.f32 %v760, 0.0
  %v825 = vmax.f32 %v761, 0.0
  %v826 = vmax.f32 %v762, 0.0
  %v827 = vmax.f32 %v763, 0.0
  %v828 = vmax.f32 %v764, 0.0
  %829 = vst [vmem:[%s6] sm:$0xff] %v765
  %830 = vst [vmem:[%s6 + $0x8] sm:$0xff] %v766
  %831 = vst [vmem:[%s6 + $0x10] sm:$0xff] %v767
  %832 = vst [vmem:[%s6 + $0x18] sm:$0xff] %v768
  %833 = vst [vmem:[%s6 + $0x20] sm:$0xff] %v769
  %834 = vst [vmem:[%s6 + $0x28] sm:$0xff] %v770
  %835 = vst [vmem:[%s6 + $0x30] sm:$0xff] %v771
  %836 = vst [vmem:[%s6 + $0x38] sm:$0xff] %v772
  %837 = vst [vmem:[%s6 + $0x40] sm:$0xff] %v773
  %838 = vst [vmem:[%s6 + $0x48] sm:$0xff] %v774
  %839 = vst [vmem:[%s6 + $0x50] sm:$0xff] %v775
  %840 = vst [vmem:[%s6 + $0x58] sm:$0xff] %v776
  %841 = vst [vmem:[%s6 + $0x60] sm:$0xff] %v777
  %842 = vst [vmem:[%s6 + $0x68] sm:$0xff] %v778
  %843 = vst [vmem:[%s6 + $0x70] sm:$0xff] %v779
  %844 = vst [vmem:[%s6 + $0x78] sm:$0xff] %v780
  %845 = vst [vmem:[%s6 + $0x80] sm:$0xff] %v781
  %846 = vst [vmem:[%s6 + $0x88] sm:$0xff] %v782
  %847 = vst [vmem:[%s6 + $0x90] sm:$0xff] %v783
  %848 = vst [vmem:[%s6 + $0x98] sm:$0xff] %v784
  %849 = vst [vmem:[%s6 + $0xa0] sm:$0xff] %v785
  %850 = vst [vmem:[%s6 + $0xa8] sm:$0xff] %v786
  %851 = vst [vmem:[%s6 + $0xb0] sm:$0xff] %v787
  %852 = vst [vmem:[%s6 + $0xb8] sm:$0xff] %v788
  %853 = vst [vmem:[%s6 + $0xc0] sm:$0xff] %v789
  %854 = vst [vmem:[%s6 + $0xc8] sm:$0xff] %v790
  %855 = vst [vmem:[%s6 + $0xd0] sm:$0xff] %v791
  %856 = vst [vmem:[%s6 + $0xd8] sm:$0xff] %v792
  %857 = vst [vmem:[%s6 + $0xe0] sm:$0xff] %v793
  %858 = vst [vmem:[%s6 + $0xe8] sm:$0xff] %v794
  %859 = vst [vmem:[%s6 + $0xf0] sm:$0xff] %v795
  %860 = vst [vmem:[%s6 + $0xf8] sm:$0xff] %v796
  %861 = vst [vmem:[%s6 + $0x100] sm:$0xff] %v797
  %862 = vst [vmem:[%s6 + $0x108] sm:$0xff] %v798
  %863 = vst [vmem:[%s6 + $0x110] sm:$0xff] %v799
  %864 = vst [vmem:[%s6 + $0x118] sm:$0xff] %v800
  %865 = vst [vmem:[%s6 + $0x120] sm:$0xff] %v801
  %866 = vst [vmem:[%s6 + $0x128] sm:$0xff] %v802
  %867 = vst [vmem:[%s6 + $0x130] sm:$0xff] %v803
  %868 = vst [vmem:[%s6 + $0x138] sm:$0xff] %v804
  %869 = vst [vmem:[%s6 + $0x140] sm:$0xff] %v805
  %870 = vst [vmem:[%s6 + $0x148] sm:$0xff] %v806
  %871 = vst [vmem:[%s6 + $0x150] sm:$0xff] %v807
  %872 = vst [vmem:[%s6 + $0x158] sm:$0xff] %v808
  %873 = vst [vmem:[%s6 + $0x160] sm:$0xff] %v809
  %874 = vst [vmem:[%s6 + $0x168] sm:$0xff] %v810
  %875 = vst [vmem:[%s6 + $0x170] sm:$0xff] %v811
  %876 = vst [vmem:[%s6 + $0x178] sm:$0xff] %v812
  %877 = vst [vmem:[%s6 + $0x180] sm:$0xff] %v813
  %878 = vst [vmem:[%s6 + $0x188] sm:$0xff] %v814
  %879 = vst [vmem:[%s6 + $0x190] sm:$0xff] %v815
  %880 = vst [vmem:[%s6 + $0x198] sm:$0xff] %v816
  %881 = vst [vmem:[%s6 + $0x1a0] sm:$0xff] %v817
  %882 = vst [vmem:[%s6 + $0x1a8] sm:$0xff] %v818
  %883 = vst [vmem:[%s6 + $0x1b0] sm:$0xff] %v819
  %884 = vst [vmem:[%s6 + $0x1b8] sm:$0xff] %v820
  %885 = vst [vmem:[%s6 + $0x1c0] sm:$0xff] %v821
  %886 = vst [vmem:[%s6 + $0x1c8] sm:$0xff] %v822
  %887 = vst [vmem:[%s6 + $0x1d0] sm:$0xff] %v823
  %888 = vst [vmem:[%s6 + $0x1d8] sm:$0xff] %v824
  %889 = vst [vmem:[%s6 + $0x1e0] sm:$0xff] %v825
  %890 = vst [vmem:[%s6 + $0x1e8] sm:$0xff] %v826
  %891 = vst [vmem:[%s6 + $0x1f0] sm:$0xff] %v827
  %892 = vst [vmem:[%s6 + $0x1f8] sm:$0xff] %v828
  // Predicated region
  $region26: #{residual_double_conv.5} parent=0 // pred_check
    _
  $region27: #{residual_double_conv.5} parent=0 // pred_check_branch
    %894 = sbr.rel (0) target = $region29
  $region28: #{residual_double_conv.5} parent=0 // pred_region
    _
  $region29: #{residual_double_conv.5} parent=0 // pred_fallthru
    _
  // Predicated region
  $region30: #{residual_double_conv.5} parent=0 // pred_check
    _
  $region31: #{residual_double_conv.5} parent=0 // pred_check_branch
    %896 = sbr.rel (0) target = $region33
  $region32: #{residual_double_conv.5} parent=0 // pred_region
    _
  $region33: #{residual_double_conv.5} parent=0 // pred_fallthru
    _

// kernel: residual_double_conv.3
$region0: #{residual_double_conv.3}
  #allocation0 [shape = 'u32[]', space=smem, size = 0x4, offset = 0x4, fixed_abs, tag = 'smem constant byte address 0x4 - core index']
  #allocation1 [shape = 'u32[144,128]{1,0:T(1,128)}', space=vmem, size = 0x12000, scoped, tag = 'internal scratch']
  #allocation2 [shape = 'f32[18,18,128]{2,1,0:T(8,128)}', space=vmem, size = 0x36000, scoped, tag = 'scratch operand']
  %s0 = inlined_call_operand.vmem [shape: f32[2,16,16,128], index: 0, kind: input, shape index: {}]
  %s1 = inlined_call_operand.vmem [shape: f32[3,384,128], index: 1, kind: input, shape index: {}]
  %s2 = inlined_call_operand.vmem [shape: f32[2,16,16,128], index: 2, kind: output, shape index: {0}]
  %s3 = inlined_call_operand.vmem [shape: f32[2,1,128], index: 3, kind: output, shape index: {1}]
  %s4 = inlined_call_operand.vmem [shape: f32[2,1,128], index: 4, kind: output, shape index: {2}]
  %5 = xla_tuple %s2, %s3, %s4
  %s6 = sld [smem:[#allocation0]]
  $region57: #{residual_double_conv.3} parent=0
    _
  %s8 = ssub.s32 1, %s6
  %s9 = scalar_select 0, %s8, %s6
  loop: start=0, step=1, limit=4
  $region2: #{residual_double_conv.3} parent=0 // loop_pre_header
    _
  $region3: #{residual_double_conv.3} parent=0 // loop_header
    %s11 = sphi 0, %s15
    %p12 = scmp.ge.s32.totalorder %s11, 4
    %s21 = sphi 0, %s23
    %s24 = sphi 0, %s21
    %s25 = sphi 0, %s24
    %s41 = sphi 0, %s25
    %s45 = sphi 0, %s45
    %s47 = sphi 0, %s45
    %s48 = sphi 0, %s47
    %s62 = sphi 0, %s48
    %s68 = sphi 0, %s70
    %s71 = sphi 0, %s68
    %s72 = sphi 0, %s71
    %s88 = sphi 0, %s72
    %s94 = sphi 0, %s96
    %s97 = sphi 0, %s94
    %s98 = sphi 0, %s97
    %s114 = sphi 0, %s98
    %s120 = sphi 0, %s122
    %s123 = sphi 0, %s120
    %s124 = sphi 0, %s123
    %s140 = sphi 0, %s124
  $region4: #{residual_double_conv.3} parent=0 // loop_header_branch
    %14 = sbr.rel (%p12) target = $region8
  $region5: #{residual_double_conv.3} parent=0 // loop_body
    %s16 = ssub.s32 %s11, 1
    %s17 = ssub.s32 %s11, 2
    %s18 = sadd.s32 %s11, 1
    %s19 = ssub.s32 %s11, %s18
    %p20 = scmp.eq.s32.totalorder %s19, 0
    %s22 = sadd.s32 %s21, 1
    %s23 = scalar_select %p20, %s21, %s22
    %p26 = pneg %p20
    %p27 = scmp.eq.s32.totalorder %s11, 1
    %p28 = por %p26, %p27
    %p29 = scmp.ne.s32.totalorder %s21, %s24
    %p30 = scmp.eq.s32.totalorder %s11, 0
    %p31 = por %p29, %p30
    %p32 = scmp.ne.s32.totalorder %s21, %s24
    %p33 = scmp.eq.s32.totalorder %s16, 1
    %p34 = por %p32, %p33
    %p35 = scmp.ne.s32.totalorder %s24, %s25
    %p36 = scmp.eq.s32.totalorder %s16, 0
    %p37 = por %p35, %p36
    %p38 = scmp.ne.s32.totalorder %s24, %s25
    %p39 = scmp.eq.s32.totalorder %s17, 1
    %p40 = por %p38, %p39
    %p42 = scmp.ne.s32.totalorder %s25, %s41
    %p43 = scmp.eq.s32.totalorder %s17, 0
    %p44 = por %p42, %p43
    %s46 = sadd.s32 %s45, 1
    %p49 = scmp.eq.s32.totalorder %s11, 1
    %p50 = scmp.ne.s32.totalorder %s45, %s47
    %p51 = scmp.eq.s32.totalorder %s11, 0
    %p52 = por %p50, %p51
    %p53 = scmp.ne.s32.totalorder %s45, %s47
    %p54 = scmp.eq.s32.totalorder %s16, 1
    %p55 = por %p53, %p54
    %p56 = scmp.ne.s32.totalorder %s47, %s48
    %p57 = scmp.eq.s32.totalorder %s16, 0
    %p58 = por %p56, %p57
    %p59 = scmp.ne.s32.totalorder %s47, %s48
    %p60 = scmp.eq.s32.totalorder %s17, 1
    %p61 = por %p59, %p60
    %p63 = scmp.ne.s32.totalorder %s48, %s62
    %p64 = scmp.eq.s32.totalorder %s17, 0
    %p65 = por %p63, %p64
    %s66 = ssub.s32 %s11, %s18
    %p67 = scmp.eq.s32.totalorder %s66, 0
    %s69 = sadd.s32 %s68, 1
    %s70 = scalar_select %p67, %s68, %s69
    %p73 = pneg %p67
    %p74 = scmp.eq.s32.totalorder %s11, 1
    %p75 = por %p73, %p74
    %p76 = scmp.ne.s32.totalorder %s68, %s71
    %p77 = scmp.eq.s32.totalorder %s11, 0
    %p78 = por %p76, %p77
    %p79 = scmp.ne.s32.totalorder %s68, %s71
    %p80 = scmp.eq.s32.totalorder %s16, 1
    %p81 = por %p79, %p80
    %p82 = scmp.ne.s32.totalorder %s71, %s72
    %p83 = scmp.eq.s32.totalorder %s16, 0
    %p84 = por %p82, %p83
    %p85 = scmp.ne.s32.totalorder %s71, %s72
    %p86 = scmp.eq.s32.totalorder %s17, 1
    %p87 = por %p85, %p86
    %p89 = scmp.ne.s32.totalorder %s72, %s88
    %p90 = scmp.eq.s32.totalorder %s17, 0
    %p91 = por %p89, %p90
    %s92 = ssub.s32 %s11, %s18
    %p93 = scmp.eq.s32.totalorder %s92, 0
    %s95 = sadd.s32 %s94, 1
    %s96 = scalar_select %p93, %s94, %s95
    %p99 = pneg %p93
    %p100 = scmp.eq.s32.totalorder %s11, 1
    %p101 = por %p99, %p100
    %p102 = scmp.ne.s32.totalorder %s94, %s97
    %p103 = scmp.eq.s32.totalorder %s11, 0
    %p104 = por %p102, %p103
    %p105 = scmp.ne.s32.totalorder %s94, %s97
    %p106 = scmp.eq.s32.totalorder %s16, 1
    %p107 = por %p105, %p106
    %p108 = scmp.ne.s32.totalorder %s97, %s98
    %p109 = scmp.eq.s32.totalorder %s16, 0
    %p110 = por %p108, %p109
    %p111 = scmp.ne.s32.totalorder %s97, %s98
    %p112 = scmp.eq.s32.totalorder %s17, 1
    %p113 = por %p111, %p112
    %p115 = scmp.ne.s32.totalorder %s98, %s114
    %p116 = scmp.eq.s32.totalorder %s17, 0
    %p117 = por %p115, %p116
    %s118 = ssub.s32 %s11, %s18
    %p119 = scmp.eq.s32.totalorder %s118, 0
    %s121 = sadd.s32 %s120, 1
    %s122 = scalar_select %p119, %s120, %s121
    %p125 = pneg %p119
    %p126 = scmp.eq.s32.totalorder %s11, 1
    %p127 = por %p125, %p126
    %p128 = scmp.ne.s32.totalorder %s120, %s123
    %p129 = scmp.eq.s32.totalorder %s11, 0
    %p130 = por %p128, %p129
    %p131 = scmp.ne.s32.totalorder %s120, %s123
    %p132 = scmp.eq.s32.totalorder %s16, 1
    %p133 = por %p131, %p132
    %p134 = scmp.ne.s32.totalorder %s123, %s124
    %p135 = scmp.eq.s32.totalorder %s16, 0
    %p136 = por %p134, %p135
    %p137 = scmp.ne.s32.totalorder %s123, %s124
    %p138 = scmp.eq.s32.totalorder %s17, 1
    %p139 = por %p137, %p138
    %p141 = scmp.ne.s32.totalorder %s124, %s140
    %p142 = scmp.eq.s32.totalorder %s17, 0
    %p143 = por %p141, %p142
    %p144 = scmp.le.s32.totalorder 1, %s11
    %p145 = scmp.lt.s32.totalorder %s11, 3
    %p146 = pnand %p144, %p145
    %p147 = pneg %p146
    // Predicated region
    $region9: #{residual_double_conv.3} parent=5 // pred_check
      _
    $region10: #{residual_double_conv.3} parent=5 // pred_check_branch
      %149 = sbr.rel (%p146) target = $region12
    $region11: #{residual_double_conv.3} parent=5 // pred_region
      %s150 = ssub.s32 %s11, 1
      // Predicated region
      $region13: #{residual_double_conv.3} parent=11 // pred_check
        %p151 = pneg %p58
      $region14: #{residual_double_conv.3} parent=11 // pred_check_branch
        %153 = sbr.rel (%p151) target = $region16
      $region15: #{residual_double_conv.3} parent=11 // pred_region
        _
      $region16: #{residual_double_conv.3} parent=11 // pred_fallthru
        _
    $region12: #{residual_double_conv.3} parent=5 // pred_fallthru
      _
    %p154 = scmp.lt.s32.totalorder %s11, 2
    // Predicated region
    $region17: #{residual_double_conv.3} parent=5 // pred_check
      %p155 = pneg %p154
    $region18: #{residual_double_conv.3} parent=5 // pred_check_branch
      %157 = sbr.rel (%p155) target = $region20
    $region19: #{residual_double_conv.3} parent=5 // pred_region
      // Predicated region
      $region21: #{residual_double_conv.3} parent=19 // pred_check
        %p158 = pneg %p31
      $region22: #{residual_double_conv.3} parent=19 // pred_check_branch
        %160 = sbr.rel (%p158) target = $region24
      $region23: #{residual_double_conv.3} parent=19 // pred_region
        %p161 = scmp.lt.s32.totalorder %s11, 1
        %s162 = scalar_select %p161, %s11, 1
        %s163 = smul.addr %s162, 32
        %s164 = smul.addr %s163, 8
        %s165 = scalar_lea.vmem %s0, %s164
      $region24: #{residual_double_conv.3} parent=19 // pred_fallthru
        _
    $region20: #{residual_double_conv.3} parent=5 // pred_fallthru
      _
    %p166 = scmp.le.s32.totalorder 1, %s11
    %p167 = scmp.lt.s32.totalorder %s11, 3
    %p168 = pnand %p166, %p167
    %p169 = pneg %p168
    // Predicated region
    $region25: #{residual_double_conv.3} parent=5 // pred_check
      _
    $region26: #{residual_double_conv.3} parent=5 // pred_check_branch
      %171 = sbr.rel (%p168) target = $region28
    $region27: #{residual_double_conv.3} parent=5 // pred_region
      %s172 = ssub.s32 %s11, 1
      %p173 = scmp.lt.s32.totalorder %s16, 1
      %s174 = scalar_select %p173, %s16, 1
      %s175 = smul.addr %s174, 32
      %s176 = smul.addr %s175, 8
      %s177 = scalar_lea.vmem %s0, %s176
      %p178 = pneg %p37
      %p179 = pneg %p34
      %p180 = pneg %p58
      %p181 = pneg %p55
      %p182 = pneg %p84
      %p183 = pneg %p81
      %p184 = scmp.lt.s32.totalorder %s16, 1
      %s185 = scalar_select %p184, %s16, 1
      %s186 = smul.addr %s185, 32
      %s187 = smul.addr %s186, 8
      %s188 = scalar_lea.vmem %s2, %s187
      %p189 = pneg %p110
      %p190 = pneg %p107
      %p191 = scmp.lt.s32.totalorder %s16, 1
      %s192 = scalar_select %p191, %s16, 1
      %s193 = scalar_lea.vmem %s3, %s192
      %p194 = pneg %p136
      %p195 = pneg %p133
      %p196 = scmp.lt.s32.totalorder %s16, 1
      %s197 = scalar_select %p196, %s16, 1
      %s198 = scalar_lea.vmem %s4, %s197
      %p199 = scmp.lt.s32.totalorder %s16, 1
      %s200 = scalar_select %p199, %s16, 1
      %s201 = smul.addr %s200, 32
      %s202 = smul.addr %s201, 8
      %s203 = scalar_lea.vmem %s0, %s202
      %p204 = scmp.lt.s32.totalorder %s16, 1
      %s205 = scalar_select %p204, %s16, 1
      %s206 = smul.addr %s205, 32
      %s207 = smul.addr %s206, 8
      %s208 = scalar_lea.vmem %s2, %s207
      %p209 = scmp.lt.s32.totalorder %s16, 1
      %s210 = scalar_select %p209, %s16, 1
      %s211 = scalar_lea.vmem %s3, %s210
      %p212 = scmp.lt.s32.totalorder %s16, 1
      %s213 = scalar_select %p212, %s16, 1
      %s214 = scalar_lea.vmem %s4, %s213
      %v215 = vld [vmem:[%s203] sm:$0xff]
      %v216 = vld [vmem:[%s203 + $0x8] sm:$0xff]
      %v217 = vld [vmem:[%s203 + $0x10] sm:$0xff]
      %v218 = vld [vmem:[%s203 + $0x18] sm:$0xff]
      %v219 = vld [vmem:[%s203 + $0x20] sm:$0xff]
      %v220 = vld [vmem:[%s203 + $0x28] sm:$0xff]
      %v221 = vld [vmem:[%s203 + $0x30] sm:$0xff]
      %v222 = vld [vmem:[%s203 + $0x38] sm:$0xff]
      %v223 = vld [vmem:[%s203 + $0x40] sm:$0xff]
      %v224 = vld [vmem:[%s203 + $0x48] sm:$0xff]
      %v225 = vld [vmem:[%s203 + $0x50] sm:$0xff]
      %v226 = vld [vmem:[%s203 + $0x58] sm:$0xff]
      %v227 = vld [vmem:[%s203 + $0x60] sm:$0xff]
      %v228 = vld [vmem:[%s203 + $0x68] sm:$0xff]
      %v229 = vld [vmem:[%s203 + $0x70] sm:$0xff]
      %v230 = vld [vmem:[%s203 + $0x78] sm:$0xff]
      %v231 = vld [vmem:[%s203 + $0x80] sm:$0xff]
      %v232 = vld [vmem:[%s203 + $0x88] sm:$0xff]
      %v233 = vld [vmem:[%s203 + $0x90] sm:$0xff]
      %v234 = vld [vmem:[%s203 + $0x98] sm:$0xff]
      %v235 = vld [vmem:[%s203 + $0xa0] sm:$0xff]
      %v236 = vld [vmem:[%s203 + $0xa8] sm:$0xff]
      %v237 = vld [vmem:[%s203 + $0xb0] sm:$0xff]
      %v238 = vld [vmem:[%s203 + $0xb8] sm:$0xff]
      %v239 = vld [vmem:[%s203 + $0xc0] sm:$0xff]
      %v240 = vld [vmem:[%s203 + $0xc8] sm:$0xff]
      %v241 = vld [vmem:[%s203 + $0xd0] sm:$0xff]
      %v242 = vld [vmem:[%s203 + $0xd8] sm:$0xff]
      %v243 = vld [vmem:[%s203 + $0xe0] sm:$0xff]
      %v244 = vld [vmem:[%s203 + $0xe8] sm:$0xff]
      %v245 = vld [vmem:[%s203 + $0xf0] sm:$0xff]
      %v246 = vld [vmem:[%s203 + $0xf8] sm:$0xff]
      %vm279 = vcmask 1040384
      %v280 = vrot.slane %v215, 7
      %v281 = vrot.slane %v216, 7
      %v282 = vsel %vm279, %v280, %v281
      %v283 = vrot.slane %v217, 7
      %v284 = vrot.slane %v218, 7
      %v285 = vsel %vm279, %v283, %v284
      %v286 = vrot.slane %v219, 7
      %v287 = vrot.slane %v220, 7
      %v288 = vsel %vm279, %v286, %v287
      %v289 = vrot.slane %v221, 7
      %v290 = vrot.slane %v222, 7
      %v291 = vsel %vm279, %v289, %v290
      %v292 = vrot.slane %v223, 7
      %v293 = vrot.slane %v224, 7
      %v294 = vsel %vm279, %v292, %v293
      %v295 = vrot.slane %v225, 7
      %v296 = vrot.slane %v226, 7
      %v297 = vsel %vm279, %v295, %v296
      %v298 = vrot.slane %v227, 7
      %v299 = vrot.slane %v228, 7
      %v300 = vsel %vm279, %v298, %v299
      %v301 = vrot.slane %v229, 7
      %v302 = vrot.slane %v230, 7
      %v303 = vsel %vm279, %v301, %v302
      %v304 = vrot.slane %v231, 7
      %v305 = vrot.slane %v232, 7
      %v306 = vsel %vm279, %v304, %v305
      %v307 = vrot.slane %v233, 7
      %v308 = vrot.slane %v234, 7
      %v309 = vsel %vm279, %v307, %v308
      %v310 = vrot.slane %v235, 7
      %v311 = vrot.slane %v236, 7
      %v312 = vsel %vm279, %v310, %v311
      %v313 = vrot.slane %v237, 7
      %v314 = vrot.slane %v238, 7
      %v315 = vsel %vm279, %v313, %v314
      %v316 = vrot.slane %v239, 7
      %v317 = vrot.slane %v240, 7
      %v318 = vsel %vm279, %v316, %v317
      %v319 = vrot.slane %v241, 7
      %v320 = vrot.slane %v242, 7
      %v321 = vsel %vm279, %v319, %v320
      %v322 = vrot.slane %v243, 7
      %v323 = vrot.slane %v244, 7
      %v324 = vsel %vm279, %v322, %v323
      %v325 = vrot.slane %v245, 7
      %v326 = vrot.slane %v246, 7
      %v327 = vsel %vm279, %v325, %v326
      %v376 = vsel %vm279, 0.0, %v280
      %v377 = vsel %vm279, 0.0, %v283
      %v378 = vsel %vm279, 0.0, %v286
      %v379 = vsel %vm279, 0.0, %v289
      %v380 = vsel %vm279, 0.0, %v292
      %v381 = vsel %vm279, 0.0, %v295
      %v382 = vsel %vm279, 0.0, %v298
      %v383 = vsel %vm279, 0.0, %v301
      %v384 = vsel %vm279, 0.0, %v304
      %v385 = vsel %vm279, 0.0, %v307
      %v386 = vsel %vm279, 0.0, %v310
      %v387 = vsel %vm279, 0.0, %v313
      %v388 = vsel %vm279, 0.0, %v316
      %v389 = vsel %vm279, 0.0, %v319
      %v390 = vsel %vm279, 0.0, %v322
      %v391 = vsel %vm279, 0.0, %v325
      %v392 = vsel %vm279, %v281, 0.0
      %v393 = vsel %vm279, %v284, 0.0
      %v394 = vsel %vm279, %v287, 0.0
      %v395 = vsel %vm279, %v290, 0.0
      %v396 = vsel %vm279, %v293, 0.0
      %v397 = vsel %vm279, %v296, 0.0
      %v398 = vsel %vm279, %v299, 0.0
      %v399 = vsel %vm279, %v302, 0.0
      %v400 = vsel %vm279, %v305, 0.0
      %v401 = vsel %vm279, %v308, 0.0
      %v402 = vsel %vm279, %v311, 0.0
      %v403 = vsel %vm279, %v314, 0.0
      %v404 = vsel %vm279, %v317, 0.0
      %v405 = vsel %vm279, %v320, 0.0
      %v406 = vsel %vm279, %v323, 0.0
      %v407 = vsel %vm279, %v326, 0.0
      %s408 = scalar_lea.vmem [#allocation2], 24
      %409 = vst [vmem:[%s408] sm:$0xff] %v376
      %410 = vst [vmem:[%s408 + $0x8] sm:$0xff] %v282
      %411 = vst [vmem:[%s408 + $0x10] sm:$0x3] %v392
      %412 = vst [vmem:[%s408 + $0x18] sm:$0xff] %v377
      %413 = vst [vmem:[%s408 + $0x20] sm:$0xff] %v285
      %414 = vst [vmem:[%s408 + $0x28] sm:$0x3] %v393
      %415 = vst [vmem:[%s408 + $0x30] sm:$0xff] %v378
      %416 = vst [vmem:[%s408 + $0x38] sm:$0xff] %v288
      %417 = vst [vmem:[%s408 + $0x40] sm:$0x3] %v394
      %418 = vst [vmem:[%s408 + $0x48] sm:$0xff] %v379
      %419 = vst [vmem:[%s408 + $0x50] sm:$0xff] %v291
      %420 = vst [vmem:[%s408 + $0x58] sm:$0x3] %v395
      %421 = vst [vmem:[%s408 + $0x60] sm:$0xff] %v380
      %422 = vst [vmem:[%s408 + $0x68] sm:$0xff] %v294
      %423 = vst [vmem:[%s408 + $0x70] sm:$0x3] %v396
      %424 = vst [vmem:[%s408 + $0x78] sm:$0xff] %v381
      %425 = vst [vmem:[%s408 + $0x80] sm:$0xff] %v297
      %426 = vst [vmem:[%s408 + $0x88] sm:$0x3] %v397
      %427 = vst [vmem:[%s408 + $0x90] sm:$0xff] %v382
      %428 = vst [vmem:[%s408 + $0x98] sm:$0xff] %v300
      %429 = vst [vmem:[%s408 + $0xa0] sm:$0x3] %v398
      %430 = vst [vmem:[%s408 + $0xa8] sm:$0xff] %v383
      %431 = vst [vmem:[%s408 + $0xb0] sm:$0xff] %v303
      %432 = vst [vmem:[%s408 + $0xb8] sm:$0x3] %v399
      %433 = vst [vmem:[%s408 + $0xc0] sm:$0xff] %v384
      %434 = vst [vmem:[%s408 + $0xc8] sm:$0xff] %v306
      %435 = vst [vmem:[%s408 + $0xd0] sm:$0x3] %v400
      %436 = vst [vmem:[%s408 + $0xd8] sm:$0xff] %v385
      %437 = vst [vmem:[%s408 + $0xe0] sm:$0xff] %v309
      %438 = vst [vmem:[%s408 + $0xe8] sm:$0x3] %v401
      %439 = vst [vmem:[%s408 + $0xf0] sm:$0xff] %v386
      %440 = vst [vmem:[%s408 + $0xf8] sm:$0xff] %v312
      %441 = vst [vmem:[%s408 + $0x100] sm:$0x3] %v402
      %442 = vst [vmem:[%s408 + $0x108] sm:$0xff] %v387
      %443 = vst [vmem:[%s408 + $0x110] sm:$0xff] %v315
      %444 = vst [vmem:[%s408 + $0x118] sm:$0x3] %v403
      %445 = vst [vmem:[%s408 + $0x120] sm:$0xff] %v388
      %446 = vst [vmem:[%s408 + $0x128] sm:$0xff] %v318
      %447 = vst [vmem:[%s408 + $0x130] sm:$0x3] %v404
      %448 = vst [vmem:[%s408 + $0x138] sm:$0xff] %v389
      %449 = vst [vmem:[%s408 + $0x140] sm:$0xff] %v321
      %450 = vst [vmem:[%s408 + $0x148] sm:$0x3] %v405
      %451 = vst [vmem:[%s408 + $0x150] sm:$0xff] %v390
      %452 = vst [vmem:[%s408 + $0x158] sm:$0xff] %v324
      %453 = vst [vmem:[%s408 + $0x160] sm:$0x3] %v406
      %454 = vst [vmem:[%s408 + $0x168] sm:$0xff] %v391
      %455 = vst [vmem:[%s408 + $0x170] sm:$0xff] %v327
      %456 = vst [vmem:[%s408 + $0x178] sm:$0x3] %v407
      %457 = vst [vmem:[#allocation2] sm:$0xff] 0.0
      %458 = vst [vmem:[#allocation2 + $0x8] sm:$0xff] 0.0
      %459 = vst [vmem:[#allocation2 + $0x10] sm:$0x3] 0.0
      %s460 = scalar_lea.vmem [#allocation2], 408
      %461 = vst [vmem:[%s460] sm:$0xff] 0.0
      %462 = vst [vmem:[%s460 + $0x8] sm:$0xff] 0.0
      %463 = vst [vmem:[%s460 + $0x10] sm:$0x3] 0.0
      %v464 = vld [vmem:[#allocation2] sm:$0xff]
      %v465 = vld [vmem:[#allocation2 + $0x8] sm:$0xff]
      %v466 = vld [vmem:[#allocation2 + $0x18] sm:$0xff]
      %v467 = vld [vmem:[#allocation2 + $0x20] sm:$0xff]
      %v468 = vld [vmem:[#allocation2 + $0x30] sm:$0xff]
      %v469 = vld [vmem:[#allocation2 + $0x38] sm:$0xff]
      %v470 = vld [vmem:[#allocation2 + $0x48] sm:$0xff]
      %v471 = vld [vmem:[#allocation2 + $0x50] sm:$0xff]
      %v472 = vld [vmem:[#allocation2 + $0x60] sm:$0xff]
      %v473 = vld [vmem:[#allocation2 + $0x68] sm:$0xff]
      %v474 = vld [vmem:[#allocation2 + $0x78] sm:$0xff]
      %v475 = vld [vmem:[#allocation2 + $0x80] sm:$0xff]
      %v476 = vld [vmem:[#allocation2 + $0x90] sm:$0xff]
      %v477 = vld [vmem:[#allocation2 + $0x98] sm:$0xff]
      %v478 = vld [vmem:[#allocation2 + $0xa8] sm:$0xff]
      %v479 = vld [vmem:[#allocation2 + $0xb0] sm:$0xff]
      %v480 = vld [vmem:[#allocation2 + $0xc0] sm:$0xff]
      %v481 = vld [vmem:[#allocation2 + $0xc8] sm:$0xff]
      %v482 = vld [vmem:[#allocation2 + $0xd8] sm:$0xff]
      %v483 = vld [vmem:[#allocation2 + $0xe0] sm:$0xff]
      %v484 = vld [vmem:[#allocation2 + $0xf0] sm:$0xff]
      %v485 = vld [vmem:[#allocation2 + $0xf8] sm:$0xff]
      %v486 = vld [vmem:[#allocation2 + $0x108] sm:$0xff]
      %v487 = vld [vmem:[#allocation2 + $0x110] sm:$0xff]
      %v488 = vld [vmem:[#allocation2 + $0x120] sm:$0xff]
      %v489 = vld [vmem:[#allocation2 + $0x128] sm:$0xff]
      %v490 = vld [vmem:[#allocation2 + $0x138] sm:$0xff]
      %v491 = vld [vmem:[#allocation2 + $0x140] sm:$0xff]
      %v492 = vld [vmem:[#allocation2 + $0x150] sm:$0xff]
      %v493 = vld [vmem:[#allocation2 + $0x158] sm:$0xff]
      %v494 = vld [vmem:[#allocation2 + $0x168] sm:$0xff]
      %v495 = vld [vmem:[#allocation2 + $0x170] sm:$0xff]
      %v496 = vld [vmem:[#allocation2 + $0x180] sm:$0xff]
      %v497 = vld [vmem:[#allocation2 + $0x188] sm:$0xff]
      %v498 = vld [vmem:[#allocation2 + $0x198] sm:$0xff]
      %v499 = vld [vmem:[#allocation2 + $0x1a0] sm:$0xff]
      %v500 = vld [vmem:[#allocation2 + $0x1] sm:$0xff]
      %v501 = vld [vmem:[#allocation2 + $0x9] sm:$0xff]
      %v502 = vld [vmem:[#allocation2 + $0x19] sm:$0xff]
      %v503 = vld [vmem:[#allocation2 + $0x21] sm:$0xff]
      %v504 = vld [vmem:[#allocation2 + $0x31] sm:$0xff]
      %v505 = vld [vmem:[#allocation2 + $0x39] sm:$0xff]
      %v506 = vld [vmem:[#allocation2 + $0x49] sm:$0xff]
      %v507 = vld [vmem:[#allocation2 + $0x51] sm:$0xff]
      %v508 = vld [vmem:[#allocation2 + $0x61] sm:$0xff]
      %v509 = vld [vmem:[#allocation2 + $0x69] sm:$0xff]
      %v510 = vld [vmem:[#allocation2 + $0x79] sm:$0xff]
      %v511 = vld [vmem:[#allocation2 + $0x81] sm:$0xff]
      %v512 = vld [vmem:[#allocation2 + $0x91] sm:$0xff]
      %v513 = vld [vmem:[#allocation2 + $0x99] sm:$0xff]
      %v514 = vld [vmem:[#allocation2 + $0xa9] sm:$0xff]
      %v515 = vld [vmem:[#allocation2 + $0xb1] sm:$0xff]
      %v516 = vld [vmem:[#allocation2 + $0xc1] sm:$0xff]
      %v517 = vld [vmem:[#allocation2 + $0xc9] sm:$0xff]
      %v518 = vld [vmem:[#allocation2 + $0xd9] sm:$0xff]
      %v519 = vld [vmem:[#allocation2 + $0xe1] sm:$0xff]
      %v520 = vld [vmem:[#allocation2 + $0xf1] sm:$0xff]
      %v521 = vld [vmem:[#allocation2 + $0xf9] sm:$0xff]
      %v522 = vld [vmem:[#allocation2 + $0x109] sm:$0xff]
      %v523 = vld [vmem:[#allocation2 + $0x111] sm:$0xff]
      %v524 = vld [vmem:[#allocation2 + $0x121] sm:$0xff]
      %v525 = vld [vmem:[#allocation2 + $0x129] sm:$0xff]
      %v526 = vld [vmem:[#allocation2 + $0x139] sm:$0xff]
      %v527 = vld [vmem:[#allocation2 + $0x141] sm:$0xff]
      %v528 = vld [vmem:[#allocation2 + $0x151] sm:$0xff]
      %v529 = vld [vmem:[#allocation2 + $0x159] sm:$0xff]
      %v530 = vld [vmem:[#allocation2 + $0x169] sm:$0xff]
      %v531 = vld [vmem:[#allocation2 + $0x171] sm:$0xff]
      %v532 = vld [vmem:[#allocation2 + $0x181] sm:$0xff]
      %v533 = vld [vmem:[#allocation2 + $0x189] sm:$0xff]
      %v534 = vld [vmem:[#allocation2 + $0x199] sm:$0xff]
      %v535 = vld [vmem:[#allocation2 + $0x1a1] sm:$0xff]
      %v536 = vld [vmem:[#allocation2 + $0x2] sm:$0xff]
      %v537 = vld [vmem:[#allocation2 + $0xa] sm:$0xff]
      %v538 = vld [vmem:[#allocation2 + $0x1a] sm:$0xff]
      %v539 = vld [vmem:[#allocation2 + $0x22] sm:$0xff]
      %v540 = vld [vmem:[#allocation2 + $0x32] sm:$0xff]
      %v541 = vld [vmem:[#allocation2 + $0x3a] sm:$0xff]
      %v542 = vld [vmem:[#allocation2 + $0x4a] sm:$0xff]
      %v543 = vld [vmem:[#allocation2 + $0x52] sm:$0xff]
      %v544 = vld [vmem:[#allocation2 + $0x62] sm:$0xff]
      %v545 = vld [vmem:[#allocation2 + $0x6a] sm:$0xff]
      %v546 = vld [vmem:[#allocation2 + $0x7a] sm:$0xff]
      %v547 = vld [vmem:[#allocation2 + $0x82] sm:$0xff]
      %v548 = vld [vmem:[#allocation2 + $0x92] sm:$0xff]
      %v549 = vld [vmem:[#allocation2 + $0x9a] sm:$0xff]
      %v550 = vld [vmem:[#allocation2 + $0xaa] sm:$0xff]
      %v551 = vld [vmem:[#allocation2 + $0xb2] sm:$0xff]
      %v552 = vld [vmem:[#allocation2 + $0xc2] sm:$0xff]
      %v553 = vld [vmem:[#allocation2 + $0xca] sm:$0xff]
      %v554 = vld [vmem:[#allocation2 + $0xda] sm:$0xff]
      %v555 = vld [vmem:[#allocation2 + $0xe2] sm:$0xff]
      %v556 = vld [vmem:[#allocation2 + $0xf2] sm:$0xff]
      %v557 = vld [vmem:[#allocation2 + $0xfa] sm:$0xff]
      %v558 = vld [vmem:[#allocation2 + $0x10a] sm:$0xff]
      %v559 = vld [vmem:[#allocation2 + $0x112] sm:$0xff]
      %v560 = vld [vmem:[#allocation2 + $0x122] sm:$0xff]
      %v561 = vld [vmem:[#allocation2 + $0x12a] sm:$0xff]
      %v562 = vld [vmem:[#allocation2 + $0x13a] sm:$0xff]
      %v563 = vld [vmem:[#allocation2 + $0x142] sm:$0xff]
      %v564 = vld [vmem:[#allocation2 + $0x152] sm:$0xff]
      %v565 = vld [vmem:[#allocation2 + $0x15a] sm:$0xff]
      %v566 = vld [vmem:[#allocation2 + $0x16a] sm:$0xff]
      %v567 = vld [vmem:[#allocation2 + $0x172] sm:$0xff]
      %v568 = vld [vmem:[#allocation2 + $0x182] sm:$0xff]
      %v569 = vld [vmem:[#allocation2 + $0x18a] sm:$0xff]
      %v570 = vld [vmem:[#allocation2 + $0x19a] sm:$0xff]
      %v571 = vld [vmem:[#allocation2 + $0x1a2] sm:$0xff]
      %v572 = vld [vmem:[%s1] sm:$0xff]
      %v573 = vld [vmem:[%s1 + $0x8] sm:$0xff]
      %v574 = vld [vmem:[%s1 + $0x10] sm:$0xff]
      %v575 = vld [vmem:[%s1 + $0x18] sm:$0xff]
      %v576 = vld [vmem:[%s1 + $0x20] sm:$0xff]
      %v577 = vld [vmem:[%s1 + $0x28] sm:$0xff]
      %v578 = vld [vmem:[%s1 + $0x30] sm:$0xff]
      %v579 = vld [vmem:[%s1 + $0x38] sm:$0xff]
      %v580 = vld [vmem:[%s1 + $0x40] sm:$0xff]
      %v581 = vld [vmem:[%s1 + $0x48] sm:$0xff]
      %v582 = vld [vmem:[%s1 + $0x50] sm:$0xff]
      %v583 = vld [vmem:[%s1 + $0x58] sm:$0xff]
      %v584 = vld [vmem:[%s1 + $0x60] sm:$0xff]
      %v585 = vld [vmem:[%s1 + $0x68] sm:$0xff]
      %v586 = vld [vmem:[%s1 + $0x70] sm:$0xff]
      %v587 = vld [vmem:[%s1 + $0x78] sm:$0xff]
      %v588 = vld [vmem:[%s1 + $0x80] sm:$0xff]
      %v589 = vld [vmem:[%s1 + $0x88] sm:$0xff]
      %v590 = vld [vmem:[%s1 + $0x90] sm:$0xff]
      %v591 = vld [vmem:[%s1 + $0x98] sm:$0xff]
      %v592 = vld [vmem:[%s1 + $0xa0] sm:$0xff]
      %v593 = vld [vmem:[%s1 + $0xa8] sm:$0xff]
      %v594 = vld [vmem:[%s1 + $0xb0] sm:$0xff]
      %v595 = vld [vmem:[%s1 + $0xb8] sm:$0xff]
      %v596 = vld [vmem:[%s1 + $0xc0] sm:$0xff]
      %v597 = vld [vmem:[%s1 + $0xc8] sm:$0xff]
      %v598 = vld [vmem:[%s1 + $0xd0] sm:$0xff]
      %v599 = vld [vmem:[%s1 + $0xd8] sm:$0xff]
      %v600 = vld [vmem:[%s1 + $0xe0] sm:$0xff]
      %v601 = vld [vmem:[%s1 + $0xe8] sm:$0xff]
      %v602 = vld [vmem:[%s1 + $0xf0] sm:$0xff]
      %v603 = vld [vmem:[%s1 + $0xf8] sm:$0xff]
      %v604 = vld [vmem:[%s1 + $0x100] sm:$0xff]
      %v605 = vld [vmem:[%s1 + $0x108] sm:$0xff]
      %v606 = vld [vmem:[%s1 + $0x110] sm:$0xff]
      %v607 = vld [vmem:[%s1 + $0x118] sm:$0xff]
      %v608 = vld [vmem:[%s1 + $0x120] sm:$0xff]
      %v609 = vld [vmem:[%s1 + $0x128] sm:$0xff]
      %v610 = vld [vmem:[%s1 + $0x130] sm:$0xff]
      %v611 = vld [vmem:[%s1 + $0x138] sm:$0xff]
      %v612 = vld [vmem:[%s1 + $0x140] sm:$0xff]
      %v613 = vld [vmem:[%s1 + $0x148] sm:$0xff]
      %v614 = vld [vmem:[%s1 + $0x150] sm:$0xff]
      %v615 = vld [vmem:[%s1 + $0x158] sm:$0xff]
      %v616 = vld [vmem:[%s1 + $0x160] sm:$0xff]
      %v617 = vld [vmem:[%s1 + $0x168] sm:$0xff]
      %v618 = vld [vmem:[%s1 + $0x170] sm:$0xff]
      %v619 = vld [vmem:[%s1 + $0x178] sm:$0xff]
      %s620 = scalar_lea.vmem %s1, 384
      %v621 = vld [vmem:[%s620] sm:$0xff]
      %v622 = vld [vmem:[%s620 + $0x8] sm:$0xff]
      %v623 = vld [vmem:[%s620 + $0x10] sm:$0xff]
      %v624 = vld [vmem:[%s620 + $0x18] sm:$0xff]
      %v625 = vld [vmem:[%s620 + $0x20] sm:$0xff]
      %v626 = vld [vmem:[%s620 + $0x28] sm:$0xff]
      %v627 = vld [vmem:[%s620 + $0x30] sm:$0xff]
      %v628 = vld [vmem:[%s620 + $0x38] sm:$0xff]
      %v629 = vld [vmem:[%s620 + $0x40] sm:$0xff]
      %v630 = vld [vmem:[%s620 + $0x48] sm:$0xff]
      %v631 = vld [vmem:[%s620 + $0x50] sm:$0xff]
      %v632 = vld [vmem:[%s620 + $0x58] sm:$0xff]
      %v633 = vld [vmem:[%s620 + $0x60] sm:$0xff]
      %v634 = vld [vmem:[%s620 + $0x68] sm:$0xff]
      %v635 = vld [vmem:[%s620 + $0x70] sm:$0xff]
      %v636 = vld [vmem:[%s620 + $0x78] sm:$0xff]
      %v637 = vld [vmem:[%s620 + $0x80] sm:$0xff]
      %v638 = vld [vmem:[%s620 + $0x88] sm:$0xff]
      %v639 = vld [vmem:[%s620 + $0x90] sm:$0xff]
      %v640 = vld [vmem:[%s620 + $0x98] sm:$0xff]
      %v641 = vld [vmem:[%s620 + $0xa0] sm:$0xff]
      %v642 = vld [vmem:[%s620 + $0xa8] sm:$0xff]
      %v643 = vld [vmem:[%s620 + $0xb0] sm:$0xff]
      %v644 = vld [vmem:[%s620 + $0xb8] sm:$0xff]
      %v645 = vld [vmem:[%s620 + $0xc0] sm:$0xff]
      %v646 = vld [vmem:[%s620 + $0xc8] sm:$0xff]
      %v647 = vld [vmem:[%s620 + $0xd0] sm:$0xff]
      %v648 = vld [vmem:[%s620 + $0xd8] sm:$0xff]
      %v649 = vld [vmem:[%s620 + $0xe0] sm:$0xff]
      %v650 = vld [vmem:[%s620 + $0xe8] sm:$0xff]
      %v651 = vld [vmem:[%s620 + $0xf0] sm:$0xff]
      %v652 = vld [vmem:[%s620 + $0xf8] sm:$0xff]
      %v653 = vld [vmem:[%s620 + $0x100] sm:$0xff]
      %v654 = vld [vmem:[%s620 + $0x108] sm:$0xff]
      %v655 = vld [vmem:[%s620 + $0x110] sm:$0xff]
      %v656 = vld [vmem:[%s620 + $0x118] sm:$0xff]
      %v657 = vld [vmem:[%s620 + $0x120] sm:$0xff]
      %v658 = vld [vmem:[%s620 + $0x128] sm:$0xff]
      %v659 = vld [vmem:[%s620 + $0x130] sm:$0xff]
      %v660 = vld [vmem:[%s620 + $0x138] sm:$0xff]
      %v661 = vld [vmem:[%s620 + $0x140] sm:$0xff]
      %v662 = vld [vmem:[%s620 + $0x148] sm:$0xff]
      %v663 = vld [vmem:[%s620 + $0x150] sm:$0xff]
      %v664 = vld [vmem:[%s620 + $0x158] sm:$0xff]
      %v665 = vld [vmem:[%s620 + $0x160] sm:$0xff]
      %v666 = vld [vmem:[%s620 + $0x168] sm:$0xff]
      %v667 = vld [vmem:[%s620 + $0x170] sm:$0xff]
      %v668 = vld [vmem:[%s620 + $0x178] sm:$0xff]
      %669 = vmatprep.subr.mxu0 0.0
      %670 = vmatpush1.msra.mxu0 %v636
      %671 = vmatprep.subr.mxu0 0.0
      %672 = vmatpush1.msra.mxu0 %v635
      %673 = vmatprep.subr.mxu0 0.0
      %674 = vmatpush1.msra.mxu0 %v634
      %675 = vmatprep.subr.mxu0 0.0
      %676 = vmatpush1.msra.mxu0 %v633
      %677 = vmatprep.subr.mxu0 0.0
      %678 = vmatpush1.msra.mxu0 %v632
      %679 = vmatprep.subr.mxu0 0.0
      %680 = vmatpush1.msra.mxu0 %v631
      %681 = vmatprep.subr.mxu0 0.0
      %682 = vmatpush1.msra.mxu0 %v630
      %683 = vmatprep.subr.mxu0 0.0
      %684 = vmatpush1.msra.mxu0 %v629
      %685 = vmatprep.subr.mxu0 0.0
      %686 = vmatpush1.msra.mxu0 %v628
      %687 = vmatprep.subr.mxu0 0.0
      %688 = vmatpush1.msra.mxu0 %v627
      %689 = vmatprep.subr.mxu0 0.0
      %690 = vmatpush1.msra.mxu0 %v626
      %691 = vmatprep.subr.mxu0 0.0
      %692 = vmatpush1.msra.mxu0 %v625
      %693 = vmatprep.subr.mxu0 0.0
      %694 = vmatpush1.msra.mxu0 %v624
      %695 = vmatprep.subr.mxu0 0.0
      %696 = vmatpush1.msra.mxu0 %v623
      %697 = vmatprep.subr.mxu0 0.0
      %698 = vmatpush1.msra.mxu0 %v622
      %699 = vmatprep.subr.mxu0 0.0
      %700 = vmatpush1.msra.mxu0 %v621
      %701 = vmatprep.subr.mxu0 0.0
      %702 = vmatpush2.msra.mxu0 %v652
      %703 = vmatprep.subr.mxu0 0.0
      %704 = vmatpush2.msra.mxu0 %v651
      %705 = vmatprep.subr.mxu0 0.0
      %706 = vmatpush2.msra.mxu0 %v650
      %707 = vmatprep.subr.mxu0 0.0
      %708 = vmatpush2.msra.mxu0 %v649
      %709 = vmatprep.subr.mxu0 0.0
      %710 = vmatpush2.msra.mxu0 %v648
      %711 = vmatprep.subr.mxu0 0.0
      %712 = vmatpush2.msra.mxu0 %v647
      %713 = vmatprep.subr.mxu0 0.0
      %714 = vmatpush2.msra.mxu0 %v646
      %715 = vmatprep.subr.mxu0 0.0
      %716 = vmatpush2.msra.mxu0 %v645
      %717 = vmatprep.subr.mxu0 0.0
      %718 = vmatpush2.msra.mxu0 %v644
      %719 = vmatprep.subr.mxu0 0.0
      %720 = vmatpush2.msra.mxu0 %v643
      %721 = vmatprep.subr.mxu0 0.0
      %722 = vmatpush2.msra.mxu0 %v642
      %723 = vmatprep.subr.mxu0 0.0
      %724 = vmatpush2.msra.mxu0 %v641
      %725 = vmatprep.subr.mxu0 0.0
      %726 = vmatpush2.msra.mxu0 %v640
      %727 = vmatprep.subr.mxu0 0.0
      %728 = vmatpush2.msra.mxu0 %v639
      %729 = vmatprep.subr.mxu0 0.0
      %730 = vmatpush2.msra.mxu0 %v638
      %731 = vmatprep.subr.mxu0 0.0
      %732 = vmatpush2.msra.mxu0 %v637
      %733 = vmatprep.mubr.f32.mxu0 %v502
      %734 = vmatmul.mubr.f32.gmra.mxu0 %v466
      %v735 = vpop.f32.mrf.mxu0
      %v736 = vadd.f32 0.0, %v735
      %v737 = vpop.f32.mrf.mxu0
      %738 = vmatprep.mubr.f32.mxu0 %v503
      %739 = vmatmul.mubr.f32.gmra.mxu0 %v467
      %v740 = vpop.f32.mrf.mxu0
      %v741 = vadd.f32 0.0, %v740
      %v742 = vpop.f32.mrf.mxu0
      %743 = vmatprep.mubr.f32.mxu0 %v504
      %744 = vmatmul.mubr.f32.gmra.mxu0 %v468
      %v745 = vpop.f32.mrf.mxu0
      %v746 = vadd.f32 0.0, %v745
      %v747 = vpop.f32.mrf.mxu0
      %748 = vmatprep.mubr.f32.mxu0 %v505
      %749 = vmatmul.mubr.f32.gmra.mxu0 %v469
      %v750 = vpop.f32.mrf.mxu0
      %v751 = vadd.f32 0.0, %v750
      %v752 = vpop.f32.mrf.mxu0
      %753 = vmatprep.mubr.f32.mxu0 %v506
      %754 = vmatmul.mubr.f32.gmra.mxu0 %v470
      %v755 = vpop.f32.mrf.mxu0
      %v756 = vadd.f32 0.0, %v755
      %v757 = vpop.f32.mrf.mxu0
      %758 = vmatprep.mubr.f32.mxu0 %v507
      %759 = vmatmul.mubr.f32.gmra.mxu0 %v471
      %v760 = vpop.f32.mrf.mxu0
      %v761 = vadd.f32 0.0, %v760
      %v762 = vpop.f32.mrf.mxu0
      %763 = vmatprep.mubr.f32.mxu0 %v508
      %764 = vmatmul.mubr.f32.gmra.mxu0 %v472
      %v765 = vpop.f32.mrf.mxu0
      %v766 = vadd.f32 0.0, %v765
      %v767 = vpop.f32.mrf.mxu0
      %768 = vmatprep.mubr.f32.mxu0 %v509
      %769 = vmatmul.mubr.f32.gmra.mxu0 %v473
      %v770 = vpop.f32.mrf.mxu0
      %v771 = vadd.f32 0.0, %v770
      %v772 = vpop.f32.mrf.mxu0
      %773 = vmatprep.mubr.f32.mxu0 %v510
      %774 = vmatmul.mubr.f32.gmra.mxu0 %v474
      %v775 = vpop.f32.mrf.mxu0
      %v776 = vadd.f32 0.0, %v775
      %v777 = vpop.f32.mrf.mxu0
      %778 = vmatprep.mubr.f32.mxu0 %v511
      %779 = vmatmul.mubr.f32.gmra.mxu0 %v475
      %v780 = vpop.f32.mrf.mxu0
      %v781 = vadd.f32 0.0, %v780
      %v782 = vpop.f32.mrf.mxu0
      %783 = vmatprep.mubr.f32.mxu0 %v512
      %784 = vmatmul.mubr.f32.gmra.mxu0 %v476
      %v785 = vpop.f32.mrf.mxu0
      %v786 = vadd.f32 0.0, %v785
      %v787 = vpop.f32.mrf.mxu0
      %788 = vmatprep.mubr.f32.mxu0 %v513
      %789 = vmatmul.mubr.f32.gmra.mxu0 %v477
      %v790 = vpop.f32.mrf.mxu0
      %v791 = vadd.f32 0.0, %v790
      %v792 = vpop.f32.mrf.mxu0
      %793 = vmatprep.mubr.f32.mxu0 %v514
      %794 = vmatmul.mubr.f32.gmra.mxu0 %v478
      %v795 = vpop.f32.mrf.mxu0
      %v796 = vadd.f32 0.0, %v795
      %v797 = vpop.f32.mrf.mxu0
      %798 = vmatprep.mubr.f32.mxu0 %v515
      %799 = vmatmul.mubr.f32.gmra.mxu0 %v479
      %v800 = vpop.f32.mrf.mxu0
      %v801 = vadd.f32 0.0, %v800
      %v802 = vpop.f32.mrf.mxu0
      %803 = vmatprep.mubr.f32.mxu0 %v516
      %804 = vmatmul.mubr.f32.gmra.mxu0 %v480
      %v805 = vpop.f32.mrf.mxu0
      %v806 = vadd.f32 0.0, %v805
      %v807 = vpop.f32.mrf.mxu0
      %808 = vmatprep.mubr.f32.mxu0 %v517
      %809 = vmatmul.mubr.f32.gmra.mxu0 %v481
      %v810 = vpop.f32.mrf.mxu0
      %v811 = vadd.f32 0.0, %v810
      %v812 = vpop.f32.mrf.mxu0
      %813 = vmatprep.mubr.f32.mxu0 %v518
      %814 = vmatmul.mubr.f32.gmra.mxu0 %v482
      %v815 = vpop.f32.mrf.mxu0
      %v816 = vadd.f32 0.0, %v815
      %v817 = vpop.f32.mrf.mxu0
      %818 = vmatprep.mubr.f32.mxu0 %v519
      %819 = vmatmul.mubr.f32.gmra.mxu0 %v483
      %v820 = vpop.f32.mrf.mxu0
      %v821 = vadd.f32 0.0, %v820
      %v822 = vpop.f32.mrf.mxu0
      %823 = vmatprep.mubr.f32.mxu0 %v520
      %824 = vmatmul.mubr.f32.gmra.mxu0 %v484
      %v825 = vpop.f32.mrf.mxu0
      %v826 = vadd.f32 0.0, %v825
      %v827 = vpop.f32.mrf.mxu0
      %828 = vmatprep.mubr.f32.mxu0 %v521
      %829 = vmatmul.mubr.f32.gmra.mxu0 %v485
      %v830 = vpop.f32.mrf.mxu0
      %v831 = vadd.f32 0.0, %v830
      %v832 = vpop.f32.mrf.mxu0
      %833 = vmatprep.mubr.f32.mxu0 %v522
      %834 = vmatmul.mubr.f32.gmra.mxu0 %v486
      %v835 = vpop.f32.mrf.mxu0
      %v836 = vadd.f32 0.0, %v835
      %v837 = vpop.f32.mrf.mxu0
      %838 = vmatprep.mubr.f32.mxu0 %v523
      %839 = vmatmul.mubr.f32.gmra.mxu0 %v487
      %v840 = vpop.f32.mrf.mxu0
      %v841 = vadd.f32 0.0, %v840
      %v842 = vpop.f32.mrf.mxu0
      %843 = vmatprep.mubr.f32.mxu0 %v524
      %844 = vmatmul.mubr.f32.gmra.mxu0 %v488
      %v845 = vpop.f32.mrf.mxu0
      %v846 = vadd.f32 0.0, %v845
      %v847 = vpop.f32.mrf.mxu0
      %848 = vmatprep.mubr.f32.mxu0 %v525
      %849 = vmatmul.mubr.f32.gmra.mxu0 %v489
      %v850 = vpop.f32.mrf.mxu0
      %v851 = vadd.f32 0.0, %v850
      %v852 = vpop.f32.mrf.mxu0
      %853 = vmatprep.mubr.f32.mxu0 %v526
      %854 = vmatmul.mubr.f32.gmra.mxu0 %v490
      %v855 = vpop.f32.mrf.mxu0
      %v856 = vadd.f32 0.0, %v855
      %v857 = vpop.f32.mrf.mxu0
      %858 = vmatprep.mubr.f32.mxu0 %v527
      %859 = vmatmul.mubr.f32.gmra.mxu0 %v491
      %v860 = vpop.f32.mrf.mxu0
      %v861 = vadd.f32 0.0, %v860
      %v862 = vpop.f32.mrf.mxu0
      %863 = vmatprep.mubr.f32.mxu0 %v528
      %864 = vmatmul.mubr.f32.gmra.mxu0 %v492
      %v865 = vpop.f32.mrf.mxu0
      %v866 = vadd.f32 0.0, %v865
      %v867 = vpop.f32.mrf.mxu0
      %868 = vmatprep.mubr.f32.mxu0 %v529
      %869 = vmatmul.mubr.f32.gmra.mxu0 %v493
      %v870 = vpop.f32.mrf.mxu0
      %v871 = vadd.f32 0.0, %v870
      %v872 = vpop.f32.mrf.mxu0
      %873 = vmatprep.mubr.f32.mxu0 %v530
      %874 = vmatmul.mubr.f32.gmra.mxu0 %v494
      %v875 = vpop.f32.mrf.mxu0
      %v876 = vadd.f32 0.0, %v875
      %v877 = vpop.f32.mrf.mxu0
      %878 = vmatprep.mubr.f32.mxu0 %v531
      %879 = vmatmul.mubr.f32.gmra.mxu0 %v495
      %v880 = vpop.f32.mrf.mxu0
      %v881 = vadd.f32 0.0, %v880
      %v882 = vpop.f32.mrf.mxu0
      %883 = vmatprep.mubr.f32.mxu0 %v532
      %884 = vmatmul.mubr.f32.gmra.mxu0 %v496
      %v885 = vpop.f32.mrf.mxu0
      %v886 = vadd.f32 0.0, %v885
      %v887 = vpop.f32.mrf.mxu0
      %888 = vmatprep.mubr.f32.mxu0 %v533
      %889 = vmatmul.mubr.f32.gmra.mxu0 %v497
      %v890 = vpop.f32.mrf.mxu0
      %v891 = vadd.f32 0.0, %v890
      %v892 = vpop.f32.mrf.mxu0
      %893 = vdwg.mxu0
      %894 = vmatprep.subr.mxu0 0.0
      %895 = vmatpush1.msra.mxu0 %v668
      %896 = vmatprep.subr.mxu0 0.0
      %897 = vmatpush1.msra.mxu0 %v667
      %898 = vmatprep.subr.mxu0 0.0
      %899 = vmatpush1.msra.mxu0 %v666
      %900 = vmatprep.subr.mxu0 0.0
      %901 = vmatpush1.msra.mxu0 %v665
      %902 = vmatprep.subr.mxu0 0.0
      %903 = vmatpush1.msra.mxu0 %v664
      %904 = vmatprep.subr.mxu0 0.0
      %905 = vmatpush1.msra.mxu0 %v663
      %906 = vmatprep.subr.mxu0 0.0
      %907 = vmatpush1.msra.mxu0 %v662
      %908 = vmatprep.subr.mxu0 0.0
      %909 = vmatpush1.msra.mxu0 %v661
      %910 = vmatprep.subr.mxu0 0.0
      %911 = vmatpush1.msra.mxu0 %v660
      %912 = vmatprep.subr.mxu0 0.0
      %913 = vmatpush1.msra.mxu0 %v659
      %914 = vmatprep.subr.mxu0 0.0
      %915 = vmatpush1.msra.mxu0 %v658
      %916 = vmatprep.subr.mxu0 0.0
      %917 = vmatpush1.msra.mxu0 %v657
      %918 = vmatprep.subr.mxu0 0.0
      %919 = vmatpush1.msra.mxu0 %v656
      %920 = vmatprep.subr.mxu0 0.0
      %921 = vmatpush1.msra.mxu0 %v655
      %922 = vmatprep.subr.mxu0 0.0
      %923 = vmatpush1.msra.mxu0 %v654
      %924 = vmatprep.subr.mxu0 0.0
      %925 = vmatpush1.msra.mxu0 %v653
      %926 = vmatprep.subr.mxu0 0.0
      %927 = vmatpush2.msra.mxu0 0.0
      %928 = vmatprep.subr.mxu0 0.0
      %929 = vmatpush2.msra.mxu0 0.0
      %930 = vmatprep.subr.mxu0 0.0
      %931 = vmatpush2.msra.mxu0 0.0
      %932 = vmatprep.subr.mxu0 0.0
      %933 = vmatpush2.msra.mxu0 0.0
      %934 = vmatprep.subr.mxu0 0.0
      %935 = vmatpush2.msra.mxu0 0.0
      %936 = vmatprep.subr.mxu0 0.0
      %937 = vmatpush2.msra.mxu0 0.0
      %938 = vmatprep.subr.mxu0 0.0
      %939 = vmatpush2.msra.mxu0 0.0
      %940 = vmatprep.subr.mxu0 0.0
      %941 = vmatpush2.msra.mxu0 0.0
      %942 = vmatprep.subr.mxu0 0.0
      %943 = vmatpush2.msra.mxu0 0.0
      %944 = vmatprep.subr.mxu0 0.0
      %945 = vmatpush2.msra.mxu0 0.0
      %946 = vmatprep.subr.mxu0 0.0
      %947 = vmatpush2.msra.mxu0 0.0
      %948 = vmatprep.subr.mxu0 0.0
      %949 = vmatpush2.msra.mxu0 0.0
      %950 = vmatprep.subr.mxu0 0.0
      %951 = vmatpush2.msra.mxu0 0.0
      %952 = vmatprep.subr.mxu0 0.0
      %953 = vmatpush2.msra.mxu0 0.0
      %954 = vmatprep.subr.mxu0 0.0
      %955 = vmatpush2.msra.mxu0 0.0
      %956 = vmatprep.subr.mxu0 0.0
      %957 = vmatpush2.msra.mxu0 0.0
      %958 = vmatprep.mubr.f32.mxu0 0.0
      %959 = vmatmul.mubr.f32.gmra.mxu0 %v538
      %v960 = vpop.f32.mrf.mxu0
      %v961 = vadd.f32 %v736, %v960
      %v962 = vpop.f32.mrf.mxu0
      %963 = vmatprep.mubr.f32.mxu0 0.0
      %964 = vmatmul.mubr.f32.gmra.mxu0 %v539
      %v965 = vpop.f32.mrf.mxu0
      %v966 = vadd.f32 %v741, %v965
      %v967 = vpop.f32.mrf.mxu0
      %968 = vmatprep.mubr.f32.mxu0 0.0
      %969 = vmatmul.mubr.f32.gmra.mxu0 %v540
      %v970 = vpop.f32.mrf.mxu0
      %v971 = vadd.f32 %v746, %v970
      %v972 = vpop.f32.mrf.mxu0
      %973 = vmatprep.mubr.f32.mxu0 0.0
      %974 = vmatmul.mubr.f32.gmra.mxu0 %v541
      %v975 = vpop.f32.mrf.mxu0
      %v976 = vadd.f32 %v751, %v975
      %v977 = vpop.f32.mrf.mxu0
      %978 = vmatprep.mubr.f32.mxu0 0.0
      %979 = vmatmul.mubr.f32.gmra.mxu0 %v542
      %v980 = vpop.f32.mrf.mxu0
      %v981 = vadd.f32 %v756, %v980
      %v982 = vpop.f32.mrf.mxu0
      %983 = vmatprep.mubr.f32.mxu0 0.0
      %984 = vmatmul.mubr.f32.gmra.mxu0 %v543
      %v985 = vpop.f32.mrf.mxu0
      %v986 = vadd.f32 %v761, %v985
      %v987 = vpop.f32.mrf.mxu0
      %988 = vmatprep.mubr.f32.mxu0 0.0
      %989 = vmatmul.mubr.f32.gmra.mxu0 %v544
      %v990 = vpop.f32.mrf.mxu0
      %v991 = vadd.f32 %v766, %v990
      %v992 = vpop.f32.mrf.mxu0
      %993 = vmatprep.mubr.f32.mxu0 0.0
      %994 = vmatmul.mubr.f32.gmra.mxu0 %v545
      %v995 = vpop.f32.mrf.mxu0
      %v996 = vadd.f32 %v771, %v995
      %v997 = vpop.f32.mrf.mxu0
      %998 = vmatprep.mubr.f32.mxu0 0.0
      %999 = vmatmul.mubr.f32.gmra.mxu0 %v546
      %v1000 = vpop.f32.mrf.mxu0
      %v1001 = vadd.f32 %v776, %v1000
      %v1002 = vpop.f32.mrf.mxu0
      %1003 = vmatprep.mubr.f32.mxu0 0.0
      %1004 = vmatmul.mubr.f32.gmra.mxu0 %v547
      %v1005 = vpop.f32.mrf.mxu0
      %v1006 = vadd.f32 %v781, %v1005
      %v1007 = vpop.f32.mrf.mxu0
      %1008 = vmatprep.mubr.f32.mxu0 0.0
      %1009 = vmatmul.mubr.f32.gmra.mxu0 %v548
      %v1010 = vpop.f32.mrf.mxu0
      %v1011 = vadd.f32 %v786, %v1010
      %v1012 = vpop.f32.mrf.mxu0
      %1013 = vmatprep.mubr.f32.mxu0 0.0
      %1014 = vmatmul.mubr.f32.gmra.mxu0 %v549
      %v1015 = vpop.f32.mrf.mxu0
      %v1016 = vadd.f32 %v791, %v1015
      %v1017 = vpop.f32.mrf.mxu0
      %1018 = vmatprep.mubr.f32.mxu0 0.0
      %1019 = vmatmul.mubr.f32.gmra.mxu0 %v550
      %v1020 = vpop.f32.mrf.mxu0
      %v1021 = vadd.f32 %v796, %v1020
      %v1022 = vpop.f32.mrf.mxu0
      %1023 = vmatprep.mubr.f32.mxu0 0.0
      %1024 = vmatmul.mubr.f32.gmra.mxu0 %v551
      %v1025 = vpop.f32.mrf.mxu0
      %v1026 = vadd.f32 %v801, %v1025
      %v1027 = vpop.f32.mrf.mxu0
      %1028 = vmatprep.mubr.f32.mxu0 0.0
      %1029 = vmatmul.mubr.f32.gmra.mxu0 %v552
      %v1030 = vpop.f32.mrf.mxu0
      %v1031 = vadd.f32 %v806, %v1030
      %v1032 = vpop.f32.mrf.mxu0
      %1033 = vmatprep.mubr.f32.mxu0 0.0
      %1034 = vmatmul.mubr.f32.gmra.mxu0 %v553
      %v1035 = vpop.f32.mrf.mxu0
      %v1036 = vadd.f32 %v811, %v1035
      %v1037 = vpop.f32.mrf.mxu0
      %1038 = vmatprep.mubr.f32.mxu0 0.0
      %1039 = vmatmul.mubr.f32.gmra.mxu0 %v554
      %v1040 = vpop.f32.mrf.mxu0
      %v1041 = vadd.f32 %v816, %v1040
      %v1042 = vpop.f32.mrf.mxu0
      %1043 = vmatprep.mubr.f32.mxu0 0.0
      %1044 = vmatmul.mubr.f32.gmra.mxu0 %v555
      %v1045 = vpop.f32.mrf.mxu0
      %v1046 = vadd.f32 %v821, %v1045
      %v1047 = vpop.f32.mrf.mxu0
      %1048 = vmatprep.mubr.f32.mxu0 0.0
      %1049 = vmatmul.mubr.f32.gmra.mxu0 %v556
      %v1050 = vpop.f32.mrf.mxu0
      %v1051 = vadd.f32 %v826, %v1050
      %v1052 = vpop.f32.mrf.mxu0
      %1053 = vmatprep.mubr.f32.mxu0 0.0
      %1054 = vmatmul.mubr.f32.gmra.mxu0 %v557
      %v1055 = vpop.f32.mrf.mxu0
      %v1056 = vadd.f32 %v831, %v1055
      %v1057 = vpop.f32.mrf.mxu0
      %1058 = vmatprep.mubr.f32.mxu0 0.0
      %1059 = vmatmul.mubr.f32.gmra.mxu0 %v558
      %v1060 = vpop.f32.mrf.mxu0
      %v1061 = vadd.f32 %v836, %v1060
      %v1062 = vpop.f32.mrf.mxu0
      %1063 = vmatprep.mubr.f32.mxu0 0.0
      %1064 = vmatmul.mubr.f32.gmra.mxu0 %v559
      %v1065 = vpop.f32.mrf.mxu0
      %v1066 = vadd.f32 %v841, %v1065
      %v1067 = vpop.f32.mrf.mxu0
      %1068 = vmatprep.mubr.f32.mxu0 0.0
      %1069 = vmatmul.mubr.f32.gmra.mxu0 %v560
      %v1070 = vpop.f32.mrf.mxu0
      %v1071 = vadd.f32 %v846, %v1070
      %v1072 = vpop.f32.mrf.mxu0
      %1073 = vmatprep.mubr.f32.mxu0 0.0
      %1074 = vmatmul.mubr.f32.gmra.mxu0 %v561
      %v1075 = vpop.f32.mrf.mxu0
      %v1076 = vadd.f32 %v851, %v1075
      %v1077 = vpop.f32.mrf.mxu0
      %1078 = vmatprep.mubr.f32.mxu0 0.0
      %1079 = vmatmul.mubr.f32.gmra.mxu0 %v562
      %v1080 = vpop.f32.mrf.mxu0
      %v1081 = vadd.f32 %v856, %v1080
      %v1082 = vpop.f32.mrf.mxu0
      %1083 = vmatprep.mubr.f32.mxu0 0.0
      %1084 = vmatmul.mubr.f32.gmra.mxu0 %v563
      %v1085 = vpop.f32.mrf.mxu0
      %v1086 = vadd.f32 %v861, %v1085
      %v1087 = vpop.f32.mrf.mxu0
      %1088 = vmatprep.mubr.f32.mxu0 0.0
      %1089 = vmatmul.mubr.f32.gmra.mxu0 %v564
      %v1090 = vpop.f32.mrf.mxu0
      %v1091 = vadd.f32 %v866, %v1090
      %v1092 = vpop.f32.mrf.mxu0
      %1093 = vmatprep.mubr.f32.mxu0 0.0
      %1094 = vmatmul.mubr.f32.gmra.mxu0 %v565
      %v1095 = vpop.f32.mrf.mxu0
      %v1096 = vadd.f32 %v871, %v1095
      %v1097 = vpop.f32.mrf.mxu0
      %1098 = vmatprep.mubr.f32.mxu0 0.0
      %1099 = vmatmul.mubr.f32.gmra.mxu0 %v566
      %v1100 = vpop.f32.mrf.mxu0
      %v1101 = vadd.f32 %v876, %v1100
      %v1102 = vpop.f32.mrf.mxu0
      %1103 = vmatprep.mubr.f32.mxu0 0.0
      %1104 = vmatmul.mubr.f32.gmra.mxu0 %v567
      %v1105 = vpop.f32.mrf.mxu0
      %v1106 = vadd.f32 %v881, %v1105
      %v1107 = vpop.f32.mrf.mxu0
      %1108 = vmatprep.mubr.f32.mxu0 0.0
      %1109 = vmatmul.mubr.f32.gmra.mxu0 %v568
      %v1110 = vpop.f32.mrf.mxu0
      %v1111 = vadd.f32 %v886, %v1110
      %v1112 = vpop.f32.mrf.mxu0
      %1113 = vmatprep.mubr.f32.mxu0 0.0
      %1114 = vmatmul.mubr.f32.gmra.mxu0 %v569
      %v1115 = vpop.f32.mrf.mxu0
      %v1116 = vadd.f32 %v891, %v1115
      %v1117 = vpop.f32.mrf.mxu0
      %1118 = vdwg.mxu0
      %1119 = vmatprep.subr.mxu0 0.0
      %1120 = vmatpush1.msra.mxu0 %v587
      %1121 = vmatprep.subr.mxu0 0.0
      %1122 = vmatpush1.msra.mxu0 %v586
      %1123 = vmatprep.subr.mxu0 0.0
      %1124 = vmatpush1.msra.mxu0 %v585
      %1125 = vmatprep.subr.mxu0 0.0
      %1126 = vmatpush1.msra.mxu0 %v584
      %1127 = vmatprep.subr.mxu0 0.0
      %1128 = vmatpush1.msra.mxu0 %v583
      %1129 = vmatprep.subr.mxu0 0.0
      %1130 = vmatpush1.msra.mxu0 %v582
      %1131 = vmatprep.subr.mxu0 0.0
      %1132 = vmatpush1.msra.mxu0 %v581
      %1133 = vmatprep.subr.mxu0 0.0
      %1134 = vmatpush1.msra.mxu0 %v580
      %1135 = vmatprep.subr.mxu0 0.0
      %1136 = vmatpush1.msra.mxu0 %v579
      %1137 = vmatprep.subr.mxu0 0.0
      %1138 = vmatpush1.msra.mxu0 %v578
      %1139 = vmatprep.subr.mxu0 0.0
      %1140 = vmatpush1.msra.mxu0 %v577
      %1141 = vmatprep.subr.mxu0 0.0
      %1142 = vmatpush1.msra.mxu0 %v576
      %1143 = vmatprep.subr.mxu0 0.0
      %1144 = vmatpush1.msra.mxu0 %v575
      %1145 = vmatprep.subr.mxu0 0.0
      %1146 = vmatpush1.msra.mxu0 %v574
      %1147 = vmatprep.subr.mxu0 0.0
      %1148 = vmatpush1.msra.mxu0 %v573
      %1149 = vmatprep.subr.mxu0 0.0
      %1150 = vmatpush1.msra.mxu0 %v572
      %1151 = vmatprep.subr.mxu0 0.0
      %1152 = vmatpush2.msra.mxu0 %v603
      %1153 = vmatprep.subr.mxu0 0.0
      %1154 = vmatpush2.msra.mxu0 %v602
      %1155 = vmatprep.subr.mxu0 0.0
      %1156 = vmatpush2.msra.mxu0 %v601
      %1157 = vmatprep.subr.mxu0 0.0
      %1158 = vmatpush2.msra.mxu0 %v600
      %1159 = vmatprep.subr.mxu0 0.0
      %1160 = vmatpush2.msra.mxu0 %v599
      %1161 = vmatprep.subr.mxu0 0.0
      %1162 = vmatpush2.msra.mxu0 %v598
      %1163 = vmatprep.subr.mxu0 0.0
      %1164 = vmatpush2.msra.mxu0 %v597
      %1165 = vmatprep.subr.mxu0 0.0
      %1166 = vmatpush2.msra.mxu0 %v596
      %1167 = vmatprep.subr.mxu0 0.0
      %1168 = vmatpush2.msra.mxu0 %v595
      %1169 = vmatprep.subr.mxu0 0.0
      %1170 = vmatpush2.msra.mxu0 %v594
      %1171 = vmatprep.subr.mxu0 0.0
      %1172 = vmatpush2.msra.mxu0 %v593
      %1173 = vmatprep.subr.mxu0 0.0
      %1174 = vmatpush2.msra.mxu0 %v592
      %1175 = vmatprep.subr.mxu0 0.0
      %1176 = vmatpush2.msra.mxu0 %v591
      %1177 = vmatprep.subr.mxu0 0.0
      %1178 = vmatpush2.msra.mxu0 %v590
      %1179 = vmatprep.subr.mxu0 0.0
      %1180 = vmatpush2.msra.mxu0 %v589
      %1181 = vmatprep.subr.mxu0 0.0
      %1182 = vmatpush2.msra.mxu0 %v588
      %1183 = vmatprep.mubr.f32.mxu0 %v500
      %1184 = vmatmul.mubr.f32.gmra.mxu0 %v464
      %v1185 = vpop.f32.mrf.mxu0
      %v1186 = vadd.f32 %v961, %v1185
      %v1187 = vpop.f32.mrf.mxu0
      %1188 = vmatprep.mubr.f32.mxu0 %v501
      %1189 = vmatmul.mubr.f32.gmra.mxu0 %v465
      %v1190 = vpop.f32.mrf.mxu0
      %v1191 = vadd.f32 %v966, %v1190
      %v1192 = vpop.f32.mrf.mxu0
      %1193 = vmatprep.mubr.f32.mxu0 %v502
      %1194 = vmatmul.mubr.f32.gmra.mxu0 %v466
      %v1195 = vpop.f32.mrf.mxu0
      %v1196 = vadd.f32 %v971, %v1195
      %v1197 = vpop.f32.mrf.mxu0
      %1198 = vmatprep.mubr.f32.mxu0 %v503
      %1199 = vmatmul.mubr.f32.gmra.mxu0 %v467
      %v1200 = vpop.f32.mrf.mxu0
      %v1201 = vadd.f32 %v976, %v1200
      %v1202 = vpop.f32.mrf.mxu0
      %1203 = vmatprep.mubr.f32.mxu0 %v504
      %1204 = vmatmul.mubr.f32.gmra.mxu0 %v468
      %v1205 = vpop.f32.mrf.mxu0
      %v1206 = vadd.f32 %v981, %v1205
      %v1207 = vpop.f32.mrf.mxu0
      %1208 = vmatprep.mubr.f32.mxu0 %v505
      %1209 = vmatmul.mubr.f32.gmra.mxu0 %v469
      %v1210 = vpop.f32.mrf.mxu0
      %v1211 = vadd.f32 %v986, %v1210
      %v1212 = vpop.f32.mrf.mxu0
      %1213 = vmatprep.mubr.f32.mxu0 %v506
      %1214 = vmatmul.mubr.f32.gmra.mxu0 %v470
      %v1215 = vpop.f32.mrf.mxu0
      %v1216 = vadd.f32 %v991, %v1215
      %v1217 = vpop.f32.mrf.mxu0
      %1218 = vmatprep.mubr.f32.mxu0 %v507
      %1219 = vmatmul.mubr.f32.gmra.mxu0 %v471
      %v1220 = vpop.f32.mrf.mxu0
      %v1221 = vadd.f32 %v996, %v1220
      %v1222 = vpop.f32.mrf.mxu0
      %1223 = vmatprep.mubr.f32.mxu0 %v508
      %1224 = vmatmul.mubr.f32.gmra.mxu0 %v472
      %v1225 = vpop.f32.mrf.mxu0
      %v1226 = vadd.f32 %v1001, %v1225
      %v1227 = vpop.f32.mrf.mxu0
      %1228 = vmatprep.mubr.f32.mxu0 %v509
      %1229 = vmatmul.mubr.f32.gmra.mxu0 %v473
      %v1230 = vpop.f32.mrf.mxu0
      %v1231 = vadd.f32 %v1006, %v1230
      %v1232 = vpop.f32.mrf.mxu0
      %1233 = vmatprep.mubr.f32.mxu0 %v510
      %1234 = vmatmul.mubr.f32.gmra.mxu0 %v474
      %v1235 = vpop.f32.mrf.mxu0
      %v1236 = vadd.f32 %v1011, %v1235
      %v1237 = vpop.f32.mrf.mxu0
      %1238 = vmatprep.mubr.f32.mxu0 %v511
      %1239 = vmatmul.mubr.f32.gmra.mxu0 %v475
      %v1240 = vpop.f32.mrf.mxu0
      %v1241 = vadd.f32 %v1016, %v1240
      %v1242 = vpop.f32.mrf.mxu0
      %1243 = vmatprep.mubr.f32.mxu0 %v512
      %1244 = vmatmul.mubr.f32.gmra.mxu0 %v476
      %v1245 = vpop.f32.mrf.mxu0
      %v1246 = vadd.f32 %v1021, %v1245
      %v1247 = vpop.f32.mrf.mxu0
      %1248 = vmatprep.mubr.f32.mxu0 %v513
      %1249 = vmatmul.mubr.f32.gmra.mxu0 %v477
      %v1250 = vpop.f32.mrf.mxu0
      %v1251 = vadd.f32 %v1026, %v1250
      %v1252 = vpop.f32.mrf.mxu0
      %1253 = vmatprep.mubr.f32.mxu0 %v514
      %1254 = vmatmul.mubr.f32.gmra.mxu0 %v478
      %v1255 = vpop.f32.mrf.mxu0
      %v1256 = vadd.f32 %v1031, %v1255
      %v1257 = vpop.f32.mrf.mxu0
      %1258 = vmatprep.mubr.f32.mxu0 %v515
      %1259 = vmatmul.mubr.f32.gmra.mxu0 %v479
      %v1260 = vpop.f32.mrf.mxu0
      %v1261 = vadd.f32 %v1036, %v1260
      %v1262 = vpop.f32.mrf.mxu0
      %1263 = vmatprep.mubr.f32.mxu0 %v516
      %1264 = vmatmul.mubr.f32.gmra.mxu0 %v480
      %v1265 = vpop.f32.mrf.mxu0
      %v1266 = vadd.f32 %v1041, %v1265
      %v1267 = vpop.f32.mrf.mxu0
      %1268 = vmatprep.mubr.f32.mxu0 %v517
      %1269 = vmatmul.mubr.f32.gmra.mxu0 %v481
      %v1270 = vpop.f32.mrf.mxu0
      %v1271 = vadd.f32 %v1046, %v1270
      %v1272 = vpop.f32.mrf.mxu0
      %1273 = vmatprep.mubr.f32.mxu0 %v518
      %1274 = vmatmul.mubr.f32.gmra.mxu0 %v482
      %v1275 = vpop.f32.mrf.mxu0
      %v1276 = vadd.f32 %v1051, %v1275
      %v1277 = vpop.f32.mrf.mxu0
      %1278 = vmatprep.mubr.f32.mxu0 %v519
      %1279 = vmatmul.mubr.f32.gmra.mxu0 %v483
      %v1280 = vpop.f32.mrf.mxu0
      %v1281 = vadd.f32 %v1056, %v1280
      %v1282 = vpop.f32.mrf.mxu0
      %1283 = vmatprep.mubr.f32.mxu0 %v520
      %1284 = vmatmul.mubr.f32.gmra.mxu0 %v484
      %v1285 = vpop.f32.mrf.mxu0
      %v1286 = vadd.f32 %v1061, %v1285
      %v1287 = vpop.f32.mrf.mxu0
      %1288 = vmatprep.mubr.f32.mxu0 %v521
      %1289 = vmatmul.mubr.f32.gmra.mxu0 %v485
      %v1290 = vpop.f32.mrf.mxu0
      %v1291 = vadd.f32 %v1066, %v1290
      %v1292 = vpop.f32.mrf.mxu0
      %1293 = vmatprep.mubr.f32.mxu0 %v522
      %1294 = vmatmul.mubr.f32.gmra.mxu0 %v486
      %v1295 = vpop.f32.mrf.mxu0
      %v1296 = vadd.f32 %v1071, %v1295
      %v1297 = vpop.f32.mrf.mxu0
      %1298 = vmatprep.mubr.f32.mxu0 %v523
      %1299 = vmatmul.mubr.f32.gmra.mxu0 %v487
      %v1300 = vpop.f32.mrf.mxu0
      %v1301 = vadd.f32 %v1076, %v1300
      %v1302 = vpop.f32.mrf.mxu0
      %1303 = vmatprep.mubr.f32.mxu0 %v524
      %1304 = vmatmul.mubr.f32.gmra.mxu0 %v488
      %v1305 = vpop.f32.mrf.mxu0
      %v1306 = vadd.f32 %v1081, %v1305
      %v1307 = vpop.f32.mrf.mxu0
      %1308 = vmatprep.mubr.f32.mxu0 %v525
      %1309 = vmatmul.mubr.f32.gmra.mxu0 %v489
      %v1310 = vpop.f32.mrf.mxu0
      %v1311 = vadd.f32 %v1086, %v1310
      %v1312 = vpop.f32.mrf.mxu0
      %1313 = vmatprep.mubr.f32.mxu0 %v526
      %1314 = vmatmul.mubr.f32.gmra.mxu0 %v490
      %v1315 = vpop.f32.mrf.mxu0
      %v1316 = vadd.f32 %v1091, %v1315
      %v1317 = vpop.f32.mrf.mxu0
      %1318 = vmatprep.mubr.f32.mxu0 %v527
      %1319 = vmatmul.mubr.f32.gmra.mxu0 %v491
      %v1320 = vpop.f32.mrf.mxu0
      %v1321 = vadd.f32 %v1096, %v1320
      %v1322 = vpop.f32.mrf.mxu0
      %1323 = vmatprep.mubr.f32.mxu0 %v528
      %1324 = vmatmul.mubr.f32.gmra.mxu0 %v492
      %v1325 = vpop.f32.mrf.mxu0
      %v1326 = vadd.f32 %v1101, %v1325
      %v1327 = vpop.f32.mrf.mxu0
      %1328 = vmatprep.mubr.f32.mxu0 %v529
      %1329 = vmatmul.mubr.f32.gmra.mxu0 %v493
      %v1330 = vpop.f32.mrf.mxu0
      %v1331 = vadd.f32 %v1106, %v1330
      %v1332 = vpop.f32.mrf.mxu0
      %1333 = vmatprep.mubr.f32.mxu0 %v530
      %1334 = vmatmul.mubr.f32.gmra.mxu0 %v494
      %v1335 = vpop.f32.mrf.mxu0
      %v1336 = vadd.f32 %v1111, %v1335
      %v1337 = vpop.f32.mrf.mxu0
      %1338 = vmatprep.mubr.f32.mxu0 %v531
      %1339 = vmatmul.mubr.f32.gmra.mxu0 %v495
      %v1340 = vpop.f32.mrf.mxu0
      %v1341 = vadd.f32 %v1116, %v1340
      %v1342 = vpop.f32.mrf.mxu0
      %1343 = vdwg.mxu0
      %1344 = vmatprep.subr.mxu0 0.0
      %1345 = vmatpush1.msra.mxu0 %v619
      %1346 = vmatprep.subr.mxu0 0.0
      %1347 = vmatpush1.msra.mxu0 %v618
      %1348 = vmatprep.subr.mxu0 0.0
      %1349 = vmatpush1.msra.mxu0 %v617
      %1350 = vmatprep.subr.mxu0 0.0
      %1351 = vmatpush1.msra.mxu0 %v616
      %1352 = vmatprep.subr.mxu0 0.0
      %1353 = vmatpush1.msra.mxu0 %v615
      %1354 = vmatprep.subr.mxu0 0.0
      %1355 = vmatpush1.msra.mxu0 %v614
      %1356 = vmatprep.subr.mxu0 0.0
      %1357 = vmatpush1.msra.mxu0 %v613
      %1358 = vmatprep.subr.mxu0 0.0
      %1359 = vmatpush1.msra.mxu0 %v612
      %1360 = vmatprep.subr.mxu0 0.0
      %1361 = vmatpush1.msra.mxu0 %v611
      %1362 = vmatprep.subr.mxu0 0.0
      %1363 = vmatpush1.msra.mxu0 %v610
      %1364 = vmatprep.subr.mxu0 0.0
      %1365 = vmatpush1.msra.mxu0 %v609
      %1366 = vmatprep.subr.mxu0 0.0
      %1367 = vmatpush1.msra.mxu0 %v608
      %1368 = vmatprep.subr.mxu0 0.0
      %1369 = vmatpush1.msra.mxu0 %v607
      %1370 = vmatprep.subr.mxu0 0.0
      %1371 = vmatpush1.msra.mxu0 %v606
      %1372 = vmatprep.subr.mxu0 0.0
      %1373 = vmatpush1.msra.mxu0 %v605
      %1374 = vmatprep.subr.mxu0 0.0
      %1375 = vmatpush1.msra.mxu0 %v604
      %1376 = vmatprep.subr.mxu0 0.0
      %1377 = vmatpush2.msra.mxu0 0.0
      %1378 = vmatprep.subr.mxu0 0.0
      %1379 = vmatpush2.msra.mxu0 0.0
      %1380 = vmatprep.subr.mxu0 0.0
      %1381 = vmatpush2.msra.mxu0 0.0
      %1382 = vmatprep.subr.mxu0 0.0
      %1383 = vmatpush2.msra.mxu0 0.0
      %1384 = vmatprep.subr.mxu0 0.0
      %1385 = vmatpush2.msra.mxu0 0.0
      %1386 = vmatprep.subr.mxu0 0.0
      %1387 = vmatpush2.msra.mxu0 0.0
      %1388 = vmatprep.subr.mxu0 0.0
      %1389 = vmatpush2.msra.mxu0 0.0
      %1390 = vmatprep.subr.mxu0 0.0
      %1391 = vmatpush2.msra.mxu0 0.0
      %1392 = vmatprep.subr.mxu0 0.0
      %1393 = vmatpush2.msra.mxu0 0.0
      %1394 = vmatprep.subr.mxu0 0.0
      %1395 = vmatpush2.msra.mxu0 0.0
      %1396 = vmatprep.subr.mxu0 0.0
      %1397 = vmatpush2.msra.mxu0 0.0
      %1398 = vmatprep.subr.mxu0 0.0
      %1399 = vmatpush2.msra.mxu0 0.0
      %1400 = vmatprep.subr.mxu0 0.0
      %1401 = vmatpush2.msra.mxu0 0.0
      %1402 = vmatprep.subr.mxu0 0.0
      %1403 = vmatpush2.msra.mxu0 0.0
      %1404 = vmatprep.subr.mxu0 0.0
      %1405 = vmatpush2.msra.mxu0 0.0
      %1406 = vmatprep.subr.mxu0 0.0
      %1407 = vmatpush2.msra.mxu0 0.0
      %1408 = vmatprep.mubr.f32.mxu0 0.0
      %1409 = vmatmul.mubr.f32.gmra.mxu0 %v536
      %v1410 = vpop.f32.mrf.mxu0
      %v1411 = vadd.f32 %v1186, %v1410
      %v1412 = vpop.f32.mrf.mxu0
      %1413 = vmatprep.mubr.f32.mxu0 0.0
      %1414 = vmatmul.mubr.f32.gmra.mxu0 %v537
      %v1415 = vpop.f32.mrf.mxu0
      %v1416 = vadd.f32 %v1191, %v1415
      %v1417 = vpop.f32.mrf.mxu0
      %1418 = vmatprep.mubr.f32.mxu0 0.0
      %1419 = vmatmul.mubr.f32.gmra.mxu0 %v538
      %v1420 = vpop.f32.mrf.mxu0
      %v1421 = vadd.f32 %v1196, %v1420
      %v1422 = vpop.f32.mrf.mxu0
      %1423 = vmatprep.mubr.f32.mxu0 0.0
      %1424 = vmatmul.mubr.f32.gmra.mxu0 %v539
      %v1425 = vpop.f32.mrf.mxu0
      %v1426 = vadd.f32 %v1201, %v1425
      %v1427 = vpop.f32.mrf.mxu0
      %1428 = vmatprep.mubr.f32.mxu0 0.0
      %1429 = vmatmul.mubr.f32.gmra.mxu0 %v540
      %v1430 = vpop.f32.mrf.mxu0
      %v1431 = vadd.f32 %v1206, %v1430
      %v1432 = vpop.f32.mrf.mxu0
      %1433 = vmatprep.mubr.f32.mxu0 0.0
      %1434 = vmatmul.mubr.f32.gmra.mxu0 %v541
      %v1435 = vpop.f32.mrf.mxu0
      %v1436 = vadd.f32 %v1211, %v1435
      %v1437 = vpop.f32.mrf.mxu0
      %1438 = vmatprep.mubr.f32.mxu0 0.0
      %1439 = vmatmul.mubr.f32.gmra.mxu0 %v542
      %v1440 = vpop.f32.mrf.mxu0
      %v1441 = vadd.f32 %v1216, %v1440
      %v1442 = vpop.f32.mrf.mxu0
      %1443 = vmatprep.mubr.f32.mxu0 0.0
      %1444 = vmatmul.mubr.f32.gmra.mxu0 %v543
      %v1445 = vpop.f32.mrf.mxu0
      %v1446 = vadd.f32 %v1221, %v1445
      %v1447 = vpop.f32.mrf.mxu0
      %1448 = vmatprep.mubr.f32.mxu0 0.0
      %1449 = vmatmul.mubr.f32.gmra.mxu0 %v544
      %v1450 = vpop.f32.mrf.mxu0
      %v1451 = vadd.f32 %v1226, %v1450
      %v1452 = vpop.f32.mrf.mxu0
      %1453 = vmatprep.mubr.f32.mxu0 0.0
      %1454 = vmatmul.mubr.f32.gmra.mxu0 %v545
      %v1455 = vpop.f32.mrf.mxu0
      %v1456 = vadd.f32 %v1231, %v1455
      %v1457 = vpop.f32.mrf.mxu0
      %1458 = vmatprep.mubr.f32.mxu0 0.0
      %1459 = vmatmul.mubr.f32.gmra.mxu0 %v546
      %v1460 = vpop.f32.mrf.mxu0
      %v1461 = vadd.f32 %v1236, %v1460
      %v1462 = vpop.f32.mrf.mxu0
      %1463 = vmatprep.mubr.f32.mxu0 0.0
      %1464 = vmatmul.mubr.f32.gmra.mxu0 %v547
      %v1465 = vpop.f32.mrf.mxu0
      %v1466 = vadd.f32 %v1241, %v1465
      %v1467 = vpop.f32.mrf.mxu0
      %1468 = vmatprep.mubr.f32.mxu0 0.0
      %1469 = vmatmul.mubr.f32.gmra.mxu0 %v548
      %v1470 = vpop.f32.mrf.mxu0
      %v1471 = vadd.f32 %v1246, %v1470
      %v1472 = vpop.f32.mrf.mxu0
      %1473 = vmatprep.mubr.f32.mxu0 0.0
      %1474 = vmatmul.mubr.f32.gmra.mxu0 %v549
      %v1475 = vpop.f32.mrf.mxu0
      %v1476 = vadd.f32 %v1251, %v1475
      %v1477 = vpop.f32.mrf.mxu0
      %1478 = vmatprep.mubr.f32.mxu0 0.0
      %1479 = vmatmul.mubr.f32.gmra.mxu0 %v550
      %v1480 = vpop.f32.mrf.mxu0
      %v1481 = vadd.f32 %v1256, %v1480
      %v1482 = vpop.f32.mrf.mxu0
      %1483 = vmatprep.mubr.f32.mxu0 0.0
      %1484 = vmatmul.mubr.f32.gmra.mxu0 %v551
      %v1485 = vpop.f32.mrf.mxu0
      %v1486 = vadd.f32 %v1261, %v1485
      %v1487 = vpop.f32.mrf.mxu0
      %1488 = vmatprep.mubr.f32.mxu0 0.0
      %1489 = vmatmul.mubr.f32.gmra.mxu0 %v552
      %v1490 = vpop.f32.mrf.mxu0
      %v1491 = vadd.f32 %v1266, %v1490
      %v1492 = vpop.f32.mrf.mxu0
      %1493 = vmatprep.mubr.f32.mxu0 0.0
      %1494 = vmatmul.mubr.f32.gmra.mxu0 %v553
      %v1495 = vpop.f32.mrf.mxu0
      %v1496 = vadd.f32 %v1271, %v1495
      %v1497 = vpop.f32.mrf.mxu0
      %1498 = vmatprep.mubr.f32.mxu0 0.0
      %1499 = vmatmul.mubr.f32.gmra.mxu0 %v554
      %v1500 = vpop.f32.mrf.mxu0
      %v1501 = vadd.f32 %v1276, %v1500
      %v1502 = vpop.f32.mrf.mxu0
      %1503 = vmatprep.mubr.f32.mxu0 0.0
      %1504 = vmatmul.mubr.f32.gmra.mxu0 %v555
      %v1505 = vpop.f32.mrf.mxu0
      %v1506 = vadd.f32 %v1281, %v1505
      %v1507 = vpop.f32.mrf.mxu0
      %1508 = vmatprep.mubr.f32.mxu0 0.0
      %1509 = vmatmul.mubr.f32.gmra.mxu0 %v556
      %v1510 = vpop.f32.mrf.mxu0
      %v1511 = vadd.f32 %v1286, %v1510
      %v1512 = vpop.f32.mrf.mxu0
      %1513 = vmatprep.mubr.f32.mxu0 0.0
      %1514 = vmatmul.mubr.f32.gmra.mxu0 %v557
      %v1515 = vpop.f32.mrf.mxu0
      %v1516 = vadd.f32 %v1291, %v1515
      %v1517 = vpop.f32.mrf.mxu0
      %1518 = vmatprep.mubr.f32.mxu0 0.0
      %1519 = vmatmul.mubr.f32.gmra.mxu0 %v558
      %v1520 = vpop.f32.mrf.mxu0
      %v1521 = vadd.f32 %v1296, %v1520
      %v1522 = vpop.f32.mrf.mxu0
      %1523 = vmatprep.mubr.f32.mxu0 0.0
      %1524 = vmatmul.mubr.f32.gmra.mxu0 %v559
      %v1525 = vpop.f32.mrf.mxu0
      %v1526 = vadd.f32 %v1301, %v1525
      %v1527 = vpop.f32.mrf.mxu0
      %1528 = vmatprep.mubr.f32.mxu0 0.0
      %1529 = vmatmul.mubr.f32.gmra.mxu0 %v560
      %v1530 = vpop.f32.mrf.mxu0
      %v1531 = vadd.f32 %v1306, %v1530
      %v1532 = vpop.f32.mrf.mxu0
      %1533 = vmatprep.mubr.f32.mxu0 0.0
      %1534 = vmatmul.mubr.f32.gmra.mxu0 %v561
      %v1535 = vpop.f32.mrf.mxu0
      %v1536 = vadd.f32 %v1311, %v1535
      %v1537 = vpop.f32.mrf.mxu0
      %1538 = vmatprep.mubr.f32.mxu0 0.0
      %1539 = vmatmul.mubr.f32.gmra.mxu0 %v562
      %v1540 = vpop.f32.mrf.mxu0
      %v1541 = vadd.f32 %v1316, %v1540
      %v1542 = vpop.f32.mrf.mxu0
      %1543 = vmatprep.mubr.f32.mxu0 0.0
      %1544 = vmatmul.mubr.f32.gmra.mxu0 %v563
      %v1545 = vpop.f32.mrf.mxu0
      %v1546 = vadd.f32 %v1321, %v1545
      %v1547 = vpop.f32.mrf.mxu0
      %1548 = vmatprep.mubr.f32.mxu0 0.0
      %1549 = vmatmul.mubr.f32.gmra.mxu0 %v564
      %v1550 = vpop.f32.mrf.mxu0
      %v1551 = vadd.f32 %v1326, %v1550
      %v1552 = vpop.f32.mrf.mxu0
      %1553 = vmatprep.mubr.f32.mxu0 0.0
      %1554 = vmatmul.mubr.f32.gmra.mxu0 %v565
      %v1555 = vpop.f32.mrf.mxu0
      %v1556 = vadd.f32 %v1331, %v1555
      %v1557 = vpop.f32.mrf.mxu0
      %1558 = vmatprep.mubr.f32.mxu0 0.0
      %1559 = vmatmul.mubr.f32.gmra.mxu0 %v566
      %v1560 = vpop.f32.mrf.mxu0
      %v1561 = vadd.f32 %v1336, %v1560
      %v1562 = vpop.f32.mrf.mxu0
      %1563 = vmatprep.mubr.f32.mxu0 0.0
      %1564 = vmatmul.mubr.f32.gmra.mxu0 %v567
      %v1565 = vpop.f32.mrf.mxu0
      %v1566 = vadd.f32 %v1341, %v1565
      %v1567 = vpop.f32.mrf.mxu0
      %1568 = vdwg.mxu0
      %s1569 = scalar_lea.vmem %s1, 768
      %v1570 = vld [vmem:[%s1569] sm:$0xff]
      %v1571 = vld [vmem:[%s1569 + $0x8] sm:$0xff]
      %v1572 = vld [vmem:[%s1569 + $0x10] sm:$0xff]
      %v1573 = vld [vmem:[%s1569 + $0x18] sm:$0xff]
      %v1574 = vld [vmem:[%s1569 + $0x20] sm:$0xff]
      %v1575 = vld [vmem:[%s1569 + $0x28] sm:$0xff]
      %v1576 = vld [vmem:[%s1569 + $0x30] sm:$0xff]
      %v1577 = vld [vmem:[%s1569 + $0x38] sm:$0xff]
      %v1578 = vld [vmem:[%s1569 + $0x40] sm:$0xff]
      %v1579 = vld [vmem:[%s1569 + $0x48] sm:$0xff]
      %v1580 = vld [vmem:[%s1569 + $0x50] sm:$0xff]
      %v1581 = vld [vmem:[%s1569 + $0x58] sm:$0xff]
      %v1582 = vld [vmem:[%s1569 + $0x60] sm:$0xff]
      %v1583 = vld [vmem:[%s1569 + $0x68] sm:$0xff]
      %v1584 = vld [vmem:[%s1569 + $0x70] sm:$0xff]
      %v1585 = vld [vmem:[%s1569 + $0x78] sm:$0xff]
      %v1586 = vld [vmem:[%s1569 + $0x80] sm:$0xff]
      %v1587 = vld [vmem:[%s1569 + $0x88] sm:$0xff]
      %v1588 = vld [vmem:[%s1569 + $0x90] sm:$0xff]
      %v1589 = vld [vmem:[%s1569 + $0x98] sm:$0xff]
      %v1590 = vld [vmem:[%s1569 + $0xa0] sm:$0xff]
      %v1591 = vld [vmem:[%s1569 + $0xa8] sm:$0xff]
      %v1592 = vld [vmem:[%s1569 + $0xb0] sm:$0xff]
      %v1593 = vld [vmem:[%s1569 + $0xb8] sm:$0xff]
      %v1594 = vld [vmem:[%s1569 + $0xc0] sm:$0xff]
      %v1595 = vld [vmem:[%s1569 + $0xc8] sm:$0xff]
      %v1596 = vld [vmem:[%s1569 + $0xd0] sm:$0xff]
      %v1597 = vld [vmem:[%s1569 + $0xd8] sm:$0xff]
      %v1598 = vld [vmem:[%s1569 + $0xe0] sm:$0xff]
      %v1599 = vld [vmem:[%s1569 + $0xe8] sm:$0xff]
      %v1600 = vld [vmem:[%s1569 + $0xf0] sm:$0xff]
      %v1601 = vld [vmem:[%s1569 + $0xf8] sm:$0xff]
      %v1602 = vld [vmem:[%s1569 + $0x100] sm:$0xff]
      %v1603 = vld [vmem:[%s1569 + $0x108] sm:$0xff]
      %v1604 = vld [vmem:[%s1569 + $0x110] sm:$0xff]
      %v1605 = vld [vmem:[%s1569 + $0x118] sm:$0xff]
      %v1606 = vld [vmem:[%s1569 + $0x120] sm:$0xff]
      %v1607 = vld [vmem:[%s1569 + $0x128] sm:$0xff]
      %v1608 = vld [vmem:[%s1569 + $0x130] sm:$0xff]
      %v1609 = vld [vmem:[%s1569 + $0x138] sm:$0xff]
      %v1610 = vld [vmem:[%s1569 + $0x140] sm:$0xff]
      %v1611 = vld [vmem:[%s1569 + $0x148] sm:$0xff]
      %v1612 = vld [vmem:[%s1569 + $0x150] sm:$0xff]
      %v1613 = vld [vmem:[%s1569 + $0x158] sm:$0xff]
      %v1614 = vld [vmem:[%s1569 + $0x160] sm:$0xff]
      %v1615 = vld [vmem:[%s1569 + $0x168] sm:$0xff]
      %v1616 = vld [vmem:[%s1569 + $0x170] sm:$0xff]
      %v1617 = vld [vmem:[%s1569 + $0x178] sm:$0xff]
      %1618 = vmatprep.subr.mxu0 0.0
      %1619 = vmatpush1.msra.mxu0 %v1585
      %1620 = vmatprep.subr.mxu0 0.0
      %1621 = vmatpush1.msra.mxu0 %v1584
      %1622 = vmatprep.subr.mxu0 0.0
      %1623 = vmatpush1.msra.mxu0 %v1583
      %1624 = vmatprep.subr.mxu0 0.0
      %1625 = vmatpush1.msra.mxu0 %v1582
      %1626 = vmatprep.subr.mxu0 0.0
      %1627 = vmatpush1.msra.mxu0 %v1581
      %1628 = vmatprep.subr.mxu0 0.0
      %1629 = vmatpush1.msra.mxu0 %v1580
      %1630 = vmatprep.subr.mxu0 0.0
      %1631 = vmatpush1.msra.mxu0 %v1579
      %1632 = vmatprep.subr.mxu0 0.0
      %1633 = vmatpush1.msra.mxu0 %v1578
      %1634 = vmatprep.subr.mxu0 0.0
      %1635 = vmatpush1.msra.mxu0 %v1577
      %1636 = vmatprep.subr.mxu0 0.0
      %1637 = vmatpush1.msra.mxu0 %v1576
      %1638 = vmatprep.subr.mxu0 0.0
      %1639 = vmatpush1.msra.mxu0 %v1575
      %1640 = vmatprep.subr.mxu0 0.0
      %1641 = vmatpush1.msra.mxu0 %v1574
      %1642 = vmatprep.subr.mxu0 0.0
      %1643 = vmatpush1.msra.mxu0 %v1573
      %1644 = vmatprep.subr.mxu0 0.0
      %1645 = vmatpush1.msra.mxu0 %v1572
      %1646 = vmatprep.subr.mxu0 0.0
      %1647 = vmatpush1.msra.mxu0 %v1571
      %1648 = vmatprep.subr.mxu0 0.0
      %1649 = vmatpush1.msra.mxu0 %v1570
      %1650 = vmatprep.subr.mxu0 0.0
      %1651 = vmatpush2.msra.mxu0 %v1601
      %1652 = vmatprep.subr.mxu0 0.0
      %1653 = vmatpush2.msra.mxu0 %v1600
      %1654 = vmatprep.subr.mxu0 0.0
      %1655 = vmatpush2.msra.mxu0 %v1599
      %1656 = vmatprep.subr.mxu0 0.0
      %1657 = vmatpush2.msra.mxu0 %v1598
      %1658 = vmatprep.subr.mxu0 0.0
      %1659 = vmatpush2.msra.mxu0 %v1597
      %1660 = vmatprep.subr.mxu0 0.0
      %1661 = vmatpush2.msra.mxu0 %v1596
      %1662 = vmatprep.subr.mxu0 0.0
      %1663 = vmatpush2.msra.mxu0 %v1595
      %1664 = vmatprep.subr.mxu0 0.0
      %1665 = vmatpush2.msra.mxu0 %v1594
      %1666 = vmatprep.subr.mxu0 0.0
      %1667 = vmatpush2.msra.mxu0 %v1593
      %1668 = vmatprep.subr.mxu0 0.0
      %1669 = vmatpush2.msra.mxu0 %v1592
      %1670 = vmatprep.subr.mxu0 0.0
      %1671 = vmatpush2.msra.mxu0 %v1591
      %1672 = vmatprep.subr.mxu0 0.0
      %1673 = vmatpush2.msra.mxu0 %v1590
      %1674 = vmatprep.subr.mxu0 0.0
      %1675 = vmatpush2.msra.mxu0 %v1589
      %1676 = vmatprep.subr.mxu0 0.0
      %1677 = vmatpush2.msra.mxu0 %v1588
      %1678 = vmatprep.subr.mxu0 0.0
      %1679 = vmatpush2.msra.mxu0 %v1587
      %1680 = vmatprep.subr.mxu0 0.0
      %1681 = vmatpush2.msra.mxu0 %v1586
      %1682 = vmatprep.mubr.f32.mxu0 %v504
      %1683 = vmatmul.mubr.f32.gmra.mxu0 %v468
      %v1684 = vpop.f32.mrf.mxu0
      %v1685 = vadd.f32 0.0, %v1684
      %v1686 = vpop.f32.mrf.mxu0
      %1687 = vmatprep.mubr.f32.mxu0 %v505
      %1688 = vmatmul.mubr.f32.gmra.mxu0 %v469
      %v1689 = vpop.f32.mrf.mxu0
      %v1690 = vadd.f32 0.0, %v1689
      %v1691 = vpop.f32.mrf.mxu0
      %1692 = vmatprep.mubr.f32.mxu0 %v506
      %1693 = vmatmul.mubr.f32.gmra.mxu0 %v470
      %v1694 = vpop.f32.mrf.mxu0
      %v1695 = vadd.f32 0.0, %v1694
      %v1696 = vpop.f32.mrf.mxu0
      %1697 = vmatprep.mubr.f32.mxu0 %v507
      %1698 = vmatmul.mubr.f32.gmra.mxu0 %v471
      %v1699 = vpop.f32.mrf.mxu0
      %v1700 = vadd.f32 0.0, %v1699
      %v1701 = vpop.f32.mrf.mxu0
      %1702 = vmatprep.mubr.f32.mxu0 %v508
      %1703 = vmatmul.mubr.f32.gmra.mxu0 %v472
      %v1704 = vpop.f32.mrf.mxu0
      %v1705 = vadd.f32 0.0, %v1704
      %v1706 = vpop.f32.mrf.mxu0
      %1707 = vmatprep.mubr.f32.mxu0 %v509
      %1708 = vmatmul.mubr.f32.gmra.mxu0 %v473
      %v1709 = vpop.f32.mrf.mxu0
      %v1710 = vadd.f32 0.0, %v1709
      %v1711 = vpop.f32.mrf.mxu0
      %1712 = vmatprep.mubr.f32.mxu0 %v510
      %1713 = vmatmul.mubr.f32.gmra.mxu0 %v474
      %v1714 = vpop.f32.mrf.mxu0
      %v1715 = vadd.f32 0.0, %v1714
      %v1716 = vpop.f32.mrf.mxu0
      %1717 = vmatprep.mubr.f32.mxu0 %v511
      %1718 = vmatmul.mubr.f32.gmra.mxu0 %v475
      %v1719 = vpop.f32.mrf.mxu0
      %v1720 = vadd.f32 0.0, %v1719
      %v1721 = vpop.f32.mrf.mxu0
      %1722 = vmatprep.mubr.f32.mxu0 %v512
      %1723 = vmatmul.mubr.f32.gmra.mxu0 %v476
      %v1724 = vpop.f32.mrf.mxu0
      %v1725 = vadd.f32 0.0, %v1724
      %v1726 = vpop.f32.mrf.mxu0
      %1727 = vmatprep.mubr.f32.mxu0 %v513
      %1728 = vmatmul.mubr.f32.gmra.mxu0 %v477
      %v1729 = vpop.f32.mrf.mxu0
      %v1730 = vadd.f32 0.0, %v1729
      %v1731 = vpop.f32.mrf.mxu0
      %1732 = vmatprep.mubr.f32.mxu0 %v514
      %1733 = vmatmul.mubr.f32.gmra.mxu0 %v478
      %v1734 = vpop.f32.mrf.mxu0
      %v1735 = vadd.f32 0.0, %v1734
      %v1736 = vpop.f32.mrf.mxu0
      %1737 = vmatprep.mubr.f32.mxu0 %v515
      %1738 = vmatmul.mubr.f32.gmra.mxu0 %v479
      %v1739 = vpop.f32.mrf.mxu0
      %v1740 = vadd.f32 0.0, %v1739
      %v1741 = vpop.f32.mrf.mxu0
      %1742 = vmatprep.mubr.f32.mxu0 %v516
      %1743 = vmatmul.mubr.f32.gmra.mxu0 %v480
      %v1744 = vpop.f32.mrf.mxu0
      %v1745 = vadd.f32 0.0, %v1744
      %v1746 = vpop.f32.mrf.mxu0
      %1747 = vmatprep.mubr.f32.mxu0 %v517
      %1748 = vmatmul.mubr.f32.gmra.mxu0 %v481
      %v1749 = vpop.f32.mrf.mxu0
      %v1750 = vadd.f32 0.0, %v1749
      %v1751 = vpop.f32.mrf.mxu0
      %1752 = vmatprep.mubr.f32.mxu0 %v518
      %1753 = vmatmul.mubr.f32.gmra.mxu0 %v482
      %v1754 = vpop.f32.mrf.mxu0
      %v1755 = vadd.f32 0.0, %v1754
      %v1756 = vpop.f32.mrf.mxu0
      %1757 = vmatprep.mubr.f32.mxu0 %v519
      %1758 = vmatmul.mubr.f32.gmra.mxu0 %v483
      %v1759 = vpop.f32.mrf.mxu0
      %v1760 = vadd.f32 0.0, %v1759
      %v1761 = vpop.f32.mrf.mxu0
      %1762 = vmatprep.mubr.f32.mxu0 %v520
      %1763 = vmatmul.mubr.f32.gmra.mxu0 %v484
      %v1764 = vpop.f32.mrf.mxu0
      %v1765 = vadd.f32 0.0, %v1764
      %v1766 = vpop.f32.mrf.mxu0
      %1767 = vmatprep.mubr.f32.mxu0 %v521
      %1768 = vmatmul.mubr.f32.gmra.mxu0 %v485
      %v1769 = vpop.f32.mrf.mxu0
      %v1770 = vadd.f32 0.0, %v1769
      %v1771 = vpop.f32.mrf.mxu0
      %1772 = vmatprep.mubr.f32.mxu0 %v522
      %1773 = vmatmul.mubr.f32.gmra.mxu0 %v486
      %v1774 = vpop.f32.mrf.mxu0
      %v1775 = vadd.f32 0.0, %v1774
      %v1776 = vpop.f32.mrf.mxu0
      %1777 = vmatprep.mubr.f32.mxu0 %v523
      %1778 = vmatmul.mubr.f32.gmra.mxu0 %v487
      %v1779 = vpop.f32.mrf.mxu0
      %v1780 = vadd.f32 0.0, %v1779
      %v1781 = vpop.f32.mrf.mxu0
      %1782 = vmatprep.mubr.f32.mxu0 %v524
      %1783 = vmatmul.mubr.f32.gmra.mxu0 %v488
      %v1784 = vpop.f32.mrf.mxu0
      %v1785 = vadd.f32 0.0, %v1784
      %v1786 = vpop.f32.mrf.mxu0
      %1787 = vmatprep.mubr.f32.mxu0 %v525
      %1788 = vmatmul.mubr.f32.gmra.mxu0 %v489
      %v1789 = vpop.f32.mrf.mxu0
      %v1790 = vadd.f32 0.0, %v1789
      %v1791 = vpop.f32.mrf.mxu0
      %1792 = vmatprep.mubr.f32.mxu0 %v526
      %1793 = vmatmul.mubr.f32.gmra.mxu0 %v490
      %v1794 = vpop.f32.mrf.mxu0
      %v1795 = vadd.f32 0.0, %v1794
      %v1796 = vpop.f32.mrf.mxu0
      %1797 = vmatprep.mubr.f32.mxu0 %v527
      %1798 = vmatmul.mubr.f32.gmra.mxu0 %v491
      %v1799 = vpop.f32.mrf.mxu0
      %v1800 = vadd.f32 0.0, %v1799
      %v1801 = vpop.f32.mrf.mxu0
      %1802 = vmatprep.mubr.f32.mxu0 %v528
      %1803 = vmatmul.mubr.f32.gmra.mxu0 %v492
      %v1804 = vpop.f32.mrf.mxu0
      %v1805 = vadd.f32 0.0, %v1804
      %v1806 = vpop.f32.mrf.mxu0
      %1807 = vmatprep.mubr.f32.mxu0 %v529
      %1808 = vmatmul.mubr.f32.gmra.mxu0 %v493
      %v1809 = vpop.f32.mrf.mxu0
      %v1810 = vadd.f32 0.0, %v1809
      %v1811 = vpop.f32.mrf.mxu0
      %1812 = vmatprep.mubr.f32.mxu0 %v530
      %1813 = vmatmul.mubr.f32.gmra.mxu0 %v494
      %v1814 = vpop.f32.mrf.mxu0
      %v1815 = vadd.f32 0.0, %v1814
      %v1816 = vpop.f32.mrf.mxu0
      %1817 = vmatprep.mubr.f32.mxu0 %v531
      %1818 = vmatmul.mubr.f32.gmra.mxu0 %v495
      %v1819 = vpop.f32.mrf.mxu0
      %v1820 = vadd.f32 0.0, %v1819
      %v1821 = vpop.f32.mrf.mxu0
      %1822 = vmatprep.mubr.f32.mxu0 %v532
      %1823 = vmatmul.mubr.f32.gmra.mxu0 %v496
      %v1824 = vpop.f32.mrf.mxu0
      %v1825 = vadd.f32 0.0, %v1824
      %v1826 = vpop.f32.mrf.mxu0
      %1827 = vmatprep.mubr.f32.mxu0 %v533
      %1828 = vmatmul.mubr.f32.gmra.mxu0 %v497
      %v1829 = vpop.f32.mrf.mxu0
      %v1830 = vadd.f32 0.0, %v1829
      %v1831 = vpop.f32.mrf.mxu0
      %1832 = vmatprep.mubr.f32.mxu0 %v534
      %1833 = vmatmul.mubr.f32.gmra.mxu0 %v498
      %v1834 = vpop.f32.mrf.mxu0
      %v1835 = vadd.f32 0.0, %v1834
      %v1836 = vpop.f32.mrf.mxu0
      %1837 = vmatprep.mubr.f32.mxu0 %v535
      %1838 = vmatmul.mubr.f32.gmra.mxu0 %v499
      %v1839 = vpop.f32.mrf.mxu0
      %v1840 = vadd.f32 0.0, %v1839
      %v1841 = vpop.f32.mrf.mxu0
      %1842 = vdwg.mxu0
      %1843 = vmatprep.subr.mxu0 0.0
      %1844 = vmatpush1.msra.mxu0 %v1617
      %1845 = vmatprep.subr.mxu0 0.0
      %1846 = vmatpush1.msra.mxu0 %v1616
      %1847 = vmatprep.subr.mxu0 0.0
      %1848 = vmatpush1.msra.mxu0 %v1615
      %1849 = vmatprep.subr.mxu0 0.0
      %1850 = vmatpush1.msra.mxu0 %v1614
      %1851 = vmatprep.subr.mxu0 0.0
      %1852 = vmatpush1.msra.mxu0 %v1613
      %1853 = vmatprep.subr.mxu0 0.0
      %1854 = vmatpush1.msra.mxu0 %v1612
      %1855 = vmatprep.subr.mxu0 0.0
      %1856 = vmatpush1.msra.mxu0 %v1611
      %1857 = vmatprep.subr.mxu0 0.0
      %1858 = vmatpush1.msra.mxu0 %v1610
      %1859 = vmatprep.subr.mxu0 0.0
      %1860 = vmatpush1.msra.mxu0 %v1609
      %1861 = vmatprep.subr.mxu0 0.0
      %1862 = vmatpush1.msra.mxu0 %v1608
      %1863 = vmatprep.subr.mxu0 0.0
      %1864 = vmatpush1.msra.mxu0 %v1607
      %1865 = vmatprep.subr.mxu0 0.0
      %1866 = vmatpush1.msra.mxu0 %v1606
      %1867 = vmatprep.subr.mxu0 0.0
      %1868 = vmatpush1.msra.mxu0 %v1605
      %1869 = vmatprep.subr.mxu0 0.0
      %1870 = vmatpush1.msra.mxu0 %v1604
      %1871 = vmatprep.subr.mxu0 0.0
      %1872 = vmatpush1.msra.mxu0 %v1603
      %1873 = vmatprep.subr.mxu0 0.0
      %1874 = vmatpush1.msra.mxu0 %v1602
      %1875 = vmatprep.subr.mxu0 0.0
      %1876 = vmatpush2.msra.mxu0 0.0
      %1877 = vmatprep.subr.mxu0 0.0
      %1878 = vmatpush2.msra.mxu0 0.0
      %1879 = vmatprep.subr.mxu0 0.0
      %1880 = vmatpush2.msra.mxu0 0.0
      %1881 = vmatprep.subr.mxu0 0.0
      %1882 = vmatpush2.msra.mxu0 0.0
      %1883 = vmatprep.subr.mxu0 0.0
      %1884 = vmatpush2.msra.mxu0 0.0
      %1885 = vmatprep.subr.mxu0 0.0
      %1886 = vmatpush2.msra.mxu0 0.0
      %1887 = vmatprep.subr.mxu0 0.0
      %1888 = vmatpush2.msra.mxu0 0.0
      %1889 = vmatprep.subr.mxu0 0.0
      %1890 = vmatpush2.msra.mxu0 0.0
      %1891 = vmatprep.subr.mxu0 0.0
      %1892 = vmatpush2.msra.mxu0 0.0
      %1893 = vmatprep.subr.mxu0 0.0
      %1894 = vmatpush2.msra.mxu0 0.0
      %1895 = vmatprep.subr.mxu0 0.0
      %1896 = vmatpush2.msra.mxu0 0.0
      %1897 = vmatprep.subr.mxu0 0.0
      %1898 = vmatpush2.msra.mxu0 0.0
      %1899 = vmatprep.subr.mxu0 0.0
      %1900 = vmatpush2.msra.mxu0 0.0
      %1901 = vmatprep.subr.mxu0 0.0
      %1902 = vmatpush2.msra.mxu0 0.0
      %1903 = vmatprep.subr.mxu0 0.0
      %1904 = vmatpush2.msra.mxu0 0.0
      %1905 = vmatprep.subr.mxu0 0.0
      %1906 = vmatpush2.msra.mxu0 0.0
      %1907 = vmatprep.mubr.f32.mxu0 0.0
      %1908 = vmatmul.mubr.f32.gmra.mxu0 %v540
      %v1909 = vpop.f32.mrf.mxu0
      %v1910 = vadd.f32 %v1685, %v1909
      %v1911 = vpop.f32.mrf.mxu0
      %1912 = vmatprep.mubr.f32.mxu0 0.0
      %1913 = vmatmul.mubr.f32.gmra.mxu0 %v541
      %v1914 = vpop.f32.mrf.mxu0
      %v1915 = vadd.f32 %v1690, %v1914
      %v1916 = vpop.f32.mrf.mxu0
      %1917 = vmatprep.mubr.f32.mxu0 0.0
      %1918 = vmatmul.mubr.f32.gmra.mxu0 %v542
      %v1919 = vpop.f32.mrf.mxu0
      %v1920 = vadd.f32 %v1695, %v1919
      %v1921 = vpop.f32.mrf.mxu0
      %1922 = vmatprep.mubr.f32.mxu0 0.0
      %1923 = vmatmul.mubr.f32.gmra.mxu0 %v543
      %v1924 = vpop.f32.mrf.mxu0
      %v1925 = vadd.f32 %v1700, %v1924
      %v1926 = vpop.f32.mrf.mxu0
      %1927 = vmatprep.mubr.f32.mxu0 0.0
      %1928 = vmatmul.mubr.f32.gmra.mxu0 %v544
      %v1929 = vpop.f32.mrf.mxu0
      %v1930 = vadd.f32 %v1705, %v1929
      %v1931 = vpop.f32.mrf.mxu0
      %1932 = vmatprep.mubr.f32.mxu0 0.0
      %1933 = vmatmul.mubr.f32.gmra.mxu0 %v545
      %v1934 = vpop.f32.mrf.mxu0
      %v1935 = vadd.f32 %v1710, %v1934
      %v1936 = vpop.f32.mrf.mxu0
      %1937 = vmatprep.mubr.f32.mxu0 0.0
      %1938 = vmatmul.mubr.f32.gmra.mxu0 %v546
      %v1939 = vpop.f32.mrf.mxu0
      %v1940 = vadd.f32 %v1715, %v1939
      %v1941 = vpop.f32.mrf.mxu0
      %1942 = vmatprep.mubr.f32.mxu0 0.0
      %1943 = vmatmul.mubr.f32.gmra.mxu0 %v547
      %v1944 = vpop.f32.mrf.mxu0
      %v1945 = vadd.f32 %v1720, %v1944
      %v1946 = vpop.f32.mrf.mxu0
      %1947 = vmatprep.mubr.f32.mxu0 0.0
      %1948 = vmatmul.mubr.f32.gmra.mxu0 %v548
      %v1949 = vpop.f32.mrf.mxu0
      %v1950 = vadd.f32 %v1725, %v1949
      %v1951 = vpop.f32.mrf.mxu0
      %1952 = vmatprep.mubr.f32.mxu0 0.0
      %1953 = vmatmul.mubr.f32.gmra.mxu0 %v549
      %v1954 = vpop.f32.mrf.mxu0
      %v1955 = vadd.f32 %v1730, %v1954
      %v1956 = vpop.f32.mrf.mxu0
      %1957 = vmatprep.mubr.f32.mxu0 0.0
      %1958 = vmatmul.mubr.f32.gmra.mxu0 %v550
      %v1959 = vpop.f32.mrf.mxu0
      %v1960 = vadd.f32 %v1735, %v1959
      %v1961 = vpop.f32.mrf.mxu0
      %1962 = vmatprep.mubr.f32.mxu0 0.0
      %1963 = vmatmul.mubr.f32.gmra.mxu0 %v551
      %v1964 = vpop.f32.mrf.mxu0
      %v1965 = vadd.f32 %v1740, %v1964
      %v1966 = vpop.f32.mrf.mxu0
      %1967 = vmatprep.mubr.f32.mxu0 0.0
      %1968 = vmatmul.mubr.f32.gmra.mxu0 %v552
      %v1969 = vpop.f32.mrf.mxu0
      %v1970 = vadd.f32 %v1745, %v1969
      %v1971 = vpop.f32.mrf.mxu0
      %1972 = vmatprep.mubr.f32.mxu0 0.0
      %1973 = vmatmul.mubr.f32.gmra.mxu0 %v553
      %v1974 = vpop.f32.mrf.mxu0
      %v1975 = vadd.f32 %v1750, %v1974
      %v1976 = vpop.f32.mrf.mxu0
      %1977 = vmatprep.mubr.f32.mxu0 0.0
      %1978 = vmatmul.mubr.f32.gmra.mxu0 %v554
      %v1979 = vpop.f32.mrf.mxu0
      %v1980 = vadd.f32 %v1755, %v1979
      %v1981 = vpop.f32.mrf.mxu0
      %1982 = vmatprep.mubr.f32.mxu0 0.0
      %1983 = vmatmul.mubr.f32.gmra.mxu0 %v555
      %v1984 = vpop.f32.mrf.mxu0
      %v1985 = vadd.f32 %v1760, %v1984
      %v1986 = vpop.f32.mrf.mxu0
      %1987 = vmatprep.mubr.f32.mxu0 0.0
      %1988 = vmatmul.mubr.f32.gmra.mxu0 %v556
      %v1989 = vpop.f32.mrf.mxu0
      %v1990 = vadd.f32 %v1765, %v1989
      %v1991 = vpop.f32.mrf.mxu0
      %1992 = vmatprep.mubr.f32.mxu0 0.0
      %1993 = vmatmul.mubr.f32.gmra.mxu0 %v557
      %v1994 = vpop.f32.mrf.mxu0
      %v1995 = vadd.f32 %v1770, %v1994
      %v1996 = vpop.f32.mrf.mxu0
      %1997 = vmatprep.mubr.f32.mxu0 0.0
      %1998 = vmatmul.mubr.f32.gmra.mxu0 %v558
      %v1999 = vpop.f32.mrf.mxu0
      %v2000 = vadd.f32 %v1775, %v1999
      %v2001 = vpop.f32.mrf.mxu0
      %2002 = vmatprep.mubr.f32.mxu0 0.0
      %2003 = vmatmul.mubr.f32.gmra.mxu0 %v559
      %v2004 = vpop.f32.mrf.mxu0
      %v2005 = vadd.f32 %v1780, %v2004
      %v2006 = vpop.f32.mrf.mxu0
      %2007 = vmatprep.mubr.f32.mxu0 0.0
      %2008 = vmatmul.mubr.f32.gmra.mxu0 %v560
      %v2009 = vpop.f32.mrf.mxu0
      %v2010 = vadd.f32 %v1785, %v2009
      %v2011 = vpop.f32.mrf.mxu0
      %2012 = vmatprep.mubr.f32.mxu0 0.0
      %2013 = vmatmul.mubr.f32.gmra.mxu0 %v561
      %v2014 = vpop.f32.mrf.mxu0
      %v2015 = vadd.f32 %v1790, %v2014
      %v2016 = vpop.f32.mrf.mxu0
      %2017 = vmatprep.mubr.f32.mxu0 0.0
      %2018 = vmatmul.mubr.f32.gmra.mxu0 %v562
      %v2019 = vpop.f32.mrf.mxu0
      %v2020 = vadd.f32 %v1795, %v2019
      %v2021 = vpop.f32.mrf.mxu0
      %2022 = vmatprep.mubr.f32.mxu0 0.0
      %2023 = vmatmul.mubr.f32.gmra.mxu0 %v563
      %v2024 = vpop.f32.mrf.mxu0
      %v2025 = vadd.f32 %v1800, %v2024
      %v2026 = vpop.f32.mrf.mxu0
      %2027 = vmatprep.mubr.f32.mxu0 0.0
      %2028 = vmatmul.mubr.f32.gmra.mxu0 %v564
      %v2029 = vpop.f32.mrf.mxu0
      %v2030 = vadd.f32 %v1805, %v2029
      %v2031 = vpop.f32.mrf.mxu0
      %2032 = vmatprep.mubr.f32.mxu0 0.0
      %2033 = vmatmul.mubr.f32.gmra.mxu0 %v565
      %v2034 = vpop.f32.mrf.mxu0
      %v2035 = vadd.f32 %v1810, %v2034
      %v2036 = vpop.f32.mrf.mxu0
      %2037 = vmatprep.mubr.f32.mxu0 0.0
      %2038 = vmatmul.mubr.f32.gmra.mxu0 %v566
      %v2039 = vpop.f32.mrf.mxu0
      %v2040 = vadd.f32 %v1815, %v2039
      %v2041 = vpop.f32.mrf.mxu0
      %2042 = vmatprep.mubr.f32.mxu0 0.0
      %2043 = vmatmul.mubr.f32.gmra.mxu0 %v567
      %v2044 = vpop.f32.mrf.mxu0
      %v2045 = vadd.f32 %v1820, %v2044
      %v2046 = vpop.f32.mrf.mxu0
      %2047 = vmatprep.mubr.f32.mxu0 0.0
      %2048 = vmatmul.mubr.f32.gmra.mxu0 %v568
      %v2049 = vpop.f32.mrf.mxu0
      %v2050 = vadd.f32 %v1825, %v2049
      %v2051 = vpop.f32.mrf.mxu0
      %2052 = vmatprep.mubr.f32.mxu0 0.0
      %2053 = vmatmul.mubr.f32.gmra.mxu0 %v569
      %v2054 = vpop.f32.mrf.mxu0
      %v2055 = vadd.f32 %v1830, %v2054
      %v2056 = vpop.f32.mrf.mxu0
      %2057 = vmatprep.mubr.f32.mxu0 0.0
      %2058 = vmatmul.mubr.f32.gmra.mxu0 %v570
      %v2059 = vpop.f32.mrf.mxu0
      %v2060 = vadd.f32 %v1835, %v2059
      %v2061 = vpop.f32.mrf.mxu0
      %2062 = vmatprep.mubr.f32.mxu0 0.0
      %2063 = vmatmul.mubr.f32.gmra.mxu0 %v571
      %v2064 = vpop.f32.mrf.mxu0
      %v2065 = vadd.f32 %v1840, %v2064
      %v2066 = vpop.f32.mrf.mxu0
      %2067 = vdwg.mxu0
      %v2068 = vadd.f32 %v1411, %v1910
      %v2069 = vadd.f32 %v1416, %v1915
      %v2070 = vadd.f32 %v1421, %v1920
      %v2071 = vadd.f32 %v1426, %v1925
      %v2072 = vadd.f32 %v1431, %v1930
      %v2073 = vadd.f32 %v1436, %v1935
      %v2074 = vadd.f32 %v1441, %v1940
      %v2075 = vadd.f32 %v1446, %v1945
      %v2076 = vadd.f32 %v1451, %v1950
      %v2077 = vadd.f32 %v1456, %v1955
      %v2078 = vadd.f32 %v1461, %v1960
      %v2079 = vadd.f32 %v1466, %v1965
      %v2080 = vadd.f32 %v1471, %v1970
      %v2081 = vadd.f32 %v1476, %v1975
      %v2082 = vadd.f32 %v1481, %v1980
      %v2083 = vadd.f32 %v1486, %v1985
      %v2084 = vadd.f32 %v1491, %v1990
      %v2085 = vadd.f32 %v1496, %v1995
      %v2086 = vadd.f32 %v1501, %v2000
      %v2087 = vadd.f32 %v1506, %v2005
      %v2088 = vadd.f32 %v1511, %v2010
      %v2089 = vadd.f32 %v1516, %v2015
      %v2090 = vadd.f32 %v1521, %v2020
      %v2091 = vadd.f32 %v1526, %v2025
      %v2092 = vadd.f32 %v1531, %v2030
      %v2093 = vadd.f32 %v1536, %v2035
      %v2094 = vadd.f32 %v1541, %v2040
      %v2095 = vadd.f32 %v1546, %v2045
      %v2096 = vadd.f32 %v1551, %v2050
      %v2097 = vadd.f32 %v1556, %v2055
      %v2098 = vadd.f32 %v1561, %v2060
      %v2099 = vadd.f32 %v1566, %v2065
      %2100 = vst [vmem:[%s208] sm:$0xff] %v2068
      %2101 = vst [vmem:[%s208 + $0x8] sm:$0xff] %v2069
      %2102 = vst [vmem:[%s208 + $0x10] sm:$0xff] %v2070
      %2103 = vst [vmem:[%s208 + $0x18] sm:$0xff] %v2071
      %2104 = vst [vmem:[%s208 + $0x20] sm:$0xff] %v2072
      %2105 = vst [vmem:[%s208 + $0x28] sm:$0xff] %v2073
      %2106 = vst [vmem:[%s208 + $0x30] sm:$0xff] %v2074
      %2107 = vst [vmem:[%s208 + $0x38] sm:$0xff] %v2075
      %2108 = vst [vmem:[%s208 + $0x40] sm:$0xff] %v2076
      %2109 = vst [vmem:[%s208 + $0x48] sm:$0xff] %v2077
      %2110 = vst [vmem:[%s208 + $0x50] sm:$0xff] %v2078
      %2111 = vst [vmem:[%s208 + $0x58] sm:$0xff] %v2079
      %2112 = vst [vmem:[%s208 + $0x60] sm:$0xff] %v2080
      %2113 = vst [vmem:[%s208 + $0x68] sm:$0xff] %v2081
      %2114 = vst [vmem:[%s208 + $0x70] sm:$0xff] %v2082
      %2115 = vst [vmem:[%s208 + $0x78] sm:$0xff] %v2083
      %2116 = vst [vmem:[%s208 + $0x80] sm:$0xff] %v2084
      %2117 = vst [vmem:[%s208 + $0x88] sm:$0xff] %v2085
      %2118 = vst [vmem:[%s208 + $0x90] sm:$0xff] %v2086
      %2119 = vst [vmem:[%s208 + $0x98] sm:$0xff] %v2087
      %2120 = vst [vmem:[%s208 + $0xa0] sm:$0xff] %v2088
      %2121 = vst [vmem:[%s208 + $0xa8] sm:$0xff] %v2089
      %2122 = vst [vmem:[%s208 + $0xb0] sm:$0xff] %v2090
      %2123 = vst [vmem:[%s208 + $0xb8] sm:$0xff] %v2091
      %2124 = vst [vmem:[%s208 + $0xc0] sm:$0xff] %v2092
      %2125 = vst [vmem:[%s208 + $0xc8] sm:$0xff] %v2093
      %2126 = vst [vmem:[%s208 + $0xd0] sm:$0xff] %v2094
      %2127 = vst [vmem:[%s208 + $0xd8] sm:$0xff] %v2095
      %2128 = vst [vmem:[%s208 + $0xe0] sm:$0xff] %v2096
      %2129 = vst [vmem:[%s208 + $0xe8] sm:$0xff] %v2097
      %2130 = vst [vmem:[%s208 + $0xf0] sm:$0xff] %v2098
      %2131 = vst [vmem:[%s208 + $0xf8] sm:$0xff] %v2099
      %v2132 = vadd.f32 %v2068, %v2069
      %v2133 = vadd.f32 %v2132, %v2070
      %v2134 = vadd.f32 %v2133, %v2071
      %v2135 = vadd.f32 %v2134, %v2072
      %v2136 = vadd.f32 %v2135, %v2073
      %v2137 = vadd.f32 %v2136, %v2074
      %v2138 = vadd.f32 %v2137, %v2075
      %v2139 = vadd.f32 %v2138, %v2076
      %v2140 = vadd.f32 %v2139, %v2077
      %v2141 = vadd.f32 %v2140, %v2078
      %v2142 = vadd.f32 %v2141, %v2079
      %v2143 = vadd.f32 %v2142, %v2080
      %v2144 = vadd.f32 %v2143, %v2081
      %v2145 = vadd.f32 %v2144, %v2082
      %v2146 = vadd.f32 %v2145, %v2083
      %v2147 = vadd.f32 %v2146, %v2084
      %v2148 = vadd.f32 %v2147, %v2085
      %v2149 = vadd.f32 %v2148, %v2086
      %v2150 = vadd.f32 %v2149, %v2087
      %v2151 = vadd.f32 %v2150, %v2088
      %v2152 = vadd.f32 %v2151, %v2089
      %v2153 = vadd.f32 %v2152, %v2090
      %v2154 = vadd.f32 %v2153, %v2091
      %v2155 = vadd.f32 %v2154, %v2092
      %v2156 = vadd.f32 %v2155, %v2093
      %v2157 = vadd.f32 %v2156, %v2094
      %v2158 = vadd.f32 %v2157, %v2095
      %v2159 = vadd.f32 %v2158, %v2096
      %v2160 = vadd.f32 %v2159, %v2097
      %v2161 = vadd.f32 %v2160, %v2098
      %v2162 = vadd.f32 %v2161, %v2099
      %v2163 = vrot.slane %v2162, 4
      %v2164 = vadd.f32 %v2162, %v2163
      %v2165 = vrot.slane %v2164, 2
      %v2166 = vadd.f32 %v2164, %v2165
      %v2167 = vrot.slane %v2166, 1
      %v2168 = vadd.f32 %v2166, %v2167
      %2169 = vst [vmem:[%s211] sm:$0x1] %v2168
      %v2170 = vmul.f32 %v2068, %v2068
      %v2171 = vmul.f32 %v2069, %v2069
      %v2172 = vmul.f32 %v2070, %v2070
      %v2173 = vmul.f32 %v2071, %v2071
      %v2174 = vmul.f32 %v2072, %v2072
      %v2175 = vmul.f32 %v2073, %v2073
      %v2176 = vmul.f32 %v2074, %v2074
      %v2177 = vmul.f32 %v2075, %v2075
      %v2178 = vmul.f32 %v2076, %v2076
      %v2179 = vmul.f32 %v2077, %v2077
      %v2180 = vmul.f32 %v2078, %v2078
      %v2181 = vmul.f32 %v2079, %v2079
      %v2182 = vmul.f32 %v2080, %v2080
      %v2183 = vmul.f32 %v2081, %v2081
      %v2184 = vmul.f32 %v2082, %v2082
      %v2185 = vmul.f32 %v2083, %v2083
      %v2186 = vmul.f32 %v2084, %v2084
      %v2187 = vmul.f32 %v2085, %v2085
      %v2188 = vmul.f32 %v2086, %v2086
      %v2189 = vmul.f32 %v2087, %v2087
      %v2190 = vmul.f32 %v2088, %v2088
      %v2191 = vmul.f32 %v2089, %v2089
      %v2192 = vmul.f32 %v2090, %v2090
      %v2193 = vmul.f32 %v2091, %v2091
      %v2194 = vmul.f32 %v2092, %v2092
      %v2195 = vmul.f32 %v2093, %v2093
      %v2196 = vmul.f32 %v2094, %v2094
      %v2197 = vmul.f32 %v2095, %v2095
      %v2198 = vmul.f32 %v2096, %v2096
      %v2199 = vmul.f32 %v2097, %v2097
      %v2200 = vmul.f32 %v2098, %v2098
      %v2201 = vmul.f32 %v2099, %v2099
      %v2202 = vadd.f32 %v2170, %v2171
      %v2203 = vadd.f32 %v2202, %v2172
      %v2204 = vadd.f32 %v2203, %v2173
      %v2205 = vadd.f32 %v2204, %v2174
      %v2206 = vadd.f32 %v2205, %v2175
      %v2207 = vadd.f32 %v2206, %v2176
      %v2208 = vadd.f32 %v2207, %v2177
      %v2209 = vadd.f32 %v2208, %v2178
      %v2210 = vadd.f32 %v2209, %v2179
      %v2211 = vadd.f32 %v2210, %v2180
      %v2212 = vadd.f32 %v2211, %v2181
      %v2213 = vadd.f32 %v2212, %v2182
      %v2214 = vadd.f32 %v2213, %v2183
      %v2215 = vadd.f32 %v2214, %v2184
      %v2216 = vadd.f32 %v2215, %v2185
      %v2217 = vadd.f32 %v2216, %v2186
      %v2218 = vadd.f32 %v2217, %v2187
      %v2219 = vadd.f32 %v2218, %v2188
      %v2220 = vadd.f32 %v2219, %v2189
      %v2221 = vadd.f32 %v2220, %v2190
      %v2222 = vadd.f32 %v2221, %v2191
      %v2223 = vadd.f32 %v2222, %v2192
      %v2224 = vadd.f32 %v2223, %v2193
      %v2225 = vadd.f32 %v2224, %v2194
      %v2226 = vadd.f32 %v2225, %v2195
      %v2227 = vadd.f32 %v2226, %v2196
      %v2228 = vadd.f32 %v2227, %v2197
      %v2229 = vadd.f32 %v2228, %v2198
      %v2230 = vadd.f32 %v2229, %v2199
      %v2231 = vadd.f32 %v2230, %v2200
      %v2232 = vadd.f32 %v2231, %v2201
      %v2233 = vrot.slane %v2232, 4
      %v2234 = vadd.f32 %v2232, %v2233
      %v2235 = vrot.slane %v2234, 2
      %v2236 = vadd.f32 %v2234, %v2235
      %v2237 = vrot.slane %v2236, 1
      %v2238 = vadd.f32 %v2236, %v2237
      %2239 = vst [vmem:[%s214] sm:$0x1] %v2238
      %p2240 = scmp.lt.s32.totalorder %s16, 1
      %s2241 = scalar_select %p2240, %s16, 1
      %s2242 = smul.addr %s2241, 32
      %s2243 = smul.addr %s2242, 8
      %s2244 = scalar_lea.vmem %s2, %s2243
      %p2245 = scmp.lt.s32.totalorder %s16, 1
      %s2246 = scalar_select %p2245, %s16, 1
      %s2247 = scalar_lea.vmem %s3, %s2246
      %p2248 = scmp.lt.s32.totalorder %s16, 1
      %s2249 = scalar_select %p2248, %s16, 1
      %s2250 = scalar_lea.vmem %s4, %s2249
      // Predicated region
      $region29: #{residual_double_conv.3} parent=27 // pred_check
        %p2251 = pneg %p81
      $region30: #{residual_double_conv.3} parent=27 // pred_check_branch
        %2253 = sbr.rel (%p2251) target = $region32
      $region31: #{residual_double_conv.3} parent=27 // pred_region
        _
      $region32: #{residual_double_conv.3} parent=27 // pred_fallthru
        _
      // Predicated region
      $region33: #{residual_double_conv.3} parent=27 // pred_check
        %p2254 = pneg %p107
      $region34: #{residual_double_conv.3} parent=27 // pred_check_branch
        %2256 = sbr.rel (%p2254) target = $region36
      $region35: #{residual_double_conv.3} parent=27 // pred_region
        _
      $region36: #{residual_double_conv.3} parent=27 // pred_fallthru
        _
      // Predicated region
      $region37: #{residual_double_conv.3} parent=27 // pred_check
        %p2257 = pneg %p133
      $region38: #{residual_double_conv.3} parent=27 // pred_check_branch
        %2259 = sbr.rel (%p2257) target = $region40
      $region39: #{residual_double_conv.3} parent=27 // pred_region
        _
      $region40: #{residual_double_conv.3} parent=27 // pred_fallthru
        _
    $region28: #{residual_double_conv.3} parent=5 // pred_fallthru
      _
    %p2260 = scmp.le.s32.totalorder 2, %s11
    // Predicated region
    $region41: #{residual_double_conv.3} parent=5 // pred_check
      %p2261 = pneg %p2260
    $region42: #{residual_double_conv.3} parent=5 // pred_check_branch
      %2263 = sbr.rel (%p2261) target = $region44
    $region43: #{residual_double_conv.3} parent=5 // pred_region
      %s2264 = ssub.s32 %s11, 2
      // Predicated region
      $region45: #{residual_double_conv.3} parent=43 // pred_check
        %p2265 = pneg %p87
      $region46: #{residual_double_conv.3} parent=43 // pred_check_branch
        %2267 = sbr.rel (%p2265) target = $region48
      $region47: #{residual_double_conv.3} parent=43 // pred_region
        %p2268 = scmp.lt.s32.totalorder %s17, 1
        %s2269 = scalar_select %p2268, %s17, 1
        %s2270 = smul.addr %s2269, 32
        %s2271 = smul.addr %s2270, 8
        %s2272 = scalar_lea.vmem %s2, %s2271
      $region48: #{residual_double_conv.3} parent=43 // pred_fallthru
        _
      // Predicated region
      $region49: #{residual_double_conv.3} parent=43 // pred_check
        %p2273 = pneg %p113
      $region50: #{residual_double_conv.3} parent=43 // pred_check_branch
        %2275 = sbr.rel (%p2273) target = $region52
      $region51: #{residual_double_conv.3} parent=43 // pred_region
        %p2276 = scmp.lt.s32.totalorder %s17, 1
        %s2277 = scalar_select %p2276, %s17, 1
        %s2278 = scalar_lea.vmem %s3, %s2277
      $region52: #{residual_double_conv.3} parent=43 // pred_fallthru
        _
      // Predicated region
      $region53: #{residual_double_conv.3} parent=43 // pred_check
        %p2279 = pneg %p139
      $region54: #{residual_double_conv.3} parent=43 // pred_check_branch
        %2281 = sbr.rel (%p2279) target = $region56
      $region55: #{residual_double_conv.3} parent=43 // pred_region
        %p2282 = scmp.lt.s32.totalorder %s17, 1
        %s2283 = scalar_select %p2282, %s17, 1
        %s2284 = scalar_lea.vmem %s4, %s2283
      $region56: #{residual_double_conv.3} parent=43 // pred_fallthru
        _
    $region44: #{residual_double_conv.3} parent=5 // pred_fallthru
      _
  $region6: #{residual_double_conv.3} parent=0 // loop_footer
    %s15 = sadd.s32 1, %s11
  $region7: #{residual_double_conv.3} parent=0 // loop_footer_branch
    %10 = sbr.rel target = $region3
  $region8: #{residual_double_conv.3} parent=0 // loop_exit
    _

// kernel: residual_double_conv.4
$region0: #{residual_double_conv.4}
  #allocation0 [shape = 'u32[]', space=smem, size = 0x4, offset = 0x4, fixed_abs, tag = 'smem constant byte address 0x4 - core index']
  #allocation1 [shape = 'u32[144,128]{1,0:T(1,128)}', space=vmem, size = 0x12000, scoped, tag = 'internal scratch']
  #allocation2 [shape = 'f32[18,18,128]{2,1,0:T(8,128)}', space=vmem, size = 0x36000, scoped, tag = 'scratch operand']
  %s0 = inlined_call_operand.vmem [shape: f32[2,16,16,128], index: 0, kind: input, shape index: {}]
  %s1 = inlined_call_operand.vmem [shape: f32[3,384,128], index: 1, kind: input, shape index: {}]
  %s2 = inlined_call_operand.vmem [shape: f32[1,128], index: 2, kind: input, shape index: {}]
  %s3 = inlined_call_operand.vmem [shape: f32[1,128], index: 3, kind: input, shape index: {}]
  %s4 = inlined_call_operand.vmem [shape: f32[2,16,16,128], index: 4, kind: output, shape index: {0}]
  %s5 = inlined_call_operand.vmem [shape: f32[2,1,128], index: 5, kind: output, shape index: {1}]
  %s6 = inlined_call_operand.vmem [shape: f32[2,1,128], index: 6, kind: output, shape index: {2}]
  %7 = xla_tuple %s4, %s5, %s6
  %s8 = sld [smem:[#allocation0]]
  $region65: #{residual_double_conv.4} parent=0
    _
  %s10 = ssub.s32 1, %s8
  %s11 = scalar_select 0, %s10, %s8
  loop: start=0, step=1, limit=4
  $region2: #{residual_double_conv.4} parent=0 // loop_pre_header
    _
  $region3: #{residual_double_conv.4} parent=0 // loop_header
    %s13 = sphi 0, %s17
    %p14 = scmp.ge.s32.totalorder %s13, 4
    %s23 = sphi 0, %s25
    %s26 = sphi 0, %s23
    %s27 = sphi 0, %s26
    %s43 = sphi 0, %s27
    %s47 = sphi 0, %s47
    %s49 = sphi 0, %s47
    %s50 = sphi 0, %s49
    %s64 = sphi 0, %s50
    %s68 = sphi 0, %s68
    %s70 = sphi 0, %s68
    %s71 = sphi 0, %s70
    %s85 = sphi 0, %s71
    %s89 = sphi 0, %s89
    %s91 = sphi 0, %s89
    %s92 = sphi 0, %s91
    %s106 = sphi 0, %s92
    %s112 = sphi 0, %s114
    %s115 = sphi 0, %s112
    %s116 = sphi 0, %s115
    %s132 = sphi 0, %s116
    %s138 = sphi 0, %s140
    %s141 = sphi 0, %s138
    %s142 = sphi 0, %s141
    %s158 = sphi 0, %s142
    %s164 = sphi 0, %s166
    %s167 = sphi 0, %s164
    %s168 = sphi 0, %s167
    %s184 = sphi 0, %s168
  $region4: #{residual_double_conv.4} parent=0 // loop_header_branch
    %16 = sbr.rel (%p14) target = $region8
  $region5: #{residual_double_conv.4} parent=0 // loop_body
    %s18 = ssub.s32 %s13, 1
    %s19 = ssub.s32 %s13, 2
    %s20 = sadd.s32 %s13, 1
    %s21 = ssub.s32 %s13, %s20
    %p22 = scmp.eq.s32.totalorder %s21, 0
    %s24 = sadd.s32 %s23, 1
    %s25 = scalar_select %p22, %s23, %s24
    %p28 = pneg %p22
    %p29 = scmp.eq.s32.totalorder %s13, 1
    %p30 = por %p28, %p29
    %p31 = scmp.ne.s32.totalorder %s23, %s26
    %p32 = scmp.eq.s32.totalorder %s13, 0
    %p33 = por %p31, %p32
    %p34 = scmp.ne.s32.totalorder %s23, %s26
    %p35 = scmp.eq.s32.totalorder %s18, 1
    %p36 = por %p34, %p35
    %p37 = scmp.ne.s32.totalorder %s26, %s27
    %p38 = scmp.eq.s32.totalorder %s18, 0
    %p39 = por %p37, %p38
    %p40 = scmp.ne.s32.totalorder %s26, %s27
    %p41 = scmp.eq.s32.totalorder %s19, 1
    %p42 = por %p40, %p41
    %p44 = scmp.ne.s32.totalorder %s27, %s43
    %p45 = scmp.eq.s32.totalorder %s19, 0
    %p46 = por %p44, %p45
    %s48 = sadd.s32 %s47, 1
    %p51 = scmp.eq.s32.totalorder %s13, 1
    %p52 = scmp.ne.s32.totalorder %s47, %s49
    %p53 = scmp.eq.s32.totalorder %s13, 0
    %p54 = por %p52, %p53
    %p55 = scmp.ne.s32.totalorder %s47, %s49
    %p56 = scmp.eq.s32.totalorder %s18, 1
    %p57 = por %p55, %p56
    %p58 = scmp.ne.s32.totalorder %s49, %s50
    %p59 = scmp.eq.s32.totalorder %s18, 0
    %p60 = por %p58, %p59
    %p61 = scmp.ne.s32.totalorder %s49, %s50
    %p62 = scmp.eq.s32.totalorder %s19, 1
    %p63 = por %p61, %p62
    %p65 = scmp.ne.s32.totalorder %s50, %s64
    %p66 = scmp.eq.s32.totalorder %s19, 0
    %p67 = por %p65, %p66
    %s69 = sadd.s32 %s68, 1
    %p72 = scmp.eq.s32.totalorder %s13, 1
    %p73 = scmp.ne.s32.totalorder %s68, %s70
    %p74 = scmp.eq.s32.totalorder %s13, 0
    %p75 = por %p73, %p74
    %p76 = scmp.ne.s32.totalorder %s68, %s70
    %p77 = scmp.eq.s32.totalorder %s18, 1
    %p78 = por %p76, %p77
    %p79 = scmp.ne.s32.totalorder %s70, %s71
    %p80 = scmp.eq.s32.totalorder %s18, 0
    %p81 = por %p79, %p80
    %p82 = scmp.ne.s32.totalorder %s70, %s71
    %p83 = scmp.eq.s32.totalorder %s19, 1
    %p84 = por %p82, %p83
    %p86 = scmp.ne.s32.totalorder %s71, %s85
    %p87 = scmp.eq.s32.totalorder %s19, 0
    %p88 = por %p86, %p87
    %s90 = sadd.s32 %s89, 1
    %p93 = scmp.eq.s32.totalorder %s13, 1
    %p94 = scmp.ne.s32.totalorder %s89, %s91
    %p95 = scmp.eq.s32.totalorder %s13, 0
    %p96 = por %p94, %p95
    %p97 = scmp.ne.s32.totalorder %s89, %s91
    %p98 = scmp.eq.s32.totalorder %s18, 1
    %p99 = por %p97, %p98
    %p100 = scmp.ne.s32.totalorder %s91, %s92
    %p101 = scmp.eq.s32.totalorder %s18, 0
    %p102 = por %p100, %p101
    %p103 = scmp.ne.s32.totalorder %s91, %s92
    %p104 = scmp.eq.s32.totalorder %s19, 1
    %p105 = por %p103, %p104
    %p107 = scmp.ne.s32.totalorder %s92, %s106
    %p108 = scmp.eq.s32.totalorder %s19, 0
    %p109 = por %p107, %p108
    %s110 = ssub.s32 %s13, %s20
    %p111 = scmp.eq.s32.totalorder %s110, 0
    %s113 = sadd.s32 %s112, 1
    %s114 = scalar_select %p111, %s112, %s113
    %p117 = pneg %p111
    %p118 = scmp.eq.s32.totalorder %s13, 1
    %p119 = por %p117, %p118
    %p120 = scmp.ne.s32.totalorder %s112, %s115
    %p121 = scmp.eq.s32.totalorder %s13, 0
    %p122 = por %p120, %p121
    %p123 = scmp.ne.s32.totalorder %s112, %s115
    %p124 = scmp.eq.s32.totalorder %s18, 1
    %p125 = por %p123, %p124
    %p126 = scmp.ne.s32.totalorder %s115, %s116
    %p127 = scmp.eq.s32.totalorder %s18, 0
    %p128 = por %p126, %p127
    %p129 = scmp.ne.s32.totalorder %s115, %s116
    %p130 = scmp.eq.s32.totalorder %s19, 1
    %p131 = por %p129, %p130
    %p133 = scmp.ne.s32.totalorder %s116, %s132
    %p134 = scmp.eq.s32.totalorder %s19, 0
    %p135 = por %p133, %p134
    %s136 = ssub.s32 %s13, %s20
    %p137 = scmp.eq.s32.totalorder %s136, 0
    %s139 = sadd.s32 %s138, 1
    %s140 = scalar_select %p137, %s138, %s139
    %p143 = pneg %p137
    %p144 = scmp.eq.s32.totalorder %s13, 1
    %p145 = por %p143, %p144
    %p146 = scmp.ne.s32.totalorder %s138, %s141
    %p147 = scmp.eq.s32.totalorder %s13, 0
    %p148 = por %p146, %p147
    %p149 = scmp.ne.s32.totalorder %s138, %s141
    %p150 = scmp.eq.s32.totalorder %s18, 1
    %p151 = por %p149, %p150
    %p152 = scmp.ne.s32.totalorder %s141, %s142
    %p153 = scmp.eq.s32.totalorder %s18, 0
    %p154 = por %p152, %p153
    %p155 = scmp.ne.s32.totalorder %s141, %s142
    %p156 = scmp.eq.s32.totalorder %s19, 1
    %p157 = por %p155, %p156
    %p159 = scmp.ne.s32.totalorder %s142, %s158
    %p160 = scmp.eq.s32.totalorder %s19, 0
    %p161 = por %p159, %p160
    %s162 = ssub.s32 %s13, %s20
    %p163 = scmp.eq.s32.totalorder %s162, 0
    %s165 = sadd.s32 %s164, 1
    %s166 = scalar_select %p163, %s164, %s165
    %p169 = pneg %p163
    %p170 = scmp.eq.s32.totalorder %s13, 1
    %p171 = por %p169, %p170
    %p172 = scmp.ne.s32.totalorder %s164, %s167
    %p173 = scmp.eq.s32.totalorder %s13, 0
    %p174 = por %p172, %p173
    %p175 = scmp.ne.s32.totalorder %s164, %s167
    %p176 = scmp.eq.s32.totalorder %s18, 1
    %p177 = por %p175, %p176
    %p178 = scmp.ne.s32.totalorder %s167, %s168
    %p179 = scmp.eq.s32.totalorder %s18, 0
    %p180 = por %p178, %p179
    %p181 = scmp.ne.s32.totalorder %s167, %s168
    %p182 = scmp.eq.s32.totalorder %s19, 1
    %p183 = por %p181, %p182
    %p185 = scmp.ne.s32.totalorder %s168, %s184
    %p186 = scmp.eq.s32.totalorder %s19, 0
    %p187 = por %p185, %p186
    %p188 = scmp.le.s32.totalorder 1, %s13
    %p189 = scmp.lt.s32.totalorder %s13, 3
    %p190 = pnand %p188, %p189
    %p191 = pneg %p190
    // Predicated region
    $region9: #{residual_double_conv.4} parent=5 // pred_check
      _
    $region10: #{residual_double_conv.4} parent=5 // pred_check_branch
      %193 = sbr.rel (%p190) target = $region12
    $region11: #{residual_double_conv.4} parent=5 // pred_region
      %s194 = ssub.s32 %s13, 1
      // Predicated region
      $region13: #{residual_double_conv.4} parent=11 // pred_check
        %p195 = pneg %p60
      $region14: #{residual_double_conv.4} parent=11 // pred_check_branch
        %197 = sbr.rel (%p195) target = $region16
      $region15: #{residual_double_conv.4} parent=11 // pred_region
        _
      $region16: #{residual_double_conv.4} parent=11 // pred_fallthru
        _
      // Predicated region
      $region17: #{residual_double_conv.4} parent=11 // pred_check
        %p198 = pneg %p81
      $region18: #{residual_double_conv.4} parent=11 // pred_check_branch
        %200 = sbr.rel (%p198) target = $region20
      $region19: #{residual_double_conv.4} parent=11 // pred_region
        _
      $region20: #{residual_double_conv.4} parent=11 // pred_fallthru
        _
      // Predicated region
      $region21: #{residual_double_conv.4} parent=11 // pred_check
        %p201 = pneg %p102
      $region22: #{residual_double_conv.4} parent=11 // pred_check_branch
        %203 = sbr.rel (%p201) target = $region24
      $region23: #{residual_double_conv.4} parent=11 // pred_region
        _
      $region24: #{residual_double_conv.4} parent=11 // pred_fallthru
        _
    $region12: #{residual_double_conv.4} parent=5 // pred_fallthru
      _
    %p204 = scmp.lt.s32.totalorder %s13, 2
    // Predicated region
    $region25: #{residual_double_conv.4} parent=5 // pred_check
      %p205 = pneg %p204
    $region26: #{residual_double_conv.4} parent=5 // pred_check_branch
      %207 = sbr.rel (%p205) target = $region28
    $region27: #{residual_double_conv.4} parent=5 // pred_region
      // Predicated region
      $region29: #{residual_double_conv.4} parent=27 // pred_check
        %p208 = pneg %p33
      $region30: #{residual_double_conv.4} parent=27 // pred_check_branch
        %210 = sbr.rel (%p208) target = $region32
      $region31: #{residual_double_conv.4} parent=27 // pred_region
        %p211 = scmp.lt.s32.totalorder %s13, 1
        %s212 = scalar_select %p211, %s13, 1
        %s213 = smul.addr %s212, 32
        %s214 = smul.addr %s213, 8
        %s215 = scalar_lea.vmem %s0, %s214
      $region32: #{residual_double_conv.4} parent=27 // pred_fallthru
        _
    $region28: #{residual_double_conv.4} parent=5 // pred_fallthru
      _
    %p216 = scmp.le.s32.totalorder 1, %s13
    %p217 = scmp.lt.s32.totalorder %s13, 3
    %p218 = pnand %p216, %p217
    %p219 = pneg %p218
    // Predicated region
    $region33: #{residual_double_conv.4} parent=5 // pred_check
      _
    $region34: #{residual_double_conv.4} parent=5 // pred_check_branch
      %221 = sbr.rel (%p218) target = $region36
    $region35: #{residual_double_conv.4} parent=5 // pred_region
      %s222 = ssub.s32 %s13, 1
      %p223 = scmp.lt.s32.totalorder %s18, 1
      %s224 = scalar_select %p223, %s18, 1
      %s225 = smul.addr %s224, 32
      %s226 = smul.addr %s225, 8
      %s227 = scalar_lea.vmem %s0, %s226
      %p228 = pneg %p39
      %p229 = pneg %p36
      %p230 = pneg %p60
      %p231 = pneg %p57
      %p232 = pneg %p81
      %p233 = pneg %p78
      %p234 = pneg %p102
      %p235 = pneg %p99
      %p236 = pneg %p128
      %p237 = pneg %p125
      %p238 = scmp.lt.s32.totalorder %s18, 1
      %s239 = scalar_select %p238, %s18, 1
      %s240 = smul.addr %s239, 32
      %s241 = smul.addr %s240, 8
      %s242 = scalar_lea.vmem %s4, %s241
      %p243 = pneg %p154
      %p244 = pneg %p151
      %p245 = scmp.lt.s32.totalorder %s18, 1
      %s246 = scalar_select %p245, %s18, 1
      %s247 = scalar_lea.vmem %s5, %s246
      %p248 = pneg %p180
      %p249 = pneg %p177
      %p250 = scmp.lt.s32.totalorder %s18, 1
      %s251 = scalar_select %p250, %s18, 1
      %s252 = scalar_lea.vmem %s6, %s251
      %p253 = scmp.lt.s32.totalorder %s18, 1
      %s254 = scalar_select %p253, %s18, 1
      %s255 = smul.addr %s254, 32
      %s256 = smul.addr %s255, 8
      %s257 = scalar_lea.vmem %s0, %s256
      %p258 = scmp.lt.s32.totalorder %s18, 1
      %s259 = scalar_select %p258, %s18, 1
      %s260 = smul.addr %s259, 32
      %s261 = smul.addr %s260, 8
      %s262 = scalar_lea.vmem %s4, %s261
      %p263 = scmp.lt.s32.totalorder %s18, 1
      %s264 = scalar_select %p263, %s18, 1
      %s265 = scalar_lea.vmem %s5, %s264
      %p266 = scmp.lt.s32.totalorder %s18, 1
      %s267 = scalar_select %p266, %s18, 1
      %s268 = scalar_lea.vmem %s6, %s267
      %v269 = vld [vmem:[%s257] sm:$0xff]
      %v270 = vld [vmem:[%s257 + $0x8] sm:$0xff]
      %v271 = vld [vmem:[%s257 + $0x10] sm:$0xff]
      %v272 = vld [vmem:[%s257 + $0x18] sm:$0xff]
      %v273 = vld [vmem:[%s257 + $0x20] sm:$0xff]
      %v274 = vld [vmem:[%s257 + $0x28] sm:$0xff]
      %v275 = vld [vmem:[%s257 + $0x30] sm:$0xff]
      %v276 = vld [vmem:[%s257 + $0x38] sm:$0xff]
      %v277 = vld [vmem:[%s257 + $0x40] sm:$0xff]
      %v278 = vld [vmem:[%s257 + $0x48] sm:$0xff]
      %v279 = vld [vmem:[%s257 + $0x50] sm:$0xff]
      %v280 = vld [vmem:[%s257 + $0x58] sm:$0xff]
      %v281 = vld [vmem:[%s257 + $0x60] sm:$0xff]
      %v282 = vld [vmem:[%s257 + $0x68] sm:$0xff]
      %v283 = vld [vmem:[%s257 + $0x70] sm:$0xff]
      %v284 = vld [vmem:[%s257 + $0x78] sm:$0xff]
      %v285 = vld [vmem:[%s257 + $0x80] sm:$0xff]
      %v286 = vld [vmem:[%s257 + $0x88] sm:$0xff]
      %v287 = vld [vmem:[%s257 + $0x90] sm:$0xff]
      %v288 = vld [vmem:[%s257 + $0x98] sm:$0xff]
      %v289 = vld [vmem:[%s257 + $0xa0] sm:$0xff]
      %v290 = vld [vmem:[%s257 + $0xa8] sm:$0xff]
      %v291 = vld [vmem:[%s257 + $0xb0] sm:$0xff]
      %v292 = vld [vmem:[%s257 + $0xb8] sm:$0xff]
      %v293 = vld [vmem:[%s257 + $0xc0] sm:$0xff]
      %v294 = vld [vmem:[%s257 + $0xc8] sm:$0xff]
      %v295 = vld [vmem:[%s257 + $0xd0] sm:$0xff]
      %v296 = vld [vmem:[%s257 + $0xd8] sm:$0xff]
      %v297 = vld [vmem:[%s257 + $0xe0] sm:$0xff]
      %v298 = vld [vmem:[%s257 + $0xe8] sm:$0xff]
      %v299 = vld [vmem:[%s257 + $0xf0] sm:$0xff]
      %v300 = vld [vmem:[%s257 + $0xf8] sm:$0xff]
      %v301 = vld [vmem:[%s2] sm:$0x1]
      %v303 = vlaneseq
      %v304 = vshrl.u32 %v303, 7
      %v305 = vsub.s32 0, %v304
      %v306 = vrot.slane %v301, %v305
      %v308 = vmul.f32 %v269, %v306
      %v309 = vmul.f32 %v270, %v306
      %v310 = vmul.f32 %v271, %v306
      %v311 = vmul.f32 %v272, %v306
      %v312 = vmul.f32 %v273, %v306
      %v313 = vmul.f32 %v274, %v306
      %v314 = vmul.f32 %v275, %v306
      %v315 = vmul.f32 %v276, %v306
      %v316 = vmul.f32 %v277, %v306
      %v317 = vmul.f32 %v278, %v306
      %v318 = vmul.f32 %v279, %v306
      %v319 = vmul.f32 %v280, %v306
      %v320 = vmul.f32 %v281, %v306
      %v321 = vmul.f32 %v282, %v306
      %v322 = vmul.f32 %v283, %v306
      %v323 = vmul.f32 %v284, %v306
      %v324 = vmul.f32 %v285, %v306
      %v325 = vmul.f32 %v286, %v306
      %v326 = vmul.f32 %v287, %v306
      %v327 = vmul.f32 %v288, %v306
      %v328 = vmul.f32 %v289, %v306
      %v329 = vmul.f32 %v290, %v306
      %v330 = vmul.f32 %v291, %v306
      %v331 = vmul.f32 %v292, %v306
      %v332 = vmul.f32 %v293, %v306
      %v333 = vmul.f32 %v294, %v306
      %v334 = vmul.f32 %v295, %v306
      %v335 = vmul.f32 %v296, %v306
      %v336 = vmul.f32 %v297, %v306
      %v337 = vmul.f32 %v298, %v306
      %v338 = vmul.f32 %v299, %v306
      %v339 = vmul.f32 %v300, %v306
      %v340 = vld [vmem:[%s3] sm:$0x1]
      %v342 = vlaneseq
      %v343 = vshrl.u32 %v342, 7
      %v344 = vsub.s32 0, %v343
      %v345 = vrot.slane %v340, %v344
      %v347 = vadd.f32 %v308, %v345
      %v348 = vadd.f32 %v309, %v345
      %v349 = vadd.f32 %v310, %v345
      %v350 = vadd.f32 %v311, %v345
      %v351 = vadd.f32 %v312, %v345
      %v352 = vadd.f32 %v313, %v345
      %v353 = vadd.f32 %v314, %v345
      %v354 = vadd.f32 %v315, %v345
      %v355 = vadd.f32 %v316, %v345
      %v356 = vadd.f32 %v317, %v345
      %v357 = vadd.f32 %v318, %v345
      %v358 = vadd.f32 %v319, %v345
      %v359 = vadd.f32 %v320, %v345
      %v360 = vadd.f32 %v321, %v345
      %v361 = vadd.f32 %v322, %v345
      %v362 = vadd.f32 %v323, %v345
      %v363 = vadd.f32 %v324, %v345
      %v364 = vadd.f32 %v325, %v345
      %v365 = vadd.f32 %v326, %v345
      %v366 = vadd.f32 %v327, %v345
      %v367 = vadd.f32 %v328, %v345
      %v368 = vadd.f32 %v329, %v345
      %v369 = vadd.f32 %v330, %v345
      %v370 = vadd.f32 %v331, %v345
      %v371 = vadd.f32 %v332, %v345
      %v372 = vadd.f32 %v333, %v345
      %v373 = vadd.f32 %v334, %v345
      %v374 = vadd.f32 %v335, %v345
      %v375 = vadd.f32 %v336, %v345
      %v376 = vadd.f32 %v337, %v345
      %v377 = vadd.f32 %v338, %v345
      %v378 = vadd.f32 %v339, %v345
      %v379 = vmax.f32 %v347, 0.0
      %v380 = vmax.f32 %v348, 0.0
      %v381 = vmax.f32 %v349, 0.0
      %v382 = vmax.f32 %v350, 0.0
      %v383 = vmax.f32 %v351, 0.0
      %v384 = vmax.f32 %v352, 0.0
      %v385 = vmax.f32 %v353, 0.0
      %v386 = vmax.f32 %v354, 0.0
      %v387 = vmax.f32 %v355, 0.0
      %v388 = vmax.f32 %v356, 0.0
      %v389 = vmax.f32 %v357, 0.0
      %v390 = vmax.f32 %v358, 0.0
      %v391 = vmax.f32 %v359, 0.0
      %v392 = vmax.f32 %v360, 0.0
      %v393 = vmax.f32 %v361, 0.0
      %v394 = vmax.f32 %v362, 0.0
      %v395 = vmax.f32 %v363, 0.0
      %v396 = vmax.f32 %v364, 0.0
      %v397 = vmax.f32 %v365, 0.0
      %v398 = vmax.f32 %v366, 0.0
      %v399 = vmax.f32 %v367, 0.0
      %v400 = vmax.f32 %v368, 0.0
      %v401 = vmax.f32 %v369, 0.0
      %v402 = vmax.f32 %v370, 0.0
      %v403 = vmax.f32 %v371, 0.0
      %v404 = vmax.f32 %v372, 0.0
      %v405 = vmax.f32 %v373, 0.0
      %v406 = vmax.f32 %v374, 0.0
      %v407 = vmax.f32 %v375, 0.0
      %v408 = vmax.f32 %v376, 0.0
      %v409 = vmax.f32 %v377, 0.0
      %v410 = vmax.f32 %v378, 0.0
      %vm443 = vcmask 1040384
      %v444 = vrot.slane %v379, 7
      %v445 = vrot.slane %v380, 7
      %v446 = vsel %vm443, %v444, %v445
      %v447 = vrot.slane %v381, 7
      %v448 = vrot.slane %v382, 7
      %v449 = vsel %vm443, %v447, %v448
      %v450 = vrot.slane %v383, 7
      %v451 = vrot.slane %v384, 7
      %v452 = vsel %vm443, %v450, %v451
      %v453 = vrot.slane %v385, 7
      %v454 = vrot.slane %v386, 7
      %v455 = vsel %vm443, %v453, %v454
      %v456 = vrot.slane %v387, 7
      %v457 = vrot.slane %v388, 7
      %v458 = vsel %vm443, %v456, %v457
      %v459 = vrot.slane %v389, 7
      %v460 = vrot.slane %v390, 7
      %v461 = vsel %vm443, %v459, %v460
      %v462 = vrot.slane %v391, 7
      %v463 = vrot.slane %v392, 7
      %v464 = vsel %vm443, %v462, %v463
      %v465 = vrot.slane %v393, 7
      %v466 = vrot.slane %v394, 7
      %v467 = vsel %vm443, %v465, %v466
      %v468 = vrot.slane %v395, 7
      %v469 = vrot.slane %v396, 7
      %v470 = vsel %vm443, %v468, %v469
      %v471 = vrot.slane %v397, 7
      %v472 = vrot.slane %v398, 7
      %v473 = vsel %vm443, %v471, %v472
      %v474 = vrot.slane %v399, 7
      %v475 = vrot.slane %v400, 7
      %v476 = vsel %vm443, %v474, %v475
      %v477 = vrot.slane %v401, 7
      %v478 = vrot.slane %v402, 7
      %v479 = vsel %vm443, %v477, %v478
      %v480 = vrot.slane %v403, 7
      %v481 = vrot.slane %v404, 7
      %v482 = vsel %vm443, %v480, %v481
      %v483 = vrot.slane %v405, 7
      %v484 = vrot.slane %v406, 7
      %v485 = vsel %vm443, %v483, %v484
      %v486 = vrot.slane %v407, 7
      %v487 = vrot.slane %v408, 7
      %v488 = vsel %vm443, %v486, %v487
      %v489 = vrot.slane %v409, 7
      %v490 = vrot.slane %v410, 7
      %v491 = vsel %vm443, %v489, %v490
      %v540 = vsel %vm443, 0.0, %v444
      %v541 = vsel %vm443, 0.0, %v447
      %v542 = vsel %vm443, 0.0, %v450
      %v543 = vsel %vm443, 0.0, %v453
      %v544 = vsel %vm443, 0.0, %v456
      %v545 = vsel %vm443, 0.0, %v459
      %v546 = vsel %vm443, 0.0, %v462
      %v547 = vsel %vm443, 0.0, %v465
      %v548 = vsel %vm443, 0.0, %v468
      %v549 = vsel %vm443, 0.0, %v471
      %v550 = vsel %vm443, 0.0, %v474
      %v551 = vsel %vm443, 0.0, %v477
      %v552 = vsel %vm443, 0.0, %v480
      %v553 = vsel %vm443, 0.0, %v483
      %v554 = vsel %vm443, 0.0, %v486
      %v555 = vsel %vm443, 0.0, %v489
      %v556 = vsel %vm443, %v445, 0.0
      %v557 = vsel %vm443, %v448, 0.0
      %v558 = vsel %vm443, %v451, 0.0
      %v559 = vsel %vm443, %v454, 0.0
      %v560 = vsel %vm443, %v457, 0.0
      %v561 = vsel %vm443, %v460, 0.0
      %v562 = vsel %vm443, %v463, 0.0
      %v563 = vsel %vm443, %v466, 0.0
      %v564 = vsel %vm443, %v469, 0.0
      %v565 = vsel %vm443, %v472, 0.0
      %v566 = vsel %vm443, %v475, 0.0
      %v567 = vsel %vm443, %v478, 0.0
      %v568 = vsel %vm443, %v481, 0.0
      %v569 = vsel %vm443, %v484, 0.0
      %v570 = vsel %vm443, %v487, 0.0
      %v571 = vsel %vm443, %v490, 0.0
      %s572 = scalar_lea.vmem [#allocation2], 24
      %573 = vst [vmem:[%s572] sm:$0xff] %v540
      %574 = vst [vmem:[%s572 + $0x8] sm:$0xff] %v446
      %575 = vst [vmem:[%s572 + $0x10] sm:$0x3] %v556
      %576 = vst [vmem:[%s572 + $0x18] sm:$0xff] %v541
      %577 = vst [vmem:[%s572 + $0x20] sm:$0xff] %v449
      %578 = vst [vmem:[%s572 + $0x28] sm:$0x3] %v557
      %579 = vst [vmem:[%s572 + $0x30] sm:$0xff] %v542
      %580 = vst [vmem:[%s572 + $0x38] sm:$0xff] %v452
      %581 = vst [vmem:[%s572 + $0x40] sm:$0x3] %v558
      %582 = vst [vmem:[%s572 + $0x48] sm:$0xff] %v543
      %583 = vst [vmem:[%s572 + $0x50] sm:$0xff] %v455
      %584 = vst [vmem:[%s572 + $0x58] sm:$0x3] %v559
      %585 = vst [vmem:[%s572 + $0x60] sm:$0xff] %v544
      %586 = vst [vmem:[%s572 + $0x68] sm:$0xff] %v458
      %587 = vst [vmem:[%s572 + $0x70] sm:$0x3] %v560
      %588 = vst [vmem:[%s572 + $0x78] sm:$0xff] %v545
      %589 = vst [vmem:[%s572 + $0x80] sm:$0xff] %v461
      %590 = vst [vmem:[%s572 + $0x88] sm:$0x3] %v561
      %591 = vst [vmem:[%s572 + $0x90] sm:$0xff] %v546
      %592 = vst [vmem:[%s572 + $0x98] sm:$0xff] %v464
      %593 = vst [vmem:[%s572 + $0xa0] sm:$0x3] %v562
      %594 = vst [vmem:[%s572 + $0xa8] sm:$0xff] %v547
      %595 = vst [vmem:[%s572 + $0xb0] sm:$0xff] %v467
      %596 = vst [vmem:[%s572 + $0xb8] sm:$0x3] %v563
      %597 = vst [vmem:[%s572 + $0xc0] sm:$0xff] %v548
      %598 = vst [vmem:[%s572 + $0xc8] sm:$0xff] %v470
      %599 = vst [vmem:[%s572 + $0xd0] sm:$0x3] %v564
      %600 = vst [vmem:[%s572 + $0xd8] sm:$0xff] %v549
      %601 = vst [vmem:[%s572 + $0xe0] sm:$0xff] %v473
      %602 = vst [vmem:[%s572 + $0xe8] sm:$0x3] %v565
      %603 = vst [vmem:[%s572 + $0xf0] sm:$0xff] %v550
      %604 = vst [vmem:[%s572 + $0xf8] sm:$0xff] %v476
      %605 = vst [vmem:[%s572 + $0x100] sm:$0x3] %v566
      %606 = vst [vmem:[%s572 + $0x108] sm:$0xff] %v551
      %607 = vst [vmem:[%s572 + $0x110] sm:$0xff] %v479
      %608 = vst [vmem:[%s572 + $0x118] sm:$0x3] %v567
      %609 = vst [vmem:[%s572 + $0x120] sm:$0xff] %v552
      %610 = vst [vmem:[%s572 + $0x128] sm:$0xff] %v482
      %611 = vst [vmem:[%s572 + $0x130] sm:$0x3] %v568
      %612 = vst [vmem:[%s572 + $0x138] sm:$0xff] %v553
      %613 = vst [vmem:[%s572 + $0x140] sm:$0xff] %v485
      %614 = vst [vmem:[%s572 + $0x148] sm:$0x3] %v569
      %615 = vst [vmem:[%s572 + $0x150] sm:$0xff] %v554
      %616 = vst [vmem:[%s572 + $0x158] sm:$0xff] %v488
      %617 = vst [vmem:[%s572 + $0x160] sm:$0x3] %v570
      %618 = vst [vmem:[%s572 + $0x168] sm:$0xff] %v555
      %619 = vst [vmem:[%s572 + $0x170] sm:$0xff] %v491
      %620 = vst [vmem:[%s572 + $0x178] sm:$0x3] %v571
      %621 = vst [vmem:[#allocation2] sm:$0xff] 0.0
      %622 = vst [vmem:[#allocation2 + $0x8] sm:$0xff] 0.0
      %623 = vst [vmem:[#allocation2 + $0x10] sm:$0x3] 0.0
      %s624 = scalar_lea.vmem [#allocation2], 408
      %625 = vst [vmem:[%s624] sm:$0xff] 0.0
      %626 = vst [vmem:[%s624 + $0x8] sm:$0xff] 0.0
      %627 = vst [vmem:[%s624 + $0x10] sm:$0x3] 0.0
      %v628 = vld [vmem:[#allocation2] sm:$0xff]
      %v629 = vld [vmem:[#allocation2 + $0x8] sm:$0xff]
      %v630 = vld [vmem:[#allocation2 + $0x18] sm:$0xff]
      %v631 = vld [vmem:[#allocation2 + $0x20] sm:$0xff]
      %v632 = vld [vmem:[#allocation2 + $0x30] sm:$0xff]
      %v633 = vld [vmem:[#allocation2 + $0x38] sm:$0xff]
      %v634 = vld [vmem:[#allocation2 + $0x48] sm:$0xff]
      %v635 = vld [vmem:[#allocation2 + $0x50] sm:$0xff]
      %v636 = vld [vmem:[#allocation2 + $0x60] sm:$0xff]
      %v637 = vld [vmem:[#allocation2 + $0x68] sm:$0xff]
      %v638 = vld [vmem:[#allocation2 + $0x78] sm:$0xff]
      %v639 = vld [vmem:[#allocation2 + $0x80] sm:$0xff]
      %v640 = vld [vmem:[#allocation2 + $0x90] sm:$0xff]
      %v641 = vld [vmem:[#allocation2 + $0x98] sm:$0xff]
      %v642 = vld [vmem:[#allocation2 + $0xa8] sm:$0xff]
      %v643 = vld [vmem:[#allocation2 + $0xb0] sm:$0xff]
      %v644 = vld [vmem:[#allocation2 + $0xc0] sm:$0xff]
      %v645 = vld [vmem:[#allocation2 + $0xc8] sm:$0xff]
      %v646 = vld [vmem:[#allocation2 + $0xd8] sm:$0xff]
      %v647 = vld [vmem:[#allocation2 + $0xe0] sm:$0xff]
      %v648 = vld [vmem:[#allocation2 + $0xf0] sm:$0xff]
      %v649 = vld [vmem:[#allocation2 + $0xf8] sm:$0xff]
      %v650 = vld [vmem:[#allocation2 + $0x108] sm:$0xff]
      %v651 = vld [vmem:[#allocation2 + $0x110] sm:$0xff]
      %v652 = vld [vmem:[#allocation2 + $0x120] sm:$0xff]
      %v653 = vld [vmem:[#allocation2 + $0x128] sm:$0xff]
      %v654 = vld [vmem:[#allocation2 + $0x138] sm:$0xff]
      %v655 = vld [vmem:[#allocation2 + $0x140] sm:$0xff]
      %v656 = vld [vmem:[#allocation2 + $0x150] sm:$0xff]
      %v657 = vld [vmem:[#allocation2 + $0x158] sm:$0xff]
      %v658 = vld [vmem:[#allocation2 + $0x168] sm:$0xff]
      %v659 = vld [vmem:[#allocation2 + $0x170] sm:$0xff]
      %v660 = vld [vmem:[#allocation2 + $0x180] sm:$0xff]
      %v661 = vld [vmem:[#allocation2 + $0x188] sm:$0xff]
      %v662 = vld [vmem:[#allocation2 + $0x198] sm:$0xff]
      %v663 = vld [vmem:[#allocation2 + $0x1a0] sm:$0xff]
      %v664 = vld [vmem:[#allocation2 + $0x1] sm:$0xff]
      %v665 = vld [vmem:[#allocation2 + $0x9] sm:$0xff]
      %v666 = vld [vmem:[#allocation2 + $0x19] sm:$0xff]
      %v667 = vld [vmem:[#allocation2 + $0x21] sm:$0xff]
      %v668 = vld [vmem:[#allocation2 + $0x31] sm:$0xff]
      %v669 = vld [vmem:[#allocation2 + $0x39] sm:$0xff]
      %v670 = vld [vmem:[#allocation2 + $0x49] sm:$0xff]
      %v671 = vld [vmem:[#allocation2 + $0x51] sm:$0xff]
      %v672 = vld [vmem:[#allocation2 + $0x61] sm:$0xff]
      %v673 = vld [vmem:[#allocation2 + $0x69] sm:$0xff]
      %v674 = vld [vmem:[#allocation2 + $0x79] sm:$0xff]
      %v675 = vld [vmem:[#allocation2 + $0x81] sm:$0xff]
      %v676 = vld [vmem:[#allocation2 + $0x91] sm:$0xff]
      %v677 = vld [vmem:[#allocation2 + $0x99] sm:$0xff]
      %v678 = vld [vmem:[#allocation2 + $0xa9] sm:$0xff]
      %v679 = vld [vmem:[#allocation2 + $0xb1] sm:$0xff]
      %v680 = vld [vmem:[#allocation2 + $0xc1] sm:$0xff]
      %v681 = vld [vmem:[#allocation2 + $0xc9] sm:$0xff]
      %v682 = vld [vmem:[#allocation2 + $0xd9] sm:$0xff]
      %v683 = vld [vmem:[#allocation2 + $0xe1] sm:$0xff]
      %v684 = vld [vmem:[#allocation2 + $0xf1] sm:$0xff]
      %v685 = vld [vmem:[#allocation2 + $0xf9] sm:$0xff]
      %v686 = vld [vmem:[#allocation2 + $0x109] sm:$0xff]
      %v687 = vld [vmem:[#allocation2 + $0x111] sm:$0xff]
      %v688 = vld [vmem:[#allocation2 + $0x121] sm:$0xff]
      %v689 = vld [vmem:[#allocation2 + $0x129] sm:$0xff]
      %v690 = vld [vmem:[#allocation2 + $0x139] sm:$0xff]
      %v691 = vld [vmem:[#allocation2 + $0x141] sm:$0xff]
      %v692 = vld [vmem:[#allocation2 + $0x151] sm:$0xff]
      %v693 = vld [vmem:[#allocation2 + $0x159] sm:$0xff]
      %v694 = vld [vmem:[#allocation2 + $0x169] sm:$0xff]
      %v695 = vld [vmem:[#allocation2 + $0x171] sm:$0xff]
      %v696 = vld [vmem:[#allocation2 + $0x181] sm:$0xff]
      %v697 = vld [vmem:[#allocation2 + $0x189] sm:$0xff]
      %v698 = vld [vmem:[#allocation2 + $0x199] sm:$0xff]
      %v699 = vld [vmem:[#allocation2 + $0x1a1] sm:$0xff]
      %v700 = vld [vmem:[#allocation2 + $0x2] sm:$0xff]
      %v701 = vld [vmem:[#allocation2 + $0xa] sm:$0xff]
      %v702 = vld [vmem:[#allocation2 + $0x1a] sm:$0xff]
      %v703 = vld [vmem:[#allocation2 + $0x22] sm:$0xff]
      %v704 = vld [vmem:[#allocation2 + $0x32] sm:$0xff]
      %v705 = vld [vmem:[#allocation2 + $0x3a] sm:$0xff]
      %v706 = vld [vmem:[#allocation2 + $0x4a] sm:$0xff]
      %v707 = vld [vmem:[#allocation2 + $0x52] sm:$0xff]
      %v708 = vld [vmem:[#allocation2 + $0x62] sm:$0xff]
      %v709 = vld [vmem:[#allocation2 + $0x6a] sm:$0xff]
      %v710 = vld [vmem:[#allocation2 + $0x7a] sm:$0xff]
      %v711 = vld [vmem:[#allocation2 + $0x82] sm:$0xff]
      %v712 = vld [vmem:[#allocation2 + $0x92] sm:$0xff]
      %v713 = vld [vmem:[#allocation2 + $0x9a] sm:$0xff]
      %v714 = vld [vmem:[#allocation2 + $0xaa] sm:$0xff]
      %v715 = vld [vmem:[#allocation2 + $0xb2] sm:$0xff]
      %v716 = vld [vmem:[#allocation2 + $0xc2] sm:$0xff]
      %v717 = vld [vmem:[#allocation2 + $0xca] sm:$0xff]
      %v718 = vld [vmem:[#allocation2 + $0xda] sm:$0xff]
      %v719 = vld [vmem:[#allocation2 + $0xe2] sm:$0xff]
      %v720 = vld [vmem:[#allocation2 + $0xf2] sm:$0xff]
      %v721 = vld [vmem:[#allocation2 + $0xfa] sm:$0xff]
      %v722 = vld [vmem:[#allocation2 + $0x10a] sm:$0xff]
      %v723 = vld [vmem:[#allocation2 + $0x112] sm:$0xff]
      %v724 = vld [vmem:[#allocation2 + $0x122] sm:$0xff]
      %v725 = vld [vmem:[#allocation2 + $0x12a] sm:$0xff]
      %v726 = vld [vmem:[#allocation2 + $0x13a] sm:$0xff]
      %v727 = vld [vmem:[#allocation2 + $0x142] sm:$0xff]
      %v728 = vld [vmem:[#allocation2 + $0x152] sm:$0xff]
      %v729 = vld [vmem:[#allocation2 + $0x15a] sm:$0xff]
      %v730 = vld [vmem:[#allocation2 + $0x16a] sm:$0xff]
      %v731 = vld [vmem:[#allocation2 + $0x172] sm:$0xff]
      %v732 = vld [vmem:[#allocation2 + $0x182] sm:$0xff]
      %v733 = vld [vmem:[#allocation2 + $0x18a] sm:$0xff]
      %v734 = vld [vmem:[#allocation2 + $0x19a] sm:$0xff]
      %v735 = vld [vmem:[#allocation2 + $0x1a2] sm:$0xff]
      %v736 = vld [vmem:[%s1] sm:$0xff]
      %v737 = vld [vmem:[%s1 + $0x8] sm:$0xff]
      %v738 = vld [vmem:[%s1 + $0x10] sm:$0xff]
      %v739 = vld [vmem:[%s1 + $0x18] sm:$0xff]
      %v740 = vld [vmem:[%s1 + $0x20] sm:$0xff]
      %v741 = vld [vmem:[%s1 + $0x28] sm:$0xff]
      %v742 = vld [vmem:[%s1 + $0x30] sm:$0xff]
      %v743 = vld [vmem:[%s1 + $0x38] sm:$0xff]
      %v744 = vld [vmem:[%s1 + $0x40] sm:$0xff]
      %v745 = vld [vmem:[%s1 + $0x48] sm:$0xff]
      %v746 = vld [vmem:[%s1 + $0x50] sm:$0xff]
      %v747 = vld [vmem:[%s1 + $0x58] sm:$0xff]
      %v748 = vld [vmem:[%s1 + $0x60] sm:$0xff]
      %v749 = vld [vmem:[%s1 + $0x68] sm:$0xff]
      %v750 = vld [vmem:[%s1 + $0x70] sm:$0xff]
      %v751 = vld [vmem:[%s1 + $0x78] sm:$0xff]
      %v752 = vld [vmem:[%s1 + $0x80] sm:$0xff]
      %v753 = vld [vmem:[%s1 + $0x88] sm:$0xff]
      %v754 = vld [vmem:[%s1 + $0x90] sm:$0xff]
      %v755 = vld [vmem:[%s1 + $0x98] sm:$0xff]
      %v756 = vld [vmem:[%s1 + $0xa0] sm:$0xff]
      %v757 = vld [vmem:[%s1 + $0xa8] sm:$0xff]
      %v758 = vld [vmem:[%s1 + $0xb0] sm:$0xff]
      %v759 = vld [vmem:[%s1 + $0xb8] sm:$0xff]
      %v760 = vld [vmem:[%s1 + $0xc0] sm:$0xff]
      %v761 = vld [vmem:[%s1 + $0xc8] sm:$0xff]
      %v762 = vld [vmem:[%s1 + $0xd0] sm:$0xff]
      %v763 = vld [vmem:[%s1 + $0xd8] sm:$0xff]
      %v764 = vld [vmem:[%s1 + $0xe0] sm:$0xff]
      %v765 = vld [vmem:[%s1 + $0xe8] sm:$0xff]
      %v766 = vld [vmem:[%s1 + $0xf0] sm:$0xff]
      %v767 = vld [vmem:[%s1 + $0xf8] sm:$0xff]
      %v768 = vld [vmem:[%s1 + $0x100] sm:$0xff]
      %v769 = vld [vmem:[%s1 + $0x108] sm:$0xff]
      %v770 = vld [vmem:[%s1 + $0x110] sm:$0xff]
      %v771 = vld [vmem:[%s1 + $0x118] sm:$0xff]
      %v772 = vld [vmem:[%s1 + $0x120] sm:$0xff]
      %v773 = vld [vmem:[%s1 + $0x128] sm:$0xff]
      %v774 = vld [vmem:[%s1 + $0x130] sm:$0xff]
      %v775 = vld [vmem:[%s1 + $0x138] sm:$0xff]
      %v776 = vld [vmem:[%s1 + $0x140] sm:$0xff]
      %v777 = vld [vmem:[%s1 + $0x148] sm:$0xff]
      %v778 = vld [vmem:[%s1 + $0x150] sm:$0xff]
      %v779 = vld [vmem:[%s1 + $0x158] sm:$0xff]
      %v780 = vld [vmem:[%s1 + $0x160] sm:$0xff]
      %v781 = vld [vmem:[%s1 + $0x168] sm:$0xff]
      %v782 = vld [vmem:[%s1 + $0x170] sm:$0xff]
      %v783 = vld [vmem:[%s1 + $0x178] sm:$0xff]
      %s784 = scalar_lea.vmem %s1, 384
      %v785 = vld [vmem:[%s784] sm:$0xff]
      %v786 = vld [vmem:[%s784 + $0x8] sm:$0xff]
      %v787 = vld [vmem:[%s784 + $0x10] sm:$0xff]
      %v788 = vld [vmem:[%s784 + $0x18] sm:$0xff]
      %v789 = vld [vmem:[%s784 + $0x20] sm:$0xff]
      %v790 = vld [vmem:[%s784 + $0x28] sm:$0xff]
      %v791 = vld [vmem:[%s784 + $0x30] sm:$0xff]
      %v792 = vld [vmem:[%s784 + $0x38] sm:$0xff]
      %v793 = vld [vmem:[%s784 + $0x40] sm:$0xff]
      %v794 = vld [vmem:[%s784 + $0x48] sm:$0xff]
      %v795 = vld [vmem:[%s784 + $0x50] sm:$0xff]
      %v796 = vld [vmem:[%s784 + $0x58] sm:$0xff]
      %v797 = vld [vmem:[%s784 + $0x60] sm:$0xff]
      %v798 = vld [vmem:[%s784 + $0x68] sm:$0xff]
      %v799 = vld [vmem:[%s784 + $0x70] sm:$0xff]
      %v800 = vld [vmem:[%s784 + $0x78] sm:$0xff]
      %v801 = vld [vmem:[%s784 + $0x80] sm:$0xff]
      %v802 = vld [vmem:[%s784 + $0x88] sm:$0xff]
      %v803 = vld [vmem:[%s784 + $0x90] sm:$0xff]
      %v804 = vld [vmem:[%s784 + $0x98] sm:$0xff]
      %v805 = vld [vmem:[%s784 + $0xa0] sm:$0xff]
      %v806 = vld [vmem:[%s784 + $0xa8] sm:$0xff]
      %v807 = vld [vmem:[%s784 + $0xb0] sm:$0xff]
      %v808 = vld [vmem:[%s784 + $0xb8] sm:$0xff]
      %v809 = vld [vmem:[%s784 + $0xc0] sm:$0xff]
      %v810 = vld [vmem:[%s784 + $0xc8] sm:$0xff]
      %v811 = vld [vmem:[%s784 + $0xd0] sm:$0xff]
      %v812 = vld [vmem:[%s784 + $0xd8] sm:$0xff]
      %v813 = vld [vmem:[%s784 + $0xe0] sm:$0xff]
      %v814 = vld [vmem:[%s784 + $0xe8] sm:$0xff]
      %v815 = vld [vmem:[%s784 + $0xf0] sm:$0xff]
      %v816 = vld [vmem:[%s784 + $0xf8] sm:$0xff]
      %v817 = vld [vmem:[%s784 + $0x100] sm:$0xff]
      %v818 = vld [vmem:[%s784 + $0x108] sm:$0xff]
      %v819 = vld [vmem:[%s784 + $0x110] sm:$0xff]
      %v820 = vld [vmem:[%s784 + $0x118] sm:$0xff]
      %v821 = vld [vmem:[%s784 + $0x120] sm:$0xff]
      %v822 = vld [vmem:[%s784 + $0x128] sm:$0xff]
      %v823 = vld [vmem:[%s784 + $0x130] sm:$0xff]
      %v824 = vld [vmem:[%s784 + $0x138] sm:$0xff]
      %v825 = vld [vmem:[%s784 + $0x140] sm:$0xff]
      %v826 = vld [vmem:[%s784 + $0x148] sm:$0xff]
      %v827 = vld [vmem:[%s784 + $0x150] sm:$0xff]
      %v828 = vld [vmem:[%s784 + $0x158] sm:$0xff]
      %v829 = vld [vmem:[%s784 + $0x160] sm:$0xff]
      %v830 = vld [vmem:[%s784 + $0x168] sm:$0xff]
      %v831 = vld [vmem:[%s784 + $0x170] sm:$0xff]
      %v832 = vld [vmem:[%s784 + $0x178] sm:$0xff]
      %833 = vmatprep.subr.mxu0 0.0
      %834 = vmatpush1.msra.mxu0 %v800
      %835 = vmatprep.subr.mxu0 0.0
      %836 = vmatpush1.msra.mxu0 %v799
      %837 = vmatprep.subr.mxu0 0.0
      %838 = vmatpush1.msra.mxu0 %v798
      %839 = vmatprep.subr.mxu0 0.0
      %840 = vmatpush1.msra.mxu0 %v797
      %841 = vmatprep.subr.mxu0 0.0
      %842 = vmatpush1.msra.mxu0 %v796
      %843 = vmatprep.subr.mxu0 0.0
      %844 = vmatpush1.msra.mxu0 %v795
      %845 = vmatprep.subr.mxu0 0.0
      %846 = vmatpush1.msra.mxu0 %v794
      %847 = vmatprep.subr.mxu0 0.0
      %848 = vmatpush1.msra.mxu0 %v793
      %849 = vmatprep.subr.mxu0 0.0
      %850 = vmatpush1.msra.mxu0 %v792
      %851 = vmatprep.subr.mxu0 0.0
      %852 = vmatpush1.msra.mxu0 %v791
      %853 = vmatprep.subr.mxu0 0.0
      %854 = vmatpush1.msra.mxu0 %v790
      %855 = vmatprep.subr.mxu0 0.0
      %856 = vmatpush1.msra.mxu0 %v789
      %857 = vmatprep.subr.mxu0 0.0
      %858 = vmatpush1.msra.mxu0 %v788
      %859 = vmatprep.subr.mxu0 0.0
      %860 = vmatpush1.msra.mxu0 %v787
      %861 = vmatprep.subr.mxu0 0.0
      %862 = vmatpush1.msra.mxu0 %v786
      %863 = vmatprep.subr.mxu0 0.0
      %864 = vmatpush1.msra.mxu0 %v785
      %865 = vmatprep.subr.mxu0 0.0
      %866 = vmatpush2.msra.mxu0 %v816
      %867 = vmatprep.subr.mxu0 0.0
      %868 = vmatpush2.msra.mxu0 %v815
      %869 = vmatprep.subr.mxu0 0.0
      %870 = vmatpush2.msra.mxu0 %v814
      %871 = vmatprep.subr.mxu0 0.0
      %872 = vmatpush2.msra.mxu0 %v813
      %873 = vmatprep.subr.mxu0 0.0
      %874 = vmatpush2.msra.mxu0 %v812
      %875 = vmatprep.subr.mxu0 0.0
      %876 = vmatpush2.msra.mxu0 %v811
      %877 = vmatprep.subr.mxu0 0.0
      %878 = vmatpush2.msra.mxu0 %v810
      %879 = vmatprep.subr.mxu0 0.0
      %880 = vmatpush2.msra.mxu0 %v809
      %881 = vmatprep.subr.mxu0 0.0
      %882 = vmatpush2.msra.mxu0 %v808
      %883 = vmatprep.subr.mxu0 0.0
      %884 = vmatpush2.msra.mxu0 %v807
      %885 = vmatprep.subr.mxu0 0.0
      %886 = vmatpush2.msra.mxu0 %v806
      %887 = vmatprep.subr.mxu0 0.0
      %888 = vmatpush2.msra.mxu0 %v805
      %889 = vmatprep.subr.mxu0 0.0
      %890 = vmatpush2.msra.mxu0 %v804
      %891 = vmatprep.subr.mxu0 0.0
      %892 = vmatpush2.msra.mxu0 %v803
      %893 = vmatprep.subr.mxu0 0.0
      %894 = vmatpush2.msra.mxu0 %v802
      %895 = vmatprep.subr.mxu0 0.0
      %896 = vmatpush2.msra.mxu0 %v801
      %897 = vmatprep.mubr.f32.mxu0 %v666
      %898 = vmatmul.mubr.f32.gmra.mxu0 %v630
      %v899 = vpop.f32.mrf.mxu0
      %v900 = vadd.f32 0.0, %v899
      %v901 = vpop.f32.mrf.mxu0
      %902 = vmatprep.mubr.f32.mxu0 %v667
      %903 = vmatmul.mubr.f32.gmra.mxu0 %v631
      %v904 = vpop.f32.mrf.mxu0
      %v905 = vadd.f32 0.0, %v904
      %v906 = vpop.f32.mrf.mxu0
      %907 = vmatprep.mubr.f32.mxu0 %v668
      %908 = vmatmul.mubr.f32.gmra.mxu0 %v632
      %v909 = vpop.f32.mrf.mxu0
      %v910 = vadd.f32 0.0, %v909
      %v911 = vpop.f32.mrf.mxu0
      %912 = vmatprep.mubr.f32.mxu0 %v669
      %913 = vmatmul.mubr.f32.gmra.mxu0 %v633
      %v914 = vpop.f32.mrf.mxu0
      %v915 = vadd.f32 0.0, %v914
      %v916 = vpop.f32.mrf.mxu0
      %917 = vmatprep.mubr.f32.mxu0 %v670
      %918 = vmatmul.mubr.f32.gmra.mxu0 %v634
      %v919 = vpop.f32.mrf.mxu0
      %v920 = vadd.f32 0.0, %v919
      %v921 = vpop.f32.mrf.mxu0
      %922 = vmatprep.mubr.f32.mxu0 %v671
      %923 = vmatmul.mubr.f32.gmra.mxu0 %v635
      %v924 = vpop.f32.mrf.mxu0
      %v925 = vadd.f32 0.0, %v924
      %v926 = vpop.f32.mrf.mxu0
      %927 = vmatprep.mubr.f32.mxu0 %v672
      %928 = vmatmul.mubr.f32.gmra.mxu0 %v636
      %v929 = vpop.f32.mrf.mxu0
      %v930 = vadd.f32 0.0, %v929
      %v931 = vpop.f32.mrf.mxu0
      %932 = vmatprep.mubr.f32.mxu0 %v673
      %933 = vmatmul.mubr.f32.gmra.mxu0 %v637
      %v934 = vpop.f32.mrf.mxu0
      %v935 = vadd.f32 0.0, %v934
      %v936 = vpop.f32.mrf.mxu0
      %937 = vmatprep.mubr.f32.mxu0 %v674
      %938 = vmatmul.mubr.f32.gmra.mxu0 %v638
      %v939 = vpop.f32.mrf.mxu0
      %v940 = vadd.f32 0.0, %v939
      %v941 = vpop.f32.mrf.mxu0
      %942 = vmatprep.mubr.f32.mxu0 %v675
      %943 = vmatmul.mubr.f32.gmra.mxu0 %v639
      %v944 = vpop.f32.mrf.mxu0
      %v945 = vadd.f32 0.0, %v944
      %v946 = vpop.f32.mrf.mxu0
      %947 = vmatprep.mubr.f32.mxu0 %v676
      %948 = vmatmul.mubr.f32.gmra.mxu0 %v640
      %v949 = vpop.f32.mrf.mxu0
      %v950 = vadd.f32 0.0, %v949
      %v951 = vpop.f32.mrf.mxu0
      %952 = vmatprep.mubr.f32.mxu0 %v677
      %953 = vmatmul.mubr.f32.gmra.mxu0 %v641
      %v954 = vpop.f32.mrf.mxu0
      %v955 = vadd.f32 0.0, %v954
      %v956 = vpop.f32.mrf.mxu0
      %957 = vmatprep.mubr.f32.mxu0 %v678
      %958 = vmatmul.mubr.f32.gmra.mxu0 %v642
      %v959 = vpop.f32.mrf.mxu0
      %v960 = vadd.f32 0.0, %v959
      %v961 = vpop.f32.mrf.mxu0
      %962 = vmatprep.mubr.f32.mxu0 %v679
      %963 = vmatmul.mubr.f32.gmra.mxu0 %v643
      %v964 = vpop.f32.mrf.mxu0
      %v965 = vadd.f32 0.0, %v964
      %v966 = vpop.f32.mrf.mxu0
      %967 = vmatprep.mubr.f32.mxu0 %v680
      %968 = vmatmul.mubr.f32.gmra.mxu0 %v644
      %v969 = vpop.f32.mrf.mxu0
      %v970 = vadd.f32 0.0, %v969
      %v971 = vpop.f32.mrf.mxu0
      %972 = vmatprep.mubr.f32.mxu0 %v681
      %973 = vmatmul.mubr.f32.gmra.mxu0 %v645
      %v974 = vpop.f32.mrf.mxu0
      %v975 = vadd.f32 0.0, %v974
      %v976 = vpop.f32.mrf.mxu0
      %977 = vmatprep.mubr.f32.mxu0 %v682
      %978 = vmatmul.mubr.f32.gmra.mxu0 %v646
      %v979 = vpop.f32.mrf.mxu0
      %v980 = vadd.f32 0.0, %v979
      %v981 = vpop.f32.mrf.mxu0
      %982 = vmatprep.mubr.f32.mxu0 %v683
      %983 = vmatmul.mubr.f32.gmra.mxu0 %v647
      %v984 = vpop.f32.mrf.mxu0
      %v985 = vadd.f32 0.0, %v984
      %v986 = vpop.f32.mrf.mxu0
      %987 = vmatprep.mubr.f32.mxu0 %v684
      %988 = vmatmul.mubr.f32.gmra.mxu0 %v648
      %v989 = vpop.f32.mrf.mxu0
      %v990 = vadd.f32 0.0, %v989
      %v991 = vpop.f32.mrf.mxu0
      %992 = vmatprep.mubr.f32.mxu0 %v685
      %993 = vmatmul.mubr.f32.gmra.mxu0 %v649
      %v994 = vpop.f32.mrf.mxu0
      %v995 = vadd.f32 0.0, %v994
      %v996 = vpop.f32.mrf.mxu0
      %997 = vmatprep.mubr.f32.mxu0 %v686
      %998 = vmatmul.mubr.f32.gmra.mxu0 %v650
      %v999 = vpop.f32.mrf.mxu0
      %v1000 = vadd.f32 0.0, %v999
      %v1001 = vpop.f32.mrf.mxu0
      %1002 = vmatprep.mubr.f32.mxu0 %v687
      %1003 = vmatmul.mubr.f32.gmra.mxu0 %v651
      %v1004 = vpop.f32.mrf.mxu0
      %v1005 = vadd.f32 0.0, %v1004
      %v1006 = vpop.f32.mrf.mxu0
      %1007 = vmatprep.mubr.f32.mxu0 %v688
      %1008 = vmatmul.mubr.f32.gmra.mxu0 %v652
      %v1009 = vpop.f32.mrf.mxu0
      %v1010 = vadd.f32 0.0, %v1009
      %v1011 = vpop.f32.mrf.mxu0
      %1012 = vmatprep.mubr.f32.mxu0 %v689
      %1013 = vmatmul.mubr.f32.gmra.mxu0 %v653
      %v1014 = vpop.f32.mrf.mxu0
      %v1015 = vadd.f32 0.0, %v1014
      %v1016 = vpop.f32.mrf.mxu0
      %1017 = vmatprep.mubr.f32.mxu0 %v690
      %1018 = vmatmul.mubr.f32.gmra.mxu0 %v654
      %v1019 = vpop.f32.mrf.mxu0
      %v1020 = vadd.f32 0.0, %v1019
      %v1021 = vpop.f32.mrf.mxu0
      %1022 = vmatprep.mubr.f32.mxu0 %v691
      %1023 = vmatmul.mubr.f32.gmra.mxu0 %v655
      %v1024 = vpop.f32.mrf.mxu0
      %v1025 = vadd.f32 0.0, %v1024
      %v1026 = vpop.f32.mrf.mxu0
      %1027 = vmatprep.mubr.f32.mxu0 %v692
      %1028 = vmatmul.mubr.f32.gmra.mxu0 %v656
      %v1029 = vpop.f32.mrf.mxu0
      %v1030 = vadd.f32 0.0, %v1029
      %v1031 = vpop.f32.mrf.mxu0
      %1032 = vmatprep.mubr.f32.mxu0 %v693
      %1033 = vmatmul.mubr.f32.gmra.mxu0 %v657
      %v1034 = vpop.f32.mrf.mxu0
      %v1035 = vadd.f32 0.0, %v1034
      %v1036 = vpop.f32.mrf.mxu0
      %1037 = vmatprep.mubr.f32.mxu0 %v694
      %1038 = vmatmul.mubr.f32.gmra.mxu0 %v658
      %v1039 = vpop.f32.mrf.mxu0
      %v1040 = vadd.f32 0.0, %v1039
      %v1041 = vpop.f32.mrf.mxu0
      %1042 = vmatprep.mubr.f32.mxu0 %v695
      %1043 = vmatmul.mubr.f32.gmra.mxu0 %v659
      %v1044 = vpop.f32.mrf.mxu0
      %v1045 = vadd.f32 0.0, %v1044
      %v1046 = vpop.f32.mrf.mxu0
      %1047 = vmatprep.mubr.f32.mxu0 %v696
      %1048 = vmatmul.mubr.f32.gmra.mxu0 %v660
      %v1049 = vpop.f32.mrf.mxu0
      %v1050 = vadd.f32 0.0, %v1049
      %v1051 = vpop.f32.mrf.mxu0
      %1052 = vmatprep.mubr.f32.mxu0 %v697
      %1053 = vmatmul.mubr.f32.gmra.mxu0 %v661
      %v1054 = vpop.f32.mrf.mxu0
      %v1055 = vadd.f32 0.0, %v1054
      %v1056 = vpop.f32.mrf.mxu0
      %1057 = vdwg.mxu0
      %1058 = vmatprep.subr.mxu0 0.0
      %1059 = vmatpush1.msra.mxu0 %v832
      %1060 = vmatprep.subr.mxu0 0.0
      %1061 = vmatpush1.msra.mxu0 %v831
      %1062 = vmatprep.subr.mxu0 0.0
      %1063 = vmatpush1.msra.mxu0 %v830
      %1064 = vmatprep.subr.mxu0 0.0
      %1065 = vmatpush1.msra.mxu0 %v829
      %1066 = vmatprep.subr.mxu0 0.0
      %1067 = vmatpush1.msra.mxu0 %v828
      %1068 = vmatprep.subr.mxu0 0.0
      %1069 = vmatpush1.msra.mxu0 %v827
      %1070 = vmatprep.subr.mxu0 0.0
      %1071 = vmatpush1.msra.mxu0 %v826
      %1072 = vmatprep.subr.mxu0 0.0
      %1073 = vmatpush1.msra.mxu0 %v825
      %1074 = vmatprep.subr.mxu0 0.0
      %1075 = vmatpush1.msra.mxu0 %v824
      %1076 = vmatprep.subr.mxu0 0.0
      %1077 = vmatpush1.msra.mxu0 %v823
      %1078 = vmatprep.subr.mxu0 0.0
      %1079 = vmatpush1.msra.mxu0 %v822
      %1080 = vmatprep.subr.mxu0 0.0
      %1081 = vmatpush1.msra.mxu0 %v821
      %1082 = vmatprep.subr.mxu0 0.0
      %1083 = vmatpush1.msra.mxu0 %v820
      %1084 = vmatprep.subr.mxu0 0.0
      %1085 = vmatpush1.msra.mxu0 %v819
      %1086 = vmatprep.subr.mxu0 0.0
      %1087 = vmatpush1.msra.mxu0 %v818
      %1088 = vmatprep.subr.mxu0 0.0
      %1089 = vmatpush1.msra.mxu0 %v817
      %1090 = vmatprep.subr.mxu0 0.0
      %1091 = vmatpush2.msra.mxu0 0.0
      %1092 = vmatprep.subr.mxu0 0.0
      %1093 = vmatpush2.msra.mxu0 0.0
      %1094 = vmatprep.subr.mxu0 0.0
      %1095 = vmatpush2.msra.mxu0 0.0
      %1096 = vmatprep.subr.mxu0 0.0
      %1097 = vmatpush2.msra.mxu0 0.0
      %1098 = vmatprep.subr.mxu0 0.0
      %1099 = vmatpush2.msra.mxu0 0.0
      %1100 = vmatprep.subr.mxu0 0.0
      %1101 = vmatpush2.msra.mxu0 0.0
      %1102 = vmatprep.subr.mxu0 0.0
      %1103 = vmatpush2.msra.mxu0 0.0
      %1104 = vmatprep.subr.mxu0 0.0
      %1105 = vmatpush2.msra.mxu0 0.0
      %1106 = vmatprep.subr.mxu0 0.0
      %1107 = vmatpush2.msra.mxu0 0.0
      %1108 = vmatprep.subr.mxu0 0.0
      %1109 = vmatpush2.msra.mxu0 0.0
      %1110 = vmatprep.subr.mxu0 0.0
      %1111 = vmatpush2.msra.mxu0 0.0
      %1112 = vmatprep.subr.mxu0 0.0
      %1113 = vmatpush2.msra.mxu0 0.0
      %1114 = vmatprep.subr.mxu0 0.0
      %1115 = vmatpush2.msra.mxu0 0.0
      %1116 = vmatprep.subr.mxu0 0.0
      %1117 = vmatpush2.msra.mxu0 0.0
      %1118 = vmatprep.subr.mxu0 0.0
      %1119 = vmatpush2.msra.mxu0 0.0
      %1120 = vmatprep.subr.mxu0 0.0
      %1121 = vmatpush2.msra.mxu0 0.0
      %1122 = vmatprep.mubr.f32.mxu0 0.0
      %1123 = vmatmul.mubr.f32.gmra.mxu0 %v702
      %v1124 = vpop.f32.mrf.mxu0
      %v1125 = vadd.f32 %v900, %v1124
      %v1126 = vpop.f32.mrf.mxu0
      %1127 = vmatprep.mubr.f32.mxu0 0.0
      %1128 = vmatmul.mubr.f32.gmra.mxu0 %v703
      %v1129 = vpop.f32.mrf.mxu0
      %v1130 = vadd.f32 %v905, %v1129
      %v1131 = vpop.f32.mrf.mxu0
      %1132 = vmatprep.mubr.f32.mxu0 0.0
      %1133 = vmatmul.mubr.f32.gmra.mxu0 %v704
      %v1134 = vpop.f32.mrf.mxu0
      %v1135 = vadd.f32 %v910, %v1134
      %v1136 = vpop.f32.mrf.mxu0
      %1137 = vmatprep.mubr.f32.mxu0 0.0
      %1138 = vmatmul.mubr.f32.gmra.mxu0 %v705
      %v1139 = vpop.f32.mrf.mxu0
      %v1140 = vadd.f32 %v915, %v1139
      %v1141 = vpop.f32.mrf.mxu0
      %1142 = vmatprep.mubr.f32.mxu0 0.0
      %1143 = vmatmul.mubr.f32.gmra.mxu0 %v706
      %v1144 = vpop.f32.mrf.mxu0
      %v1145 = vadd.f32 %v920, %v1144
      %v1146 = vpop.f32.mrf.mxu0
      %1147 = vmatprep.mubr.f32.mxu0 0.0
      %1148 = vmatmul.mubr.f32.gmra.mxu0 %v707
      %v1149 = vpop.f32.mrf.mxu0
      %v1150 = vadd.f32 %v925, %v1149
      %v1151 = vpop.f32.mrf.mxu0
      %1152 = vmatprep.mubr.f32.mxu0 0.0
      %1153 = vmatmul.mubr.f32.gmra.mxu0 %v708
      %v1154 = vpop.f32.mrf.mxu0
      %v1155 = vadd.f32 %v930, %v1154
      %v1156 = vpop.f32.mrf.mxu0
      %1157 = vmatprep.mubr.f32.mxu0 0.0
      %1158 = vmatmul.mubr.f32.gmra.mxu0 %v709
      %v1159 = vpop.f32.mrf.mxu0
      %v1160 = vadd.f32 %v935, %v1159
      %v1161 = vpop.f32.mrf.mxu0
      %1162 = vmatprep.mubr.f32.mxu0 0.0
      %1163 = vmatmul.mubr.f32.gmra.mxu0 %v710
      %v1164 = vpop.f32.mrf.mxu0
      %v1165 = vadd.f32 %v940, %v1164
      %v1166 = vpop.f32.mrf.mxu0
      %1167 = vmatprep.mubr.f32.mxu0 0.0
      %1168 = vmatmul.mubr.f32.gmra.mxu0 %v711
      %v1169 = vpop.f32.mrf.mxu0
      %v1170 = vadd.f32 %v945, %v1169
      %v1171 = vpop.f32.mrf.mxu0
      %1172 = vmatprep.mubr.f32.mxu0 0.0
      %1173 = vmatmul.mubr.f32.gmra.mxu0 %v712
      %v1174 = vpop.f32.mrf.mxu0
      %v1175 = vadd.f32 %v950, %v1174
      %v1176 = vpop.f32.mrf.mxu0
      %1177 = vmatprep.mubr.f32.mxu0 0.0
      %1178 = vmatmul.mubr.f32.gmra.mxu0 %v713
      %v1179 = vpop.f32.mrf.mxu0
      %v1180 = vadd.f32 %v955, %v1179
      %v1181 = vpop.f32.mrf.mxu0
      %1182 = vmatprep.mubr.f32.mxu0 0.0
      %1183 = vmatmul.mubr.f32.gmra.mxu0 %v714
      %v1184 = vpop.f32.mrf.mxu0
      %v1185 = vadd.f32 %v960, %v1184
      %v1186 = vpop.f32.mrf.mxu0
      %1187 = vmatprep.mubr.f32.mxu0 0.0
      %1188 = vmatmul.mubr.f32.gmra.mxu0 %v715
      %v1189 = vpop.f32.mrf.mxu0
      %v1190 = vadd.f32 %v965, %v1189
      %v1191 = vpop.f32.mrf.mxu0
      %1192 = vmatprep.mubr.f32.mxu0 0.0
      %1193 = vmatmul.mubr.f32.gmra.mxu0 %v716
      %v1194 = vpop.f32.mrf.mxu0
      %v1195 = vadd.f32 %v970, %v1194
      %v1196 = vpop.f32.mrf.mxu0
      %1197 = vmatprep.mubr.f32.mxu0 0.0
      %1198 = vmatmul.mubr.f32.gmra.mxu0 %v717
      %v1199 = vpop.f32.mrf.mxu0
      %v1200 = vadd.f32 %v975, %v1199
      %v1201 = vpop.f32.mrf.mxu0
      %1202 = vmatprep.mubr.f32.mxu0 0.0
      %1203 = vmatmul.mubr.f32.gmra.mxu0 %v718
      %v1204 = vpop.f32.mrf.mxu0
      %v1205 = vadd.f32 %v980, %v1204
      %v1206 = vpop.f32.mrf.mxu0
      %1207 = vmatprep.mubr.f32.mxu0 0.0
      %1208 = vmatmul.mubr.f32.gmra.mxu0 %v719
      %v1209 = vpop.f32.mrf.mxu0
      %v1210 = vadd.f32 %v985, %v1209
      %v1211 = vpop.f32.mrf.mxu0
      %1212 = vmatprep.mubr.f32.mxu0 0.0
      %1213 = vmatmul.mubr.f32.gmra.mxu0 %v720
      %v1214 = vpop.f32.mrf.mxu0
      %v1215 = vadd.f32 %v990, %v1214
      %v1216 = vpop.f32.mrf.mxu0
      %1217 = vmatprep.mubr.f32.mxu0 0.0
      %1218 = vmatmul.mubr.f32.gmra.mxu0 %v721
      %v1219 = vpop.f32.mrf.mxu0
      %v1220 = vadd.f32 %v995, %v1219
      %v1221 = vpop.f32.mrf.mxu0
      %1222 = vmatprep.mubr.f32.mxu0 0.0
      %1223 = vmatmul.mubr.f32.gmra.mxu0 %v722
      %v1224 = vpop.f32.mrf.mxu0
      %v1225 = vadd.f32 %v1000, %v1224
      %v1226 = vpop.f32.mrf.mxu0
      %1227 = vmatprep.mubr.f32.mxu0 0.0
      %1228 = vmatmul.mubr.f32.gmra.mxu0 %v723
      %v1229 = vpop.f32.mrf.mxu0
      %v1230 = vadd.f32 %v1005, %v1229
      %v1231 = vpop.f32.mrf.mxu0
      %1232 = vmatprep.mubr.f32.mxu0 0.0
      %1233 = vmatmul.mubr.f32.gmra.mxu0 %v724
      %v1234 = vpop.f32.mrf.mxu0
      %v1235 = vadd.f32 %v1010, %v1234
      %v1236 = vpop.f32.mrf.mxu0
      %1237 = vmatprep.mubr.f32.mxu0 0.0
      %1238 = vmatmul.mubr.f32.gmra.mxu0 %v725
      %v1239 = vpop.f32.mrf.mxu0
      %v1240 = vadd.f32 %v1015, %v1239
      %v1241 = vpop.f32.mrf.mxu0
      %1242 = vmatprep.mubr.f32.mxu0 0.0
      %1243 = vmatmul.mubr.f32.gmra.mxu0 %v726
      %v1244 = vpop.f32.mrf.mxu0
      %v1245 = vadd.f32 %v1020, %v1244
      %v1246 = vpop.f32.mrf.mxu0
      %1247 = vmatprep.mubr.f32.mxu0 0.0
      %1248 = vmatmul.mubr.f32.gmra.mxu0 %v727
      %v1249 = vpop.f32.mrf.mxu0
      %v1250 = vadd.f32 %v1025, %v1249
      %v1251 = vpop.f32.mrf.mxu0
      %1252 = vmatprep.mubr.f32.mxu0 0.0
      %1253 = vmatmul.mubr.f32.gmra.mxu0 %v728
      %v1254 = vpop.f32.mrf.mxu0
      %v1255 = vadd.f32 %v1030, %v1254
      %v1256 = vpop.f32.mrf.mxu0
      %1257 = vmatprep.mubr.f32.mxu0 0.0
      %1258 = vmatmul.mubr.f32.gmra.mxu0 %v729
      %v1259 = vpop.f32.mrf.mxu0
      %v1260 = vadd.f32 %v1035, %v1259
      %v1261 = vpop.f32.mrf.mxu0
      %1262 = vmatprep.mubr.f32.mxu0 0.0
      %1263 = vmatmul.mubr.f32.gmra.mxu0 %v730
      %v1264 = vpop.f32.mrf.mxu0
      %v1265 = vadd.f32 %v1040, %v1264
      %v1266 = vpop.f32.mrf.mxu0
      %1267 = vmatprep.mubr.f32.mxu0 0.0
      %1268 = vmatmul.mubr.f32.gmra.mxu0 %v731
      %v1269 = vpop.f32.mrf.mxu0
      %v1270 = vadd.f32 %v1045, %v1269
      %v1271 = vpop.f32.mrf.mxu0
      %1272 = vmatprep.mubr.f32.mxu0 0.0
      %1273 = vmatmul.mubr.f32.gmra.mxu0 %v732
      %v1274 = vpop.f32.mrf.mxu0
      %v1275 = vadd.f32 %v1050, %v1274
      %v1276 = vpop.f32.mrf.mxu0
      %1277 = vmatprep.mubr.f32.mxu0 0.0
      %1278 = vmatmul.mubr.f32.gmra.mxu0 %v733
      %v1279 = vpop.f32.mrf.mxu0
      %v1280 = vadd.f32 %v1055, %v1279
      %v1281 = vpop.f32.mrf.mxu0
      %1282 = vdwg.mxu0
      %1283 = vmatprep.subr.mxu0 0.0
      %1284 = vmatpush1.msra.mxu0 %v751
      %1285 = vmatprep.subr.mxu0 0.0
      %1286 = vmatpush1.msra.mxu0 %v750
      %1287 = vmatprep.subr.mxu0 0.0
      %1288 = vmatpush1.msra.mxu0 %v749
      %1289 = vmatprep.subr.mxu0 0.0
      %1290 = vmatpush1.msra.mxu0 %v748
      %1291 = vmatprep.subr.mxu0 0.0
      %1292 = vmatpush1.msra.mxu0 %v747
      %1293 = vmatprep.subr.mxu0 0.0
      %1294 = vmatpush1.msra.mxu0 %v746
      %1295 = vmatprep.subr.mxu0 0.0
      %1296 = vmatpush1.msra.mxu0 %v745
      %1297 = vmatprep.subr.mxu0 0.0
      %1298 = vmatpush1.msra.mxu0 %v744
      %1299 = vmatprep.subr.mxu0 0.0
      %1300 = vmatpush1.msra.mxu0 %v743
      %1301 = vmatprep.subr.mxu0 0.0
      %1302 = vmatpush1.msra.mxu0 %v742
      %1303 = vmatprep.subr.mxu0 0.0
      %1304 = vmatpush1.msra.mxu0 %v741
      %1305 = vmatprep.subr.mxu0 0.0
      %1306 = vmatpush1.msra.mxu0 %v740
      %1307 = vmatprep.subr.mxu0 0.0
      %1308 = vmatpush1.msra.mxu0 %v739
      %1309 = vmatprep.subr.mxu0 0.0
      %1310 = vmatpush1.msra.mxu0 %v738
      %1311 = vmatprep.subr.mxu0 0.0
      %1312 = vmatpush1.msra.mxu0 %v737
      %1313 = vmatprep.subr.mxu0 0.0
      %1314 = vmatpush1.msra.mxu0 %v736
      %1315 = vmatprep.subr.mxu0 0.0
      %1316 = vmatpush2.msra.mxu0 %v767
      %1317 = vmatprep.subr.mxu0 0.0
      %1318 = vmatpush2.msra.mxu0 %v766
      %1319 = vmatprep.subr.mxu0 0.0
      %1320 = vmatpush2.msra.mxu0 %v765
      %1321 = vmatprep.subr.mxu0 0.0
      %1322 = vmatpush2.msra.mxu0 %v764
      %1323 = vmatprep.subr.mxu0 0.0
      %1324 = vmatpush2.msra.mxu0 %v763
      %1325 = vmatprep.subr.mxu0 0.0
      %1326 = vmatpush2.msra.mxu0 %v762
      %1327 = vmatprep.subr.mxu0 0.0
      %1328 = vmatpush2.msra.mxu0 %v761
      %1329 = vmatprep.subr.mxu0 0.0
      %1330 = vmatpush2.msra.mxu0 %v760
      %1331 = vmatprep.subr.mxu0 0.0
      %1332 = vmatpush2.msra.mxu0 %v759
      %1333 = vmatprep.subr.mxu0 0.0
      %1334 = vmatpush2.msra.mxu0 %v758
      %1335 = vmatprep.subr.mxu0 0.0
      %1336 = vmatpush2.msra.mxu0 %v757
      %1337 = vmatprep.subr.mxu0 0.0
      %1338 = vmatpush2.msra.mxu0 %v756
      %1339 = vmatprep.subr.mxu0 0.0
      %1340 = vmatpush2.msra.mxu0 %v755
      %1341 = vmatprep.subr.mxu0 0.0
      %1342 = vmatpush2.msra.mxu0 %v754
      %1343 = vmatprep.subr.mxu0 0.0
      %1344 = vmatpush2.msra.mxu0 %v753
      %1345 = vmatprep.subr.mxu0 0.0
      %1346 = vmatpush2.msra.mxu0 %v752
      %1347 = vmatprep.mubr.f32.mxu0 %v664
      %1348 = vmatmul.mubr.f32.gmra.mxu0 %v628
      %v1349 = vpop.f32.mrf.mxu0
      %v1350 = vadd.f32 %v1125, %v1349
      %v1351 = vpop.f32.mrf.mxu0
      %1352 = vmatprep.mubr.f32.mxu0 %v665
      %1353 = vmatmul.mubr.f32.gmra.mxu0 %v629
      %v1354 = vpop.f32.mrf.mxu0
      %v1355 = vadd.f32 %v1130, %v1354
      %v1356 = vpop.f32.mrf.mxu0
      %1357 = vmatprep.mubr.f32.mxu0 %v666
      %1358 = vmatmul.mubr.f32.gmra.mxu0 %v630
      %v1359 = vpop.f32.mrf.mxu0
      %v1360 = vadd.f32 %v1135, %v1359
      %v1361 = vpop.f32.mrf.mxu0
      %1362 = vmatprep.mubr.f32.mxu0 %v667
      %1363 = vmatmul.mubr.f32.gmra.mxu0 %v631
      %v1364 = vpop.f32.mrf.mxu0
      %v1365 = vadd.f32 %v1140, %v1364
      %v1366 = vpop.f32.mrf.mxu0
      %1367 = vmatprep.mubr.f32.mxu0 %v668
      %1368 = vmatmul.mubr.f32.gmra.mxu0 %v632
      %v1369 = vpop.f32.mrf.mxu0
      %v1370 = vadd.f32 %v1145, %v1369
      %v1371 = vpop.f32.mrf.mxu0
      %1372 = vmatprep.mubr.f32.mxu0 %v669
      %1373 = vmatmul.mubr.f32.gmra.mxu0 %v633
      %v1374 = vpop.f32.mrf.mxu0
      %v1375 = vadd.f32 %v1150, %v1374
      %v1376 = vpop.f32.mrf.mxu0
      %1377 = vmatprep.mubr.f32.mxu0 %v670
      %1378 = vmatmul.mubr.f32.gmra.mxu0 %v634
      %v1379 = vpop.f32.mrf.mxu0
      %v1380 = vadd.f32 %v1155, %v1379
      %v1381 = vpop.f32.mrf.mxu0
      %1382 = vmatprep.mubr.f32.mxu0 %v671
      %1383 = vmatmul.mubr.f32.gmra.mxu0 %v635
      %v1384 = vpop.f32.mrf.mxu0
      %v1385 = vadd.f32 %v1160, %v1384
      %v1386 = vpop.f32.mrf.mxu0
      %1387 = vmatprep.mubr.f32.mxu0 %v672
      %1388 = vmatmul.mubr.f32.gmra.mxu0 %v636
      %v1389 = vpop.f32.mrf.mxu0
      %v1390 = vadd.f32 %v1165, %v1389
      %v1391 = vpop.f32.mrf.mxu0
      %1392 = vmatprep.mubr.f32.mxu0 %v673
      %1393 = vmatmul.mubr.f32.gmra.mxu0 %v637
      %v1394 = vpop.f32.mrf.mxu0
      %v1395 = vadd.f32 %v1170, %v1394
      %v1396 = vpop.f32.mrf.mxu0
      %1397 = vmatprep.mubr.f32.mxu0 %v674
      %1398 = vmatmul.mubr.f32.gmra.mxu0 %v638
      %v1399 = vpop.f32.mrf.mxu0
      %v1400 = vadd.f32 %v1175, %v1399
      %v1401 = vpop.f32.mrf.mxu0
      %1402 = vmatprep.mubr.f32.mxu0 %v675
      %1403 = vmatmul.mubr.f32.gmra.mxu0 %v639
      %v1404 = vpop.f32.mrf.mxu0
      %v1405 = vadd.f32 %v1180, %v1404
      %v1406 = vpop.f32.mrf.mxu0
      %1407 = vmatprep.mubr.f32.mxu0 %v676
      %1408 = vmatmul.mubr.f32.gmra.mxu0 %v640
      %v1409 = vpop.f32.mrf.mxu0
      %v1410 = vadd.f32 %v1185, %v1409
      %v1411 = vpop.f32.mrf.mxu0
      %1412 = vmatprep.mubr.f32.mxu0 %v677
      %1413 = vmatmul.mubr.f32.gmra.mxu0 %v641
      %v1414 = vpop.f32.mrf.mxu0
      %v1415 = vadd.f32 %v1190, %v1414
      %v1416 = vpop.f32.mrf.mxu0
      %1417 = vmatprep.mubr.f32.mxu0 %v678
      %1418 = vmatmul.mubr.f32.gmra.mxu0 %v642
      %v1419 = vpop.f32.mrf.mxu0
      %v1420 = vadd.f32 %v1195, %v1419
      %v1421 = vpop.f32.mrf.mxu0
      %1422 = vmatprep.mubr.f32.mxu0 %v679
      %1423 = vmatmul.mubr.f32.gmra.mxu0 %v643
      %v1424 = vpop.f32.mrf.mxu0
      %v1425 = vadd.f32 %v1200, %v1424
      %v1426 = vpop.f32.mrf.mxu0
      %1427 = vmatprep.mubr.f32.mxu0 %v680
      %1428 = vmatmul.mubr.f32.gmra.mxu0 %v644
      %v1429 = vpop.f32.mrf.mxu0
      %v1430 = vadd.f32 %v1205, %v1429
      %v1431 = vpop.f32.mrf.mxu0
      %1432 = vmatprep.mubr.f32.mxu0 %v681
      %1433 = vmatmul.mubr.f32.gmra.mxu0 %v645
      %v1434 = vpop.f32.mrf.mxu0
      %v1435 = vadd.f32 %v1210, %v1434
      %v1436 = vpop.f32.mrf.mxu0
      %1437 = vmatprep.mubr.f32.mxu0 %v682
      %1438 = vmatmul.mubr.f32.gmra.mxu0 %v646
      %v1439 = vpop.f32.mrf.mxu0
      %v1440 = vadd.f32 %v1215, %v1439
      %v1441 = vpop.f32.mrf.mxu0
      %1442 = vmatprep.mubr.f32.mxu0 %v683
      %1443 = vmatmul.mubr.f32.gmra.mxu0 %v647
      %v1444 = vpop.f32.mrf.mxu0
      %v1445 = vadd.f32 %v1220, %v1444
      %v1446 = vpop.f32.mrf.mxu0
      %1447 = vmatprep.mubr.f32.mxu0 %v684
      %1448 = vmatmul.mubr.f32.gmra.mxu0 %v648
      %v1449 = vpop.f32.mrf.mxu0
      %v1450 = vadd.f32 %v1225, %v1449
      %v1451 = vpop.f32.mrf.mxu0
      %1452 = vmatprep.mubr.f32.mxu0 %v685
      %1453 = vmatmul.mubr.f32.gmra.mxu0 %v649
      %v1454 = vpop.f32.mrf.mxu0
      %v1455 = vadd.f32 %v1230, %v1454
      %v1456 = vpop.f32.mrf.mxu0
      %1457 = vmatprep.mubr.f32.mxu0 %v686
      %1458 = vmatmul.mubr.f32.gmra.mxu0 %v650
      %v1459 = vpop.f32.mrf.mxu0
      %v1460 = vadd.f32 %v1235, %v1459
      %v1461 = vpop.f32.mrf.mxu0
      %1462 = vmatprep.mubr.f32.mxu0 %v687
      %1463 = vmatmul.mubr.f32.gmra.mxu0 %v651
      %v1464 = vpop.f32.mrf.mxu0
      %v1465 = vadd.f32 %v1240, %v1464
      %v1466 = vpop.f32.mrf.mxu0
      %1467 = vmatprep.mubr.f32.mxu0 %v688
      %1468 = vmatmul.mubr.f32.gmra.mxu0 %v652
      %v1469 = vpop.f32.mrf.mxu0
      %v1470 = vadd.f32 %v1245, %v1469
      %v1471 = vpop.f32.mrf.mxu0
      %1472 = vmatprep.mubr.f32.mxu0 %v689
      %1473 = vmatmul.mubr.f32.gmra.mxu0 %v653
      %v1474 = vpop.f32.mrf.mxu0
      %v1475 = vadd.f32 %v1250, %v1474
      %v1476 = vpop.f32.mrf.mxu0
      %1477 = vmatprep.mubr.f32.mxu0 %v690
      %1478 = vmatmul.mubr.f32.gmra.mxu0 %v654
      %v1479 = vpop.f32.mrf.mxu0
      %v1480 = vadd.f32 %v1255, %v1479
      %v1481 = vpop.f32.mrf.mxu0
      %1482 = vmatprep.mubr.f32.mxu0 %v691
      %1483 = vmatmul.mubr.f32.gmra.mxu0 %v655
      %v1484 = vpop.f32.mrf.mxu0
      %v1485 = vadd.f32 %v1260, %v1484
      %v1486 = vpop.f32.mrf.mxu0
      %1487 = vmatprep.mubr.f32.mxu0 %v692
      %1488 = vmatmul.mubr.f32.gmra.mxu0 %v656
      %v1489 = vpop.f32.mrf.mxu0
      %v1490 = vadd.f32 %v1265, %v1489
      %v1491 = vpop.f32.mrf.mxu0
      %1492 = vmatprep.mubr.f32.mxu0 %v693
      %1493 = vmatmul.mubr.f32.gmra.mxu0 %v657
      %v1494 = vpop.f32.mrf.mxu0
      %v1495 = vadd.f32 %v1270, %v1494
      %v1496 = vpop.f32.mrf.mxu0
      %1497 = vmatprep.mubr.f32.mxu0 %v694
      %1498 = vmatmul.mubr.f32.gmra.mxu0 %v658
      %v1499 = vpop.f32.mrf.mxu0
      %v1500 = vadd.f32 %v1275, %v1499
      %v1501 = vpop.f32.mrf.mxu0
      %1502 = vmatprep.mubr.f32.mxu0 %v695
      %1503 = vmatmul.mubr.f32.gmra.mxu0 %v659
      %v1504 = vpop.f32.mrf.mxu0
      %v1505 = vadd.f32 %v1280, %v1504
      %v1506 = vpop.f32.mrf.mxu0
      %1507 = vdwg.mxu0
      %1508 = vmatprep.subr.mxu0 0.0
      %1509 = vmatpush1.msra.mxu0 %v783
      %1510 = vmatprep.subr.mxu0 0.0
      %1511 = vmatpush1.msra.mxu0 %v782
      %1512 = vmatprep.subr.mxu0 0.0
      %1513 = vmatpush1.msra.mxu0 %v781
      %1514 = vmatprep.subr.mxu0 0.0
      %1515 = vmatpush1.msra.mxu0 %v780
      %1516 = vmatprep.subr.mxu0 0.0
      %1517 = vmatpush1.msra.mxu0 %v779
      %1518 = vmatprep.subr.mxu0 0.0
      %1519 = vmatpush1.msra.mxu0 %v778
      %1520 = vmatprep.subr.mxu0 0.0
      %1521 = vmatpush1.msra.mxu0 %v777
      %1522 = vmatprep.subr.mxu0 0.0
      %1523 = vmatpush1.msra.mxu0 %v776
      %1524 = vmatprep.subr.mxu0 0.0
      %1525 = vmatpush1.msra.mxu0 %v775
      %1526 = vmatprep.subr.mxu0 0.0
      %1527 = vmatpush1.msra.mxu0 %v774
      %1528 = vmatprep.subr.mxu0 0.0
      %1529 = vmatpush1.msra.mxu0 %v773
      %1530 = vmatprep.subr.mxu0 0.0
      %1531 = vmatpush1.msra.mxu0 %v772
      %1532 = vmatprep.subr.mxu0 0.0
      %1533 = vmatpush1.msra.mxu0 %v771
      %1534 = vmatprep.subr.mxu0 0.0
      %1535 = vmatpush1.msra.mxu0 %v770
      %1536 = vmatprep.subr.mxu0 0.0
      %1537 = vmatpush1.msra.mxu0 %v769
      %1538 = vmatprep.subr.mxu0 0.0
      %1539 = vmatpush1.msra.mxu0 %v768
      %1540 = vmatprep.subr.mxu0 0.0
      %1541 = vmatpush2.msra.mxu0 0.0
      %1542 = vmatprep.subr.mxu0 0.0
      %1543 = vmatpush2.msra.mxu0 0.0
      %1544 = vmatprep.subr.mxu0 0.0
      %1545 = vmatpush2.msra.mxu0 0.0
      %1546 = vmatprep.subr.mxu0 0.0
      %1547 = vmatpush2.msra.mxu0 0.0
      %1548 = vmatprep.subr.mxu0 0.0
      %1549 = vmatpush2.msra.mxu0 0.0
      %1550 = vmatprep.subr.mxu0 0.0
      %1551 = vmatpush2.msra.mxu0 0.0
      %1552 = vmatprep.subr.mxu0 0.0
      %1553 = vmatpush2.msra.mxu0 0.0
      %1554 = vmatprep.subr.mxu0 0.0
      %1555 = vmatpush2.msra.mxu0 0.0
      %1556 = vmatprep.subr.mxu0 0.0
      %1557 = vmatpush2.msra.mxu0 0.0
      %1558 = vmatprep.subr.mxu0 0.0
      %1559 = vmatpush2.msra.mxu0 0.0
      %1560 = vmatprep.subr.mxu0 0.0
      %1561 = vmatpush2.msra.mxu0 0.0
      %1562 = vmatprep.subr.mxu0 0.0
      %1563 = vmatpush2.msra.mxu0 0.0
      %1564 = vmatprep.subr.mxu0 0.0
      %1565 = vmatpush2.msra.mxu0 0.0
      %1566 = vmatprep.subr.mxu0 0.0
      %1567 = vmatpush2.msra.mxu0 0.0
      %1568 = vmatprep.subr.mxu0 0.0
      %1569 = vmatpush2.msra.mxu0 0.0
      %1570 = vmatprep.subr.mxu0 0.0
      %1571 = vmatpush2.msra.mxu0 0.0
      %1572 = vmatprep.mubr.f32.mxu0 0.0
      %1573 = vmatmul.mubr.f32.gmra.mxu0 %v700
      %v1574 = vpop.f32.mrf.mxu0
      %v1575 = vadd.f32 %v1350, %v1574
      %v1576 = vpop.f32.mrf.mxu0
      %1577 = vmatprep.mubr.f32.mxu0 0.0
      %1578 = vmatmul.mubr.f32.gmra.mxu0 %v701
      %v1579 = vpop.f32.mrf.mxu0
      %v1580 = vadd.f32 %v1355, %v1579
      %v1581 = vpop.f32.mrf.mxu0
      %1582 = vmatprep.mubr.f32.mxu0 0.0
      %1583 = vmatmul.mubr.f32.gmra.mxu0 %v702
      %v1584 = vpop.f32.mrf.mxu0
      %v1585 = vadd.f32 %v1360, %v1584
      %v1586 = vpop.f32.mrf.mxu0
      %1587 = vmatprep.mubr.f32.mxu0 0.0
      %1588 = vmatmul.mubr.f32.gmra.mxu0 %v703
      %v1589 = vpop.f32.mrf.mxu0
      %v1590 = vadd.f32 %v1365, %v1589
      %v1591 = vpop.f32.mrf.mxu0
      %1592 = vmatprep.mubr.f32.mxu0 0.0
      %1593 = vmatmul.mubr.f32.gmra.mxu0 %v704
      %v1594 = vpop.f32.mrf.mxu0
      %v1595 = vadd.f32 %v1370, %v1594
      %v1596 = vpop.f32.mrf.mxu0
      %1597 = vmatprep.mubr.f32.mxu0 0.0
      %1598 = vmatmul.mubr.f32.gmra.mxu0 %v705
      %v1599 = vpop.f32.mrf.mxu0
      %v1600 = vadd.f32 %v1375, %v1599
      %v1601 = vpop.f32.mrf.mxu0
      %1602 = vmatprep.mubr.f32.mxu0 0.0
      %1603 = vmatmul.mubr.f32.gmra.mxu0 %v706
      %v1604 = vpop.f32.mrf.mxu0
      %v1605 = vadd.f32 %v1380, %v1604
      %v1606 = vpop.f32.mrf.mxu0
      %1607 = vmatprep.mubr.f32.mxu0 0.0
      %1608 = vmatmul.mubr.f32.gmra.mxu0 %v707
      %v1609 = vpop.f32.mrf.mxu0
      %v1610 = vadd.f32 %v1385, %v1609
      %v1611 = vpop.f32.mrf.mxu0
      %1612 = vmatprep.mubr.f32.mxu0 0.0
      %1613 = vmatmul.mubr.f32.gmra.mxu0 %v708
      %v1614 = vpop.f32.mrf.mxu0
      %v1615 = vadd.f32 %v1390, %v1614
      %v1616 = vpop.f32.mrf.mxu0
      %1617 = vmatprep.mubr.f32.mxu0 0.0
      %1618 = vmatmul.mubr.f32.gmra.mxu0 %v709
      %v1619 = vpop.f32.mrf.mxu0
      %v1620 = vadd.f32 %v1395, %v1619
      %v1621 = vpop.f32.mrf.mxu0
      %1622 = vmatprep.mubr.f32.mxu0 0.0
      %1623 = vmatmul.mubr.f32.gmra.mxu0 %v710
      %v1624 = vpop.f32.mrf.mxu0
      %v1625 = vadd.f32 %v1400, %v1624
      %v1626 = vpop.f32.mrf.mxu0
      %1627 = vmatprep.mubr.f32.mxu0 0.0
      %1628 = vmatmul.mubr.f32.gmra.mxu0 %v711
      %v1629 = vpop.f32.mrf.mxu0
      %v1630 = vadd.f32 %v1405, %v1629
      %v1631 = vpop.f32.mrf.mxu0
      %1632 = vmatprep.mubr.f32.mxu0 0.0
      %1633 = vmatmul.mubr.f32.gmra.mxu0 %v712
      %v1634 = vpop.f32.mrf.mxu0
      %v1635 = vadd.f32 %v1410, %v1634
      %v1636 = vpop.f32.mrf.mxu0
      %1637 = vmatprep.mubr.f32.mxu0 0.0
      %1638 = vmatmul.mubr.f32.gmra.mxu0 %v713
      %v1639 = vpop.f32.mrf.mxu0
      %v1640 = vadd.f32 %v1415, %v1639
      %v1641 = vpop.f32.mrf.mxu0
      %1642 = vmatprep.mubr.f32.mxu0 0.0
      %1643 = vmatmul.mubr.f32.gmra.mxu0 %v714
      %v1644 = vpop.f32.mrf.mxu0
      %v1645 = vadd.f32 %v1420, %v1644
      %v1646 = vpop.f32.mrf.mxu0
      %1647 = vmatprep.mubr.f32.mxu0 0.0
      %1648 = vmatmul.mubr.f32.gmra.mxu0 %v715
      %v1649 = vpop.f32.mrf.mxu0
      %v1650 = vadd.f32 %v1425, %v1649
      %v1651 = vpop.f32.mrf.mxu0
      %1652 = vmatprep.mubr.f32.mxu0 0.0
      %1653 = vmatmul.mubr.f32.gmra.mxu0 %v716
      %v1654 = vpop.f32.mrf.mxu0
      %v1655 = vadd.f32 %v1430, %v1654
      %v1656 = vpop.f32.mrf.mxu0
      %1657 = vmatprep.mubr.f32.mxu0 0.0
      %1658 = vmatmul.mubr.f32.gmra.mxu0 %v717
      %v1659 = vpop.f32.mrf.mxu0
      %v1660 = vadd.f32 %v1435, %v1659
      %v1661 = vpop.f32.mrf.mxu0
      %1662 = vmatprep.mubr.f32.mxu0 0.0
      %1663 = vmatmul.mubr.f32.gmra.mxu0 %v718
      %v1664 = vpop.f32.mrf.mxu0
      %v1665 = vadd.f32 %v1440, %v1664
      %v1666 = vpop.f32.mrf.mxu0
      %1667 = vmatprep.mubr.f32.mxu0 0.0
      %1668 = vmatmul.mubr.f32.gmra.mxu0 %v719
      %v1669 = vpop.f32.mrf.mxu0
      %v1670 = vadd.f32 %v1445, %v1669
      %v1671 = vpop.f32.mrf.mxu0
      %1672 = vmatprep.mubr.f32.mxu0 0.0
      %1673 = vmatmul.mubr.f32.gmra.mxu0 %v720
      %v1674 = vpop.f32.mrf.mxu0
      %v1675 = vadd.f32 %v1450, %v1674
      %v1676 = vpop.f32.mrf.mxu0
      %1677 = vmatprep.mubr.f32.mxu0 0.0
      %1678 = vmatmul.mubr.f32.gmra.mxu0 %v721
      %v1679 = vpop.f32.mrf.mxu0
      %v1680 = vadd.f32 %v1455, %v1679
      %v1681 = vpop.f32.mrf.mxu0
      %1682 = vmatprep.mubr.f32.mxu0 0.0
      %1683 = vmatmul.mubr.f32.gmra.mxu0 %v722
      %v1684 = vpop.f32.mrf.mxu0
      %v1685 = vadd.f32 %v1460, %v1684
      %v1686 = vpop.f32.mrf.mxu0
      %1687 = vmatprep.mubr.f32.mxu0 0.0
      %1688 = vmatmul.mubr.f32.gmra.mxu0 %v723
      %v1689 = vpop.f32.mrf.mxu0
      %v1690 = vadd.f32 %v1465, %v1689
      %v1691 = vpop.f32.mrf.mxu0
      %1692 = vmatprep.mubr.f32.mxu0 0.0
      %1693 = vmatmul.mubr.f32.gmra.mxu0 %v724
      %v1694 = vpop.f32.mrf.mxu0
      %v1695 = vadd.f32 %v1470, %v1694
      %v1696 = vpop.f32.mrf.mxu0
      %1697 = vmatprep.mubr.f32.mxu0 0.0
      %1698 = vmatmul.mubr.f32.gmra.mxu0 %v725
      %v1699 = vpop.f32.mrf.mxu0
      %v1700 = vadd.f32 %v1475, %v1699
      %v1701 = vpop.f32.mrf.mxu0
      %1702 = vmatprep.mubr.f32.mxu0 0.0
      %1703 = vmatmul.mubr.f32.gmra.mxu0 %v726
      %v1704 = vpop.f32.mrf.mxu0
      %v1705 = vadd.f32 %v1480, %v1704
      %v1706 = vpop.f32.mrf.mxu0
      %1707 = vmatprep.mubr.f32.mxu0 0.0
      %1708 = vmatmul.mubr.f32.gmra.mxu0 %v727
      %v1709 = vpop.f32.mrf.mxu0
      %v1710 = vadd.f32 %v1485, %v1709
      %v1711 = vpop.f32.mrf.mxu0
      %1712 = vmatprep.mubr.f32.mxu0 0.0
      %1713 = vmatmul.mubr.f32.gmra.mxu0 %v728
      %v1714 = vpop.f32.mrf.mxu0
      %v1715 = vadd.f32 %v1490, %v1714
      %v1716 = vpop.f32.mrf.mxu0
      %1717 = vmatprep.mubr.f32.mxu0 0.0
      %1718 = vmatmul.mubr.f32.gmra.mxu0 %v729
      %v1719 = vpop.f32.mrf.mxu0
      %v1720 = vadd.f32 %v1495, %v1719
      %v1721 = vpop.f32.mrf.mxu0
      %1722 = vmatprep.mubr.f32.mxu0 0.0
      %1723 = vmatmul.mubr.f32.gmra.mxu0 %v730
      %v1724 = vpop.f32.mrf.mxu0
      %v1725 = vadd.f32 %v1500, %v1724
      %v1726 = vpop.f32.mrf.mxu0
      %1727 = vmatprep.mubr.f32.mxu0 0.0
      %1728 = vmatmul.mubr.f32.gmra.mxu0 %v731
      %v1729 = vpop.f32.mrf.mxu0
      %v1730 = vadd.f32 %v1505, %v1729
      %v1731 = vpop.f32.mrf.mxu0
      %1732 = vdwg.mxu0
      %s1733 = scalar_lea.vmem %s1, 768
      %v1734 = vld [vmem:[%s1733] sm:$0xff]
      %v1735 = vld [vmem:[%s1733 + $0x8] sm:$0xff]
      %v1736 = vld [vmem:[%s1733 + $0x10] sm:$0xff]
      %v1737 = vld [vmem:[%s1733 + $0x18] sm:$0xff]
      %v1738 = vld [vmem:[%s1733 + $0x20] sm:$0xff]
      %v1739 = vld [vmem:[%s1733 + $0x28] sm:$0xff]
      %v1740 = vld [vmem:[%s1733 + $0x30] sm:$0xff]
      %v1741 = vld [vmem:[%s1733 + $0x38] sm:$0xff]
      %v1742 = vld [vmem:[%s1733 + $0x40] sm:$0xff]
      %v1743 = vld [vmem:[%s1733 + $0x48] sm:$0xff]
      %v1744 = vld [vmem:[%s1733 + $0x50] sm:$0xff]
      %v1745 = vld [vmem:[%s1733 + $0x58] sm:$0xff]
      %v1746 = vld [vmem:[%s1733 + $0x60] sm:$0xff]
      %v1747 = vld [vmem:[%s1733 + $0x68] sm:$0xff]
      %v1748 = vld [vmem:[%s1733 + $0x70] sm:$0xff]
      %v1749 = vld [vmem:[%s1733 + $0x78] sm:$0xff]
      %v1750 = vld [vmem:[%s1733 + $0x80] sm:$0xff]
      %v1751 = vld [vmem:[%s1733 + $0x88] sm:$0xff]
      %v1752 = vld [vmem:[%s1733 + $0x90] sm:$0xff]
      %v1753 = vld [vmem:[%s1733 + $0x98] sm:$0xff]
      %v1754 = vld [vmem:[%s1733 + $0xa0] sm:$0xff]
      %v1755 = vld [vmem:[%s1733 + $0xa8] sm:$0xff]
      %v1756 = vld [vmem:[%s1733 + $0xb0] sm:$0xff]
      %v1757 = vld [vmem:[%s1733 + $0xb8] sm:$0xff]
      %v1758 = vld [vmem:[%s1733 + $0xc0] sm:$0xff]
      %v1759 = vld [vmem:[%s1733 + $0xc8] sm:$0xff]
      %v1760 = vld [vmem:[%s1733 + $0xd0] sm:$0xff]
      %v1761 = vld [vmem:[%s1733 + $0xd8] sm:$0xff]
      %v1762 = vld [vmem:[%s1733 + $0xe0] sm:$0xff]
      %v1763 = vld [vmem:[%s1733 + $0xe8] sm:$0xff]
      %v1764 = vld [vmem:[%s1733 + $0xf0] sm:$0xff]
      %v1765 = vld [vmem:[%s1733 + $0xf8] sm:$0xff]
      %v1766 = vld [vmem:[%s1733 + $0x100] sm:$0xff]
      %v1767 = vld [vmem:[%s1733 + $0x108] sm:$0xff]
      %v1768 = vld [vmem:[%s1733 + $0x110] sm:$0xff]
      %v1769 = vld [vmem:[%s1733 + $0x118] sm:$0xff]
      %v1770 = vld [vmem:[%s1733 + $0x120] sm:$0xff]
      %v1771 = vld [vmem:[%s1733 + $0x128] sm:$0xff]
      %v1772 = vld [vmem:[%s1733 + $0x130] sm:$0xff]
      %v1773 = vld [vmem:[%s1733 + $0x138] sm:$0xff]
      %v1774 = vld [vmem:[%s1733 + $0x140] sm:$0xff]
      %v1775 = vld [vmem:[%s1733 + $0x148] sm:$0xff]
      %v1776 = vld [vmem:[%s1733 + $0x150] sm:$0xff]
      %v1777 = vld [vmem:[%s1733 + $0x158] sm:$0xff]
      %v1778 = vld [vmem:[%s1733 + $0x160] sm:$0xff]
      %v1779 = vld [vmem:[%s1733 + $0x168] sm:$0xff]
      %v1780 = vld [vmem:[%s1733 + $0x170] sm:$0xff]
      %v1781 = vld [vmem:[%s1733 + $0x178] sm:$0xff]
      %1782 = vmatprep.subr.mxu0 0.0
      %1783 = vmatpush1.msra.mxu0 %v1749
      %1784 = vmatprep.subr.mxu0 0.0
      %1785 = vmatpush1.msra.mxu0 %v1748
      %1786 = vmatprep.subr.mxu0 0.0
      %1787 = vmatpush1.msra.mxu0 %v1747
      %1788 = vmatprep.subr.mxu0 0.0
      %1789 = vmatpush1.msra.mxu0 %v1746
      %1790 = vmatprep.subr.mxu0 0.0
      %1791 = vmatpush1.msra.mxu0 %v1745
      %1792 = vmatprep.subr.mxu0 0.0
      %1793 = vmatpush1.msra.mxu0 %v1744
      %1794 = vmatprep.subr.mxu0 0.0
      %1795 = vmatpush1.msra.mxu0 %v1743
      %1796 = vmatprep.subr.mxu0 0.0
      %1797 = vmatpush1.msra.mxu0 %v1742
      %1798 = vmatprep.subr.mxu0 0.0
      %1799 = vmatpush1.msra.mxu0 %v1741
      %1800 = vmatprep.subr.mxu0 0.0
      %1801 = vmatpush1.msra.mxu0 %v1740
      %1802 = vmatprep.subr.mxu0 0.0
      %1803 = vmatpush1.msra.mxu0 %v1739
      %1804 = vmatprep.subr.mxu0 0.0
      %1805 = vmatpush1.msra.mxu0 %v1738
      %1806 = vmatprep.subr.mxu0 0.0
      %1807 = vmatpush1.msra.mxu0 %v1737
      %1808 = vmatprep.subr.mxu0 0.0
      %1809 = vmatpush1.msra.mxu0 %v1736
      %1810 = vmatprep.subr.mxu0 0.0
      %1811 = vmatpush1.msra.mxu0 %v1735
      %1812 = vmatprep.subr.mxu0 0.0
      %1813 = vmatpush1.msra.mxu0 %v1734
      %1814 = vmatprep.subr.mxu0 0.0
      %1815 = vmatpush2.msra.mxu0 %v1765
      %1816 = vmatprep.subr.mxu0 0.0
      %1817 = vmatpush2.msra.mxu0 %v1764
      %1818 = vmatprep.subr.mxu0 0.0
      %1819 = vmatpush2.msra.mxu0 %v1763
      %1820 = vmatprep.subr.mxu0 0.0
      %1821 = vmatpush2.msra.mxu0 %v1762
      %1822 = vmatprep.subr.mxu0 0.0
      %1823 = vmatpush2.msra.mxu0 %v1761
      %1824 = vmatprep.subr.mxu0 0.0
      %1825 = vmatpush2.msra.mxu0 %v1760
      %1826 = vmatprep.subr.mxu0 0.0
      %1827 = vmatpush2.msra.mxu0 %v1759
      %1828 = vmatprep.subr.mxu0 0.0
      %1829 = vmatpush2.msra.mxu0 %v1758
      %1830 = vmatprep.subr.mxu0 0.0
      %1831 = vmatpush2.msra.mxu0 %v1757
      %1832 = vmatprep.subr.mxu0 0.0
      %1833 = vmatpush2.msra.mxu0 %v1756
      %1834 = vmatprep.subr.mxu0 0.0
      %1835 = vmatpush2.msra.mxu0 %v1755
      %1836 = vmatprep.subr.mxu0 0.0
      %1837 = vmatpush2.msra.mxu0 %v1754
      %1838 = vmatprep.subr.mxu0 0.0
      %1839 = vmatpush2.msra.mxu0 %v1753
      %1840 = vmatprep.subr.mxu0 0.0
      %1841 = vmatpush2.msra.mxu0 %v1752
      %1842 = vmatprep.subr.mxu0 0.0
      %1843 = vmatpush2.msra.mxu0 %v1751
      %1844 = vmatprep.subr.mxu0 0.0
      %1845 = vmatpush2.msra.mxu0 %v1750
      %1846 = vmatprep.mubr.f32.mxu0 %v668
      %1847 = vmatmul.mubr.f32.gmra.mxu0 %v632
      %v1848 = vpop.f32.mrf.mxu0
      %v1849 = vadd.f32 0.0, %v1848
      %v1850 = vpop.f32.mrf.mxu0
      %1851 = vmatprep.mubr.f32.mxu0 %v669
      %1852 = vmatmul.mubr.f32.gmra.mxu0 %v633
      %v1853 = vpop.f32.mrf.mxu0
      %v1854 = vadd.f32 0.0, %v1853
      %v1855 = vpop.f32.mrf.mxu0
      %1856 = vmatprep.mubr.f32.mxu0 %v670
      %1857 = vmatmul.mubr.f32.gmra.mxu0 %v634
      %v1858 = vpop.f32.mrf.mxu0
      %v1859 = vadd.f32 0.0, %v1858
      %v1860 = vpop.f32.mrf.mxu0
      %1861 = vmatprep.mubr.f32.mxu0 %v671
      %1862 = vmatmul.mubr.f32.gmra.mxu0 %v635
      %v1863 = vpop.f32.mrf.mxu0
      %v1864 = vadd.f32 0.0, %v1863
      %v1865 = vpop.f32.mrf.mxu0
      %1866 = vmatprep.mubr.f32.mxu0 %v672
      %1867 = vmatmul.mubr.f32.gmra.mxu0 %v636
      %v1868 = vpop.f32.mrf.mxu0
      %v1869 = vadd.f32 0.0, %v1868
      %v1870 = vpop.f32.mrf.mxu0
      %1871 = vmatprep.mubr.f32.mxu0 %v673
      %1872 = vmatmul.mubr.f32.gmra.mxu0 %v637
      %v1873 = vpop.f32.mrf.mxu0
      %v1874 = vadd.f32 0.0, %v1873
      %v1875 = vpop.f32.mrf.mxu0
      %1876 = vmatprep.mubr.f32.mxu0 %v674
      %1877 = vmatmul.mubr.f32.gmra.mxu0 %v638
      %v1878 = vpop.f32.mrf.mxu0
      %v1879 = vadd.f32 0.0, %v1878
      %v1880 = vpop.f32.mrf.mxu0
      %1881 = vmatprep.mubr.f32.mxu0 %v675
      %1882 = vmatmul.mubr.f32.gmra.mxu0 %v639
      %v1883 = vpop.f32.mrf.mxu0
      %v1884 = vadd.f32 0.0, %v1883
      %v1885 = vpop.f32.mrf.mxu0
      %1886 = vmatprep.mubr.f32.mxu0 %v676
      %1887 = vmatmul.mubr.f32.gmra.mxu0 %v640
      %v1888 = vpop.f32.mrf.mxu0
      %v1889 = vadd.f32 0.0, %v1888
      %v1890 = vpop.f32.mrf.mxu0
      %1891 = vmatprep.mubr.f32.mxu0 %v677
      %1892 = vmatmul.mubr.f32.gmra.mxu0 %v641
      %v1893 = vpop.f32.mrf.mxu0
      %v1894 = vadd.f32 0.0, %v1893
      %v1895 = vpop.f32.mrf.mxu0
      %1896 = vmatprep.mubr.f32.mxu0 %v678
      %1897 = vmatmul.mubr.f32.gmra.mxu0 %v642
      %v1898 = vpop.f32.mrf.mxu0
      %v1899 = vadd.f32 0.0, %v1898
      %v1900 = vpop.f32.mrf.mxu0
      %1901 = vmatprep.mubr.f32.mxu0 %v679
      %1902 = vmatmul.mubr.f32.gmra.mxu0 %v643
      %v1903 = vpop.f32.mrf.mxu0
      %v1904 = vadd.f32 0.0, %v1903
      %v1905 = vpop.f32.mrf.mxu0
      %1906 = vmatprep.mubr.f32.mxu0 %v680
      %1907 = vmatmul.mubr.f32.gmra.mxu0 %v644
      %v1908 = vpop.f32.mrf.mxu0
      %v1909 = vadd.f32 0.0, %v1908
      %v1910 = vpop.f32.mrf.mxu0
      %1911 = vmatprep.mubr.f32.mxu0 %v681
      %1912 = vmatmul.mubr.f32.gmra.mxu0 %v645
      %v1913 = vpop.f32.mrf.mxu0
      %v1914 = vadd.f32 0.0, %v1913
      %v1915 = vpop.f32.mrf.mxu0
      %1916 = vmatprep.mubr.f32.mxu0 %v682
      %1917 = vmatmul.mubr.f32.gmra.mxu0 %v646
      %v1918 = vpop.f32.mrf.mxu0
      %v1919 = vadd.f32 0.0, %v1918
      %v1920 = vpop.f32.mrf.mxu0
      %1921 = vmatprep.mubr.f32.mxu0 %v683
      %1922 = vmatmul.mubr.f32.gmra.mxu0 %v647
      %v1923 = vpop.f32.mrf.mxu0
      %v1924 = vadd.f32 0.0, %v1923
      %v1925 = vpop.f32.mrf.mxu0
      %1926 = vmatprep.mubr.f32.mxu0 %v684
      %1927 = vmatmul.mubr.f32.gmra.mxu0 %v648
      %v1928 = vpop.f32.mrf.mxu0
      %v1929 = vadd.f32 0.0, %v1928
      %v1930 = vpop.f32.mrf.mxu0
      %1931 = vmatprep.mubr.f32.mxu0 %v685
      %1932 = vmatmul.mubr.f32.gmra.mxu0 %v649
      %v1933 = vpop.f32.mrf.mxu0
      %v1934 = vadd.f32 0.0, %v1933
      %v1935 = vpop.f32.mrf.mxu0
      %1936 = vmatprep.mubr.f32.mxu0 %v686
      %1937 = vmatmul.mubr.f32.gmra.mxu0 %v650
      %v1938 = vpop.f32.mrf.mxu0
      %v1939 = vadd.f32 0.0, %v1938
      %v1940 = vpop.f32.mrf.mxu0
      %1941 = vmatprep.mubr.f32.mxu0 %v687
      %1942 = vmatmul.mubr.f32.gmra.mxu0 %v651
      %v1943 = vpop.f32.mrf.mxu0
      %v1944 = vadd.f32 0.0, %v1943
      %v1945 = vpop.f32.mrf.mxu0
      %1946 = vmatprep.mubr.f32.mxu0 %v688
      %1947 = vmatmul.mubr.f32.gmra.mxu0 %v652
      %v1948 = vpop.f32.mrf.mxu0
      %v1949 = vadd.f32 0.0, %v1948
      %v1950 = vpop.f32.mrf.mxu0
      %1951 = vmatprep.mubr.f32.mxu0 %v689
      %1952 = vmatmul.mubr.f32.gmra.mxu0 %v653
      %v1953 = vpop.f32.mrf.mxu0
      %v1954 = vadd.f32 0.0, %v1953
      %v1955 = vpop.f32.mrf.mxu0
      %1956 = vmatprep.mubr.f32.mxu0 %v690
      %1957 = vmatmul.mubr.f32.gmra.mxu0 %v654
      %v1958 = vpop.f32.mrf.mxu0
      %v1959 = vadd.f32 0.0, %v1958
      %v1960 = vpop.f32.mrf.mxu0
      %1961 = vmatprep.mubr.f32.mxu0 %v691
      %1962 = vmatmul.mubr.f32.gmra.mxu0 %v655
      %v1963 = vpop.f32.mrf.mxu0
      %v1964 = vadd.f32 0.0, %v1963
      %v1965 = vpop.f32.mrf.mxu0
      %1966 = vmatprep.mubr.f32.mxu0 %v692
      %1967 = vmatmul.mubr.f32.gmra.mxu0 %v656
      %v1968 = vpop.f32.mrf.mxu0
      %v1969 = vadd.f32 0.0, %v1968
      %v1970 = vpop.f32.mrf.mxu0
      %1971 = vmatprep.mubr.f32.mxu0 %v693
      %1972 = vmatmul.mubr.f32.gmra.mxu0 %v657
      %v1973 = vpop.f32.mrf.mxu0
      %v1974 = vadd.f32 0.0, %v1973
      %v1975 = vpop.f32.mrf.mxu0
      %1976 = vmatprep.mubr.f32.mxu0 %v694
      %1977 = vmatmul.mubr.f32.gmra.mxu0 %v658
      %v1978 = vpop.f32.mrf.mxu0
      %v1979 = vadd.f32 0.0, %v1978
      %v1980 = vpop.f32.mrf.mxu0
      %1981 = vmatprep.mubr.f32.mxu0 %v695
      %1982 = vmatmul.mubr.f32.gmra.mxu0 %v659
      %v1983 = vpop.f32.mrf.mxu0
      %v1984 = vadd.f32 0.0, %v1983
      %v1985 = vpop.f32.mrf.mxu0
      %1986 = vmatprep.mubr.f32.mxu0 %v696
      %1987 = vmatmul.mubr.f32.gmra.mxu0 %v660
      %v1988 = vpop.f32.mrf.mxu0
      %v1989 = vadd.f32 0.0, %v1988
      %v1990 = vpop.f32.mrf.mxu0
      %1991 = vmatprep.mubr.f32.mxu0 %v697
      %1992 = vmatmul.mubr.f32.gmra.mxu0 %v661
      %v1993 = vpop.f32.mrf.mxu0
      %v1994 = vadd.f32 0.0, %v1993
      %v1995 = vpop.f32.mrf.mxu0
      %1996 = vmatprep.mubr.f32.mxu0 %v698
      %1997 = vmatmul.mubr.f32.gmra.mxu0 %v662
      %v1998 = vpop.f32.mrf.mxu0
      %v1999 = vadd.f32 0.0, %v1998
      %v2000 = vpop.f32.mrf.mxu0
      %2001 = vmatprep.mubr.f32.mxu0 %v699
      %2002 = vmatmul.mubr.f32.gmra.mxu0 %v663
      %v2003 = vpop.f32.mrf.mxu0
      %v2004 = vadd.f32 0.0, %v2003
      %v2005 = vpop.f32.mrf.mxu0
      %2006 = vdwg.mxu0
      %2007 = vmatprep.subr.mxu0 0.0
      %2008 = vmatpush1.msra.mxu0 %v1781
      %2009 = vmatprep.subr.mxu0 0.0
      %2010 = vmatpush1.msra.mxu0 %v1780
      %2011 = vmatprep.subr.mxu0 0.0
      %2012 = vmatpush1.msra.mxu0 %v1779
      %2013 = vmatprep.subr.mxu0 0.0
      %2014 = vmatpush1.msra.mxu0 %v1778
      %2015 = vmatprep.subr.mxu0 0.0
      %2016 = vmatpush1.msra.mxu0 %v1777
      %2017 = vmatprep.subr.mxu0 0.0
      %2018 = vmatpush1.msra.mxu0 %v1776
      %2019 = vmatprep.subr.mxu0 0.0
      %2020 = vmatpush1.msra.mxu0 %v1775
      %2021 = vmatprep.subr.mxu0 0.0
      %2022 = vmatpush1.msra.mxu0 %v1774
      %2023 = vmatprep.subr.mxu0 0.0
      %2024 = vmatpush1.msra.mxu0 %v1773
      %2025 = vmatprep.subr.mxu0 0.0
      %2026 = vmatpush1.msra.mxu0 %v1772
      %2027 = vmatprep.subr.mxu0 0.0
      %2028 = vmatpush1.msra.mxu0 %v1771
      %2029 = vmatprep.subr.mxu0 0.0
      %2030 = vmatpush1.msra.mxu0 %v1770
      %2031 = vmatprep.subr.mxu0 0.0
      %2032 = vmatpush1.msra.mxu0 %v1769
      %2033 = vmatprep.subr.mxu0 0.0
      %2034 = vmatpush1.msra.mxu0 %v1768
      %2035 = vmatprep.subr.mxu0 0.0
      %2036 = vmatpush1.msra.mxu0 %v1767
      %2037 = vmatprep.subr.mxu0 0.0
      %2038 = vmatpush1.msra.mxu0 %v1766
      %2039 = vmatprep.subr.mxu0 0.0
      %2040 = vmatpush2.msra.mxu0 0.0
      %2041 = vmatprep.subr.mxu0 0.0
      %2042 = vmatpush2.msra.mxu0 0.0
      %2043 = vmatprep.subr.mxu0 0.0
      %2044 = vmatpush2.msra.mxu0 0.0
      %2045 = vmatprep.subr.mxu0 0.0
      %2046 = vmatpush2.msra.mxu0 0.0
      %2047 = vmatprep.subr.mxu0 0.0
      %2048 = vmatpush2.msra.mxu0 0.0
      %2049 = vmatprep.subr.mxu0 0.0
      %2050 = vmatpush2.msra.mxu0 0.0
      %2051 = vmatprep.subr.mxu0 0.0
      %2052 = vmatpush2.msra.mxu0 0.0
      %2053 = vmatprep.subr.mxu0 0.0
      %2054 = vmatpush2.msra.mxu0 0.0
      %2055 = vmatprep.subr.mxu0 0.0
      %2056 = vmatpush2.msra.mxu0 0.0
      %2057 = vmatprep.subr.mxu0 0.0
      %2058 = vmatpush2.msra.mxu0 0.0
      %2059 = vmatprep.subr.mxu0 0.0
      %2060 = vmatpush2.msra.mxu0 0.0
      %2061 = vmatprep.subr.mxu0 0.0
      %2062 = vmatpush2.msra.mxu0 0.0
      %2063 = vmatprep.subr.mxu0 0.0
      %2064 = vmatpush2.msra.mxu0 0.0
      %2065 = vmatprep.subr.mxu0 0.0
      %2066 = vmatpush2.msra.mxu0 0.0
      %2067 = vmatprep.subr.mxu0 0.0
      %2068 = vmatpush2.msra.mxu0 0.0
      %2069 = vmatprep.subr.mxu0 0.0
      %2070 = vmatpush2.msra.mxu0 0.0
      %2071 = vmatprep.mubr.f32.mxu0 0.0
      %2072 = vmatmul.mubr.f32.gmra.mxu0 %v704
      %v2073 = vpop.f32.mrf.mxu0
      %v2074 = vadd.f32 %v1849, %v2073
      %v2075 = vpop.f32.mrf.mxu0
      %2076 = vmatprep.mubr.f32.mxu0 0.0
      %2077 = vmatmul.mubr.f32.gmra.mxu0 %v705
      %v2078 = vpop.f32.mrf.mxu0
      %v2079 = vadd.f32 %v1854, %v2078
      %v2080 = vpop.f32.mrf.mxu0
      %2081 = vmatprep.mubr.f32.mxu0 0.0
      %2082 = vmatmul.mubr.f32.gmra.mxu0 %v706
      %v2083 = vpop.f32.mrf.mxu0
      %v2084 = vadd.f32 %v1859, %v2083
      %v2085 = vpop.f32.mrf.mxu0
      %2086 = vmatprep.mubr.f32.mxu0 0.0
      %2087 = vmatmul.mubr.f32.gmra.mxu0 %v707
      %v2088 = vpop.f32.mrf.mxu0
      %v2089 = vadd.f32 %v1864, %v2088
      %v2090 = vpop.f32.mrf.mxu0
      %2091 = vmatprep.mubr.f32.mxu0 0.0
      %2092 = vmatmul.mubr.f32.gmra.mxu0 %v708
      %v2093 = vpop.f32.mrf.mxu0
      %v2094 = vadd.f32 %v1869, %v2093
      %v2095 = vpop.f32.mrf.mxu0
      %2096 = vmatprep.mubr.f32.mxu0 0.0
      %2097 = vmatmul.mubr.f32.gmra.mxu0 %v709
      %v2098 = vpop.f32.mrf.mxu0
      %v2099 = vadd.f32 %v1874, %v2098
      %v2100 = vpop.f32.mrf.mxu0
      %2101 = vmatprep.mubr.f32.mxu0 0.0
      %2102 = vmatmul.mubr.f32.gmra.mxu0 %v710
      %v2103 = vpop.f32.mrf.mxu0
      %v2104 = vadd.f32 %v1879, %v2103
      %v2105 = vpop.f32.mrf.mxu0
      %2106 = vmatprep.mubr.f32.mxu0 0.0
      %2107 = vmatmul.mubr.f32.gmra.mxu0 %v711
      %v2108 = vpop.f32.mrf.mxu0
      %v2109 = vadd.f32 %v1884, %v2108
      %v2110 = vpop.f32.mrf.mxu0
      %2111 = vmatprep.mubr.f32.mxu0 0.0
      %2112 = vmatmul.mubr.f32.gmra.mxu0 %v712
      %v2113 = vpop.f32.mrf.mxu0
      %v2114 = vadd.f32 %v1889, %v2113
      %v2115 = vpop.f32.mrf.mxu0
      %2116 = vmatprep.mubr.f32.mxu0 0.0
      %2117 = vmatmul.mubr.f32.gmra.mxu0 %v713
      %v2118 = vpop.f32.mrf.mxu0
      %v2119 = vadd.f32 %v1894, %v2118
      %v2120 = vpop.f32.mrf.mxu0
      %2121 = vmatprep.mubr.f32.mxu0 0.0
      %2122 = vmatmul.mubr.f32.gmra.mxu0 %v714
      %v2123 = vpop.f32.mrf.mxu0
      %v2124 = vadd.f32 %v1899, %v2123
      %v2125 = vpop.f32.mrf.mxu0
      %2126 = vmatprep.mubr.f32.mxu0 0.0
      %2127 = vmatmul.mubr.f32.gmra.mxu0 %v715
      %v2128 = vpop.f32.mrf.mxu0
      %v2129 = vadd.f32 %v1904, %v2128
      %v2130 = vpop.f32.mrf.mxu0
      %2131 = vmatprep.mubr.f32.mxu0 0.0
      %2132 = vmatmul.mubr.f32.gmra.mxu0 %v716
      %v2133 = vpop.f32.mrf.mxu0
      %v2134 = vadd.f32 %v1909, %v2133
      %v2135 = vpop.f32.mrf.mxu0
      %2136 = vmatprep.mubr.f32.mxu0 0.0
      %2137 = vmatmul.mubr.f32.gmra.mxu0 %v717
      %v2138 = vpop.f32.mrf.mxu0
      %v2139 = vadd.f32 %v1914, %v2138
      %v2140 = vpop.f32.mrf.mxu0
      %2141 = vmatprep.mubr.f32.mxu0 0.0
      %2142 = vmatmul.mubr.f32.gmra.mxu0 %v718
      %v2143 = vpop.f32.mrf.mxu0
      %v2144 = vadd.f32 %v1919, %v2143
      %v2145 = vpop.f32.mrf.mxu0
      %2146 = vmatprep.mubr.f32.mxu0 0.0
      %2147 = vmatmul.mubr.f32.gmra.mxu0 %v719
      %v2148 = vpop.f32.mrf.mxu0
      %v2149 = vadd.f32 %v1924, %v2148
      %v2150 = vpop.f32.mrf.mxu0
      %2151 = vmatprep.mubr.f32.mxu0 0.0
      %2152 = vmatmul.mubr.f32.gmra.mxu0 %v720
      %v2153 = vpop.f32.mrf.mxu0
      %v2154 = vadd.f32 %v1929, %v2153
      %v2155 = vpop.f32.mrf.mxu0
      %2156 = vmatprep.mubr.f32.mxu0 0.0
      %2157 = vmatmul.mubr.f32.gmra.mxu0 %v721
      %v2158 = vpop.f32.mrf.mxu0
      %v2159 = vadd.f32 %v1934, %v2158
      %v2160 = vpop.f32.mrf.mxu0
      %2161 = vmatprep.mubr.f32.mxu0 0.0
      %2162 = vmatmul.mubr.f32.gmra.mxu0 %v722
      %v2163 = vpop.f32.mrf.mxu0
      %v2164 = vadd.f32 %v1939, %v2163
      %v2165 = vpop.f32.mrf.mxu0
      %2166 = vmatprep.mubr.f32.mxu0 0.0
      %2167 = vmatmul.mubr.f32.gmra.mxu0 %v723
      %v2168 = vpop.f32.mrf.mxu0
      %v2169 = vadd.f32 %v1944, %v2168
      %v2170 = vpop.f32.mrf.mxu0
      %2171 = vmatprep.mubr.f32.mxu0 0.0
      %2172 = vmatmul.mubr.f32.gmra.mxu0 %v724
      %v2173 = vpop.f32.mrf.mxu0
      %v2174 = vadd.f32 %v1949, %v2173
      %v2175 = vpop.f32.mrf.mxu0
      %2176 = vmatprep.mubr.f32.mxu0 0.0
      %2177 = vmatmul.mubr.f32.gmra.mxu0 %v725
      %v2178 = vpop.f32.mrf.mxu0
      %v2179 = vadd.f32 %v1954, %v2178
      %v2180 = vpop.f32.mrf.mxu0
      %2181 = vmatprep.mubr.f32.mxu0 0.0
      %2182 = vmatmul.mubr.f32.gmra.mxu0 %v726
      %v2183 = vpop.f32.mrf.mxu0
      %v2184 = vadd.f32 %v1959, %v2183
      %v2185 = vpop.f32.mrf.mxu0
      %2186 = vmatprep.mubr.f32.mxu0 0.0
      %2187 = vmatmul.mubr.f32.gmra.mxu0 %v727
      %v2188 = vpop.f32.mrf.mxu0
      %v2189 = vadd.f32 %v1964, %v2188
      %v2190 = vpop.f32.mrf.mxu0
      %2191 = vmatprep.mubr.f32.mxu0 0.0
      %2192 = vmatmul.mubr.f32.gmra.mxu0 %v728
      %v2193 = vpop.f32.mrf.mxu0
      %v2194 = vadd.f32 %v1969, %v2193
      %v2195 = vpop.f32.mrf.mxu0
      %2196 = vmatprep.mubr.f32.mxu0 0.0
      %2197 = vmatmul.mubr.f32.gmra.mxu0 %v729
      %v2198 = vpop.f32.mrf.mxu0
      %v2199 = vadd.f32 %v1974, %v2198
      %v2200 = vpop.f32.mrf.mxu0
      %2201 = vmatprep.mubr.f32.mxu0 0.0
      %2202 = vmatmul.mubr.f32.gmra.mxu0 %v730
      %v2203 = vpop.f32.mrf.mxu0
      %v2204 = vadd.f32 %v1979, %v2203
      %v2205 = vpop.f32.mrf.mxu0
      %2206 = vmatprep.mubr.f32.mxu0 0.0
      %2207 = vmatmul.mubr.f32.gmra.mxu0 %v731
      %v2208 = vpop.f32.mrf.mxu0
      %v2209 = vadd.f32 %v1984, %v2208
      %v2210 = vpop.f32.mrf.mxu0
      %2211 = vmatprep.mubr.f32.mxu0 0.0
      %2212 = vmatmul.mubr.f32.gmra.mxu0 %v732
      %v2213 = vpop.f32.mrf.mxu0
      %v2214 = vadd.f32 %v1989, %v2213
      %v2215 = vpop.f32.mrf.mxu0
      %2216 = vmatprep.mubr.f32.mxu0 0.0
      %2217 = vmatmul.mubr.f32.gmra.mxu0 %v733
      %v2218 = vpop.f32.mrf.mxu0
      %v2219 = vadd.f32 %v1994, %v2218
      %v2220 = vpop.f32.mrf.mxu0
      %2221 = vmatprep.mubr.f32.mxu0 0.0
      %2222 = vmatmul.mubr.f32.gmra.mxu0 %v734
      %v2223 = vpop.f32.mrf.mxu0
      %v2224 = vadd.f32 %v1999, %v2223
      %v2225 = vpop.f32.mrf.mxu0
      %2226 = vmatprep.mubr.f32.mxu0 0.0
      %2227 = vmatmul.mubr.f32.gmra.mxu0 %v735
      %v2228 = vpop.f32.mrf.mxu0
      %v2229 = vadd.f32 %v2004, %v2228
      %v2230 = vpop.f32.mrf.mxu0
      %2231 = vdwg.mxu0
      %v2232 = vadd.f32 %v1575, %v2074
      %v2233 = vadd.f32 %v1580, %v2079
      %v2234 = vadd.f32 %v1585, %v2084
      %v2235 = vadd.f32 %v1590, %v2089
      %v2236 = vadd.f32 %v1595, %v2094
      %v2237 = vadd.f32 %v1600, %v2099
      %v2238 = vadd.f32 %v1605, %v2104
      %v2239 = vadd.f32 %v1610, %v2109
      %v2240 = vadd.f32 %v1615, %v2114
      %v2241 = vadd.f32 %v1620, %v2119
      %v2242 = vadd.f32 %v1625, %v2124
      %v2243 = vadd.f32 %v1630, %v2129
      %v2244 = vadd.f32 %v1635, %v2134
      %v2245 = vadd.f32 %v1640, %v2139
      %v2246 = vadd.f32 %v1645, %v2144
      %v2247 = vadd.f32 %v1650, %v2149
      %v2248 = vadd.f32 %v1655, %v2154
      %v2249 = vadd.f32 %v1660, %v2159
      %v2250 = vadd.f32 %v1665, %v2164
      %v2251 = vadd.f32 %v1670, %v2169
      %v2252 = vadd.f32 %v1675, %v2174
      %v2253 = vadd.f32 %v1680, %v2179
      %v2254 = vadd.f32 %v1685, %v2184
      %v2255 = vadd.f32 %v1690, %v2189
      %v2256 = vadd.f32 %v1695, %v2194
      %v2257 = vadd.f32 %v1700, %v2199
      %v2258 = vadd.f32 %v1705, %v2204
      %v2259 = vadd.f32 %v1710, %v2209
      %v2260 = vadd.f32 %v1715, %v2214
      %v2261 = vadd.f32 %v1720, %v2219
      %v2262 = vadd.f32 %v1725, %v2224
      %v2263 = vadd.f32 %v1730, %v2229
      %2264 = vst [vmem:[%s262] sm:$0xff] %v2232
      %2265 = vst [vmem:[%s262 + $0x8] sm:$0xff] %v2233
      %2266 = vst [vmem:[%s262 + $0x10] sm:$0xff] %v2234
      %2267 = vst [vmem:[%s262 + $0x18] sm:$0xff] %v2235
      %2268 = vst [vmem:[%s262 + $0x20] sm:$0xff] %v2236
      %2269 = vst [vmem:[%s262 + $0x28] sm:$0xff] %v2237
      %2270 = vst [vmem:[%s262 + $0x30] sm:$0xff] %v2238
      %2271 = vst [vmem:[%s262 + $0x38] sm:$0xff] %v2239
      %2272 = vst [vmem:[%s262 + $0x40] sm:$0xff] %v2240
      %2273 = vst [vmem:[%s262 + $0x48] sm:$0xff] %v2241
      %2274 = vst [vmem:[%s262 + $0x50] sm:$0xff] %v2242
      %2275 = vst [vmem:[%s262 + $0x58] sm:$0xff] %v2243
      %2276 = vst [vmem:[%s262 + $0x60] sm:$0xff] %v2244
      %2277 = vst [vmem:[%s262 + $0x68] sm:$0xff] %v2245
      %2278 = vst [vmem:[%s262 + $0x70] sm:$0xff] %v2246
      %2279 = vst [vmem:[%s262 + $0x78] sm:$0xff] %v2247
      %2280 = vst [vmem:[%s262 + $0x80] sm:$0xff] %v2248
      %2281 = vst [vmem:[%s262 + $0x88] sm:$0xff] %v2249
      %2282 = vst [vmem:[%s262 + $0x90] sm:$0xff] %v2250
      %2283 = vst [vmem:[%s262 + $0x98] sm:$0xff] %v2251
      %2284 = vst [vmem:[%s262 + $0xa0] sm:$0xff] %v2252
      %2285 = vst [vmem:[%s262 + $0xa8] sm:$0xff] %v2253
      %2286 = vst [vmem:[%s262 + $0xb0] sm:$0xff] %v2254
      %2287 = vst [vmem:[%s262 + $0xb8] sm:$0xff] %v2255
      %2288 = vst [vmem:[%s262 + $0xc0] sm:$0xff] %v2256
      %2289 = vst [vmem:[%s262 + $0xc8] sm:$0xff] %v2257
      %2290 = vst [vmem:[%s262 + $0xd0] sm:$0xff] %v2258
      %2291 = vst [vmem:[%s262 + $0xd8] sm:$0xff] %v2259
      %2292 = vst [vmem:[%s262 + $0xe0] sm:$0xff] %v2260
      %2293 = vst [vmem:[%s262 + $0xe8] sm:$0xff] %v2261
      %2294 = vst [vmem:[%s262 + $0xf0] sm:$0xff] %v2262
      %2295 = vst [vmem:[%s262 + $0xf8] sm:$0xff] %v2263
      %v2296 = vadd.f32 %v2232, %v2233
      %v2297 = vadd.f32 %v2296, %v2234
      %v2298 = vadd.f32 %v2297, %v2235
      %v2299 = vadd.f32 %v2298, %v2236
      %v2300 = vadd.f32 %v2299, %v2237
      %v2301 = vadd.f32 %v2300, %v2238
      %v2302 = vadd.f32 %v2301, %v2239
      %v2303 = vadd.f32 %v2302, %v2240
      %v2304 = vadd.f32 %v2303, %v2241
      %v2305 = vadd.f32 %v2304, %v2242
      %v2306 = vadd.f32 %v2305, %v2243
      %v2307 = vadd.f32 %v2306, %v2244
      %v2308 = vadd.f32 %v2307, %v2245
      %v2309 = vadd.f32 %v2308, %v2246
      %v2310 = vadd.f32 %v2309, %v2247
      %v2311 = vadd.f32 %v2310, %v2248
      %v2312 = vadd.f32 %v2311, %v2249
      %v2313 = vadd.f32 %v2312, %v2250
      %v2314 = vadd.f32 %v2313, %v2251
      %v2315 = vadd.f32 %v2314, %v2252
      %v2316 = vadd.f32 %v2315, %v2253
      %v2317 = vadd.f32 %v2316, %v2254
      %v2318 = vadd.f32 %v2317, %v2255
      %v2319 = vadd.f32 %v2318, %v2256
      %v2320 = vadd.f32 %v2319, %v2257
      %v2321 = vadd.f32 %v2320, %v2258
      %v2322 = vadd.f32 %v2321, %v2259
      %v2323 = vadd.f32 %v2322, %v2260
      %v2324 = vadd.f32 %v2323, %v2261
      %v2325 = vadd.f32 %v2324, %v2262
      %v2326 = vadd.f32 %v2325, %v2263
      %v2327 = vrot.slane %v2326, 4
      %v2328 = vadd.f32 %v2326, %v2327
      %v2329 = vrot.slane %v2328, 2
      %v2330 = vadd.f32 %v2328, %v2329
      %v2331 = vrot.slane %v2330, 1
      %v2332 = vadd.f32 %v2330, %v2331
      %2333 = vst [vmem:[%s265] sm:$0x1] %v2332
      %v2334 = vmul.f32 %v2232, %v2232
      %v2335 = vmul.f32 %v2233, %v2233
      %v2336 = vmul.f32 %v2234, %v2234
      %v2337 = vmul.f32 %v2235, %v2235
      %v2338 = vmul.f32 %v2236, %v2236
      %v2339 = vmul.f32 %v2237, %v2237
      %v2340 = vmul.f32 %v2238, %v2238
      %v2341 = vmul.f32 %v2239, %v2239
      %v2342 = vmul.f32 %v2240, %v2240
      %v2343 = vmul.f32 %v2241, %v2241
      %v2344 = vmul.f32 %v2242, %v2242
      %v2345 = vmul.f32 %v2243, %v2243
      %v2346 = vmul.f32 %v2244, %v2244
      %v2347 = vmul.f32 %v2245, %v2245
      %v2348 = vmul.f32 %v2246, %v2246
      %v2349 = vmul.f32 %v2247, %v2247
      %v2350 = vmul.f32 %v2248, %v2248
      %v2351 = vmul.f32 %v2249, %v2249
      %v2352 = vmul.f32 %v2250, %v2250
      %v2353 = vmul.f32 %v2251, %v2251
      %v2354 = vmul.f32 %v2252, %v2252
      %v2355 = vmul.f32 %v2253, %v2253
      %v2356 = vmul.f32 %v2254, %v2254
      %v2357 = vmul.f32 %v2255, %v2255
      %v2358 = vmul.f32 %v2256, %v2256
      %v2359 = vmul.f32 %v2257, %v2257
      %v2360 = vmul.f32 %v2258, %v2258
      %v2361 = vmul.f32 %v2259, %v2259
      %v2362 = vmul.f32 %v2260, %v2260
      %v2363 = vmul.f32 %v2261, %v2261
      %v2364 = vmul.f32 %v2262, %v2262
      %v2365 = vmul.f32 %v2263, %v2263
      %v2366 = vadd.f32 %v2334, %v2335
      %v2367 = vadd.f32 %v2366, %v2336
      %v2368 = vadd.f32 %v2367, %v2337
      %v2369 = vadd.f32 %v2368, %v2338
      %v2370 = vadd.f32 %v2369, %v2339
      %v2371 = vadd.f32 %v2370, %v2340
      %v2372 = vadd.f32 %v2371, %v2341
      %v2373 = vadd.f32 %v2372, %v2342
      %v2374 = vadd.f32 %v2373, %v2343
      %v2375 = vadd.f32 %v2374, %v2344
      %v2376 = vadd.f32 %v2375, %v2345
      %v2377 = vadd.f32 %v2376, %v2346
      %v2378 = vadd.f32 %v2377, %v2347
      %v2379 = vadd.f32 %v2378, %v2348
      %v2380 = vadd.f32 %v2379, %v2349
      %v2381 = vadd.f32 %v2380, %v2350
      %v2382 = vadd.f32 %v2381, %v2351
      %v2383 = vadd.f32 %v2382, %v2352
      %v2384 = vadd.f32 %v2383, %v2353
      %v2385 = vadd.f32 %v2384, %v2354
      %v2386 = vadd.f32 %v2385, %v2355
      %v2387 = vadd.f32 %v2386, %v2356
      %v2388 = vadd.f32 %v2387, %v2357
      %v2389 = vadd.f32 %v2388, %v2358
      %v2390 = vadd.f32 %v2389, %v2359
      %v2391 = vadd.f32 %v2390, %v2360
      %v2392 = vadd.f32 %v2391, %v2361
      %v2393 = vadd.f32 %v2392, %v2362
      %v2394 = vadd.f32 %v2393, %v2363
      %v2395 = vadd.f32 %v2394, %v2364
      %v2396 = vadd.f32 %v2395, %v2365
      %v2397 = vrot.slane %v2396, 4
      %v2398 = vadd.f32 %v2396, %v2397
      %v2399 = vrot.slane %v2398, 2
      %v2400 = vadd.f32 %v2398, %v2399
      %v2401 = vrot.slane %v2400, 1
      %v2402 = vadd.f32 %v2400, %v2401
      %2403 = vst [vmem:[%s268] sm:$0x1] %v2402
      %p2404 = scmp.lt.s32.totalorder %s18, 1
      %s2405 = scalar_select %p2404, %s18, 1
      %s2406 = smul.addr %s2405, 32
      %s2407 = smul.addr %s2406, 8
      %s2408 = scalar_lea.vmem %s4, %s2407
      %p2409 = scmp.lt.s32.totalorder %s18, 1
      %s2410 = scalar_select %p2409, %s18, 1
      %s2411 = scalar_lea.vmem %s5, %s2410
      %p2412 = scmp.lt.s32.totalorder %s18, 1
      %s2413 = scalar_select %p2412, %s18, 1
      %s2414 = scalar_lea.vmem %s6, %s2413
      // Predicated region
      $region37: #{residual_double_conv.4} parent=35 // pred_check
        %p2415 = pneg %p125
      $region38: #{residual_double_conv.4} parent=35 // pred_check_branch
        %2417 = sbr.rel (%p2415) target = $region40
      $region39: #{residual_double_conv.4} parent=35 // pred_region
        _
      $region40: #{residual_double_conv.4} parent=35 // pred_fallthru
        _
      // Predicated region
      $region41: #{residual_double_conv.4} parent=35 // pred_check
        %p2418 = pneg %p151
      $region42: #{residual_double_conv.4} parent=35 // pred_check_branch
        %2420 = sbr.rel (%p2418) target = $region44
      $region43: #{residual_double_conv.4} parent=35 // pred_region
        _
      $region44: #{residual_double_conv.4} parent=35 // pred_fallthru
        _
      // Predicated region
      $region45: #{residual_double_conv.4} parent=35 // pred_check
        %p2421 = pneg %p177
      $region46: #{residual_double_conv.4} parent=35 // pred_check_branch
        %2423 = sbr.rel (%p2421) target = $region48
      $region47: #{residual_double_conv.4} parent=35 // pred_region
        _
      $region48: #{residual_double_conv.4} parent=35 // pred_fallthru
        _
    $region36: #{residual_double_conv.4} parent=5 // pred_fallthru
      _
    %p2424 = scmp.le.s32.totalorder 2, %s13
    // Predicated region
    $region49: #{residual_double_conv.4} parent=5 // pred_check
      %p2425 = pneg %p2424
    $region50: #{residual_double_conv.4} parent=5 // pred_check_branch
      %2427 = sbr.rel (%p2425) target = $region52
    $region51: #{residual_double_conv.4} parent=5 // pred_region
      %s2428 = ssub.s32 %s13, 2
      // Predicated region
      $region53: #{residual_double_conv.4} parent=51 // pred_check
        %p2429 = pneg %p131
      $region54: #{residual_double_conv.4} parent=51 // pred_check_branch
        %2431 = sbr.rel (%p2429) target = $region56
      $region55: #{residual_double_conv.4} parent=51 // pred_region
        %p2432 = scmp.lt.s32.totalorder %s19, 1
        %s2433 = scalar_select %p2432, %s19, 1
        %s2434 = smul.addr %s2433, 32
        %s2435 = smul.addr %s2434, 8
        %s2436 = scalar_lea.vmem %s4, %s2435
      $region56: #{residual_double_conv.4} parent=51 // pred_fallthru
        _
      // Predicated region
      $region57: #{residual_double_conv.4} parent=51 // pred_check
        %p2437 = pneg %p157
      $region58: #{residual_double_conv.4} parent=51 // pred_check_branch
        %2439 = sbr.rel (%p2437) target = $region60
      $region59: #{residual_double_conv.4} parent=51 // pred_region
        %p2440 = scmp.lt.s32.totalorder %s19, 1
        %s2441 = scalar_select %p2440, %s19, 1
        %s2442 = scalar_lea.vmem %s5, %s2441
      $region60: #{residual_double_conv.4} parent=51 // pred_fallthru
        _
      // Predicated region
      $region61: #{residual_double_conv.4} parent=51 // pred_check
        %p2443 = pneg %p183
      $region62: #{residual_double_conv.4} parent=51 // pred_check_branch
        %2445 = sbr.rel (%p2443) target = $region64
      $region63: #{residual_double_conv.4} parent=51 // pred_region
        %p2446 = scmp.lt.s32.totalorder %s19, 1
        %s2447 = scalar_select %p2446, %s19, 1
        %s2448 = scalar_lea.vmem %s6, %s2447
      $region64: #{residual_double_conv.4} parent=51 // pred_fallthru
        _
    $region52: #{residual_double_conv.4} parent=5 // pred_fallthru
      _
  $region6: #{residual_double_conv.4} parent=0 // loop_footer
    %s17 = sadd.s32 1, %s13
  $region7: #{residual_double_conv.4} parent=0 // loop_footer_branch
    %12 = sbr.rel target = $region3
  $region8: #{residual_double_conv.4} parent=0 // loop_exit
    _

</llo_original>
